<compile_context>
chip_gen: v7x
topology: tpu7x:2x2x1
jax: 0.10.0
libtpu: 0.0.40
codegen_flags: <defaults>
</compile_context>

<pallas_src>
import functools

import jax
import jax.numpy as jnp
from jax.experimental import pallas as pl
from jax.experimental.pallas import tpu as pltpu

KSIZE = 4
BN_EPS = 1e-5
TM_MAX = 512          # rows per M tile
LATENT = 192          # true latent channels
LATENT_PAD = 256      # each latent half padded to a lane-aligned width


def _round_up(x, m):
    return (x + m - 1) // m * m


# ----------------------------------------------------------------------------
# Fused layer kernel: matmul + bias + activation + (training-mode) BatchNorm
# (+ optional reparametrization epilogue for the merged mu|logvar layer).
# Grid = (pass, phase, m_tile).
# ----------------------------------------------------------------------------
def _layer_kernel(*refs, act, bn_mode, reparam, m_true, bn_count, tm, half):
    if reparam:
        a_ref, b_ref, pgb_ref, eps_ref, y_ref, z_ref = refs[:6]
        rest = refs[6:]
    else:
        a_ref, b_ref, pgb_ref, y_ref = refs[:4]
        rest = refs[4:]

    p = pl.program_id(0)      # pass index (0 or 1)
    ph = pl.program_id(1)     # phase index (deconv sub-pixel phase)
    i = pl.program_id(2)      # M tile index

    # bf16 x bf16 -> f32 accumulation on the MXU; epilogue stays f32.
    x = jnp.dot(a_ref[0], b_ref[0], preferred_element_type=jnp.float32)
    x = x + pgb_ref[0:1, :]                      # bias row broadcast
    if act == "relu":
        x = jnp.maximum(x, 0.0)
    elif act == "tanh":
        x = jnp.tanh(x)

    def finalize(y):
        if reparam:
            mu = y[:, :half]                     # 128-aligned slices
            logvar = y[:, half:]
            z_ref[...] = eps_ref[...] * jnp.exp(0.5 * logvar) + mu
        y_ref[0] = y

    if bn_mode == "none":
        finalize(x)
        return

    # Mask rows that only exist because M was padded up to the tile size.
    rows = i * tm + jax.lax.broadcasted_iota(jnp.int32, (tm, 1), 0)
    xm = jnp.where(rows < m_true, x, 0.0)
    inv_n = 1.0 / float(bn_count)

    if bn_mode == "local":
        # Whole layer lives in this single block: exact stats in one pass.
        mean = jnp.sum(xm, axis=0, keepdims=True) * inv_n
        var = jnp.sum(xm * xm, axis=0, keepdims=True) * inv_n - mean * mean
        y = (x - mean) * jax.lax.rsqrt(var + BN_EPS)
        finalize(y * pgb_ref[1:2, :] + pgb_ref[2:3, :])
        return

    # bn_mode == "twopass": pass 0 accumulates stats over ALL phases/tiles,
    # pass 1 recomputes the matmul and normalizes with the full-batch stats.
    sum_ref, sq_ref = rest

    @pl.when((p == 0) & (ph == 0) & (i == 0))
    def _():
        sum_ref[...] = jnp.zeros_like(sum_ref)
        sq_ref[...] = jnp.zeros_like(sq_ref)

    @pl.when(p == 0)
    def _():
        sum_ref[...] += jnp.sum(xm, axis=0, keepdims=True)
        sq_ref[...] += jnp.sum(xm * xm, axis=0, keepdims=True)

    @pl.when(p == 1)
    def _():
        mean = sum_ref[...] * inv_n
        var = sq_ref[...] * inv_n - mean * mean
        y = (x - mean) * jax.lax.rsqrt(var + BN_EPS)
        finalize(y * pgb_ref[1:2, :] + pgb_ref[2:3, :])


def fused_layer(a_phases, b_phases, pgb, *, act, use_bn, eps=None, half=0):
    """a_phases: (P, M, K)  b_phases: (P, K, N)  pgb: (3|1, N) f32.

    Returns y: (P, M, N) f32 (post act/BN); if eps is given also returns
    z: (M, half) f32 = eps*exp(0.5*logvar)+mu from the two output halves.
    """
    P, m_true, K = a_phases.shape
    n_out = b_phases.shape[-1]
    reparam = eps is not None

    tm = TM_MAX if m_true >= TM_MAX else _round_up(m_true, 8)
    m_pad = _round_up(m_true, tm)
    m_tiles = m_pad // tm

    a_phases = a_phases.astype(jnp.bfloat16)
    b_phases = b_phases.astype(jnp.bfloat16)
    if m_pad != m_true:
        a_phases = jnp.pad(a_phases, ((0, 0), (0, m_pad - m_true), (0, 0)))
        if reparam:
            eps = jnp.pad(eps, ((0, m_pad - m_true), (0, 0)))

    if not use_bn:
        bn_mode, passes = "none", 1
    elif P == 1 and m_tiles == 1:
        bn_mode, passes = "local", 1
    else:
        bn_mode, passes = "twopass", 2

    grid = (passes, P, m_tiles)
    kernel = functools.partial(
        _layer_kernel, act=act, bn_mode=bn_mode, reparam=reparam,
        m_true=m_true, bn_count=P * m_true, tm=tm, half=half)

    in_specs = [
        pl.BlockSpec((1, tm, K), lambda p, ph, i: (ph, i, 0)),
        pl.BlockSpec((1, K, n_out), lambda p, ph, i: (ph, 0, 0)),
        pl.BlockSpec(pgb.shape, lambda p, ph, i: (0, 0)),
    ]
    inputs = [a_phases, b_phases, pgb]
    if reparam:
        in_specs.append(pl.BlockSpec((tm, half), lambda p, ph, i: (i, 0)))
        inputs.append(eps)
        out_shape = (jax.ShapeDtypeStruct((P, m_pad, n_out), jnp.float32),
                     jax.ShapeDtypeStruct((m_pad, half), jnp.float32))
        out_specs = (pl.BlockSpec((1, tm, n_out), lambda p, ph, i: (ph, i, 0)),
                     pl.BlockSpec((tm, half), lambda p, ph, i: (i, 0)))
    else:
        out_shape = jax.ShapeDtypeStruct((P, m_pad, n_out), jnp.float32)
        out_specs = pl.BlockSpec((1, tm, n_out), lambda p, ph, i: (ph, i, 0))

    scratch = ([pltpu.VMEM((1, n_out), jnp.float32),
                pltpu.VMEM((1, n_out), jnp.float32)]
               if bn_mode == "twopass" else [])

    if bn_mode == "twopass":
        sem = ("arbitrary", "arbitrary", "arbitrary")
    else:
        sem = ("arbitrary", "parallel", "parallel")

    flops = 2 * passes * P * m_pad * K * n_out
    trans = (P * m_pad * n_out if act == "tanh" else 0) + \
            (m_pad * half if reparam else 0)
    bytes_accessed = (passes * a_phases.size * 2 + passes * b_phases.size * 2
                      + P * m_pad * n_out * 4)

    result = pl.pallas_call(
        kernel,
        grid=grid,
        in_specs=in_specs,
        out_specs=out_specs,
        out_shape=out_shape,
        scratch_shapes=scratch,
        compiler_params=pltpu.CompilerParams(dimension_semantics=sem),
        cost_estimate=pl.CostEstimate(flops=int(flops),
                                      transcendentals=int(trans),
                                      bytes_accessed=int(bytes_accessed)),
    )(*inputs)

    if reparam:
        y, z = result
        return y[:, :m_true, :], z[:m_true, :]
    return result[:, :m_true, :]


# ----------------------------------------------------------------------------
# im2col glue (plain JAX) + layer wrappers
# ----------------------------------------------------------------------------
def _im2col_conv(x, stride=2, pad=1):
    """x: (N,H,W,C) -> (N*OH*OW, 16*C) with patch order (kh, kw, c)."""
    n, h, w, c = x.shape
    oh = (h + 2 * pad - KSIZE) // stride + 1
    ow = (w + 2 * pad - KSIZE) // stride + 1
    xp = jnp.pad(x, ((0, 0), (pad, pad), (pad, pad), (0, 0)))
    cols = []
    for kh in range(KSIZE):
        for kw in range(KSIZE):
            cols.append(xp[:, kh:kh + stride * oh:stride,
                           kw:kw + stride * ow:stride, :])
    patches = jnp.stack(cols, axis=3)                 # (N, OH, OW, 16, C)
    return patches.reshape(n * oh * ow, KSIZE * KSIZE * c), (n, oh, ow)


# ConvTranspose2d(k=4,s=2,p=1): output phase ph uses 2 kernel taps per axis.
# Entries are (row_start_in_1-padded_input, kernel_tap_index).
_DECONV_TAPS = (
    ((1, 1), (0, 3)),    # even output rows/cols
    ((2, 0), (1, 2)),    # odd  output rows/cols
)


def _deconv_phase_patches(xp, ph_h, ph_w, n, h, w, c):
    cols = []
    for sh, _ in _DECONV_TAPS[ph_h]:
        for sw, _ in _DECONV_TAPS[ph_w]:
            cols.append(xp[:, sh:sh + h, sw:sw + w, :])
    patches = jnp.stack(cols, axis=3)                 # (N, H, W, 4, C)
    return patches.reshape(n * h * w, 4 * c)


def _deconv_phase_wmat(wt, ph_h, ph_w):
    """wt: PyTorch ConvTranspose2d weight (Cin, Cout, 4, 4) -> (4*Cin, Cout)."""
    khs = [k for _, k in _DECONV_TAPS[ph_h]]
    kws = [k for _, k in _DECONV_TAPS[ph_w]]
    cin, cout = wt.shape[0], wt.shape[1]
    sub = wt[:, :, khs, :][:, :, :, kws]              # (Cin, Cout, 2, 2)
    sub = jnp.transpose(sub, (2, 3, 0, 1))            # (th, tw, Cin, Cout)
    return sub.reshape(4 * cin, cout)


def conv_layer(x, layer, *, act, use_bn):
    w_mat, pgb = layer
    a, (n, oh, ow) = _im2col_conv(x.astype(jnp.bfloat16))
    y = fused_layer(a[None], w_mat[None], pgb, act=act, use_bn=use_bn)
    return y[0].reshape(n, oh, ow, w_mat.shape[-1])


def deconv_layer(x, layer, *, act, use_bn):
    w_phases, pgb = layer                             # (4, 4*Cin, Cout)
    x = x.astype(jnp.bfloat16)
    n, h, w, _ = x.shape
    c = x.shape[-1]
    xp = jnp.pad(x, ((0, 0), (1, 1), (1, 1), (0, 0)))
    a_phases = jnp.stack(
        [_deconv_phase_patches(xp, ph_h, ph_w, n, h, w, c)
         for ph_h in (0, 1) for ph_w in (0, 1)], axis=0)   # (4, N*H*W, 4*Cin)
    y = fused_layer(a_phases, w_phases, pgb, act=act, use_bn=use_bn)
    cout = w_phases.shape[-1]
    y = y.reshape(2, 2, n, h, w, cout)
    y = jnp.transpose(y, (2, 3, 0, 4, 1, 5)).reshape(n, 2 * h, 2 * w, cout)
    return y


def latent_layer(h, layer, eps_key):
    """Merged mu|logvar conv (+ReLU+BN) with fused reparametrization."""
    w_mat, pgb = layer                                # (16*96, 512), (3, 512)
    a, (n, oh, ow) = _im2col_conv(h.astype(jnp.bfloat16))
    m = a.shape[0]
    eps = jax.random.normal(eps_key, (m, LATENT_PAD), jnp.float32)
    y, z = fused_layer(a[None], w_mat[None], pgb, act="relu", use_bn=True,
                       eps=eps, half=LATENT_PAD)
    y = y[0].reshape(n, oh, ow, 2 * LATENT_PAD)
    mu = y[..., :LATENT]
    logvar = y[..., LATENT_PAD:LATENT_PAD + LATENT]
    z = z[:, :LATENT].reshape(n, oh, ow, LATENT)
    return mu, logvar, z


# ----------------------------------------------------------------------------
# Deterministic parameter construction (synthetic weights, PyTorch layouts)
# ----------------------------------------------------------------------------
def _pack_pgb(bias, cout, use_bn):
    if use_bn:
        return jnp.stack([bias, jnp.ones((cout,), jnp.float32),
                          jnp.zeros((cout,), jnp.float32)], axis=0)
    return bias[None, :]


def _conv_params(key, cin, cout, use_bn=True):
    kw_, kb_ = jax.random.split(key)
    w = jax.random.normal(kw_, (cout, cin, KSIZE, KSIZE), jnp.float32) * 0.05
    # (Cout, Cin, kh, kw) -> (kh, kw, Cin, Cout) -> (16*Cin, Cout), stored bf16
    w_mat = jnp.transpose(w, (2, 3, 1, 0)).reshape(
        KSIZE * KSIZE * cin, cout).astype(jnp.bfloat16)
    bias = jax.random.normal(kb_, (cout,), jnp.float32) * 0.01
    return w_mat, _pack_pgb(bias, cout, use_bn)


def _deconv_params(key, cin, cout, use_bn=True):
    kw_, kb_ = jax.random.split(key)
    wt = jax.random.normal(kw_, (cin, cout, KSIZE, KSIZE), jnp.float32) * 0.05
    w_phases = jnp.stack(
        [_deconv_phase_wmat(wt, ph_h, ph_w)
         for ph_h in (0, 1) for ph_w in (0, 1)], axis=0).astype(jnp.bfloat16)
    bias = jax.random.normal(kb_, (cout,), jnp.float32) * 0.01
    return w_phases, _pack_pgb(bias, cout, use_bn)


def _latent_params(kmu, klv, cin, latent):
    wmu, pmu = _conv_params(kmu, cin, latent, use_bn=True)
    wlv, plv = _conv_params(klv, cin, latent, use_bn=True)
    padc = LATENT_PAD - latent
    padw = lambda w: jnp.pad(w, ((0, 0), (0, padc)))
    w = jnp.concatenate([padw(wmu), padw(wlv)], axis=1)        # (K, 512) bf16
    ext = jnp.zeros((3, padc), jnp.float32).at[1, :].set(1.0)  # gamma pad = 1
    padp = lambda p: jnp.concatenate([p, ext], axis=1)
    pgb = jnp.concatenate([padp(pmu), padp(plv)], axis=1)      # (3, 512)
    return w, pgb


def init_params(key):
    keys = jax.random.split(key, 11)
    return {
        "e1": _conv_params(keys[0], 3, 12, use_bn=True),
        "e2": _conv_params(keys[1], 12, 24, use_bn=False),
        "e3": _conv_params(keys[2], 24, 48, use_bn=True),
        "e4": _conv_params(keys[3], 48, 96, use_bn=True),
        "latent": _latent_params(keys[4], keys[5], 96, LATENT),
        "d1": _deconv_params(keys[6], 192, 96, use_bn=True),
        "d2": _deconv_params(keys[7], 96, 48, use_bn=True),
        "d3": _deconv_params(keys[8], 48, 24, use_bn=True),
        "d4": _deconv_params(keys[9], 24, 12, use_bn=True),
        "d5": _deconv_params(keys[10], 12, 3, use_bn=False),
    }


# ----------------------------------------------------------------------------
# VAE forward
# ----------------------------------------------------------------------------
def vae_forward(params, x_nchw, eps_key):
    x = jnp.transpose(x_nchw, (0, 2, 3, 1))            # NCHW -> NHWC

    # encoder: Conv+ReLU+BN, Conv+ReLU, Conv+ReLU+BN, Conv+ReLU+BN
    h = conv_layer(x, params["e1"], act="relu", use_bn=True)
    h = conv_layer(h, params["e2"], act="relu", use_bn=False)
    h = conv_layer(h, params["e3"], act="relu", use_bn=True)
    h = conv_layer(h, params["e4"], act="relu", use_bn=True)

    # merged mu|logvar conv (+ReLU+BN) with fused reparametrization
    mu, logvar, z = latent_layer(h, params["latent"], eps_key)

    # decoder: 4x (ConvT+ReLU+BN) then ConvT+Tanh  (phase-decomposed deconvs)
    d = deconv_layer(z, params["d1"], act="relu", use_bn=True)
    d = deconv_layer(d, params["d2"], act="relu", use_bn=True)
    d = deconv_layer(d, params["d3"], act="relu", use_bn=True)
    d = deconv_layer(d, params["d4"], act="relu", use_bn=True)
    recon = deconv_layer(d, params["d5"], act="tanh", use_bn=False)

    to_nchw = lambda t: jnp.transpose(t, (0, 3, 1, 2))
    return to_nchw(recon), to_nchw(mu), to_nchw(logvar)


if __name__ == "__main__":
    key = jax.random.PRNGKey(0)
    k_params, k_x, k_eps = jax.random.split(key, 3)

    params = init_params(k_params)
    # spatial must be divisible by 2**5 = 32 (5 stride-2 downsamples)
    x = jax.random.normal(k_x, (2, 3, 32, 32), jnp.float32)

    recon, mu, logvar = jax.jit(vae_forward)(params, x, k_eps)
    jax.block_until_ready((recon, mu, logvar))

    assert recon.shape == (2, 3, 32, 32), recon.shape
    assert mu.shape == (2, 192, 1, 1), mu.shape
    assert logvar.shape == (2, 192, 1, 1), logvar.shape
    assert bool(jnp.all(jnp.isfinite(recon)))
    assert bool(jnp.all(jnp.isfinite(mu)))
    assert bool(jnp.all(jnp.isfinite(logvar)))
    print("KERNEL_OK")
</pallas_src>

<mosaic_0001>
module attributes {stable_mosaic.version = 11 : i64} {
  func.func @_layer_kernel(%arg0: i32, %arg1: i32, %arg2: i32, %arg3: memref<1x512x48xbf16, #tpu.memory_space<vmem>>, %arg4: memref<1x48x12xbf16, #tpu.memory_space<vmem>>, %arg5: memref<3x12xf32, #tpu.memory_space<vmem>>, %arg6: memref<1x512x12xf32, #tpu.memory_space<vmem>>) attributes {dimension_semantics = [#tpu.dimension_semantics<arbitrary>, #tpu.dimension_semantics<parallel>, #tpu.dimension_semantics<parallel>], iteration_bounds = array<i64: 1, 1, 1>, scalar_prefetch = 0 : i64, scratch_operands = 0 : i64, tpu.core_type = #tpu.core_type<tc>, window_params = [{transform_indices = @transform_0, window_bounds = array<i64: 1, 512, 48>}, {transform_indices = @transform_1, window_bounds = array<i64: 1, 48, 12>}, {pipeline_mode = #tpu.pipeline_mode<synchronous>, transform_indices = @transform_2, window_bounds = array<i64: 3, 12>}, {transform_indices = @transform_3, window_bounds = array<i64: 1, 512, 12>}]} {
    %c0 = arith.constant 0 : index
    %c0_0 = arith.constant 0 : index
    %c0_1 = arith.constant 0 : index
    %0 = vector.load %arg3[%c0, %c0_0, %c0_1] : memref<1x512x48xbf16, #tpu.memory_space<vmem>>, vector<1x512x48xbf16>
    %1 = vector.shape_cast %0 : vector<1x512x48xbf16> to vector<512x48xbf16>
    %c0_2 = arith.constant 0 : index
    %c0_3 = arith.constant 0 : index
    %c0_4 = arith.constant 0 : index
    %2 = vector.load %arg4[%c0_2, %c0_3, %c0_4] : memref<1x48x12xbf16, #tpu.memory_space<vmem>>, vector<1x48x12xbf16>
    %3 = vector.shape_cast %2 : vector<1x48x12xbf16> to vector<48x12xbf16>
    %cst = arith.constant dense<0.000000e+00> : vector<512x12xf32>
    %4 = tpu.matmul %1, %3, %cst {dimension_numbers = #tpu.dot_dimension_numbers<[1], [0], [0], [1], [0, 0, 1, 1], [], []>} : vector<512x48xbf16>, vector<48x12xbf16>, vector<512x12xf32> -> vector<512x12xf32>
    %c0_5 = arith.constant 0 : index
    %c0_6 = arith.constant 0 : index
    %5 = vector.load %arg5[%c0_5, %c0_6] : memref<3x12xf32, #tpu.memory_space<vmem>>, vector<1x12xf32>
    %6 = vector.broadcast %5 : vector<1x12xf32> to vector<512x12xf32>
    %7 = arith.addf %4, %6 : vector<512x12xf32>
    %cst_7 = arith.constant 0.000000e+00 : f32
    %8 = vector.broadcast %cst_7 : f32 to vector<512x12xf32>
    %9 = arith.maximumf %7, %8 : vector<512x12xf32>
    %c512_i32 = arith.constant 512 : i32
    %10 = arith.muli %arg2, %c512_i32 : i32
    %11 = tpu.iota {dimensions = array<i32: 0>} : vector<512x1xi32>
    %12 = vector.broadcast %10 : i32 to vector<512x1xi32>
    %13 = arith.addi %12, %11 : vector<512x1xi32>
    %c512_i32_8 = arith.constant 512 : i32
    %14 = vector.broadcast %c512_i32_8 : i32 to vector<512x1xi32>
    %15 = arith.cmpi slt, %13, %14 : vector<512x1xi32>
    %cst_9 = arith.constant 0.000000e+00 : f32
    %16 = vector.shape_cast %15 : vector<512x1xi1> to vector<512x1xi1>
    %17 = vector.broadcast %16 : vector<512x1xi1> to vector<512x12xi1>
    %18 = vector.broadcast %cst_9 : f32 to vector<512x12xf32>
    %19 = arith.select %17, %9, %18 : vector<512x12xi1>, vector<512x12xf32>
    %cst_10 = arith.constant dense<0.000000e+00> : vector<12xf32>
    %20 = vector.multi_reduction <add>, %19, %cst_10 [0] : vector<512x12xf32> to vector<12xf32>
    %21 = vector.shape_cast %20 : vector<12xf32> to vector<1x12xf32>
    %cst_11 = arith.constant 0.001953125 : f32
    %22 = vector.broadcast %cst_11 : f32 to vector<1x12xf32>
    %23 = arith.mulf %21, %22 : vector<1x12xf32>
    %24 = arith.mulf %19, %19 : vector<512x12xf32>
    %cst_12 = arith.constant dense<0.000000e+00> : vector<12xf32>
    %25 = vector.multi_reduction <add>, %24, %cst_12 [0] : vector<512x12xf32> to vector<12xf32>
    %26 = vector.shape_cast %25 : vector<12xf32> to vector<1x12xf32>
    %cst_13 = arith.constant 0.001953125 : f32
    %27 = vector.broadcast %cst_13 : f32 to vector<1x12xf32>
    %28 = arith.mulf %26, %27 : vector<1x12xf32>
    %29 = arith.mulf %23, %23 : vector<1x12xf32>
    %30 = arith.subf %28, %29 : vector<1x12xf32>
    %31 = vector.broadcast %23 : vector<1x12xf32> to vector<512x12xf32>
    %32 = arith.subf %9, %31 : vector<512x12xf32>
    %cst_14 = arith.constant 9.99999974E-6 : f32
    %33 = vector.broadcast %cst_14 : f32 to vector<1x12xf32>
    %34 = arith.addf %30, %33 : vector<1x12xf32>
    %35 = math.rsqrt %34 : vector<1x12xf32>
    %36 = vector.broadcast %35 : vector<1x12xf32> to vector<512x12xf32>
    %37 = arith.mulf %32, %36 : vector<512x12xf32>
    %c1 = arith.constant 1 : index
    %c0_15 = arith.constant 0 : index
    %38 = vector.load %arg5[%c1, %c0_15] : memref<3x12xf32, #tpu.memory_space<vmem>>, vector<1x12xf32>
    %39 = vector.broadcast %38 : vector<1x12xf32> to vector<512x12xf32>
    %40 = arith.mulf %37, %39 : vector<512x12xf32>
    %c2 = arith.constant 2 : index
    %c0_16 = arith.constant 0 : index
    %41 = vector.load %arg5[%c2, %c0_16] : memref<3x12xf32, #tpu.memory_space<vmem>>, vector<1x12xf32>
    %42 = vector.broadcast %41 : vector<1x12xf32> to vector<512x12xf32>
    %43 = arith.addf %40, %42 : vector<512x12xf32>
    %c0_17 = arith.constant 0 : index
    %c0_18 = arith.constant 0 : index
    %c0_19 = arith.constant 0 : index
    %44 = vector.load %arg6[%c0_17, %c0_18, %c0_19] : memref<1x512x12xf32, #tpu.memory_space<vmem>>, vector<1x512x12xf32>
    %45 = vector.shape_cast %44 : vector<1x512x12xf32> to vector<512x12xf32>
    %46 = vector.shape_cast %43 : vector<512x12xf32> to vector<1x512x12xf32>
    tpu.vector_store %arg6[%c0_17, %c0_18, %c0_19], %46 {strides = array<i32>} : memref<1x512x12xf32, #tpu.memory_space<vmem>>, vector<1x512x12xf32>,
    return
  }
  func.func @transform_0(%arg0: i32, %arg1: i32, %arg2: i32) -> (i32, i32, i32) {
    %c0_i32 = arith.constant 0 : i32
    %c0_i32_0 = arith.constant 0 : i32
    return %arg1, %arg2, %c0_i32 : i32, i32, i32
  }
  func.func @transform_1(%arg0: i32, %arg1: i32, %arg2: i32) -> (i32, i32, i32) {
    %c0_i32 = arith.constant 0 : i32
    %c0_i32_0 = arith.constant 0 : i32
    %c0_i32_1 = arith.constant 0 : i32
    return %arg1, %c0_i32, %c0_i32_0 : i32, i32, i32
  }
  func.func @transform_2(%arg0: i32, %arg1: i32, %arg2: i32) -> (i32, i32) {
    %c0_i32 = arith.constant 0 : i32
    %c0_i32_0 = arith.constant 0 : i32
    %c0_i32_1 = arith.constant 0 : i32
    return %c0_i32, %c0_i32_0 : i32, i32
  }
  func.func @transform_3(%arg0: i32, %arg1: i32, %arg2: i32) -> (i32, i32, i32) {
    %c0_i32 = arith.constant 0 : i32
    %c0_i32_0 = arith.constant 0 : i32
    return %arg1, %arg2, %c0_i32 : i32, i32, i32
  }
}

module attributes {stable_mosaic.version = 11 : i64} {
  func.func @_layer_kernel(%arg0: i32, %arg1: i32, %arg2: i32, %arg3: memref<1x128x192xbf16, #tpu.memory_space<vmem>>, %arg4: memref<1x192x24xbf16, #tpu.memory_space<vmem>>, %arg5: memref<1x24xf32, #tpu.memory_space<vmem>>, %arg6: memref<1x128x24xf32, #tpu.memory_space<vmem>>) attributes {dimension_semantics = [#tpu.dimension_semantics<arbitrary>, #tpu.dimension_semantics<parallel>, #tpu.dimension_semantics<parallel>], iteration_bounds = array<i64: 1, 1, 1>, scalar_prefetch = 0 : i64, scratch_operands = 0 : i64, tpu.core_type = #tpu.core_type<tc>, window_params = [{transform_indices = @transform_0, window_bounds = array<i64: 1, 128, 192>}, {transform_indices = @transform_1, window_bounds = array<i64: 1, 192, 24>}, {pipeline_mode = #tpu.pipeline_mode<synchronous>, transform_indices = @transform_2, window_bounds = array<i64: 1, 24>}, {transform_indices = @transform_3, window_bounds = array<i64: 1, 128, 24>}]} {
    %c0 = arith.constant 0 : index
    %c0_0 = arith.constant 0 : index
    %c0_1 = arith.constant 0 : index
    %0 = vector.load %arg3[%c0, %c0_0, %c0_1] : memref<1x128x192xbf16, #tpu.memory_space<vmem>>, vector<1x128x192xbf16>
    %1 = vector.shape_cast %0 : vector<1x128x192xbf16> to vector<128x192xbf16>
    %c0_2 = arith.constant 0 : index
    %c0_3 = arith.constant 0 : index
    %c0_4 = arith.constant 0 : index
    %2 = vector.load %arg4[%c0_2, %c0_3, %c0_4] : memref<1x192x24xbf16, #tpu.memory_space<vmem>>, vector<1x192x24xbf16>
    %3 = vector.shape_cast %2 : vector<1x192x24xbf16> to vector<192x24xbf16>
    %cst = arith.constant dense<0.000000e+00> : vector<128x24xf32>
    %4 = tpu.matmul %1, %3, %cst {dimension_numbers = #tpu.dot_dimension_numbers<[1], [0], [0], [1], [0, 0, 1, 1], [], []>} : vector<128x192xbf16>, vector<192x24xbf16>, vector<128x24xf32> -> vector<128x24xf32>
    %c0_5 = arith.constant 0 : index
    %c0_6 = arith.constant 0 : index
    %5 = vector.load %arg5[%c0_5, %c0_6] : memref<1x24xf32, #tpu.memory_space<vmem>>, vector<1x24xf32>
    %6 = vector.broadcast %5 : vector<1x24xf32> to vector<128x24xf32>
    %7 = arith.addf %4, %6 : vector<128x24xf32>
    %cst_7 = arith.constant 0.000000e+00 : f32
    %8 = vector.broadcast %cst_7 : f32 to vector<128x24xf32>
    %9 = arith.maximumf %7, %8 : vector<128x24xf32>
    %c0_8 = arith.constant 0 : index
    %c0_9 = arith.constant 0 : index
    %c0_10 = arith.constant 0 : index
    %10 = vector.load %arg6[%c0_8, %c0_9, %c0_10] : memref<1x128x24xf32, #tpu.memory_space<vmem>>, vector<1x128x24xf32>
    %11 = vector.shape_cast %10 : vector<1x128x24xf32> to vector<128x24xf32>
    %12 = vector.shape_cast %9 : vector<128x24xf32> to vector<1x128x24xf32>
    tpu.vector_store %arg6[%c0_8, %c0_9, %c0_10], %12 {strides = array<i32>} : memref<1x128x24xf32, #tpu.memory_space<vmem>>, vector<1x128x24xf32>,
    return
  }
  func.func @transform_0(%arg0: i32, %arg1: i32, %arg2: i32) -> (i32, i32, i32) {
    %c0_i32 = arith.constant 0 : i32
    %c0_i32_0 = arith.constant 0 : i32
    return %arg1, %arg2, %c0_i32 : i32, i32, i32
  }
  func.func @transform_1(%arg0: i32, %arg1: i32, %arg2: i32) -> (i32, i32, i32) {
    %c0_i32 = arith.constant 0 : i32
    %c0_i32_0 = arith.constant 0 : i32
    %c0_i32_1 = arith.constant 0 : i32
    return %arg1, %c0_i32, %c0_i32_0 : i32, i32, i32
  }
  func.func @transform_2(%arg0: i32, %arg1: i32, %arg2: i32) -> (i32, i32) {
    %c0_i32 = arith.constant 0 : i32
    %c0_i32_0 = arith.constant 0 : i32
    %c0_i32_1 = arith.constant 0 : i32
    return %c0_i32, %c0_i32_0 : i32, i32
  }
  func.func @transform_3(%arg0: i32, %arg1: i32, %arg2: i32) -> (i32, i32, i32) {
    %c0_i32 = arith.constant 0 : i32
    %c0_i32_0 = arith.constant 0 : i32
    return %arg1, %arg2, %c0_i32 : i32, i32, i32
  }
}

module attributes {stable_mosaic.version = 11 : i64} {
  func.func @_layer_kernel(%arg0: i32, %arg1: i32, %arg2: i32, %arg3: memref<1x32x384xbf16, #tpu.memory_space<vmem>>, %arg4: memref<1x384x48xbf16, #tpu.memory_space<vmem>>, %arg5: memref<3x48xf32, #tpu.memory_space<vmem>>, %arg6: memref<1x32x48xf32, #tpu.memory_space<vmem>>) attributes {dimension_semantics = [#tpu.dimension_semantics<arbitrary>, #tpu.dimension_semantics<parallel>, #tpu.dimension_semantics<parallel>], iteration_bounds = array<i64: 1, 1, 1>, scalar_prefetch = 0 : i64, scratch_operands = 0 : i64, tpu.core_type = #tpu.core_type<tc>, window_params = [{transform_indices = @transform_0, window_bounds = array<i64: 1, 32, 384>}, {transform_indices = @transform_1, window_bounds = array<i64: 1, 384, 48>}, {pipeline_mode = #tpu.pipeline_mode<synchronous>, transform_indices = @transform_2, window_bounds = array<i64: 3, 48>}, {transform_indices = @transform_3, window_bounds = array<i64: 1, 32, 48>}]} {
    %c0 = arith.constant 0 : index
    %c0_0 = arith.constant 0 : index
    %c0_1 = arith.constant 0 : index
    %0 = vector.load %arg3[%c0, %c0_0, %c0_1] : memref<1x32x384xbf16, #tpu.memory_space<vmem>>, vector<1x32x384xbf16>
    %1 = vector.shape_cast %0 : vector<1x32x384xbf16> to vector<32x384xbf16>
    %c0_2 = arith.constant 0 : index
    %c0_3 = arith.constant 0 : index
    %c0_4 = arith.constant 0 : index
    %2 = vector.load %arg4[%c0_2, %c0_3, %c0_4] : memref<1x384x48xbf16, #tpu.memory_space<vmem>>, vector<1x384x48xbf16>
    %3 = vector.shape_cast %2 : vector<1x384x48xbf16> to vector<384x48xbf16>
    %cst = arith.constant dense<0.000000e+00> : vector<32x48xf32>
    %4 = tpu.matmul %1, %3, %cst {dimension_numbers = #tpu.dot_dimension_numbers<[1], [0], [0], [1], [0, 0, 1, 1], [], []>} : vector<32x384xbf16>, vector<384x48xbf16>, vector<32x48xf32> -> vector<32x48xf32>
    %c0_5 = arith.constant 0 : index
    %c0_6 = arith.constant 0 : index
    %5 = vector.load %arg5[%c0_5, %c0_6] : memref<3x48xf32, #tpu.memory_space<vmem>>, vector<1x48xf32>
    %6 = vector.broadcast %5 : vector<1x48xf32> to vector<32x48xf32>
    %7 = arith.addf %4, %6 : vector<32x48xf32>
    %cst_7 = arith.constant 0.000000e+00 : f32
    %8 = vector.broadcast %cst_7 : f32 to vector<32x48xf32>
    %9 = arith.maximumf %7, %8 : vector<32x48xf32>
    %c32_i32 = arith.constant 32 : i32
    %10 = arith.muli %arg2, %c32_i32 : i32
    %11 = tpu.iota {dimensions = array<i32: 0>} : vector<32x1xi32>
    %12 = vector.broadcast %10 : i32 to vector<32x1xi32>
    %13 = arith.addi %12, %11 : vector<32x1xi32>
    %c32_i32_8 = arith.constant 32 : i32
    %14 = vector.broadcast %c32_i32_8 : i32 to vector<32x1xi32>
    %15 = arith.cmpi slt, %13, %14 : vector<32x1xi32>
    %cst_9 = arith.constant 0.000000e+00 : f32
    %16 = vector.shape_cast %15 : vector<32x1xi1> to vector<32x1xi1>
    %17 = vector.broadcast %16 : vector<32x1xi1> to vector<32x48xi1>
    %18 = vector.broadcast %cst_9 : f32 to vector<32x48xf32>
    %19 = arith.select %17, %9, %18 : vector<32x48xi1>, vector<32x48xf32>
    %cst_10 = arith.constant dense<0.000000e+00> : vector<48xf32>
    %20 = vector.multi_reduction <add>, %19, %cst_10 [0] : vector<32x48xf32> to vector<48xf32>
    %21 = vector.shape_cast %20 : vector<48xf32> to vector<1x48xf32>
    %cst_11 = arith.constant 3.125000e-02 : f32
    %22 = vector.broadcast %cst_11 : f32 to vector<1x48xf32>
    %23 = arith.mulf %21, %22 : vector<1x48xf32>
    %24 = arith.mulf %19, %19 : vector<32x48xf32>
    %cst_12 = arith.constant dense<0.000000e+00> : vector<48xf32>
    %25 = vector.multi_reduction <add>, %24, %cst_12 [0] : vector<32x48xf32> to vector<48xf32>
    %26 = vector.shape_cast %25 : vector<48xf32> to vector<1x48xf32>
    %cst_13 = arith.constant 3.125000e-02 : f32
    %27 = vector.broadcast %cst_13 : f32 to vector<1x48xf32>
    %28 = arith.mulf %26, %27 : vector<1x48xf32>
    %29 = arith.mulf %23, %23 : vector<1x48xf32>
    %30 = arith.subf %28, %29 : vector<1x48xf32>
    %31 = vector.broadcast %23 : vector<1x48xf32> to vector<32x48xf32>
    %32 = arith.subf %9, %31 : vector<32x48xf32>
    %cst_14 = arith.constant 9.99999974E-6 : f32
    %33 = vector.broadcast %cst_14 : f32 to vector<1x48xf32>
    %34 = arith.addf %30, %33 : vector<1x48xf32>
    %35 = math.rsqrt %34 : vector<1x48xf32>
    %36 = vector.broadcast %35 : vector<1x48xf32> to vector<32x48xf32>
    %37 = arith.mulf %32, %36 : vector<32x48xf32>
    %c1 = arith.constant 1 : index
    %c0_15 = arith.constant 0 : index
    %38 = vector.load %arg5[%c1, %c0_15] : memref<3x48xf32, #tpu.memory_space<vmem>>, vector<1x48xf32>
    %39 = vector.broadcast %38 : vector<1x48xf32> to vector<32x48xf32>
    %40 = arith.mulf %37, %39 : vector<32x48xf32>
    %c2 = arith.constant 2 : index
    %c0_16 = arith.constant 0 : index
    %41 = vector.load %arg5[%c2, %c0_16] : memref<3x48xf32, #tpu.memory_space<vmem>>, vector<1x48xf32>
    %42 = vector.broadcast %41 : vector<1x48xf32> to vector<32x48xf32>
    %43 = arith.addf %40, %42 : vector<32x48xf32>
    %c0_17 = arith.constant 0 : index
    %c0_18 = arith.constant 0 : index
    %c0_19 = arith.constant 0 : index
    %44 = vector.load %arg6[%c0_17, %c0_18, %c0_19] : memref<1x32x48xf32, #tpu.memory_space<vmem>>, vector<1x32x48xf32>
    %45 = vector.shape_cast %44 : vector<1x32x48xf32> to vector<32x48xf32>
    %46 = vector.shape_cast %43 : vector<32x48xf32> to vector<1x32x48xf32>
    tpu.vector_store %arg6[%c0_17, %c0_18, %c0_19], %46 {strides = array<i32>} : memref<1x32x48xf32, #tpu.memory_space<vmem>>, vector<1x32x48xf32>,
    return
  }
  func.func @transform_0(%arg0: i32, %arg1: i32, %arg2: i32) -> (i32, i32, i32) {
    %c0_i32 = arith.constant 0 : i32
    %c0_i32_0 = arith.constant 0 : i32
    return %arg1, %arg2, %c0_i32 : i32, i32, i32
  }
  func.func @transform_1(%arg0: i32, %arg1: i32, %arg2: i32) -> (i32, i32, i32) {
    %c0_i32 = arith.constant 0 : i32
    %c0_i32_0 = arith.constant 0 : i32
    %c0_i32_1 = arith.constant 0 : i32
    return %arg1, %c0_i32, %c0_i32_0 : i32, i32, i32
  }
  func.func @transform_2(%arg0: i32, %arg1: i32, %arg2: i32) -> (i32, i32) {
    %c0_i32 = arith.constant 0 : i32
    %c0_i32_0 = arith.constant 0 : i32
    %c0_i32_1 = arith.constant 0 : i32
    return %c0_i32, %c0_i32_0 : i32, i32
  }
  func.func @transform_3(%arg0: i32, %arg1: i32, %arg2: i32) -> (i32, i32, i32) {
    %c0_i32 = arith.constant 0 : i32
    %c0_i32_0 = arith.constant 0 : i32
    return %arg1, %arg2, %c0_i32 : i32, i32, i32
  }
}

module attributes {stable_mosaic.version = 11 : i64} {
  func.func @_layer_kernel(%arg0: i32, %arg1: i32, %arg2: i32, %arg3: memref<1x8x768xbf16, #tpu.memory_space<vmem>>, %arg4: memref<1x768x96xbf16, #tpu.memory_space<vmem>>, %arg5: memref<3x96xf32, #tpu.memory_space<vmem>>, %arg6: memref<1x8x96xf32, #tpu.memory_space<vmem>>) attributes {dimension_semantics = [#tpu.dimension_semantics<arbitrary>, #tpu.dimension_semantics<parallel>, #tpu.dimension_semantics<parallel>], iteration_bounds = array<i64: 1, 1, 1>, scalar_prefetch = 0 : i64, scratch_operands = 0 : i64, tpu.core_type = #tpu.core_type<tc>, window_params = [{transform_indices = @transform_0, window_bounds = array<i64: 1, 8, 768>}, {transform_indices = @transform_1, window_bounds = array<i64: 1, 768, 96>}, {pipeline_mode = #tpu.pipeline_mode<synchronous>, transform_indices = @transform_2, window_bounds = array<i64: 3, 96>}, {transform_indices = @transform_3, window_bounds = array<i64: 1, 8, 96>}]} {
    %c0 = arith.constant 0 : index
    %c0_0 = arith.constant 0 : index
    %c0_1 = arith.constant 0 : index
    %0 = vector.load %arg3[%c0, %c0_0, %c0_1] : memref<1x8x768xbf16, #tpu.memory_space<vmem>>, vector<1x8x768xbf16>
    %1 = vector.shape_cast %0 : vector<1x8x768xbf16> to vector<8x768xbf16>
    %c0_2 = arith.constant 0 : index
    %c0_3 = arith.constant 0 : index
    %c0_4 = arith.constant 0 : index
    %2 = vector.load %arg4[%c0_2, %c0_3, %c0_4] : memref<1x768x96xbf16, #tpu.memory_space<vmem>>, vector<1x768x96xbf16>
    %3 = vector.shape_cast %2 : vector<1x768x96xbf16> to vector<768x96xbf16>
    %cst = arith.constant dense<0.000000e+00> : vector<8x96xf32>
    %4 = tpu.matmul %1, %3, %cst {dimension_numbers = #tpu.dot_dimension_numbers<[1], [0], [0], [1], [0, 0, 1, 1], [], []>} : vector<8x768xbf16>, vector<768x96xbf16>, vector<8x96xf32> -> vector<8x96xf32>
    %c0_5 = arith.constant 0 : index
    %c0_6 = arith.constant 0 : index
    %5 = vector.load %arg5[%c0_5, %c0_6] : memref<3x96xf32, #tpu.memory_space<vmem>>, vector<1x96xf32>
    %6 = vector.broadcast %5 : vector<1x96xf32> to vector<8x96xf32>
    %7 = arith.addf %4, %6 : vector<8x96xf32>
    %cst_7 = arith.constant 0.000000e+00 : f32
    %8 = vector.broadcast %cst_7 : f32 to vector<8x96xf32>
    %9 = arith.maximumf %7, %8 : vector<8x96xf32>
    %c8_i32 = arith.constant 8 : i32
    %10 = arith.muli %arg2, %c8_i32 : i32
    %11 = tpu.iota {dimensions = array<i32: 0>} : vector<8x1xi32>
    %12 = vector.broadcast %10 : i32 to vector<8x1xi32>
    %13 = arith.addi %12, %11 : vector<8x1xi32>
    %c8_i32_8 = arith.constant 8 : i32
    %14 = vector.broadcast %c8_i32_8 : i32 to vector<8x1xi32>
    %15 = arith.cmpi slt, %13, %14 : vector<8x1xi32>
    %cst_9 = arith.constant 0.000000e+00 : f32
    %16 = vector.shape_cast %15 : vector<8x1xi1> to vector<8x1xi1>
    %17 = vector.broadcast %16 : vector<8x1xi1> to vector<8x96xi1>
    %18 = vector.broadcast %cst_9 : f32 to vector<8x96xf32>
    %19 = arith.select %17, %9, %18 : vector<8x96xi1>, vector<8x96xf32>
    %cst_10 = arith.constant dense<0.000000e+00> : vector<96xf32>
    %20 = vector.multi_reduction <add>, %19, %cst_10 [0] : vector<8x96xf32> to vector<96xf32>
    %21 = vector.shape_cast %20 : vector<96xf32> to vector<1x96xf32>
    %cst_11 = arith.constant 1.250000e-01 : f32
    %22 = vector.broadcast %cst_11 : f32 to vector<1x96xf32>
    %23 = arith.mulf %21, %22 : vector<1x96xf32>
    %24 = arith.mulf %19, %19 : vector<8x96xf32>
    %cst_12 = arith.constant dense<0.000000e+00> : vector<96xf32>
    %25 = vector.multi_reduction <add>, %24, %cst_12 [0] : vector<8x96xf32> to vector<96xf32>
    %26 = vector.shape_cast %25 : vector<96xf32> to vector<1x96xf32>
    %cst_13 = arith.constant 1.250000e-01 : f32
    %27 = vector.broadcast %cst_13 : f32 to vector<1x96xf32>
    %28 = arith.mulf %26, %27 : vector<1x96xf32>
    %29 = arith.mulf %23, %23 : vector<1x96xf32>
    %30 = arith.subf %28, %29 : vector<1x96xf32>
    %31 = vector.broadcast %23 : vector<1x96xf32> to vector<8x96xf32>
    %32 = arith.subf %9, %31 : vector<8x96xf32>
    %cst_14 = arith.constant 9.99999974E-6 : f32
    %33 = vector.broadcast %cst_14 : f32 to vector<1x96xf32>
    %34 = arith.addf %30, %33 : vector<1x96xf32>
    %35 = math.rsqrt %34 : vector<1x96xf32>
    %36 = vector.broadcast %35 : vector<1x96xf32> to vector<8x96xf32>
    %37 = arith.mulf %32, %36 : vector<8x96xf32>
    %c1 = arith.constant 1 : index
    %c0_15 = arith.constant 0 : index
    %38 = vector.load %arg5[%c1, %c0_15] : memref<3x96xf32, #tpu.memory_space<vmem>>, vector<1x96xf32>
    %39 = vector.broadcast %38 : vector<1x96xf32> to vector<8x96xf32>
    %40 = arith.mulf %37, %39 : vector<8x96xf32>
    %c2 = arith.constant 2 : index
    %c0_16 = arith.constant 0 : index
    %41 = vector.load %arg5[%c2, %c0_16] : memref<3x96xf32, #tpu.memory_space<vmem>>, vector<1x96xf32>
    %42 = vector.broadcast %41 : vector<1x96xf32> to vector<8x96xf32>
    %43 = arith.addf %40, %42 : vector<8x96xf32>
    %c0_17 = arith.constant 0 : index
    %c0_18 = arith.constant 0 : index
    %c0_19 = arith.constant 0 : index
    %44 = vector.load %arg6[%c0_17, %c0_18, %c0_19] : memref<1x8x96xf32, #tpu.memory_space<vmem>>, vector<1x8x96xf32>
    %45 = vector.shape_cast %44 : vector<1x8x96xf32> to vector<8x96xf32>
    %46 = vector.shape_cast %43 : vector<8x96xf32> to vector<1x8x96xf32>
    tpu.vector_store %arg6[%c0_17, %c0_18, %c0_19], %46 {strides = array<i32>} : memref<1x8x96xf32, #tpu.memory_space<vmem>>, vector<1x8x96xf32>,
    return
  }
  func.func @transform_0(%arg0: i32, %arg1: i32, %arg2: i32) -> (i32, i32, i32) {
    %c0_i32 = arith.constant 0 : i32
    %c0_i32_0 = arith.constant 0 : i32
    return %arg1, %arg2, %c0_i32 : i32, i32, i32
  }
  func.func @transform_1(%arg0: i32, %arg1: i32, %arg2: i32) -> (i32, i32, i32) {
    %c0_i32 = arith.constant 0 : i32
    %c0_i32_0 = arith.constant 0 : i32
    %c0_i32_1 = arith.constant 0 : i32
    return %arg1, %c0_i32, %c0_i32_0 : i32, i32, i32
  }
  func.func @transform_2(%arg0: i32, %arg1: i32, %arg2: i32) -> (i32, i32) {
    %c0_i32 = arith.constant 0 : i32
    %c0_i32_0 = arith.constant 0 : i32
    %c0_i32_1 = arith.constant 0 : i32
    return %c0_i32, %c0_i32_0 : i32, i32
  }
  func.func @transform_3(%arg0: i32, %arg1: i32, %arg2: i32) -> (i32, i32, i32) {
    %c0_i32 = arith.constant 0 : i32
    %c0_i32_0 = arith.constant 0 : i32
    return %arg1, %arg2, %c0_i32 : i32, i32, i32
  }
}

module attributes {stable_mosaic.version = 11 : i64} {
  func.func @_layer_kernel(%arg0: i32, %arg1: i32, %arg2: i32, %arg3: memref<1x8x1536xbf16, #tpu.memory_space<vmem>>, %arg4: memref<1x1536x512xbf16, #tpu.memory_space<vmem>>, %arg5: memref<3x512xf32, #tpu.memory_space<vmem>>, %arg6: memref<8x256xf32, #tpu.memory_space<vmem>>, %arg7: memref<1x8x512xf32, #tpu.memory_space<vmem>>, %arg8: memref<8x256xf32, #tpu.memory_space<vmem>>) attributes {dimension_semantics = [#tpu.dimension_semantics<arbitrary>, #tpu.dimension_semantics<parallel>, #tpu.dimension_semantics<parallel>], iteration_bounds = array<i64: 1, 1, 1>, scalar_prefetch = 0 : i64, scratch_operands = 0 : i64, tpu.core_type = #tpu.core_type<tc>, window_params = [{transform_indices = @transform_0, window_bounds = array<i64: 1, 8, 1536>}, {transform_indices = @transform_1, window_bounds = array<i64: 1, 1536, 512>}, {pipeline_mode = #tpu.pipeline_mode<synchronous>, transform_indices = @transform_2, window_bounds = array<i64: 3, 512>}, {transform_indices = @transform_3, window_bounds = array<i64: 8, 256>}, {transform_indices = @transform_4, window_bounds = array<i64: 1, 8, 512>}, {transform_indices = @transform_5, window_bounds = array<i64: 8, 256>}]} {
    %c0 = arith.constant 0 : index
    %c0_0 = arith.constant 0 : index
    %c0_1 = arith.constant 0 : index
    %0 = vector.load %arg3[%c0, %c0_0, %c0_1] : memref<1x8x1536xbf16, #tpu.memory_space<vmem>>, vector<1x8x1536xbf16>
    %1 = vector.shape_cast %0 : vector<1x8x1536xbf16> to vector<8x1536xbf16>
    %c0_2 = arith.constant 0 : index
    %c0_3 = arith.constant 0 : index
    %c0_4 = arith.constant 0 : index
    %2 = vector.load %arg4[%c0_2, %c0_3, %c0_4] : memref<1x1536x512xbf16, #tpu.memory_space<vmem>>, vector<1x1536x512xbf16>
    %3 = vector.shape_cast %2 : vector<1x1536x512xbf16> to vector<1536x512xbf16>
    %cst = arith.constant dense<0.000000e+00> : vector<8x512xf32>
    %4 = tpu.matmul %1, %3, %cst {dimension_numbers = #tpu.dot_dimension_numbers<[1], [0], [0], [1], [0, 0, 1, 1], [], []>} : vector<8x1536xbf16>, vector<1536x512xbf16>, vector<8x512xf32> -> vector<8x512xf32>
    %c0_5 = arith.constant 0 : index
    %c0_6 = arith.constant 0 : index
    %5 = vector.load %arg5[%c0_5, %c0_6] : memref<3x512xf32, #tpu.memory_space<vmem>>, vector<1x512xf32>
    %6 = vector.broadcast %5 : vector<1x512xf32> to vector<8x512xf32>
    %7 = arith.addf %4, %6 : vector<8x512xf32>
    %cst_7 = arith.constant 0.000000e+00 : f32
    %8 = vector.broadcast %cst_7 : f32 to vector<8x512xf32>
    %9 = arith.maximumf %7, %8 : vector<8x512xf32>
    %c8_i32 = arith.constant 8 : i32
    %10 = arith.muli %arg2, %c8_i32 : i32
    %11 = tpu.iota {dimensions = array<i32: 0>} : vector<8x1xi32>
    %12 = vector.broadcast %10 : i32 to vector<8x1xi32>
    %13 = arith.addi %12, %11 : vector<8x1xi32>
    %c2_i32 = arith.constant 2 : i32
    %14 = vector.broadcast %c2_i32 : i32 to vector<8x1xi32>
    %15 = arith.cmpi slt, %13, %14 : vector<8x1xi32>
    %cst_8 = arith.constant 0.000000e+00 : f32
    %16 = vector.shape_cast %15 : vector<8x1xi1> to vector<8x1xi1>
    %17 = vector.broadcast %16 : vector<8x1xi1> to vector<8x512xi1>
    %18 = vector.broadcast %cst_8 : f32 to vector<8x512xf32>
    %19 = arith.select %17, %9, %18 : vector<8x512xi1>, vector<8x512xf32>
    %cst_9 = arith.constant dense<0.000000e+00> : vector<512xf32>
    %20 = vector.multi_reduction <add>, %19, %cst_9 [0] : vector<8x512xf32> to vector<512xf32>
    %21 = vector.shape_cast %20 : vector<512xf32> to vector<1x512xf32>
    %cst_10 = arith.constant 5.000000e-01 : f32
    %22 = vector.broadcast %cst_10 : f32 to vector<1x512xf32>
    %23 = arith.mulf %21, %22 : vector<1x512xf32>
    %24 = arith.mulf %19, %19 : vector<8x512xf32>
    %cst_11 = arith.constant dense<0.000000e+00> : vector<512xf32>
    %25 = vector.multi_reduction <add>, %24, %cst_11 [0] : vector<8x512xf32> to vector<512xf32>
    %26 = vector.shape_cast %25 : vector<512xf32> to vector<1x512xf32>
    %cst_12 = arith.constant 5.000000e-01 : f32
    %27 = vector.broadcast %cst_12 : f32 to vector<1x512xf32>
    %28 = arith.mulf %26, %27 : vector<1x512xf32>
    %29 = arith.mulf %23, %23 : vector<1x512xf32>
    %30 = arith.subf %28, %29 : vector<1x512xf32>
    %31 = vector.broadcast %23 : vector<1x512xf32> to vector<8x512xf32>
    %32 = arith.subf %9, %31 : vector<8x512xf32>
    %cst_13 = arith.constant 9.99999974E-6 : f32
    %33 = vector.broadcast %cst_13 : f32 to vector<1x512xf32>
    %34 = arith.addf %30, %33 : vector<1x512xf32>
    %35 = math.rsqrt %34 : vector<1x512xf32>
    %36 = vector.broadcast %35 : vector<1x512xf32> to vector<8x512xf32>
    %37 = arith.mulf %32, %36 : vector<8x512xf32>
    %c1 = arith.constant 1 : index
    %c0_14 = arith.constant 0 : index
    %38 = vector.load %arg5[%c1, %c0_14] : memref<3x512xf32, #tpu.memory_space<vmem>>, vector<1x512xf32>
    %39 = vector.broadcast %38 : vector<1x512xf32> to vector<8x512xf32>
    %40 = arith.mulf %37, %39 : vector<8x512xf32>
    %c2 = arith.constant 2 : index
    %c0_15 = arith.constant 0 : index
    %41 = vector.load %arg5[%c2, %c0_15] : memref<3x512xf32, #tpu.memory_space<vmem>>, vector<1x512xf32>
    %42 = vector.broadcast %41 : vector<1x512xf32> to vector<8x512xf32>
    %43 = arith.addf %40, %42 : vector<8x512xf32>
    %44 = vector.extract_strided_slice %43 {offsets = [0, 0], sizes = [8, 256], strides = [1, 1]} : vector<8x512xf32> to vector<8x256xf32>
    %45 = vector.extract_strided_slice %43 {offsets = [0, 256], sizes = [8, 256], strides = [1, 1]} : vector<8x512xf32> to vector<8x256xf32>
    %c0_16 = arith.constant 0 : index
    %c0_17 = arith.constant 0 : index
    %46 = vector.load %arg6[%c0_16, %c0_17] : memref<8x256xf32, #tpu.memory_space<vmem>>, vector<8x256xf32>
    %cst_18 = arith.constant 5.000000e-01 : f32
    %47 = vector.broadcast %cst_18 : f32 to vector<8x256xf32>
    %48 = arith.mulf %47, %45 : vector<8x256xf32>
    %49 = math.exp %48 : vector<8x256xf32>
    %50 = arith.mulf %46, %49 : vector<8x256xf32>
    %51 = arith.addf %50, %44 : vector<8x256xf32>
    %c0_19 = arith.constant 0 : index
    %c0_20 = arith.constant 0 : index
    %52 = vector.load %arg8[%c0_19, %c0_20] : memref<8x256xf32, #tpu.memory_space<vmem>>, vector<8x256xf32>
    tpu.vector_store %arg8[%c0_19, %c0_20], %51 {strides = array<i32>} : memref<8x256xf32, #tpu.memory_space<vmem>>, vector<8x256xf32>,
    %c0_21 = arith.constant 0 : index
    %c0_22 = arith.constant 0 : index
    %c0_23 = arith.constant 0 : index
    %53 = vector.load %arg7[%c0_21, %c0_22, %c0_23] : memref<1x8x512xf32, #tpu.memory_space<vmem>>, vector<1x8x512xf32>
    %54 = vector.shape_cast %53 : vector<1x8x512xf32> to vector<8x512xf32>
    %55 = vector.shape_cast %43 : vector<8x512xf32> to vector<1x8x512xf32>
    tpu.vector_store %arg7[%c0_21, %c0_22, %c0_23], %55 {strides = array<i32>} : memref<1x8x512xf32, #tpu.memory_space<vmem>>, vector<1x8x512xf32>,
    return
  }
  func.func @transform_0(%arg0: i32, %arg1: i32, %arg2: i32) -> (i32, i32, i32) {
    %c0_i32 = arith.constant 0 : i32
    %c0_i32_0 = arith.constant 0 : i32
    return %arg1, %arg2, %c0_i32 : i32, i32, i32
  }
  func.func @transform_1(%arg0: i32, %arg1: i32, %arg2: i32) -> (i32, i32, i32) {
    %c0_i32 = arith.constant 0 : i32
    %c0_i32_0 = arith.constant 0 : i32
    %c0_i32_1 = arith.constant 0 : i32
    return %arg1, %c0_i32, %c0_i32_0 : i32, i32, i32
  }
  func.func @transform_2(%arg0: i32, %arg1: i32, %arg2: i32) -> (i32, i32) {
    %c0_i32 = arith.constant 0 : i32
    %c0_i32_0 = arith.constant 0 : i32
    %c0_i32_1 = arith.constant 0 : i32
    return %c0_i32, %c0_i32_0 : i32, i32
  }
  func.func @transform_3(%arg0: i32, %arg1: i32, %arg2: i32) -> (i32, i32) {
    %c0_i32 = arith.constant 0 : i32
    %c0_i32_0 = arith.constant 0 : i32
    return %arg2, %c0_i32 : i32, i32
  }
  func.func @transform_4(%arg0: i32, %arg1: i32, %arg2: i32) -> (i32, i32, i32) {
    %c0_i32 = arith.constant 0 : i32
    %c0_i32_0 = arith.constant 0 : i32
    return %arg1, %arg2, %c0_i32 : i32, i32, i32
  }
  func.func @transform_5(%arg0: i32, %arg1: i32, %arg2: i32) -> (i32, i32) {
    %c0_i32 = arith.constant 0 : i32
    %c0_i32_0 = arith.constant 0 : i32
    return %arg2, %c0_i32 : i32, i32
  }
}

module attributes {stable_mosaic.version = 11 : i64} {
  func.func @_layer_kernel(%arg0: i32, %arg1: i32, %arg2: i32, %arg3: memref<1x8x768xbf16, #tpu.memory_space<vmem>>, %arg4: memref<1x768x96xbf16, #tpu.memory_space<vmem>>, %arg5: memref<3x96xf32, #tpu.memory_space<vmem>>, %arg6: memref<1x8x96xf32, #tpu.memory_space<vmem>>, %arg7: memref<1x96xf32, #tpu.memory_space<vmem>>, %arg8: memref<1x96xf32, #tpu.memory_space<vmem>>) attributes {dimension_semantics = [#tpu.dimension_semantics<arbitrary>, #tpu.dimension_semantics<arbitrary>, #tpu.dimension_semantics<arbitrary>], iteration_bounds = array<i64: 2, 4, 1>, scalar_prefetch = 0 : i64, scratch_operands = 2 : i64, tpu.core_type = #tpu.core_type<tc>, window_params = [{transform_indices = @transform_0, window_bounds = array<i64: 1, 8, 768>}, {transform_indices = @transform_1, window_bounds = array<i64: 1, 768, 96>}, {pipeline_mode = #tpu.pipeline_mode<synchronous>, transform_indices = @transform_2, window_bounds = array<i64: 3, 96>}, {transform_indices = @transform_3, window_bounds = array<i64: 1, 8, 96>}]} {
    %c0 = arith.constant 0 : index
    %c0_0 = arith.constant 0 : index
    %c0_1 = arith.constant 0 : index
    %0 = vector.load %arg3[%c0, %c0_0, %c0_1] : memref<1x8x768xbf16, #tpu.memory_space<vmem>>, vector<1x8x768xbf16>
    %1 = vector.shape_cast %0 : vector<1x8x768xbf16> to vector<8x768xbf16>
    %c0_2 = arith.constant 0 : index
    %c0_3 = arith.constant 0 : index
    %c0_4 = arith.constant 0 : index
    %2 = vector.load %arg4[%c0_2, %c0_3, %c0_4] : memref<1x768x96xbf16, #tpu.memory_space<vmem>>, vector<1x768x96xbf16>
    %3 = vector.shape_cast %2 : vector<1x768x96xbf16> to vector<768x96xbf16>
    %cst = arith.constant dense<0.000000e+00> : vector<8x96xf32>
    %4 = tpu.matmul %1, %3, %cst {dimension_numbers = #tpu.dot_dimension_numbers<[1], [0], [0], [1], [0, 0, 1, 1], [], []>} : vector<8x768xbf16>, vector<768x96xbf16>, vector<8x96xf32> -> vector<8x96xf32>
    %c0_5 = arith.constant 0 : index
    %c0_6 = arith.constant 0 : index
    %5 = vector.load %arg5[%c0_5, %c0_6] : memref<3x96xf32, #tpu.memory_space<vmem>>, vector<1x96xf32>
    %6 = vector.broadcast %5 : vector<1x96xf32> to vector<8x96xf32>
    %7 = arith.addf %4, %6 : vector<8x96xf32>
    %cst_7 = arith.constant 0.000000e+00 : f32
    %8 = vector.broadcast %cst_7 : f32 to vector<8x96xf32>
    %9 = arith.maximumf %7, %8 : vector<8x96xf32>
    %c8_i32 = arith.constant 8 : i32
    %10 = arith.muli %arg2, %c8_i32 : i32
    %11 = tpu.iota {dimensions = array<i32: 0>} : vector<8x1xi32>
    %12 = vector.broadcast %10 : i32 to vector<8x1xi32>
    %13 = arith.addi %12, %11 : vector<8x1xi32>
    %c2_i32 = arith.constant 2 : i32
    %14 = vector.broadcast %c2_i32 : i32 to vector<8x1xi32>
    %15 = arith.cmpi slt, %13, %14 : vector<8x1xi32>
    %cst_8 = arith.constant 0.000000e+00 : f32
    %16 = vector.shape_cast %15 : vector<8x1xi1> to vector<8x1xi1>
    %17 = vector.broadcast %16 : vector<8x1xi1> to vector<8x96xi1>
    %18 = vector.broadcast %cst_8 : f32 to vector<8x96xf32>
    %19 = arith.select %17, %9, %18 : vector<8x96xi1>, vector<8x96xf32>
    %c0_i32 = arith.constant 0 : i32
    %20 = arith.cmpi eq, %arg0, %c0_i32 : i32
    %c0_i32_9 = arith.constant 0 : i32
    %21 = arith.cmpi eq, %arg1, %c0_i32_9 : i32
    %22 = arith.andi %20, %21 : i1
    %c0_i32_10 = arith.constant 0 : i32
    %23 = arith.cmpi eq, %arg2, %c0_i32_10 : i32
    %24 = arith.andi %22, %23 : i1
    %25 = arith.extui %24 : i1 to i32
    %c0_i32_11 = arith.constant 0 : i32
    %26 = arith.cmpi ne, %25, %c0_i32_11 : i32
    scf.if %26 {
      %cst_15 = arith.constant 0.000000e+00 : f32
      %33 = vector.broadcast %cst_15 : f32 to vector<1x96xf32>
      %c0_16 = arith.constant 0 : index
      %c0_17 = arith.constant 0 : index
      %34 = vector.load %arg7[%c0_16, %c0_17] : memref<1x96xf32, #tpu.memory_space<vmem>>, vector<1x96xf32>
      tpu.vector_store %arg7[%c0_16, %c0_17], %33 {strides = array<i32>} : memref<1x96xf32, #tpu.memory_space<vmem>>, vector<1x96xf32>,
      %cst_18 = arith.constant 0.000000e+00 : f32
      %35 = vector.broadcast %cst_18 : f32 to vector<1x96xf32>
      %c0_19 = arith.constant 0 : index
      %c0_20 = arith.constant 0 : index
      %36 = vector.load %arg8[%c0_19, %c0_20] : memref<1x96xf32, #tpu.memory_space<vmem>>, vector<1x96xf32>
      tpu.vector_store %arg8[%c0_19, %c0_20], %35 {strides = array<i32>} : memref<1x96xf32, #tpu.memory_space<vmem>>, vector<1x96xf32>,
    } else {
    }
    %c0_i32_12 = arith.constant 0 : i32
    %27 = arith.cmpi eq, %arg0, %c0_i32_12 : i32
    %28 = arith.extui %27 : i1 to i32
    %c0_i32_13 = arith.constant 0 : i32
    %29 = arith.cmpi ne, %28, %c0_i32_13 : i32
    scf.if %29 {
      %c0_15 = arith.constant 0 : index
      %c0_16 = arith.constant 0 : index
      %33 = vector.load %arg7[%c0_15, %c0_16] : memref<1x96xf32, #tpu.memory_space<vmem>>, vector<1x96xf32>
      %cst_17 = arith.constant dense<0.000000e+00> : vector<96xf32>
      %34 = vector.multi_reduction <add>, %19, %cst_17 [0] : vector<8x96xf32> to vector<96xf32>
      %35 = vector.shape_cast %34 : vector<96xf32> to vector<1x96xf32>
      %36 = arith.addf %33, %35 : vector<1x96xf32>
      %c0_18 = arith.constant 0 : index
      %c0_19 = arith.constant 0 : index
      %37 = vector.load %arg7[%c0_18, %c0_19] : memref<1x96xf32, #tpu.memory_space<vmem>>, vector<1x96xf32>
      tpu.vector_store %arg7[%c0_18, %c0_19], %36 {strides = array<i32>} : memref<1x96xf32, #tpu.memory_space<vmem>>, vector<1x96xf32>,
      %c0_20 = arith.constant 0 : index
      %c0_21 = arith.constant 0 : index
      %38 = vector.load %arg8[%c0_20, %c0_21] : memref<1x96xf32, #tpu.memory_space<vmem>>, vector<1x96xf32>
      %39 = arith.mulf %19, %19 : vector<8x96xf32>
      %cst_22 = arith.constant dense<0.000000e+00> : vector<96xf32>
      %40 = vector.multi_reduction <add>, %39, %cst_22 [0] : vector<8x96xf32> to vector<96xf32>
      %41 = vector.shape_cast %40 : vector<96xf32> to vector<1x96xf32>
      %42 = arith.addf %38, %41 : vector<1x96xf32>
      %c0_23 = arith.constant 0 : index
      %c0_24 = arith.constant 0 : index
      %43 = vector.load %arg8[%c0_23, %c0_24] : memref<1x96xf32, #tpu.memory_space<vmem>>, vector<1x96xf32>
      tpu.vector_store %arg8[%c0_23, %c0_24], %42 {strides = array<i32>} : memref<1x96xf32, #tpu.memory_space<vmem>>, vector<1x96xf32>,
    } else {
    }
    %c1_i32 = arith.constant 1 : i32
    %30 = arith.cmpi eq, %arg0, %c1_i32 : i32
    %31 = arith.extui %30 : i1 to i32
    %c0_i32_14 = arith.constant 0 : i32
    %32 = arith.cmpi ne, %31, %c0_i32_14 : i32
    scf.if %32 {
      %c0_15 = arith.constant 0 : index
      %c0_16 = arith.constant 0 : index
      %33 = vector.load %arg7[%c0_15, %c0_16] : memref<1x96xf32, #tpu.memory_space<vmem>>, vector<1x96xf32>
      %cst_17 = arith.constant 1.250000e-01 : f32
      %34 = vector.broadcast %cst_17 : f32 to vector<1x96xf32>
      %35 = arith.mulf %33, %34 : vector<1x96xf32>
      %c0_18 = arith.constant 0 : index
      %c0_19 = arith.constant 0 : index
      %36 = vector.load %arg8[%c0_18, %c0_19] : memref<1x96xf32, #tpu.memory_space<vmem>>, vector<1x96xf32>
      %cst_20 = arith.constant 1.250000e-01 : f32
      %37 = vector.broadcast %cst_20 : f32 to vector<1x96xf32>
      %38 = arith.mulf %36, %37 : vector<1x96xf32>
      %39 = arith.mulf %35, %35 : vector<1x96xf32>
      %40 = arith.subf %38, %39 : vector<1x96xf32>
      %41 = vector.broadcast %35 : vector<1x96xf32> to vector<8x96xf32>
      %42 = arith.subf %9, %41 : vector<8x96xf32>
      %cst_21 = arith.constant 9.99999974E-6 : f32
      %43 = vector.broadcast %cst_21 : f32 to vector<1x96xf32>
      %44 = arith.addf %40, %43 : vector<1x96xf32>
      %45 = math.rsqrt %44 : vector<1x96xf32>
      %46 = vector.broadcast %45 : vector<1x96xf32> to vector<8x96xf32>
      %47 = arith.mulf %42, %46 : vector<8x96xf32>
      %c1 = arith.constant 1 : index
      %c0_22 = arith.constant 0 : index
      %48 = vector.load %arg5[%c1, %c0_22] : memref<3x96xf32, #tpu.memory_space<vmem>>, vector<1x96xf32>
      %49 = vector.broadcast %48 : vector<1x96xf32> to vector<8x96xf32>
      %50 = arith.mulf %47, %49 : vector<8x96xf32>
      %c2 = arith.constant 2 : index
      %c0_23 = arith.constant 0 : index
      %51 = vector.load %arg5[%c2, %c0_23] : memref<3x96xf32, #tpu.memory_space<vmem>>, vector<1x96xf32>
      %52 = vector.broadcast %51 : vector<1x96xf32> to vector<8x96xf32>
      %53 = arith.addf %50, %52 : vector<8x96xf32>
      %c0_24 = arith.constant 0 : index
      %c0_25 = arith.constant 0 : index
      %c0_26 = arith.constant 0 : index
      %54 = vector.load %arg6[%c0_24, %c0_25, %c0_26] : memref<1x8x96xf32, #tpu.memory_space<vmem>>, vector<1x8x96xf32>
      %55 = vector.shape_cast %54 : vector<1x8x96xf32> to vector<8x96xf32>
      %56 = vector.shape_cast %53 : vector<8x96xf32> to vector<1x8x96xf32>
      tpu.vector_store %arg6[%c0_24, %c0_25, %c0_26], %56 {strides = array<i32>} : memref<1x8x96xf32, #tpu.memory_space<vmem>>, vector<1x8x96xf32>,
    } else {
    }
    return
  }
  func.func @transform_0(%arg0: i32, %arg1: i32, %arg2: i32) -> (i32, i32, i32) {
    %c0_i32 = arith.constant 0 : i32
    %c0_i32_0 = arith.constant 0 : i32
    return %arg1, %arg2, %c0_i32 : i32, i32, i32
  }
  func.func @transform_1(%arg0: i32, %arg1: i32, %arg2: i32) -> (i32, i32, i32) {
    %c0_i32 = arith.constant 0 : i32
    %c0_i32_0 = arith.constant 0 : i32
    %c0_i32_1 = arith.constant 0 : i32
    return %arg1, %c0_i32, %c0_i32_0 : i32, i32, i32
  }
  func.func @transform_2(%arg0: i32, %arg1: i32, %arg2: i32) -> (i32, i32) {
    %c0_i32 = arith.constant 0 : i32
    %c0_i32_0 = arith.constant 0 : i32
    %c0_i32_1 = arith.constant 0 : i32
    return %c0_i32, %c0_i32_0 : i32, i32
  }
  func.func @transform_3(%arg0: i32, %arg1: i32, %arg2: i32) -> (i32, i32, i32) {
    %c0_i32 = arith.constant 0 : i32
    %c0_i32_0 = arith.constant 0 : i32
    return %arg1, %arg2, %c0_i32 : i32, i32, i32
  }
}

module attributes {stable_mosaic.version = 11 : i64} {
  func.func @_layer_kernel(%arg0: i32, %arg1: i32, %arg2: i32, %arg3: memref<1x8x384xbf16, #tpu.memory_space<vmem>>, %arg4: memref<1x384x48xbf16, #tpu.memory_space<vmem>>, %arg5: memref<3x48xf32, #tpu.memory_space<vmem>>, %arg6: memref<1x8x48xf32, #tpu.memory_space<vmem>>, %arg7: memref<1x48xf32, #tpu.memory_space<vmem>>, %arg8: memref<1x48xf32, #tpu.memory_space<vmem>>) attributes {dimension_semantics = [#tpu.dimension_semantics<arbitrary>, #tpu.dimension_semantics<arbitrary>, #tpu.dimension_semantics<arbitrary>], iteration_bounds = array<i64: 2, 4, 1>, scalar_prefetch = 0 : i64, scratch_operands = 2 : i64, tpu.core_type = #tpu.core_type<tc>, window_params = [{transform_indices = @transform_0, window_bounds = array<i64: 1, 8, 384>}, {transform_indices = @transform_1, window_bounds = array<i64: 1, 384, 48>}, {pipeline_mode = #tpu.pipeline_mode<synchronous>, transform_indices = @transform_2, window_bounds = array<i64: 3, 48>}, {transform_indices = @transform_3, window_bounds = array<i64: 1, 8, 48>}]} {
    %c0 = arith.constant 0 : index
    %c0_0 = arith.constant 0 : index
    %c0_1 = arith.constant 0 : index
    %0 = vector.load %arg3[%c0, %c0_0, %c0_1] : memref<1x8x384xbf16, #tpu.memory_space<vmem>>, vector<1x8x384xbf16>
    %1 = vector.shape_cast %0 : vector<1x8x384xbf16> to vector<8x384xbf16>
    %c0_2 = arith.constant 0 : index
    %c0_3 = arith.constant 0 : index
    %c0_4 = arith.constant 0 : index
    %2 = vector.load %arg4[%c0_2, %c0_3, %c0_4] : memref<1x384x48xbf16, #tpu.memory_space<vmem>>, vector<1x384x48xbf16>
    %3 = vector.shape_cast %2 : vector<1x384x48xbf16> to vector<384x48xbf16>
    %cst = arith.constant dense<0.000000e+00> : vector<8x48xf32>
    %4 = tpu.matmul %1, %3, %cst {dimension_numbers = #tpu.dot_dimension_numbers<[1], [0], [0], [1], [0, 0, 1, 1], [], []>} : vector<8x384xbf16>, vector<384x48xbf16>, vector<8x48xf32> -> vector<8x48xf32>
    %c0_5 = arith.constant 0 : index
    %c0_6 = arith.constant 0 : index
    %5 = vector.load %arg5[%c0_5, %c0_6] : memref<3x48xf32, #tpu.memory_space<vmem>>, vector<1x48xf32>
    %6 = vector.broadcast %5 : vector<1x48xf32> to vector<8x48xf32>
    %7 = arith.addf %4, %6 : vector<8x48xf32>
    %cst_7 = arith.constant 0.000000e+00 : f32
    %8 = vector.broadcast %cst_7 : f32 to vector<8x48xf32>
    %9 = arith.maximumf %7, %8 : vector<8x48xf32>
    %c8_i32 = arith.constant 8 : i32
    %10 = arith.muli %arg2, %c8_i32 : i32
    %11 = tpu.iota {dimensions = array<i32: 0>} : vector<8x1xi32>
    %12 = vector.broadcast %10 : i32 to vector<8x1xi32>
    %13 = arith.addi %12, %11 : vector<8x1xi32>
    %c8_i32_8 = arith.constant 8 : i32
    %14 = vector.broadcast %c8_i32_8 : i32 to vector<8x1xi32>
    %15 = arith.cmpi slt, %13, %14 : vector<8x1xi32>
    %cst_9 = arith.constant 0.000000e+00 : f32
    %16 = vector.shape_cast %15 : vector<8x1xi1> to vector<8x1xi1>
    %17 = vector.broadcast %16 : vector<8x1xi1> to vector<8x48xi1>
    %18 = vector.broadcast %cst_9 : f32 to vector<8x48xf32>
    %19 = arith.select %17, %9, %18 : vector<8x48xi1>, vector<8x48xf32>
    %c0_i32 = arith.constant 0 : i32
    %20 = arith.cmpi eq, %arg0, %c0_i32 : i32
    %c0_i32_10 = arith.constant 0 : i32
    %21 = arith.cmpi eq, %arg1, %c0_i32_10 : i32
    %22 = arith.andi %20, %21 : i1
    %c0_i32_11 = arith.constant 0 : i32
    %23 = arith.cmpi eq, %arg2, %c0_i32_11 : i32
    %24 = arith.andi %22, %23 : i1
    %25 = arith.extui %24 : i1 to i32
    %c0_i32_12 = arith.constant 0 : i32
    %26 = arith.cmpi ne, %25, %c0_i32_12 : i32
    scf.if %26 {
      %cst_16 = arith.constant 0.000000e+00 : f32
      %33 = vector.broadcast %cst_16 : f32 to vector<1x48xf32>
      %c0_17 = arith.constant 0 : index
      %c0_18 = arith.constant 0 : index
      %34 = vector.load %arg7[%c0_17, %c0_18] : memref<1x48xf32, #tpu.memory_space<vmem>>, vector<1x48xf32>
      tpu.vector_store %arg7[%c0_17, %c0_18], %33 {strides = array<i32>} : memref<1x48xf32, #tpu.memory_space<vmem>>, vector<1x48xf32>,
      %cst_19 = arith.constant 0.000000e+00 : f32
      %35 = vector.broadcast %cst_19 : f32 to vector<1x48xf32>
      %c0_20 = arith.constant 0 : index
      %c0_21 = arith.constant 0 : index
      %36 = vector.load %arg8[%c0_20, %c0_21] : memref<1x48xf32, #tpu.memory_space<vmem>>, vector<1x48xf32>
      tpu.vector_store %arg8[%c0_20, %c0_21], %35 {strides = array<i32>} : memref<1x48xf32, #tpu.memory_space<vmem>>, vector<1x48xf32>,
    } else {
    }
    %c0_i32_13 = arith.constant 0 : i32
    %27 = arith.cmpi eq, %arg0, %c0_i32_13 : i32
    %28 = arith.extui %27 : i1 to i32
    %c0_i32_14 = arith.constant 0 : i32
    %29 = arith.cmpi ne, %28, %c0_i32_14 : i32
    scf.if %29 {
      %c0_16 = arith.constant 0 : index
      %c0_17 = arith.constant 0 : index
      %33 = vector.load %arg7[%c0_16, %c0_17] : memref<1x48xf32, #tpu.memory_space<vmem>>, vector<1x48xf32>
      %cst_18 = arith.constant dense<0.000000e+00> : vector<48xf32>
      %34 = vector.multi_reduction <add>, %19, %cst_18 [0] : vector<8x48xf32> to vector<48xf32>
      %35 = vector.shape_cast %34 : vector<48xf32> to vector<1x48xf32>
      %36 = arith.addf %33, %35 : vector<1x48xf32>
      %c0_19 = arith.constant 0 : index
      %c0_20 = arith.constant 0 : index
      %37 = vector.load %arg7[%c0_19, %c0_20] : memref<1x48xf32, #tpu.memory_space<vmem>>, vector<1x48xf32>
      tpu.vector_store %arg7[%c0_19, %c0_20], %36 {strides = array<i32>} : memref<1x48xf32, #tpu.memory_space<vmem>>, vector<1x48xf32>,
      %c0_21 = arith.constant 0 : index
      %c0_22 = arith.constant 0 : index
      %38 = vector.load %arg8[%c0_21, %c0_22] : memref<1x48xf32, #tpu.memory_space<vmem>>, vector<1x48xf32>
      %39 = arith.mulf %19, %19 : vector<8x48xf32>
      %cst_23 = arith.constant dense<0.000000e+00> : vector<48xf32>
      %40 = vector.multi_reduction <add>, %39, %cst_23 [0] : vector<8x48xf32> to vector<48xf32>
      %41 = vector.shape_cast %40 : vector<48xf32> to vector<1x48xf32>
      %42 = arith.addf %38, %41 : vector<1x48xf32>
      %c0_24 = arith.constant 0 : index
      %c0_25 = arith.constant 0 : index
      %43 = vector.load %arg8[%c0_24, %c0_25] : memref<1x48xf32, #tpu.memory_space<vmem>>, vector<1x48xf32>
      tpu.vector_store %arg8[%c0_24, %c0_25], %42 {strides = array<i32>} : memref<1x48xf32, #tpu.memory_space<vmem>>, vector<1x48xf32>,
    } else {
    }
    %c1_i32 = arith.constant 1 : i32
    %30 = arith.cmpi eq, %arg0, %c1_i32 : i32
    %31 = arith.extui %30 : i1 to i32
    %c0_i32_15 = arith.constant 0 : i32
    %32 = arith.cmpi ne, %31, %c0_i32_15 : i32
    scf.if %32 {
      %c0_16 = arith.constant 0 : index
      %c0_17 = arith.constant 0 : index
      %33 = vector.load %arg7[%c0_16, %c0_17] : memref<1x48xf32, #tpu.memory_space<vmem>>, vector<1x48xf32>
      %cst_18 = arith.constant 3.125000e-02 : f32
      %34 = vector.broadcast %cst_18 : f32 to vector<1x48xf32>
      %35 = arith.mulf %33, %34 : vector<1x48xf32>
      %c0_19 = arith.constant 0 : index
      %c0_20 = arith.constant 0 : index
      %36 = vector.load %arg8[%c0_19, %c0_20] : memref<1x48xf32, #tpu.memory_space<vmem>>, vector<1x48xf32>
      %cst_21 = arith.constant 3.125000e-02 : f32
      %37 = vector.broadcast %cst_21 : f32 to vector<1x48xf32>
      %38 = arith.mulf %36, %37 : vector<1x48xf32>
      %39 = arith.mulf %35, %35 : vector<1x48xf32>
      %40 = arith.subf %38, %39 : vector<1x48xf32>
      %41 = vector.broadcast %35 : vector<1x48xf32> to vector<8x48xf32>
      %42 = arith.subf %9, %41 : vector<8x48xf32>
      %cst_22 = arith.constant 9.99999974E-6 : f32
      %43 = vector.broadcast %cst_22 : f32 to vector<1x48xf32>
      %44 = arith.addf %40, %43 : vector<1x48xf32>
      %45 = math.rsqrt %44 : vector<1x48xf32>
      %46 = vector.broadcast %45 : vector<1x48xf32> to vector<8x48xf32>
      %47 = arith.mulf %42, %46 : vector<8x48xf32>
      %c1 = arith.constant 1 : index
      %c0_23 = arith.constant 0 : index
      %48 = vector.load %arg5[%c1, %c0_23] : memref<3x48xf32, #tpu.memory_space<vmem>>, vector<1x48xf32>
      %49 = vector.broadcast %48 : vector<1x48xf32> to vector<8x48xf32>
      %50 = arith.mulf %47, %49 : vector<8x48xf32>
      %c2 = arith.constant 2 : index
      %c0_24 = arith.constant 0 : index
      %51 = vector.load %arg5[%c2, %c0_24] : memref<3x48xf32, #tpu.memory_space<vmem>>, vector<1x48xf32>
      %52 = vector.broadcast %51 : vector<1x48xf32> to vector<8x48xf32>
      %53 = arith.addf %50, %52 : vector<8x48xf32>
      %c0_25 = arith.constant 0 : index
      %c0_26 = arith.constant 0 : index
      %c0_27 = arith.constant 0 : index
      %54 = vector.load %arg6[%c0_25, %c0_26, %c0_27] : memref<1x8x48xf32, #tpu.memory_space<vmem>>, vector<1x8x48xf32>
      %55 = vector.shape_cast %54 : vector<1x8x48xf32> to vector<8x48xf32>
      %56 = vector.shape_cast %53 : vector<8x48xf32> to vector<1x8x48xf32>
      tpu.vector_store %arg6[%c0_25, %c0_26, %c0_27], %56 {strides = array<i32>} : memref<1x8x48xf32, #tpu.memory_space<vmem>>, vector<1x8x48xf32>,
    } else {
    }
    return
  }
  func.func @transform_0(%arg0: i32, %arg1: i32, %arg2: i32) -> (i32, i32, i32) {
    %c0_i32 = arith.constant 0 : i32
    %c0_i32_0 = arith.constant 0 : i32
    return %arg1, %arg2, %c0_i32 : i32, i32, i32
  }
  func.func @transform_1(%arg0: i32, %arg1: i32, %arg2: i32) -> (i32, i32, i32) {
    %c0_i32 = arith.constant 0 : i32
    %c0_i32_0 = arith.constant 0 : i32
    %c0_i32_1 = arith.constant 0 : i32
    return %arg1, %c0_i32, %c0_i32_0 : i32, i32, i32
  }
  func.func @transform_2(%arg0: i32, %arg1: i32, %arg2: i32) -> (i32, i32) {
    %c0_i32 = arith.constant 0 : i32
    %c0_i32_0 = arith.constant 0 : i32
    %c0_i32_1 = arith.constant 0 : i32
    return %c0_i32, %c0_i32_0 : i32, i32
  }
  func.func @transform_3(%arg0: i32, %arg1: i32, %arg2: i32) -> (i32, i32, i32) {
    %c0_i32 = arith.constant 0 : i32
    %c0_i32_0 = arith.constant 0 : i32
    return %arg1, %arg2, %c0_i32 : i32, i32, i32
  }
}

module attributes {stable_mosaic.version = 11 : i64} {
  func.func @_layer_kernel(%arg0: i32, %arg1: i32, %arg2: i32, %arg3: memref<1x32x192xbf16, #tpu.memory_space<vmem>>, %arg4: memref<1x192x24xbf16, #tpu.memory_space<vmem>>, %arg5: memref<3x24xf32, #tpu.memory_space<vmem>>, %arg6: memref<1x32x24xf32, #tpu.memory_space<vmem>>, %arg7: memref<1x24xf32, #tpu.memory_space<vmem>>, %arg8: memref<1x24xf32, #tpu.memory_space<vmem>>) attributes {dimension_semantics = [#tpu.dimension_semantics<arbitrary>, #tpu.dimension_semantics<arbitrary>, #tpu.dimension_semantics<arbitrary>], iteration_bounds = array<i64: 2, 4, 1>, scalar_prefetch = 0 : i64, scratch_operands = 2 : i64, tpu.core_type = #tpu.core_type<tc>, window_params = [{transform_indices = @transform_0, window_bounds = array<i64: 1, 32, 192>}, {transform_indices = @transform_1, window_bounds = array<i64: 1, 192, 24>}, {pipeline_mode = #tpu.pipeline_mode<synchronous>, transform_indices = @transform_2, window_bounds = array<i64: 3, 24>}, {transform_indices = @transform_3, window_bounds = array<i64: 1, 32, 24>}]} {
    %c0 = arith.constant 0 : index
    %c0_0 = arith.constant 0 : index
    %c0_1 = arith.constant 0 : index
    %0 = vector.load %arg3[%c0, %c0_0, %c0_1] : memref<1x32x192xbf16, #tpu.memory_space<vmem>>, vector<1x32x192xbf16>
    %1 = vector.shape_cast %0 : vector<1x32x192xbf16> to vector<32x192xbf16>
    %c0_2 = arith.constant 0 : index
    %c0_3 = arith.constant 0 : index
    %c0_4 = arith.constant 0 : index
    %2 = vector.load %arg4[%c0_2, %c0_3, %c0_4] : memref<1x192x24xbf16, #tpu.memory_space<vmem>>, vector<1x192x24xbf16>
    %3 = vector.shape_cast %2 : vector<1x192x24xbf16> to vector<192x24xbf16>
    %cst = arith.constant dense<0.000000e+00> : vector<32x24xf32>
    %4 = tpu.matmul %1, %3, %cst {dimension_numbers = #tpu.dot_dimension_numbers<[1], [0], [0], [1], [0, 0, 1, 1], [], []>} : vector<32x192xbf16>, vector<192x24xbf16>, vector<32x24xf32> -> vector<32x24xf32>
    %c0_5 = arith.constant 0 : index
    %c0_6 = arith.constant 0 : index
    %5 = vector.load %arg5[%c0_5, %c0_6] : memref<3x24xf32, #tpu.memory_space<vmem>>, vector<1x24xf32>
    %6 = vector.broadcast %5 : vector<1x24xf32> to vector<32x24xf32>
    %7 = arith.addf %4, %6 : vector<32x24xf32>
    %cst_7 = arith.constant 0.000000e+00 : f32
    %8 = vector.broadcast %cst_7 : f32 to vector<32x24xf32>
    %9 = arith.maximumf %7, %8 : vector<32x24xf32>
    %c32_i32 = arith.constant 32 : i32
    %10 = arith.muli %arg2, %c32_i32 : i32
    %11 = tpu.iota {dimensions = array<i32: 0>} : vector<32x1xi32>
    %12 = vector.broadcast %10 : i32 to vector<32x1xi32>
    %13 = arith.addi %12, %11 : vector<32x1xi32>
    %c32_i32_8 = arith.constant 32 : i32
    %14 = vector.broadcast %c32_i32_8 : i32 to vector<32x1xi32>
    %15 = arith.cmpi slt, %13, %14 : vector<32x1xi32>
    %cst_9 = arith.constant 0.000000e+00 : f32
    %16 = vector.shape_cast %15 : vector<32x1xi1> to vector<32x1xi1>
    %17 = vector.broadcast %16 : vector<32x1xi1> to vector<32x24xi1>
    %18 = vector.broadcast %cst_9 : f32 to vector<32x24xf32>
    %19 = arith.select %17, %9, %18 : vector<32x24xi1>, vector<32x24xf32>
    %c0_i32 = arith.constant 0 : i32
    %20 = arith.cmpi eq, %arg0, %c0_i32 : i32
    %c0_i32_10 = arith.constant 0 : i32
    %21 = arith.cmpi eq, %arg1, %c0_i32_10 : i32
    %22 = arith.andi %20, %21 : i1
    %c0_i32_11 = arith.constant 0 : i32
    %23 = arith.cmpi eq, %arg2, %c0_i32_11 : i32
    %24 = arith.andi %22, %23 : i1
    %25 = arith.extui %24 : i1 to i32
    %c0_i32_12 = arith.constant 0 : i32
    %26 = arith.cmpi ne, %25, %c0_i32_12 : i32
    scf.if %26 {
      %cst_16 = arith.constant 0.000000e+00 : f32
      %33 = vector.broadcast %cst_16 : f32 to vector<1x24xf32>
      %c0_17 = arith.constant 0 : index
      %c0_18 = arith.constant 0 : index
      %34 = vector.load %arg7[%c0_17, %c0_18] : memref<1x24xf32, #tpu.memory_space<vmem>>, vector<1x24xf32>
      tpu.vector_store %arg7[%c0_17, %c0_18], %33 {strides = array<i32>} : memref<1x24xf32, #tpu.memory_space<vmem>>, vector<1x24xf32>,
      %cst_19 = arith.constant 0.000000e+00 : f32
      %35 = vector.broadcast %cst_19 : f32 to vector<1x24xf32>
      %c0_20 = arith.constant 0 : index
      %c0_21 = arith.constant 0 : index
      %36 = vector.load %arg8[%c0_20, %c0_21] : memref<1x24xf32, #tpu.memory_space<vmem>>, vector<1x24xf32>
      tpu.vector_store %arg8[%c0_20, %c0_21], %35 {strides = array<i32>} : memref<1x24xf32, #tpu.memory_space<vmem>>, vector<1x24xf32>,
    } else {
    }
    %c0_i32_13 = arith.constant 0 : i32
    %27 = arith.cmpi eq, %arg0, %c0_i32_13 : i32
    %28 = arith.extui %27 : i1 to i32
    %c0_i32_14 = arith.constant 0 : i32
    %29 = arith.cmpi ne, %28, %c0_i32_14 : i32
    scf.if %29 {
      %c0_16 = arith.constant 0 : index
      %c0_17 = arith.constant 0 : index
      %33 = vector.load %arg7[%c0_16, %c0_17] : memref<1x24xf32, #tpu.memory_space<vmem>>, vector<1x24xf32>
      %cst_18 = arith.constant dense<0.000000e+00> : vector<24xf32>
      %34 = vector.multi_reduction <add>, %19, %cst_18 [0] : vector<32x24xf32> to vector<24xf32>
      %35 = vector.shape_cast %34 : vector<24xf32> to vector<1x24xf32>
      %36 = arith.addf %33, %35 : vector<1x24xf32>
      %c0_19 = arith.constant 0 : index
      %c0_20 = arith.constant 0 : index
      %37 = vector.load %arg7[%c0_19, %c0_20] : memref<1x24xf32, #tpu.memory_space<vmem>>, vector<1x24xf32>
      tpu.vector_store %arg7[%c0_19, %c0_20], %36 {strides = array<i32>} : memref<1x24xf32, #tpu.memory_space<vmem>>, vector<1x24xf32>,
      %c0_21 = arith.constant 0 : index
      %c0_22 = arith.constant 0 : index
      %38 = vector.load %arg8[%c0_21, %c0_22] : memref<1x24xf32, #tpu.memory_space<vmem>>, vector<1x24xf32>
      %39 = arith.mulf %19, %19 : vector<32x24xf32>
      %cst_23 = arith.constant dense<0.000000e+00> : vector<24xf32>
      %40 = vector.multi_reduction <add>, %39, %cst_23 [0] : vector<32x24xf32> to vector<24xf32>
      %41 = vector.shape_cast %40 : vector<24xf32> to vector<1x24xf32>
      %42 = arith.addf %38, %41 : vector<1x24xf32>
      %c0_24 = arith.constant 0 : index
      %c0_25 = arith.constant 0 : index
      %43 = vector.load %arg8[%c0_24, %c0_25] : memref<1x24xf32, #tpu.memory_space<vmem>>, vector<1x24xf32>
      tpu.vector_store %arg8[%c0_24, %c0_25], %42 {strides = array<i32>} : memref<1x24xf32, #tpu.memory_space<vmem>>, vector<1x24xf32>,
    } else {
    }
    %c1_i32 = arith.constant 1 : i32
    %30 = arith.cmpi eq, %arg0, %c1_i32 : i32
    %31 = arith.extui %30 : i1 to i32
    %c0_i32_15 = arith.constant 0 : i32
    %32 = arith.cmpi ne, %31, %c0_i32_15 : i32
    scf.if %32 {
      %c0_16 = arith.constant 0 : index
      %c0_17 = arith.constant 0 : index
      %33 = vector.load %arg7[%c0_16, %c0_17] : memref<1x24xf32, #tpu.memory_space<vmem>>, vector<1x24xf32>
      %cst_18 = arith.constant 7.812500e-03 : f32
      %34 = vector.broadcast %cst_18 : f32 to vector<1x24xf32>
      %35 = arith.mulf %33, %34 : vector<1x24xf32>
      %c0_19 = arith.constant 0 : index
      %c0_20 = arith.constant 0 : index
      %36 = vector.load %arg8[%c0_19, %c0_20] : memref<1x24xf32, #tpu.memory_space<vmem>>, vector<1x24xf32>
      %cst_21 = arith.constant 7.812500e-03 : f32
      %37 = vector.broadcast %cst_21 : f32 to vector<1x24xf32>
      %38 = arith.mulf %36, %37 : vector<1x24xf32>
      %39 = arith.mulf %35, %35 : vector<1x24xf32>
      %40 = arith.subf %38, %39 : vector<1x24xf32>
      %41 = vector.broadcast %35 : vector<1x24xf32> to vector<32x24xf32>
      %42 = arith.subf %9, %41 : vector<32x24xf32>
      %cst_22 = arith.constant 9.99999974E-6 : f32
      %43 = vector.broadcast %cst_22 : f32 to vector<1x24xf32>
      %44 = arith.addf %40, %43 : vector<1x24xf32>
      %45 = math.rsqrt %44 : vector<1x24xf32>
      %46 = vector.broadcast %45 : vector<1x24xf32> to vector<32x24xf32>
      %47 = arith.mulf %42, %46 : vector<32x24xf32>
      %c1 = arith.constant 1 : index
      %c0_23 = arith.constant 0 : index
      %48 = vector.load %arg5[%c1, %c0_23] : memref<3x24xf32, #tpu.memory_space<vmem>>, vector<1x24xf32>
      %49 = vector.broadcast %48 : vector<1x24xf32> to vector<32x24xf32>
      %50 = arith.mulf %47, %49 : vector<32x24xf32>
      %c2 = arith.constant 2 : index
      %c0_24 = arith.constant 0 : index
      %51 = vector.load %arg5[%c2, %c0_24] : memref<3x24xf32, #tpu.memory_space<vmem>>, vector<1x24xf32>
      %52 = vector.broadcast %51 : vector<1x24xf32> to vector<32x24xf32>
      %53 = arith.addf %50, %52 : vector<32x24xf32>
      %c0_25 = arith.constant 0 : index
      %c0_26 = arith.constant 0 : index
      %c0_27 = arith.constant 0 : index
      %54 = vector.load %arg6[%c0_25, %c0_26, %c0_27] : memref<1x32x24xf32, #tpu.memory_space<vmem>>, vector<1x32x24xf32>
      %55 = vector.shape_cast %54 : vector<1x32x24xf32> to vector<32x24xf32>
      %56 = vector.shape_cast %53 : vector<32x24xf32> to vector<1x32x24xf32>
      tpu.vector_store %arg6[%c0_25, %c0_26, %c0_27], %56 {strides = array<i32>} : memref<1x32x24xf32, #tpu.memory_space<vmem>>, vector<1x32x24xf32>,
    } else {
    }
    return
  }
  func.func @transform_0(%arg0: i32, %arg1: i32, %arg2: i32) -> (i32, i32, i32) {
    %c0_i32 = arith.constant 0 : i32
    %c0_i32_0 = arith.constant 0 : i32
    return %arg1, %arg2, %c0_i32 : i32, i32, i32
  }
  func.func @transform_1(%arg0: i32, %arg1: i32, %arg2: i32) -> (i32, i32, i32) {
    %c0_i32 = arith.constant 0 : i32
    %c0_i32_0 = arith.constant 0 : i32
    %c0_i32_1 = arith.constant 0 : i32
    return %arg1, %c0_i32, %c0_i32_0 : i32, i32, i32
  }
  func.func @transform_2(%arg0: i32, %arg1: i32, %arg2: i32) -> (i32, i32) {
    %c0_i32 = arith.constant 0 : i32
    %c0_i32_0 = arith.constant 0 : i32
    %c0_i32_1 = arith.constant 0 : i32
    return %c0_i32, %c0_i32_0 : i32, i32
  }
  func.func @transform_3(%arg0: i32, %arg1: i32, %arg2: i32) -> (i32, i32, i32) {
    %c0_i32 = arith.constant 0 : i32
    %c0_i32_0 = arith.constant 0 : i32
    return %arg1, %arg2, %c0_i32 : i32, i32, i32
  }
}

module attributes {stable_mosaic.version = 11 : i64} {
  func.func @_layer_kernel(%arg0: i32, %arg1: i32, %arg2: i32, %arg3: memref<1x128x96xbf16, #tpu.memory_space<vmem>>, %arg4: memref<1x96x12xbf16, #tpu.memory_space<vmem>>, %arg5: memref<3x12xf32, #tpu.memory_space<vmem>>, %arg6: memref<1x128x12xf32, #tpu.memory_space<vmem>>, %arg7: memref<1x12xf32, #tpu.memory_space<vmem>>, %arg8: memref<1x12xf32, #tpu.memory_space<vmem>>) attributes {dimension_semantics = [#tpu.dimension_semantics<arbitrary>, #tpu.dimension_semantics<arbitrary>, #tpu.dimension_semantics<arbitrary>], iteration_bounds = array<i64: 2, 4, 1>, scalar_prefetch = 0 : i64, scratch_operands = 2 : i64, tpu.core_type = #tpu.core_type<tc>, window_params = [{transform_indices = @transform_0, window_bounds = array<i64: 1, 128, 96>}, {transform_indices = @transform_1, window_bounds = array<i64: 1, 96, 12>}, {pipeline_mode = #tpu.pipeline_mode<synchronous>, transform_indices = @transform_2, window_bounds = array<i64: 3, 12>}, {transform_indices = @transform_3, window_bounds = array<i64: 1, 128, 12>}]} {
    %c0 = arith.constant 0 : index
    %c0_0 = arith.constant 0 : index
    %c0_1 = arith.constant 0 : index
    %0 = vector.load %arg3[%c0, %c0_0, %c0_1] : memref<1x128x96xbf16, #tpu.memory_space<vmem>>, vector<1x128x96xbf16>
    %1 = vector.shape_cast %0 : vector<1x128x96xbf16> to vector<128x96xbf16>
    %c0_2 = arith.constant 0 : index
    %c0_3 = arith.constant 0 : index
    %c0_4 = arith.constant 0 : index
    %2 = vector.load %arg4[%c0_2, %c0_3, %c0_4] : memref<1x96x12xbf16, #tpu.memory_space<vmem>>, vector<1x96x12xbf16>
    %3 = vector.shape_cast %2 : vector<1x96x12xbf16> to vector<96x12xbf16>
    %cst = arith.constant dense<0.000000e+00> : vector<128x12xf32>
    %4 = tpu.matmul %1, %3, %cst {dimension_numbers = #tpu.dot_dimension_numbers<[1], [0], [0], [1], [0, 0, 1, 1], [], []>} : vector<128x96xbf16>, vector<96x12xbf16>, vector<128x12xf32> -> vector<128x12xf32>
    %c0_5 = arith.constant 0 : index
    %c0_6 = arith.constant 0 : index
    %5 = vector.load %arg5[%c0_5, %c0_6] : memref<3x12xf32, #tpu.memory_space<vmem>>, vector<1x12xf32>
    %6 = vector.broadcast %5 : vector<1x12xf32> to vector<128x12xf32>
    %7 = arith.addf %4, %6 : vector<128x12xf32>
    %cst_7 = arith.constant 0.000000e+00 : f32
    %8 = vector.broadcast %cst_7 : f32 to vector<128x12xf32>
    %9 = arith.maximumf %7, %8 : vector<128x12xf32>
    %c128_i32 = arith.constant 128 : i32
    %10 = arith.muli %arg2, %c128_i32 : i32
    %11 = tpu.iota {dimensions = array<i32: 0>} : vector<128x1xi32>
    %12 = vector.broadcast %10 : i32 to vector<128x1xi32>
    %13 = arith.addi %12, %11 : vector<128x1xi32>
    %c128_i32_8 = arith.constant 128 : i32
    %14 = vector.broadcast %c128_i32_8 : i32 to vector<128x1xi32>
    %15 = arith.cmpi slt, %13, %14 : vector<128x1xi32>
    %cst_9 = arith.constant 0.000000e+00 : f32
    %16 = vector.shape_cast %15 : vector<128x1xi1> to vector<128x1xi1>
    %17 = vector.broadcast %16 : vector<128x1xi1> to vector<128x12xi1>
    %18 = vector.broadcast %cst_9 : f32 to vector<128x12xf32>
    %19 = arith.select %17, %9, %18 : vector<128x12xi1>, vector<128x12xf32>
    %c0_i32 = arith.constant 0 : i32
    %20 = arith.cmpi eq, %arg0, %c0_i32 : i32
    %c0_i32_10 = arith.constant 0 : i32
    %21 = arith.cmpi eq, %arg1, %c0_i32_10 : i32
    %22 = arith.andi %20, %21 : i1
    %c0_i32_11 = arith.constant 0 : i32
    %23 = arith.cmpi eq, %arg2, %c0_i32_11 : i32
    %24 = arith.andi %22, %23 : i1
    %25 = arith.extui %24 : i1 to i32
    %c0_i32_12 = arith.constant 0 : i32
    %26 = arith.cmpi ne, %25, %c0_i32_12 : i32
    scf.if %26 {
      %cst_16 = arith.constant 0.000000e+00 : f32
      %33 = vector.broadcast %cst_16 : f32 to vector<1x12xf32>
      %c0_17 = arith.constant 0 : index
      %c0_18 = arith.constant 0 : index
      %34 = vector.load %arg7[%c0_17, %c0_18] : memref<1x12xf32, #tpu.memory_space<vmem>>, vector<1x12xf32>
      tpu.vector_store %arg7[%c0_17, %c0_18], %33 {strides = array<i32>} : memref<1x12xf32, #tpu.memory_space<vmem>>, vector<1x12xf32>,
      %cst_19 = arith.constant 0.000000e+00 : f32
      %35 = vector.broadcast %cst_19 : f32 to vector<1x12xf32>
      %c0_20 = arith.constant 0 : index
      %c0_21 = arith.constant 0 : index
      %36 = vector.load %arg8[%c0_20, %c0_21] : memref<1x12xf32, #tpu.memory_space<vmem>>, vector<1x12xf32>
      tpu.vector_store %arg8[%c0_20, %c0_21], %35 {strides = array<i32>} : memref<1x12xf32, #tpu.memory_space<vmem>>, vector<1x12xf32>,
    } else {
    }
    %c0_i32_13 = arith.constant 0 : i32
    %27 = arith.cmpi eq, %arg0, %c0_i32_13 : i32
    %28 = arith.extui %27 : i1 to i32
    %c0_i32_14 = arith.constant 0 : i32
    %29 = arith.cmpi ne, %28, %c0_i32_14 : i32
    scf.if %29 {
      %c0_16 = arith.constant 0 : index
      %c0_17 = arith.constant 0 : index
      %33 = vector.load %arg7[%c0_16, %c0_17] : memref<1x12xf32, #tpu.memory_space<vmem>>, vector<1x12xf32>
      %cst_18 = arith.constant dense<0.000000e+00> : vector<12xf32>
      %34 = vector.multi_reduction <add>, %19, %cst_18 [0] : vector<128x12xf32> to vector<12xf32>
      %35 = vector.shape_cast %34 : vector<12xf32> to vector<1x12xf32>
      %36 = arith.addf %33, %35 : vector<1x12xf32>
      %c0_19 = arith.constant 0 : index
      %c0_20 = arith.constant 0 : index
      %37 = vector.load %arg7[%c0_19, %c0_20] : memref<1x12xf32, #tpu.memory_space<vmem>>, vector<1x12xf32>
      tpu.vector_store %arg7[%c0_19, %c0_20], %36 {strides = array<i32>} : memref<1x12xf32, #tpu.memory_space<vmem>>, vector<1x12xf32>,
      %c0_21 = arith.constant 0 : index
      %c0_22 = arith.constant 0 : index
      %38 = vector.load %arg8[%c0_21, %c0_22] : memref<1x12xf32, #tpu.memory_space<vmem>>, vector<1x12xf32>
      %39 = arith.mulf %19, %19 : vector<128x12xf32>
      %cst_23 = arith.constant dense<0.000000e+00> : vector<12xf32>
      %40 = vector.multi_reduction <add>, %39, %cst_23 [0] : vector<128x12xf32> to vector<12xf32>
      %41 = vector.shape_cast %40 : vector<12xf32> to vector<1x12xf32>
      %42 = arith.addf %38, %41 : vector<1x12xf32>
      %c0_24 = arith.constant 0 : index
      %c0_25 = arith.constant 0 : index
      %43 = vector.load %arg8[%c0_24, %c0_25] : memref<1x12xf32, #tpu.memory_space<vmem>>, vector<1x12xf32>
      tpu.vector_store %arg8[%c0_24, %c0_25], %42 {strides = array<i32>} : memref<1x12xf32, #tpu.memory_space<vmem>>, vector<1x12xf32>,
    } else {
    }
    %c1_i32 = arith.constant 1 : i32
    %30 = arith.cmpi eq, %arg0, %c1_i32 : i32
    %31 = arith.extui %30 : i1 to i32
    %c0_i32_15 = arith.constant 0 : i32
    %32 = arith.cmpi ne, %31, %c0_i32_15 : i32
    scf.if %32 {
      %c0_16 = arith.constant 0 : index
      %c0_17 = arith.constant 0 : index
      %33 = vector.load %arg7[%c0_16, %c0_17] : memref<1x12xf32, #tpu.memory_space<vmem>>, vector<1x12xf32>
      %cst_18 = arith.constant 0.001953125 : f32
      %34 = vector.broadcast %cst_18 : f32 to vector<1x12xf32>
      %35 = arith.mulf %33, %34 : vector<1x12xf32>
      %c0_19 = arith.constant 0 : index
      %c0_20 = arith.constant 0 : index
      %36 = vector.load %arg8[%c0_19, %c0_20] : memref<1x12xf32, #tpu.memory_space<vmem>>, vector<1x12xf32>
      %cst_21 = arith.constant 0.001953125 : f32
      %37 = vector.broadcast %cst_21 : f32 to vector<1x12xf32>
      %38 = arith.mulf %36, %37 : vector<1x12xf32>
      %39 = arith.mulf %35, %35 : vector<1x12xf32>
      %40 = arith.subf %38, %39 : vector<1x12xf32>
      %41 = vector.broadcast %35 : vector<1x12xf32> to vector<128x12xf32>
      %42 = arith.subf %9, %41 : vector<128x12xf32>
      %cst_22 = arith.constant 9.99999974E-6 : f32
      %43 = vector.broadcast %cst_22 : f32 to vector<1x12xf32>
      %44 = arith.addf %40, %43 : vector<1x12xf32>
      %45 = math.rsqrt %44 : vector<1x12xf32>
      %46 = vector.broadcast %45 : vector<1x12xf32> to vector<128x12xf32>
      %47 = arith.mulf %42, %46 : vector<128x12xf32>
      %c1 = arith.constant 1 : index
      %c0_23 = arith.constant 0 : index
      %48 = vector.load %arg5[%c1, %c0_23] : memref<3x12xf32, #tpu.memory_space<vmem>>, vector<1x12xf32>
      %49 = vector.broadcast %48 : vector<1x12xf32> to vector<128x12xf32>
      %50 = arith.mulf %47, %49 : vector<128x12xf32>
      %c2 = arith.constant 2 : index
      %c0_24 = arith.constant 0 : index
      %51 = vector.load %arg5[%c2, %c0_24] : memref<3x12xf32, #tpu.memory_space<vmem>>, vector<1x12xf32>
      %52 = vector.broadcast %51 : vector<1x12xf32> to vector<128x12xf32>
      %53 = arith.addf %50, %52 : vector<128x12xf32>
      %c0_25 = arith.constant 0 : index
      %c0_26 = arith.constant 0 : index
      %c0_27 = arith.constant 0 : index
      %54 = vector.load %arg6[%c0_25, %c0_26, %c0_27] : memref<1x128x12xf32, #tpu.memory_space<vmem>>, vector<1x128x12xf32>
      %55 = vector.shape_cast %54 : vector<1x128x12xf32> to vector<128x12xf32>
      %56 = vector.shape_cast %53 : vector<128x12xf32> to vector<1x128x12xf32>
      tpu.vector_store %arg6[%c0_25, %c0_26, %c0_27], %56 {strides = array<i32>} : memref<1x128x12xf32, #tpu.memory_space<vmem>>, vector<1x128x12xf32>,
    } else {
    }
    return
  }
  func.func @transform_0(%arg0: i32, %arg1: i32, %arg2: i32) -> (i32, i32, i32) {
    %c0_i32 = arith.constant 0 : i32
    %c0_i32_0 = arith.constant 0 : i32
    return %arg1, %arg2, %c0_i32 : i32, i32, i32
  }
  func.func @transform_1(%arg0: i32, %arg1: i32, %arg2: i32) -> (i32, i32, i32) {
    %c0_i32 = arith.constant 0 : i32
    %c0_i32_0 = arith.constant 0 : i32
    %c0_i32_1 = arith.constant 0 : i32
    return %arg1, %c0_i32, %c0_i32_0 : i32, i32, i32
  }
  func.func @transform_2(%arg0: i32, %arg1: i32, %arg2: i32) -> (i32, i32) {
    %c0_i32 = arith.constant 0 : i32
    %c0_i32_0 = arith.constant 0 : i32
    %c0_i32_1 = arith.constant 0 : i32
    return %c0_i32, %c0_i32_0 : i32, i32
  }
  func.func @transform_3(%arg0: i32, %arg1: i32, %arg2: i32) -> (i32, i32, i32) {
    %c0_i32 = arith.constant 0 : i32
    %c0_i32_0 = arith.constant 0 : i32
    return %arg1, %arg2, %c0_i32 : i32, i32, i32
  }
}

module attributes {stable_mosaic.version = 11 : i64} {
  func.func @_layer_kernel(%arg0: i32, %arg1: i32, %arg2: i32, %arg3: memref<1x512x48xbf16, #tpu.memory_space<vmem>>, %arg4: memref<1x48x3xbf16, #tpu.memory_space<vmem>>, %arg5: memref<1x3xf32, #tpu.memory_space<vmem>>, %arg6: memref<1x512x3xf32, #tpu.memory_space<vmem>>) attributes {dimension_semantics = [#tpu.dimension_semantics<arbitrary>, #tpu.dimension_semantics<parallel>, #tpu.dimension_semantics<parallel>], iteration_bounds = array<i64: 1, 4, 1>, scalar_prefetch = 0 : i64, scratch_operands = 0 : i64, tpu.core_type = #tpu.core_type<tc>, window_params = [{transform_indices = @transform_0, window_bounds = array<i64: 1, 512, 48>}, {transform_indices = @transform_1, window_bounds = array<i64: 1, 48, 3>}, {pipeline_mode = #tpu.pipeline_mode<synchronous>, transform_indices = @transform_2, window_bounds = array<i64: 1, 3>}, {transform_indices = @transform_3, window_bounds = array<i64: 1, 512, 3>}]} {
    %c0 = arith.constant 0 : index
    %c0_0 = arith.constant 0 : index
    %c0_1 = arith.constant 0 : index
    %0 = vector.load %arg3[%c0, %c0_0, %c0_1] : memref<1x512x48xbf16, #tpu.memory_space<vmem>>, vector<1x512x48xbf16>
    %1 = vector.shape_cast %0 : vector<1x512x48xbf16> to vector<512x48xbf16>
    %c0_2 = arith.constant 0 : index
    %c0_3 = arith.constant 0 : index
    %c0_4 = arith.constant 0 : index
    %2 = vector.load %arg4[%c0_2, %c0_3, %c0_4] : memref<1x48x3xbf16, #tpu.memory_space<vmem>>, vector<1x48x3xbf16>
    %3 = vector.shape_cast %2 : vector<1x48x3xbf16> to vector<48x3xbf16>
    %cst = arith.constant dense<0.000000e+00> : vector<512x3xf32>
    %4 = tpu.matmul %1, %3, %cst {dimension_numbers = #tpu.dot_dimension_numbers<[1], [0], [0], [1], [0, 0, 1, 1], [], []>} : vector<512x48xbf16>, vector<48x3xbf16>, vector<512x3xf32> -> vector<512x3xf32>
    %c0_5 = arith.constant 0 : index
    %c0_6 = arith.constant 0 : index
    %5 = vector.load %arg5[%c0_5, %c0_6] : memref<1x3xf32, #tpu.memory_space<vmem>>, vector<1x3xf32>
    %6 = vector.broadcast %5 : vector<1x3xf32> to vector<512x3xf32>
    %7 = arith.addf %4, %6 : vector<512x3xf32>
    %8 = math.tanh %7 : vector<512x3xf32>
    %c0_7 = arith.constant 0 : index
    %c0_8 = arith.constant 0 : index
    %c0_9 = arith.constant 0 : index
    %9 = vector.load %arg6[%c0_7, %c0_8, %c0_9] : memref<1x512x3xf32, #tpu.memory_space<vmem>>, vector<1x512x3xf32>
    %10 = vector.shape_cast %9 : vector<1x512x3xf32> to vector<512x3xf32>
    %11 = vector.shape_cast %8 : vector<512x3xf32> to vector<1x512x3xf32>
    tpu.vector_store %arg6[%c0_7, %c0_8, %c0_9], %11 {strides = array<i32>} : memref<1x512x3xf32, #tpu.memory_space<vmem>>, vector<1x512x3xf32>,
    return
  }
  func.func @transform_0(%arg0: i32, %arg1: i32, %arg2: i32) -> (i32, i32, i32) {
    %c0_i32 = arith.constant 0 : i32
    %c0_i32_0 = arith.constant 0 : i32
    return %arg1, %arg2, %c0_i32 : i32, i32, i32
  }
  func.func @transform_1(%arg0: i32, %arg1: i32, %arg2: i32) -> (i32, i32, i32) {
    %c0_i32 = arith.constant 0 : i32
    %c0_i32_0 = arith.constant 0 : i32
    %c0_i32_1 = arith.constant 0 : i32
    return %arg1, %c0_i32, %c0_i32_0 : i32, i32, i32
  }
  func.func @transform_2(%arg0: i32, %arg1: i32, %arg2: i32) -> (i32, i32) {
    %c0_i32 = arith.constant 0 : i32
    %c0_i32_0 = arith.constant 0 : i32
    %c0_i32_1 = arith.constant 0 : i32
    return %c0_i32, %c0_i32_0 : i32, i32
  }
  func.func @transform_3(%arg0: i32, %arg1: i32, %arg2: i32) -> (i32, i32, i32) {
    %c0_i32 = arith.constant 0 : i32
    %c0_i32_0 = arith.constant 0 : i32
    return %arg1, %arg2, %c0_i32 : i32, i32, i32
  }
}

</mosaic_0001>

<llo_original>
// kernel: vae_forward.10
$region0: #{vae_forward.10}
  #allocation0 [shape = 'u32[]', space=smem, size = 0x4, offset = 0x4, fixed_abs, tag = 'smem constant byte address 0x4 - core index']
  #allocation1 [shape = 'u32[144,128]{1,0:T(1,128)}', space=vmem, size = 0x12000, scoped, tag = 'internal scratch']
  %s0 = inlined_call_operand.vmem [shape: bf16[1,512,48], index: 0, kind: input, shape index: {}]
  %s1 = inlined_call_operand.vmem [shape: bf16[1,48,12], index: 1, kind: input, shape index: {}]
  %s2 = inlined_call_operand.vmem [shape: f32[3,12], index: 2, kind: input, shape index: {}]
  %s3 = inlined_call_operand.vmem [shape: f32[1,512,12], index: 3, kind: output, shape index: {}]
  %s4 = sld [smem:[#allocation0]]
  $region22: #{vae_forward.10} parent=0
    _
  %s6 = ssub.s32 1, %s4
  %s7 = scalar_select 0, %s6, %s4
  // Predicated region
  $region2: #{vae_forward.10} parent=0 // pred_check
    _
  $region3: #{vae_forward.10} parent=0 // pred_check_branch
    %9 = sbr.rel (0) target = $region5
  $region4: #{vae_forward.10} parent=0 // pred_region
    _
  $region5: #{vae_forward.10} parent=0 // pred_fallthru
    _
  // Predicated region
  $region6: #{vae_forward.10} parent=0 // pred_check
    _
  $region7: #{vae_forward.10} parent=0 // pred_check_branch
    %11 = sbr.rel (0) target = $region9
  $region8: #{vae_forward.10} parent=0 // pred_region
    _
  $region9: #{vae_forward.10} parent=0 // pred_fallthru
    _
  // Predicated region
  $region10: #{vae_forward.10} parent=0 // pred_check
    _
  $region11: #{vae_forward.10} parent=0 // pred_check_branch
    %13 = sbr.rel (0) target = $region13
  $region12: #{vae_forward.10} parent=0 // pred_region
    _
  $region13: #{vae_forward.10} parent=0 // pred_fallthru
    _
  %v15 = vld [vmem:[%s0] sm:$0xf]
  %v16 = vld [vmem:[%s0 + $0x4] sm:$0xf]
  %v17 = vld [vmem:[%s0 + $0x8] sm:$0xf]
  %v18 = vld [vmem:[%s0 + $0xc] sm:$0xf]
  %v19 = vld [vmem:[%s0 + $0x10] sm:$0xf]
  %v20 = vld [vmem:[%s0 + $0x14] sm:$0xf]
  %v21 = vld [vmem:[%s0 + $0x18] sm:$0xf]
  %v22 = vld [vmem:[%s0 + $0x1c] sm:$0xf]
  %v23 = vld [vmem:[%s0 + $0x20] sm:$0xf]
  %v24 = vld [vmem:[%s0 + $0x24] sm:$0xf]
  %v25 = vld [vmem:[%s0 + $0x28] sm:$0xf]
  %v26 = vld [vmem:[%s0 + $0x2c] sm:$0xf]
  %v27 = vld [vmem:[%s0 + $0x30] sm:$0xf]
  %v28 = vld [vmem:[%s0 + $0x34] sm:$0xf]
  %v29 = vld [vmem:[%s0 + $0x38] sm:$0xf]
  %v30 = vld [vmem:[%s0 + $0x3c] sm:$0xf]
  %v31 = vld [vmem:[%s0 + $0x40] sm:$0xf]
  %v32 = vld [vmem:[%s0 + $0x44] sm:$0xf]
  %v33 = vld [vmem:[%s0 + $0x48] sm:$0xf]
  %v34 = vld [vmem:[%s0 + $0x4c] sm:$0xf]
  %v35 = vld [vmem:[%s0 + $0x50] sm:$0xf]
  %v36 = vld [vmem:[%s0 + $0x54] sm:$0xf]
  %v37 = vld [vmem:[%s0 + $0x58] sm:$0xf]
  %v38 = vld [vmem:[%s0 + $0x5c] sm:$0xf]
  %v39 = vld [vmem:[%s0 + $0x60] sm:$0xf]
  %v40 = vld [vmem:[%s0 + $0x64] sm:$0xf]
  %v41 = vld [vmem:[%s0 + $0x68] sm:$0xf]
  %v42 = vld [vmem:[%s0 + $0x6c] sm:$0xf]
  %v43 = vld [vmem:[%s0 + $0x70] sm:$0xf]
  %v44 = vld [vmem:[%s0 + $0x74] sm:$0xf]
  %v45 = vld [vmem:[%s0 + $0x78] sm:$0xf]
  %v46 = vld [vmem:[%s0 + $0x7c] sm:$0xf]
  %v47 = vld [vmem:[%s0 + $0x80] sm:$0xf]
  %v48 = vld [vmem:[%s0 + $0x84] sm:$0xf]
  %v49 = vld [vmem:[%s0 + $0x88] sm:$0xf]
  %v50 = vld [vmem:[%s0 + $0x8c] sm:$0xf]
  %v51 = vld [vmem:[%s0 + $0x90] sm:$0xf]
  %v52 = vld [vmem:[%s0 + $0x94] sm:$0xf]
  %v53 = vld [vmem:[%s0 + $0x98] sm:$0xf]
  %v54 = vld [vmem:[%s0 + $0x9c] sm:$0xf]
  %v55 = vld [vmem:[%s0 + $0xa0] sm:$0xf]
  %v56 = vld [vmem:[%s0 + $0xa4] sm:$0xf]
  %v57 = vld [vmem:[%s0 + $0xa8] sm:$0xf]
  %v58 = vld [vmem:[%s0 + $0xac] sm:$0xf]
  %v59 = vld [vmem:[%s0 + $0xb0] sm:$0xf]
  %v60 = vld [vmem:[%s0 + $0xb4] sm:$0xf]
  %v61 = vld [vmem:[%s0 + $0xb8] sm:$0xf]
  %v62 = vld [vmem:[%s0 + $0xbc] sm:$0xf]
  %v63 = vld [vmem:[%s0 + $0xc0] sm:$0xf]
  %v64 = vld [vmem:[%s0 + $0xc4] sm:$0xf]
  %v65 = vld [vmem:[%s0 + $0xc8] sm:$0xf]
  %v66 = vld [vmem:[%s0 + $0xcc] sm:$0xf]
  %v67 = vld [vmem:[%s0 + $0xd0] sm:$0xf]
  %v68 = vld [vmem:[%s0 + $0xd4] sm:$0xf]
  %v69 = vld [vmem:[%s0 + $0xd8] sm:$0xf]
  %v70 = vld [vmem:[%s0 + $0xdc] sm:$0xf]
  %v71 = vld [vmem:[%s0 + $0xe0] sm:$0xf]
  %v72 = vld [vmem:[%s0 + $0xe4] sm:$0xf]
  %v73 = vld [vmem:[%s0 + $0xe8] sm:$0xf]
  %v74 = vld [vmem:[%s0 + $0xec] sm:$0xf]
  %v75 = vld [vmem:[%s0 + $0xf0] sm:$0xf]
  %v76 = vld [vmem:[%s0 + $0xf4] sm:$0xf]
  %v77 = vld [vmem:[%s0 + $0xf8] sm:$0xf]
  %v78 = vld [vmem:[%s0 + $0xfc] sm:$0xf]
  %v79 = vld [vmem:[%s1] sm:$0xf]
  %v80 = vld [vmem:[%s1 + $0x4] sm:$0xf]
  %v81 = vld [vmem:[%s1 + $0x8] sm:$0xf]
  %v82 = vld [vmem:[%s1 + $0xc] sm:$0xf]
  %v83 = vld [vmem:[%s1 + $0x10] sm:$0xf]
  %v84 = vld [vmem:[%s1 + $0x14] sm:$0xf]
  %v85 = vld [vmem:[%s2] sm:$0x1]
  %v86 = vlaneseq
  %v87 = vshrl.u32 %v86, 7
  %v88 = vsub.s32 0, %v87
  %v89 = vrot.slane %v85, %v88
  %v154 = vunpack.c.l.b16 %v15
  %v155 = vunpack.c.l.b16 %v16
  %v156 = vunpack.c.l.b16 %v17
  %v157 = vunpack.c.l.b16 %v18
  %v158 = vunpack.c.l.b16 %v19
  %v159 = vunpack.c.l.b16 %v20
  %v160 = vunpack.c.l.b16 %v21
  %v161 = vunpack.c.l.b16 %v22
  %v162 = vunpack.c.l.b16 %v23
  %v163 = vunpack.c.l.b16 %v24
  %v164 = vunpack.c.l.b16 %v25
  %v165 = vunpack.c.l.b16 %v26
  %v166 = vunpack.c.l.b16 %v27
  %v167 = vunpack.c.l.b16 %v28
  %v168 = vunpack.c.l.b16 %v29
  %v169 = vunpack.c.l.b16 %v30
  %v170 = vunpack.c.l.b16 %v31
  %v171 = vunpack.c.l.b16 %v32
  %v172 = vunpack.c.l.b16 %v33
  %v173 = vunpack.c.l.b16 %v34
  %v174 = vunpack.c.l.b16 %v35
  %v175 = vunpack.c.l.b16 %v36
  %v176 = vunpack.c.l.b16 %v37
  %v177 = vunpack.c.l.b16 %v38
  %v178 = vunpack.c.l.b16 %v39
  %v179 = vunpack.c.l.b16 %v40
  %v180 = vunpack.c.l.b16 %v41
  %v181 = vunpack.c.l.b16 %v42
  %v182 = vunpack.c.l.b16 %v43
  %v183 = vunpack.c.l.b16 %v44
  %v184 = vunpack.c.l.b16 %v45
  %v185 = vunpack.c.l.b16 %v46
  %v186 = vunpack.c.l.b16 %v47
  %v187 = vunpack.c.l.b16 %v48
  %v188 = vunpack.c.l.b16 %v49
  %v189 = vunpack.c.l.b16 %v50
  %v190 = vunpack.c.l.b16 %v51
  %v191 = vunpack.c.l.b16 %v52
  %v192 = vunpack.c.l.b16 %v53
  %v193 = vunpack.c.l.b16 %v54
  %v194 = vunpack.c.l.b16 %v55
  %v195 = vunpack.c.l.b16 %v56
  %v196 = vunpack.c.l.b16 %v57
  %v197 = vunpack.c.l.b16 %v58
  %v198 = vunpack.c.l.b16 %v59
  %v199 = vunpack.c.l.b16 %v60
  %v200 = vunpack.c.l.b16 %v61
  %v201 = vunpack.c.l.b16 %v62
  %v202 = vunpack.c.l.b16 %v63
  %v203 = vunpack.c.l.b16 %v64
  %v204 = vunpack.c.l.b16 %v65
  %v205 = vunpack.c.l.b16 %v66
  %v206 = vunpack.c.l.b16 %v67
  %v207 = vunpack.c.l.b16 %v68
  %v208 = vunpack.c.l.b16 %v69
  %v209 = vunpack.c.l.b16 %v70
  %v210 = vunpack.c.l.b16 %v71
  %v211 = vunpack.c.l.b16 %v72
  %v212 = vunpack.c.l.b16 %v73
  %v213 = vunpack.c.l.b16 %v74
  %v214 = vunpack.c.l.b16 %v75
  %v215 = vunpack.c.l.b16 %v76
  %v216 = vunpack.c.l.b16 %v77
  %v217 = vunpack.c.l.b16 %v78
  %v218 = vpack.c.b16 %v155, %v154
  %v219 = vpack.c.b16 %v157, %v156
  %v220 = vpack.c.b16 %v159, %v158
  %v221 = vpack.c.b16 %v161, %v160
  %v222 = vpack.c.b16 %v163, %v162
  %v223 = vpack.c.b16 %v165, %v164
  %v224 = vpack.c.b16 %v167, %v166
  %v225 = vpack.c.b16 %v169, %v168
  %v226 = vpack.c.b16 %v171, %v170
  %v227 = vpack.c.b16 %v173, %v172
  %v228 = vpack.c.b16 %v175, %v174
  %v229 = vpack.c.b16 %v177, %v176
  %v230 = vpack.c.b16 %v179, %v178
  %v231 = vpack.c.b16 %v181, %v180
  %v232 = vpack.c.b16 %v183, %v182
  %v233 = vpack.c.b16 %v185, %v184
  %v234 = vpack.c.b16 %v187, %v186
  %v235 = vpack.c.b16 %v189, %v188
  %v236 = vpack.c.b16 %v191, %v190
  %v237 = vpack.c.b16 %v193, %v192
  %v238 = vpack.c.b16 %v195, %v194
  %v239 = vpack.c.b16 %v197, %v196
  %v240 = vpack.c.b16 %v199, %v198
  %v241 = vpack.c.b16 %v201, %v200
  %v242 = vpack.c.b16 %v203, %v202
  %v243 = vpack.c.b16 %v205, %v204
  %v244 = vpack.c.b16 %v207, %v206
  %v245 = vpack.c.b16 %v209, %v208
  %v246 = vpack.c.b16 %v211, %v210
  %v247 = vpack.c.b16 %v213, %v212
  %v248 = vpack.c.b16 %v215, %v214
  %v249 = vpack.c.b16 %v217, %v216
  %v256 = vunpack.c.l.b16 %v79
  %v257 = vunpack.c.l.b16 %v80
  %v258 = vunpack.c.l.b16 %v81
  %v259 = vunpack.c.l.b16 %v82
  %v260 = vunpack.c.l.b16 %v83
  %v261 = vunpack.c.l.b16 %v84
  %v262 = vpack.c.b16 %v257, %v256
  %v263 = vpack.c.b16 %v259, %v258
  %v264 = vpack.c.b16 %v261, %v260
  %vm268 = vcmask 392192
  %v270 = vsel %vm268, %v218, 0
  %v273 = vsel %vm268, %v219, 0
  %v276 = vsel %vm268, %v220, 0
  %v279 = vsel %vm268, %v221, 0
  %v282 = vsel %vm268, %v222, 0
  %v285 = vsel %vm268, %v223, 0
  %v288 = vsel %vm268, %v224, 0
  %v291 = vsel %vm268, %v225, 0
  %v294 = vsel %vm268, %v226, 0
  %v297 = vsel %vm268, %v227, 0
  %v300 = vsel %vm268, %v228, 0
  %v303 = vsel %vm268, %v229, 0
  %v306 = vsel %vm268, %v230, 0
  %v309 = vsel %vm268, %v231, 0
  %v312 = vsel %vm268, %v232, 0
  %v315 = vsel %vm268, %v233, 0
  %v318 = vsel %vm268, %v234, 0
  %v321 = vsel %vm268, %v235, 0
  %v324 = vsel %vm268, %v236, 0
  %v327 = vsel %vm268, %v237, 0
  %v330 = vsel %vm268, %v238, 0
  %v333 = vsel %vm268, %v239, 0
  %v336 = vsel %vm268, %v240, 0
  %v339 = vsel %vm268, %v241, 0
  %v342 = vsel %vm268, %v242, 0
  %v345 = vsel %vm268, %v243, 0
  %v348 = vsel %vm268, %v244, 0
  %v351 = vsel %vm268, %v245, 0
  %v354 = vsel %vm268, %v246, 0
  %v357 = vsel %vm268, %v247, 0
  %v360 = vsel %vm268, %v248, 0
  %v363 = vsel %vm268, %v249, 0
  %365 = vmatprep.subr.bf16.mxu0 0
  %366 = vmatpush1.bf16.msra.mxu0 %v262
  %367 = vmatprep.subr.bf16.mxu0 0
  %368 = vmatpush1.bf16.msra.mxu0 %v263
  %369 = vmatprep.subr.bf16.mxu0 0
  %370 = vmatpush1.bf16.msra.mxu0 %v264
  %371 = vmatprep.subr.bf16.mxu0 0
  %372 = vmatpush1.bf16.msra.mxu0 0
  %373 = vmatprep.subr.bf16.mxu0 0
  %374 = vmatpush1.bf16.msra.mxu0 0
  %375 = vmatprep.subr.bf16.mxu0 0
  %376 = vmatpush1.bf16.msra.mxu0 0
  %377 = vmatprep.subr.bf16.mxu0 0
  %378 = vmatpush1.bf16.msra.mxu0 0
  %379 = vmatprep.subr.bf16.mxu0 0
  %380 = vmatpush1.bf16.msra.mxu0 0
  %381 = vmatprep.subr.bf16.mxu0 0
  %382 = vmatpush1.bf16.msra.mxu0 0
  %383 = vmatprep.subr.bf16.mxu0 0
  %384 = vmatpush1.bf16.msra.mxu0 0
  %385 = vmatprep.subr.bf16.mxu0 0
  %386 = vmatpush1.bf16.msra.mxu0 0
  %387 = vmatprep.subr.bf16.mxu0 0
  %388 = vmatpush1.bf16.msra.mxu0 0
  %389 = vmatprep.subr.bf16.mxu0 0
  %390 = vmatpush1.bf16.msra.mxu0 0
  %391 = vmatprep.subr.bf16.mxu0 0
  %392 = vmatpush1.bf16.msra.mxu0 0
  %393 = vmatprep.subr.bf16.mxu0 0
  %394 = vmatpush1.bf16.msra.mxu0 0
  %395 = vmatprep.subr.bf16.mxu0 0
  %396 = vmatpush1.bf16.msra.mxu0 0
  %397 = vmatprep.mubr.bf16.mxu0 0
  %398 = vmatmul.mubr.bf16.gmra.mrb[0].mxu0 %v270
  %v399 = vpop.f32.mrb[0].mxu0
  %v400 = vadd.f32 %v89, %v399
  %v401 = vpop.f32.mrb[0].mxu0
  %v402 = vpop.f32.mrb[0].mxu0
  %v403 = vadd.f32 %v89, %v402
  %v404 = vpop.f32.mrb[0].mxu0
  %405 = vmatprep.mubr.bf16.mxu0 0
  %406 = vmatmul.mubr.bf16.gmra.mrb[0].mxu0 %v273
  %v407 = vpop.f32.mrb[0].mxu0
  %v408 = vadd.f32 %v89, %v407
  %v409 = vpop.f32.mrb[0].mxu0
  %v410 = vpop.f32.mrb[0].mxu0
  %v411 = vadd.f32 %v89, %v410
  %v412 = vpop.f32.mrb[0].mxu0
  %413 = vmatprep.mubr.bf16.mxu0 0
  %414 = vmatmul.mubr.bf16.gmra.mrb[0].mxu0 %v276
  %v415 = vpop.f32.mrb[0].mxu0
  %v416 = vadd.f32 %v89, %v415
  %v417 = vpop.f32.mrb[0].mxu0
  %v418 = vpop.f32.mrb[0].mxu0
  %v419 = vadd.f32 %v89, %v418
  %v420 = vpop.f32.mrb[0].mxu0
  %421 = vmatprep.mubr.bf16.mxu0 0
  %422 = vmatmul.mubr.bf16.gmra.mrb[0].mxu0 %v279
  %v423 = vpop.f32.mrb[0].mxu0
  %v424 = vadd.f32 %v89, %v423
  %v425 = vpop.f32.mrb[0].mxu0
  %v426 = vpop.f32.mrb[0].mxu0
  %v427 = vadd.f32 %v89, %v426
  %v428 = vpop.f32.mrb[0].mxu0
  %429 = vmatprep.mubr.bf16.mxu0 0
  %430 = vmatmul.mubr.bf16.gmra.mrb[0].mxu0 %v282
  %v431 = vpop.f32.mrb[0].mxu0
  %v432 = vadd.f32 %v89, %v431
  %v433 = vpop.f32.mrb[0].mxu0
  %v434 = vpop.f32.mrb[0].mxu0
  %v435 = vadd.f32 %v89, %v434
  %v436 = vpop.f32.mrb[0].mxu0
  %437 = vmatprep.mubr.bf16.mxu0 0
  %438 = vmatmul.mubr.bf16.gmra.mrb[0].mxu0 %v285
  %v439 = vpop.f32.mrb[0].mxu0
  %v440 = vadd.f32 %v89, %v439
  %v441 = vpop.f32.mrb[0].mxu0
  %v442 = vpop.f32.mrb[0].mxu0
  %v443 = vadd.f32 %v89, %v442
  %v444 = vpop.f32.mrb[0].mxu0
  %445 = vmatprep.mubr.bf16.mxu0 0
  %446 = vmatmul.mubr.bf16.gmra.mrb[0].mxu0 %v288
  %v447 = vpop.f32.mrb[0].mxu0
  %v448 = vadd.f32 %v89, %v447
  %v449 = vpop.f32.mrb[0].mxu0
  %v450 = vpop.f32.mrb[0].mxu0
  %v451 = vadd.f32 %v89, %v450
  %v452 = vpop.f32.mrb[0].mxu0
  %453 = vmatprep.mubr.bf16.mxu0 0
  %454 = vmatmul.mubr.bf16.gmra.mrb[0].mxu0 %v291
  %v455 = vpop.f32.mrb[0].mxu0
  %v456 = vadd.f32 %v89, %v455
  %v457 = vpop.f32.mrb[0].mxu0
  %v458 = vpop.f32.mrb[0].mxu0
  %v459 = vadd.f32 %v89, %v458
  %v460 = vpop.f32.mrb[0].mxu0
  %461 = vmatprep.mubr.bf16.mxu0 0
  %462 = vmatmul.mubr.bf16.gmra.mrb[0].mxu0 %v294
  %v463 = vpop.f32.mrb[0].mxu0
  %v464 = vadd.f32 %v89, %v463
  %v465 = vpop.f32.mrb[0].mxu0
  %v466 = vpop.f32.mrb[0].mxu0
  %v467 = vadd.f32 %v89, %v466
  %v468 = vpop.f32.mrb[0].mxu0
  %469 = vmatprep.mubr.bf16.mxu0 0
  %470 = vmatmul.mubr.bf16.gmra.mrb[0].mxu0 %v297
  %v471 = vpop.f32.mrb[0].mxu0
  %v472 = vadd.f32 %v89, %v471
  %v473 = vpop.f32.mrb[0].mxu0
  %v474 = vpop.f32.mrb[0].mxu0
  %v475 = vadd.f32 %v89, %v474
  %v476 = vpop.f32.mrb[0].mxu0
  %477 = vmatprep.mubr.bf16.mxu0 0
  %478 = vmatmul.mubr.bf16.gmra.mrb[0].mxu0 %v300
  %v479 = vpop.f32.mrb[0].mxu0
  %v480 = vadd.f32 %v89, %v479
  %v481 = vpop.f32.mrb[0].mxu0
  %v482 = vpop.f32.mrb[0].mxu0
  %v483 = vadd.f32 %v89, %v482
  %v484 = vpop.f32.mrb[0].mxu0
  %485 = vmatprep.mubr.bf16.mxu0 0
  %486 = vmatmul.mubr.bf16.gmra.mrb[0].mxu0 %v303
  %v487 = vpop.f32.mrb[0].mxu0
  %v488 = vadd.f32 %v89, %v487
  %v489 = vpop.f32.mrb[0].mxu0
  %v490 = vpop.f32.mrb[0].mxu0
  %v491 = vadd.f32 %v89, %v490
  %v492 = vpop.f32.mrb[0].mxu0
  %493 = vmatprep.mubr.bf16.mxu0 0
  %494 = vmatmul.mubr.bf16.gmra.mrb[0].mxu0 %v306
  %v495 = vpop.f32.mrb[0].mxu0
  %v496 = vadd.f32 %v89, %v495
  %v497 = vpop.f32.mrb[0].mxu0
  %v498 = vpop.f32.mrb[0].mxu0
  %v499 = vadd.f32 %v89, %v498
  %v500 = vpop.f32.mrb[0].mxu0
  %501 = vmatprep.mubr.bf16.mxu0 0
  %502 = vmatmul.mubr.bf16.gmra.mrb[0].mxu0 %v309
  %v503 = vpop.f32.mrb[0].mxu0
  %v504 = vadd.f32 %v89, %v503
  %v505 = vpop.f32.mrb[0].mxu0
  %v506 = vpop.f32.mrb[0].mxu0
  %v507 = vadd.f32 %v89, %v506
  %v508 = vpop.f32.mrb[0].mxu0
  %509 = vmatprep.mubr.bf16.mxu0 0
  %510 = vmatmul.mubr.bf16.gmra.mrb[0].mxu0 %v312
  %v511 = vpop.f32.mrb[0].mxu0
  %v512 = vadd.f32 %v89, %v511
  %v513 = vpop.f32.mrb[0].mxu0
  %v514 = vpop.f32.mrb[0].mxu0
  %v515 = vadd.f32 %v89, %v514
  %v516 = vpop.f32.mrb[0].mxu0
  %517 = vmatprep.mubr.bf16.mxu0 0
  %518 = vmatmul.mubr.bf16.gmra.mrb[0].mxu0 %v315
  %v519 = vpop.f32.mrb[0].mxu0
  %v520 = vadd.f32 %v89, %v519
  %v521 = vpop.f32.mrb[0].mxu0
  %v522 = vpop.f32.mrb[0].mxu0
  %v523 = vadd.f32 %v89, %v522
  %v524 = vpop.f32.mrb[0].mxu0
  %525 = vmatprep.mubr.bf16.mxu0 0
  %526 = vmatmul.mubr.bf16.gmra.mrb[0].mxu0 %v318
  %v527 = vpop.f32.mrb[0].mxu0
  %v528 = vadd.f32 %v89, %v527
  %v529 = vpop.f32.mrb[0].mxu0
  %v530 = vpop.f32.mrb[0].mxu0
  %v531 = vadd.f32 %v89, %v530
  %v532 = vpop.f32.mrb[0].mxu0
  %533 = vmatprep.mubr.bf16.mxu0 0
  %534 = vmatmul.mubr.bf16.gmra.mrb[0].mxu0 %v321
  %v535 = vpop.f32.mrb[0].mxu0
  %v536 = vadd.f32 %v89, %v535
  %v537 = vpop.f32.mrb[0].mxu0
  %v538 = vpop.f32.mrb[0].mxu0
  %v539 = vadd.f32 %v89, %v538
  %v540 = vpop.f32.mrb[0].mxu0
  %541 = vmatprep.mubr.bf16.mxu0 0
  %542 = vmatmul.mubr.bf16.gmra.mrb[0].mxu0 %v324
  %v543 = vpop.f32.mrb[0].mxu0
  %v544 = vadd.f32 %v89, %v543
  %v545 = vpop.f32.mrb[0].mxu0
  %v546 = vpop.f32.mrb[0].mxu0
  %v547 = vadd.f32 %v89, %v546
  %v548 = vpop.f32.mrb[0].mxu0
  %549 = vmatprep.mubr.bf16.mxu0 0
  %550 = vmatmul.mubr.bf16.gmra.mrb[0].mxu0 %v327
  %v551 = vpop.f32.mrb[0].mxu0
  %v552 = vadd.f32 %v89, %v551
  %v553 = vpop.f32.mrb[0].mxu0
  %v554 = vpop.f32.mrb[0].mxu0
  %v555 = vadd.f32 %v89, %v554
  %v556 = vpop.f32.mrb[0].mxu0
  %557 = vmatprep.mubr.bf16.mxu0 0
  %558 = vmatmul.mubr.bf16.gmra.mrb[0].mxu0 %v330
  %v559 = vpop.f32.mrb[0].mxu0
  %v560 = vadd.f32 %v89, %v559
  %v561 = vpop.f32.mrb[0].mxu0
  %v562 = vpop.f32.mrb[0].mxu0
  %v563 = vadd.f32 %v89, %v562
  %v564 = vpop.f32.mrb[0].mxu0
  %565 = vmatprep.mubr.bf16.mxu0 0
  %566 = vmatmul.mubr.bf16.gmra.mrb[0].mxu0 %v333
  %v567 = vpop.f32.mrb[0].mxu0
  %v568 = vadd.f32 %v89, %v567
  %v569 = vpop.f32.mrb[0].mxu0
  %v570 = vpop.f32.mrb[0].mxu0
  %v571 = vadd.f32 %v89, %v570
  %v572 = vpop.f32.mrb[0].mxu0
  %573 = vmatprep.mubr.bf16.mxu0 0
  %574 = vmatmul.mubr.bf16.gmra.mrb[0].mxu0 %v336
  %v575 = vpop.f32.mrb[0].mxu0
  %v576 = vadd.f32 %v89, %v575
  %v577 = vpop.f32.mrb[0].mxu0
  %v578 = vpop.f32.mrb[0].mxu0
  %v579 = vadd.f32 %v89, %v578
  %v580 = vpop.f32.mrb[0].mxu0
  %581 = vmatprep.mubr.bf16.mxu0 0
  %582 = vmatmul.mubr.bf16.gmra.mrb[0].mxu0 %v339
  %v583 = vpop.f32.mrb[0].mxu0
  %v584 = vadd.f32 %v89, %v583
  %v585 = vpop.f32.mrb[0].mxu0
  %v586 = vpop.f32.mrb[0].mxu0
  %v587 = vadd.f32 %v89, %v586
  %v588 = vpop.f32.mrb[0].mxu0
  %589 = vmatprep.mubr.bf16.mxu0 0
  %590 = vmatmul.mubr.bf16.gmra.mrb[0].mxu0 %v342
  %v591 = vpop.f32.mrb[0].mxu0
  %v592 = vadd.f32 %v89, %v591
  %v593 = vpop.f32.mrb[0].mxu0
  %v594 = vpop.f32.mrb[0].mxu0
  %v595 = vadd.f32 %v89, %v594
  %v596 = vpop.f32.mrb[0].mxu0
  %597 = vmatprep.mubr.bf16.mxu0 0
  %598 = vmatmul.mubr.bf16.gmra.mrb[0].mxu0 %v345
  %v599 = vpop.f32.mrb[0].mxu0
  %v600 = vadd.f32 %v89, %v599
  %v601 = vpop.f32.mrb[0].mxu0
  %v602 = vpop.f32.mrb[0].mxu0
  %v603 = vadd.f32 %v89, %v602
  %v604 = vpop.f32.mrb[0].mxu0
  %605 = vmatprep.mubr.bf16.mxu0 0
  %606 = vmatmul.mubr.bf16.gmra.mrb[0].mxu0 %v348
  %v607 = vpop.f32.mrb[0].mxu0
  %v608 = vadd.f32 %v89, %v607
  %v609 = vpop.f32.mrb[0].mxu0
  %v610 = vpop.f32.mrb[0].mxu0
  %v611 = vadd.f32 %v89, %v610
  %v612 = vpop.f32.mrb[0].mxu0
  %613 = vmatprep.mubr.bf16.mxu0 0
  %614 = vmatmul.mubr.bf16.gmra.mrb[0].mxu0 %v351
  %v615 = vpop.f32.mrb[0].mxu0
  %v616 = vadd.f32 %v89, %v615
  %v617 = vpop.f32.mrb[0].mxu0
  %v618 = vpop.f32.mrb[0].mxu0
  %v619 = vadd.f32 %v89, %v618
  %v620 = vpop.f32.mrb[0].mxu0
  %621 = vmatprep.mubr.bf16.mxu0 0
  %622 = vmatmul.mubr.bf16.gmra.mrb[0].mxu0 %v354
  %v623 = vpop.f32.mrb[0].mxu0
  %v624 = vadd.f32 %v89, %v623
  %v625 = vpop.f32.mrb[0].mxu0
  %v626 = vpop.f32.mrb[0].mxu0
  %v627 = vadd.f32 %v89, %v626
  %v628 = vpop.f32.mrb[0].mxu0
  %629 = vmatprep.mubr.bf16.mxu0 0
  %630 = vmatmul.mubr.bf16.gmra.mrb[0].mxu0 %v357
  %v631 = vpop.f32.mrb[0].mxu0
  %v632 = vadd.f32 %v89, %v631
  %v633 = vpop.f32.mrb[0].mxu0
  %v634 = vpop.f32.mrb[0].mxu0
  %v635 = vadd.f32 %v89, %v634
  %v636 = vpop.f32.mrb[0].mxu0
  %637 = vmatprep.mubr.bf16.mxu0 0
  %638 = vmatmul.mubr.bf16.gmra.mrb[0].mxu0 %v360
  %v639 = vpop.f32.mrb[0].mxu0
  %v640 = vadd.f32 %v89, %v639
  %v641 = vpop.f32.mrb[0].mxu0
  %v642 = vpop.f32.mrb[0].mxu0
  %v643 = vadd.f32 %v89, %v642
  %v644 = vpop.f32.mrb[0].mxu0
  %645 = vmatprep.mubr.bf16.mxu0 0
  %646 = vmatmul.mubr.bf16.gmra.mrb[0].mxu0 %v363
  %v647 = vpop.f32.mrb[0].mxu0
  %v648 = vadd.f32 %v89, %v647
  %v649 = vpop.f32.mrb[0].mxu0
  %v650 = vpop.f32.mrb[0].mxu0
  %v651 = vadd.f32 %v89, %v650
  %v652 = vpop.f32.mrb[0].mxu0
  %653 = vdwg.mxu0
  %v654 = vmax.f32 %v400, 0.0
  %v655 = vmax.f32 %v403, 0.0
  %v656 = vmax.f32 %v408, 0.0
  %v657 = vmax.f32 %v411, 0.0
  %v658 = vmax.f32 %v416, 0.0
  %v659 = vmax.f32 %v419, 0.0
  %v660 = vmax.f32 %v424, 0.0
  %v661 = vmax.f32 %v427, 0.0
  %v662 = vmax.f32 %v432, 0.0
  %v663 = vmax.f32 %v435, 0.0
  %v664 = vmax.f32 %v440, 0.0
  %v665 = vmax.f32 %v443, 0.0
  %v666 = vmax.f32 %v448, 0.0
  %v667 = vmax.f32 %v451, 0.0
  %v668 = vmax.f32 %v456, 0.0
  %v669 = vmax.f32 %v459, 0.0
  %v670 = vmax.f32 %v464, 0.0
  %v671 = vmax.f32 %v467, 0.0
  %v672 = vmax.f32 %v472, 0.0
  %v673 = vmax.f32 %v475, 0.0
  %v674 = vmax.f32 %v480, 0.0
  %v675 = vmax.f32 %v483, 0.0
  %v676 = vmax.f32 %v488, 0.0
  %v677 = vmax.f32 %v491, 0.0
  %v678 = vmax.f32 %v496, 0.0
  %v679 = vmax.f32 %v499, 0.0
  %v680 = vmax.f32 %v504, 0.0
  %v681 = vmax.f32 %v507, 0.0
  %v682 = vmax.f32 %v512, 0.0
  %v683 = vmax.f32 %v515, 0.0
  %v684 = vmax.f32 %v520, 0.0
  %v685 = vmax.f32 %v523, 0.0
  %v686 = vmax.f32 %v528, 0.0
  %v687 = vmax.f32 %v531, 0.0
  %v688 = vmax.f32 %v536, 0.0
  %v689 = vmax.f32 %v539, 0.0
  %v690 = vmax.f32 %v544, 0.0
  %v691 = vmax.f32 %v547, 0.0
  %v692 = vmax.f32 %v552, 0.0
  %v693 = vmax.f32 %v555, 0.0
  %v694 = vmax.f32 %v560, 0.0
  %v695 = vmax.f32 %v563, 0.0
  %v696 = vmax.f32 %v568, 0.0
  %v697 = vmax.f32 %v571, 0.0
  %v698 = vmax.f32 %v576, 0.0
  %v699 = vmax.f32 %v579, 0.0
  %v700 = vmax.f32 %v584, 0.0
  %v701 = vmax.f32 %v587, 0.0
  %v702 = vmax.f32 %v592, 0.0
  %v703 = vmax.f32 %v595, 0.0
  %v704 = vmax.f32 %v600, 0.0
  %v705 = vmax.f32 %v603, 0.0
  %v706 = vmax.f32 %v608, 0.0
  %v707 = vmax.f32 %v611, 0.0
  %v708 = vmax.f32 %v616, 0.0
  %v709 = vmax.f32 %v619, 0.0
  %v710 = vmax.f32 %v624, 0.0
  %v711 = vmax.f32 %v627, 0.0
  %v712 = vmax.f32 %v632, 0.0
  %v713 = vmax.f32 %v635, 0.0
  %v714 = vmax.f32 %v640, 0.0
  %v715 = vmax.f32 %v643, 0.0
  %v716 = vmax.f32 %v648, 0.0
  %v717 = vmax.f32 %v651, 0.0
  %s718 = smul.u32 0, 512
  %v719 = vlaneseq
  %v720 = vshrl.u32 %v719, 7
  %v721 = vadd.s32 %v720, 8
  %v722 = vadd.s32 %v720, 16
  %v723 = vadd.s32 %v720, 24
  %v724 = vadd.s32 %v720, 32
  %v725 = vadd.s32 %v720, 40
  %v726 = vadd.s32 %v720, 48
  %v727 = vadd.s32 %v720, 56
  %v728 = vadd.s32 %v720, 64
  %v729 = vadd.s32 %v720, 72
  %v730 = vadd.s32 %v720, 80
  %v731 = vadd.s32 %v720, 88
  %v732 = vadd.s32 %v720, 96
  %v733 = vadd.s32 %v720, 104
  %v734 = vadd.s32 %v720, 112
  %v735 = vadd.s32 %v720, 120
  %v736 = vadd.s32 %v720, 128
  %v737 = vadd.s32 %v720, 136
  %v738 = vadd.s32 %v720, 144
  %v739 = vadd.s32 %v720, 152
  %v740 = vadd.s32 %v720, 160
  %v741 = vadd.s32 %v720, 168
  %v742 = vadd.s32 %v720, 176
  %v743 = vadd.s32 %v720, 184
  %v744 = vadd.s32 %v720, 192
  %v745 = vadd.s32 %v720, 200
  %v746 = vadd.s32 %v720, 208
  %v747 = vadd.s32 %v720, 216
  %v748 = vadd.s32 %v720, 224
  %v749 = vadd.s32 %v720, 232
  %v750 = vadd.s32 %v720, 240
  %v751 = vadd.s32 %v720, 248
  %v752 = vadd.s32 %v720, 256
  %v753 = vadd.s32 %v720, 264
  %v754 = vadd.s32 %v720, 272
  %v755 = vadd.s32 %v720, 280
  %v756 = vadd.s32 %v720, 288
  %v757 = vadd.s32 %v720, 296
  %v758 = vadd.s32 %v720, 304
  %v759 = vadd.s32 %v720, 312
  %v760 = vadd.s32 %v720, 320
  %v761 = vadd.s32 %v720, 328
  %v762 = vadd.s32 %v720, 336
  %v763 = vadd.s32 %v720, 344
  %v764 = vadd.s32 %v720, 352
  %v765 = vadd.s32 %v720, 360
  %v766 = vadd.s32 %v720, 368
  %v767 = vadd.s32 %v720, 376
  %v768 = vadd.s32 %v720, 384
  %v769 = vadd.s32 %v720, 392
  %v770 = vadd.s32 %v720, 400
  %v771 = vadd.s32 %v720, 408
  %v772 = vadd.s32 %v720, 416
  %v773 = vadd.s32 %v720, 424
  %v774 = vadd.s32 %v720, 432
  %v775 = vadd.s32 %v720, 440
  %v776 = vadd.s32 %v720, 448
  %v777 = vadd.s32 %v720, 456
  %v778 = vadd.s32 %v720, 464
  %v779 = vadd.s32 %v720, 472
  %v780 = vadd.s32 %v720, 480
  %v781 = vadd.s32 %v720, 488
  %v782 = vadd.s32 %v720, 496
  %v783 = vadd.s32 %v720, 504
  %v784 = vstv %s718
  %v785 = vadd.s32 %v784, %v720
  %v786 = vadd.s32 %v784, %v721
  %v787 = vadd.s32 %v784, %v722
  %v788 = vadd.s32 %v784, %v723
  %v789 = vadd.s32 %v784, %v724
  %v790 = vadd.s32 %v784, %v725
  %v791 = vadd.s32 %v784, %v726
  %v792 = vadd.s32 %v784, %v727
  %v793 = vadd.s32 %v784, %v728
  %v794 = vadd.s32 %v784, %v729
  %v795 = vadd.s32 %v784, %v730
  %v796 = vadd.s32 %v784, %v731
  %v797 = vadd.s32 %v784, %v732
  %v798 = vadd.s32 %v784, %v733
  %v799 = vadd.s32 %v784, %v734
  %v800 = vadd.s32 %v784, %v735
  %v801 = vadd.s32 %v784, %v736
  %v802 = vadd.s32 %v784, %v737
  %v803 = vadd.s32 %v784, %v738
  %v804 = vadd.s32 %v784, %v739
  %v805 = vadd.s32 %v784, %v740
  %v806 = vadd.s32 %v784, %v741
  %v807 = vadd.s32 %v784, %v742
  %v808 = vadd.s32 %v784, %v743
  %v809 = vadd.s32 %v784, %v744
  %v810 = vadd.s32 %v784, %v745
  %v811 = vadd.s32 %v784, %v746
  %v812 = vadd.s32 %v784, %v747
  %v813 = vadd.s32 %v784, %v748
  %v814 = vadd.s32 %v784, %v749
  %v815 = vadd.s32 %v784, %v750
  %v816 = vadd.s32 %v784, %v751
  %v817 = vadd.s32 %v784, %v752
  %v818 = vadd.s32 %v784, %v753
  %v819 = vadd.s32 %v784, %v754
  %v820 = vadd.s32 %v784, %v755
  %v821 = vadd.s32 %v784, %v756
  %v822 = vadd.s32 %v784, %v757
  %v823 = vadd.s32 %v784, %v758
  %v824 = vadd.s32 %v784, %v759
  %v825 = vadd.s32 %v784, %v760
  %v826 = vadd.s32 %v784, %v761
  %v827 = vadd.s32 %v784, %v762
  %v828 = vadd.s32 %v784, %v763
  %v829 = vadd.s32 %v784, %v764
  %v830 = vadd.s32 %v784, %v765
  %v831 = vadd.s32 %v784, %v766
  %v832 = vadd.s32 %v784, %v767
  %v833 = vadd.s32 %v784, %v768
  %v834 = vadd.s32 %v784, %v769
  %v835 = vadd.s32 %v784, %v770
  %v836 = vadd.s32 %v784, %v771
  %v837 = vadd.s32 %v784, %v772
  %v838 = vadd.s32 %v784, %v773
  %v839 = vadd.s32 %v784, %v774
  %v840 = vadd.s32 %v784, %v775
  %v841 = vadd.s32 %v784, %v776
  %v842 = vadd.s32 %v784, %v777
  %v843 = vadd.s32 %v784, %v778
  %v844 = vadd.s32 %v784, %v779
  %v845 = vadd.s32 %v784, %v780
  %v846 = vadd.s32 %v784, %v781
  %v847 = vadd.s32 %v784, %v782
  %v848 = vadd.s32 %v784, %v783
  %vm849 = vcmp.lt.s32.totalorder %v785, 512
  %vm850 = vcmp.lt.s32.totalorder %v786, 512
  %vm851 = vcmp.lt.s32.totalorder %v787, 512
  %vm852 = vcmp.lt.s32.totalorder %v788, 512
  %vm853 = vcmp.lt.s32.totalorder %v789, 512
  %vm854 = vcmp.lt.s32.totalorder %v790, 512
  %vm855 = vcmp.lt.s32.totalorder %v791, 512
  %vm856 = vcmp.lt.s32.totalorder %v792, 512
  %vm857 = vcmp.lt.s32.totalorder %v793, 512
  %vm858 = vcmp.lt.s32.totalorder %v794, 512
  %vm859 = vcmp.lt.s32.totalorder %v795, 512
  %vm860 = vcmp.lt.s32.totalorder %v796, 512
  %vm861 = vcmp.lt.s32.totalorder %v797, 512
  %vm862 = vcmp.lt.s32.totalorder %v798, 512
  %vm863 = vcmp.lt.s32.totalorder %v799, 512
  %vm864 = vcmp.lt.s32.totalorder %v800, 512
  %vm865 = vcmp.lt.s32.totalorder %v801, 512
  %vm866 = vcmp.lt.s32.totalorder %v802, 512
  %vm867 = vcmp.lt.s32.totalorder %v803, 512
  %vm868 = vcmp.lt.s32.totalorder %v804, 512
  %vm869 = vcmp.lt.s32.totalorder %v805, 512
  %vm870 = vcmp.lt.s32.totalorder %v806, 512
  %vm871 = vcmp.lt.s32.totalorder %v807, 512
  %vm872 = vcmp.lt.s32.totalorder %v808, 512
  %vm873 = vcmp.lt.s32.totalorder %v809, 512
  %vm874 = vcmp.lt.s32.totalorder %v810, 512
  %vm875 = vcmp.lt.s32.totalorder %v811, 512
  %vm876 = vcmp.lt.s32.totalorder %v812, 512
  %vm877 = vcmp.lt.s32.totalorder %v813, 512
  %vm878 = vcmp.lt.s32.totalorder %v814, 512
  %vm879 = vcmp.lt.s32.totalorder %v815, 512
  %vm880 = vcmp.lt.s32.totalorder %v816, 512
  %vm881 = vcmp.lt.s32.totalorder %v817, 512
  %vm882 = vcmp.lt.s32.totalorder %v818, 512
  %vm883 = vcmp.lt.s32.totalorder %v819, 512
  %vm884 = vcmp.lt.s32.totalorder %v820, 512
  %vm885 = vcmp.lt.s32.totalorder %v821, 512
  %vm886 = vcmp.lt.s32.totalorder %v822, 512
  %vm887 = vcmp.lt.s32.totalorder %v823, 512
  %vm888 = vcmp.lt.s32.totalorder %v824, 512
  %vm889 = vcmp.lt.s32.totalorder %v825, 512
  %vm890 = vcmp.lt.s32.totalorder %v826, 512
  %vm891 = vcmp.lt.s32.totalorder %v827, 512
  %vm892 = vcmp.lt.s32.totalorder %v828, 512
  %vm893 = vcmp.lt.s32.totalorder %v829, 512
  %vm894 = vcmp.lt.s32.totalorder %v830, 512
  %vm895 = vcmp.lt.s32.totalorder %v831, 512
  %vm896 = vcmp.lt.s32.totalorder %v832, 512
  %vm897 = vcmp.lt.s32.totalorder %v833, 512
  %vm898 = vcmp.lt.s32.totalorder %v834, 512
  %vm899 = vcmp.lt.s32.totalorder %v835, 512
  %vm900 = vcmp.lt.s32.totalorder %v836, 512
  %vm901 = vcmp.lt.s32.totalorder %v837, 512
  %vm902 = vcmp.lt.s32.totalorder %v838, 512
  %vm903 = vcmp.lt.s32.totalorder %v839, 512
  %vm904 = vcmp.lt.s32.totalorder %v840, 512
  %vm905 = vcmp.lt.s32.totalorder %v841, 512
  %vm906 = vcmp.lt.s32.totalorder %v842, 512
  %vm907 = vcmp.lt.s32.totalorder %v843, 512
  %vm908 = vcmp.lt.s32.totalorder %v844, 512
  %vm909 = vcmp.lt.s32.totalorder %v845, 512
  %vm910 = vcmp.lt.s32.totalorder %v846, 512
  %vm911 = vcmp.lt.s32.totalorder %v847, 512
  %vm912 = vcmp.lt.s32.totalorder %v848, 512
  %v913 = vsel %vm849, 1, 0
  %v914 = vsel %vm850, 1, 0
  %v915 = vsel %vm851, 1, 0
  %v916 = vsel %vm852, 1, 0
  %v917 = vsel %vm853, 1, 0
  %v918 = vsel %vm854, 1, 0
  %v919 = vsel %vm855, 1, 0
  %v920 = vsel %vm856, 1, 0
  %v921 = vsel %vm857, 1, 0
  %v922 = vsel %vm858, 1, 0
  %v923 = vsel %vm859, 1, 0
  %v924 = vsel %vm860, 1, 0
  %v925 = vsel %vm861, 1, 0
  %v926 = vsel %vm862, 1, 0
  %v927 = vsel %vm863, 1, 0
  %v928 = vsel %vm864, 1, 0
  %v929 = vsel %vm865, 1, 0
  %v930 = vsel %vm866, 1, 0
  %v931 = vsel %vm867, 1, 0
  %v932 = vsel %vm868, 1, 0
  %v933 = vsel %vm869, 1, 0
  %v934 = vsel %vm870, 1, 0
  %v935 = vsel %vm871, 1, 0
  %v936 = vsel %vm872, 1, 0
  %v937 = vsel %vm873, 1, 0
  %v938 = vsel %vm874, 1, 0
  %v939 = vsel %vm875, 1, 0
  %v940 = vsel %vm876, 1, 0
  %v941 = vsel %vm877, 1, 0
  %v942 = vsel %vm878, 1, 0
  %v943 = vsel %vm879, 1, 0
  %v944 = vsel %vm880, 1, 0
  %v945 = vsel %vm881, 1, 0
  %v946 = vsel %vm882, 1, 0
  %v947 = vsel %vm883, 1, 0
  %v948 = vsel %vm884, 1, 0
  %v949 = vsel %vm885, 1, 0
  %v950 = vsel %vm886, 1, 0
  %v951 = vsel %vm887, 1, 0
  %v952 = vsel %vm888, 1, 0
  %v953 = vsel %vm889, 1, 0
  %v954 = vsel %vm890, 1, 0
  %v955 = vsel %vm891, 1, 0
  %v956 = vsel %vm892, 1, 0
  %v957 = vsel %vm893, 1, 0
  %v958 = vsel %vm894, 1, 0
  %v959 = vsel %vm895, 1, 0
  %v960 = vsel %vm896, 1, 0
  %v961 = vsel %vm897, 1, 0
  %v962 = vsel %vm898, 1, 0
  %v963 = vsel %vm899, 1, 0
  %v964 = vsel %vm900, 1, 0
  %v965 = vsel %vm901, 1, 0
  %v966 = vsel %vm902, 1, 0
  %v967 = vsel %vm903, 1, 0
  %v968 = vsel %vm904, 1, 0
  %v969 = vsel %vm905, 1, 0
  %v970 = vsel %vm906, 1, 0
  %v971 = vsel %vm907, 1, 0
  %v972 = vsel %vm908, 1, 0
  %v973 = vsel %vm909, 1, 0
  %v974 = vsel %vm910, 1, 0
  %v975 = vsel %vm911, 1, 0
  %v976 = vsel %vm912, 1, 0
  %vm977 = vcmp.eq.s32.totalorder %v913, 1
  %vm978 = vcmp.eq.s32.totalorder %v914, 1
  %vm979 = vcmp.eq.s32.totalorder %v915, 1
  %vm980 = vcmp.eq.s32.totalorder %v916, 1
  %vm981 = vcmp.eq.s32.totalorder %v917, 1
  %vm982 = vcmp.eq.s32.totalorder %v918, 1
  %vm983 = vcmp.eq.s32.totalorder %v919, 1
  %vm984 = vcmp.eq.s32.totalorder %v920, 1
  %vm985 = vcmp.eq.s32.totalorder %v921, 1
  %vm986 = vcmp.eq.s32.totalorder %v922, 1
  %vm987 = vcmp.eq.s32.totalorder %v923, 1
  %vm988 = vcmp.eq.s32.totalorder %v924, 1
  %vm989 = vcmp.eq.s32.totalorder %v925, 1
  %vm990 = vcmp.eq.s32.totalorder %v926, 1
  %vm991 = vcmp.eq.s32.totalorder %v927, 1
  %vm992 = vcmp.eq.s32.totalorder %v928, 1
  %vm993 = vcmp.eq.s32.totalorder %v929, 1
  %vm994 = vcmp.eq.s32.totalorder %v930, 1
  %vm995 = vcmp.eq.s32.totalorder %v931, 1
  %vm996 = vcmp.eq.s32.totalorder %v932, 1
  %vm997 = vcmp.eq.s32.totalorder %v933, 1
  %vm998 = vcmp.eq.s32.totalorder %v934, 1
  %vm999 = vcmp.eq.s32.totalorder %v935, 1
  %vm1000 = vcmp.eq.s32.totalorder %v936, 1
  %vm1001 = vcmp.eq.s32.totalorder %v937, 1
  %vm1002 = vcmp.eq.s32.totalorder %v938, 1
  %vm1003 = vcmp.eq.s32.totalorder %v939, 1
  %vm1004 = vcmp.eq.s32.totalorder %v940, 1
  %vm1005 = vcmp.eq.s32.totalorder %v941, 1
  %vm1006 = vcmp.eq.s32.totalorder %v942, 1
  %vm1007 = vcmp.eq.s32.totalorder %v943, 1
  %vm1008 = vcmp.eq.s32.totalorder %v944, 1
  %vm1009 = vcmp.eq.s32.totalorder %v945, 1
  %vm1010 = vcmp.eq.s32.totalorder %v946, 1
  %vm1011 = vcmp.eq.s32.totalorder %v947, 1
  %vm1012 = vcmp.eq.s32.totalorder %v948, 1
  %vm1013 = vcmp.eq.s32.totalorder %v949, 1
  %vm1014 = vcmp.eq.s32.totalorder %v950, 1
  %vm1015 = vcmp.eq.s32.totalorder %v951, 1
  %vm1016 = vcmp.eq.s32.totalorder %v952, 1
  %vm1017 = vcmp.eq.s32.totalorder %v953, 1
  %vm1018 = vcmp.eq.s32.totalorder %v954, 1
  %vm1019 = vcmp.eq.s32.totalorder %v955, 1
  %vm1020 = vcmp.eq.s32.totalorder %v956, 1
  %vm1021 = vcmp.eq.s32.totalorder %v957, 1
  %vm1022 = vcmp.eq.s32.totalorder %v958, 1
  %vm1023 = vcmp.eq.s32.totalorder %v959, 1
  %vm1024 = vcmp.eq.s32.totalorder %v960, 1
  %vm1025 = vcmp.eq.s32.totalorder %v961, 1
  %vm1026 = vcmp.eq.s32.totalorder %v962, 1
  %vm1027 = vcmp.eq.s32.totalorder %v963, 1
  %vm1028 = vcmp.eq.s32.totalorder %v964, 1
  %vm1029 = vcmp.eq.s32.totalorder %v965, 1
  %vm1030 = vcmp.eq.s32.totalorder %v966, 1
  %vm1031 = vcmp.eq.s32.totalorder %v967, 1
  %vm1032 = vcmp.eq.s32.totalorder %v968, 1
  %vm1033 = vcmp.eq.s32.totalorder %v969, 1
  %vm1034 = vcmp.eq.s32.totalorder %v970, 1
  %vm1035 = vcmp.eq.s32.totalorder %v971, 1
  %vm1036 = vcmp.eq.s32.totalorder %v972, 1
  %vm1037 = vcmp.eq.s32.totalorder %v973, 1
  %vm1038 = vcmp.eq.s32.totalorder %v974, 1
  %vm1039 = vcmp.eq.s32.totalorder %v975, 1
  %vm1040 = vcmp.eq.s32.totalorder %v976, 1
  %v1041 = vsel %vm977, %v654, 0.0
  %v1042 = vsel %vm978, %v655, 0.0
  %v1043 = vsel %vm979, %v656, 0.0
  %v1044 = vsel %vm980, %v657, 0.0
  %v1045 = vsel %vm981, %v658, 0.0
  %v1046 = vsel %vm982, %v659, 0.0
  %v1047 = vsel %vm983, %v660, 0.0
  %v1048 = vsel %vm984, %v661, 0.0
  %v1049 = vsel %vm985, %v662, 0.0
  %v1050 = vsel %vm986, %v663, 0.0
  %v1051 = vsel %vm987, %v664, 0.0
  %v1052 = vsel %vm988, %v665, 0.0
  %v1053 = vsel %vm989, %v666, 0.0
  %v1054 = vsel %vm990, %v667, 0.0
  %v1055 = vsel %vm991, %v668, 0.0
  %v1056 = vsel %vm992, %v669, 0.0
  %v1057 = vsel %vm993, %v670, 0.0
  %v1058 = vsel %vm994, %v671, 0.0
  %v1059 = vsel %vm995, %v672, 0.0
  %v1060 = vsel %vm996, %v673, 0.0
  %v1061 = vsel %vm997, %v674, 0.0
  %v1062 = vsel %vm998, %v675, 0.0
  %v1063 = vsel %vm999, %v676, 0.0
  %v1064 = vsel %vm1000, %v677, 0.0
  %v1065 = vsel %vm1001, %v678, 0.0
  %v1066 = vsel %vm1002, %v679, 0.0
  %v1067 = vsel %vm1003, %v680, 0.0
  %v1068 = vsel %vm1004, %v681, 0.0
  %v1069 = vsel %vm1005, %v682, 0.0
  %v1070 = vsel %vm1006, %v683, 0.0
  %v1071 = vsel %vm1007, %v684, 0.0
  %v1072 = vsel %vm1008, %v685, 0.0
  %v1073 = vsel %vm1009, %v686, 0.0
  %v1074 = vsel %vm1010, %v687, 0.0
  %v1075 = vsel %vm1011, %v688, 0.0
  %v1076 = vsel %vm1012, %v689, 0.0
  %v1077 = vsel %vm1013, %v690, 0.0
  %v1078 = vsel %vm1014, %v691, 0.0
  %v1079 = vsel %vm1015, %v692, 0.0
  %v1080 = vsel %vm1016, %v693, 0.0
  %v1081 = vsel %vm1017, %v694, 0.0
  %v1082 = vsel %vm1018, %v695, 0.0
  %v1083 = vsel %vm1019, %v696, 0.0
  %v1084 = vsel %vm1020, %v697, 0.0
  %v1085 = vsel %vm1021, %v698, 0.0
  %v1086 = vsel %vm1022, %v699, 0.0
  %v1087 = vsel %vm1023, %v700, 0.0
  %v1088 = vsel %vm1024, %v701, 0.0
  %v1089 = vsel %vm1025, %v702, 0.0
  %v1090 = vsel %vm1026, %v703, 0.0
  %v1091 = vsel %vm1027, %v704, 0.0
  %v1092 = vsel %vm1028, %v705, 0.0
  %v1093 = vsel %vm1029, %v706, 0.0
  %v1094 = vsel %vm1030, %v707, 0.0
  %v1095 = vsel %vm1031, %v708, 0.0
  %v1096 = vsel %vm1032, %v709, 0.0
  %v1097 = vsel %vm1033, %v710, 0.0
  %v1098 = vsel %vm1034, %v711, 0.0
  %v1099 = vsel %vm1035, %v712, 0.0
  %v1100 = vsel %vm1036, %v713, 0.0
  %v1101 = vsel %vm1037, %v714, 0.0
  %v1102 = vsel %vm1038, %v715, 0.0
  %v1103 = vsel %vm1039, %v716, 0.0
  %v1104 = vsel %vm1040, %v717, 0.0
  %vm1105 = vcmask 97280
  %v1106 = vsel %vm1105, %v1041, 0.0
  %v1107 = vsel %vm1105, %v1042, 0.0
  %v1108 = vadd.f32 %v1106, %v1107
  %v1109 = vsel %vm1105, %v1043, 0.0
  %v1110 = vadd.f32 %v1108, %v1109
  %v1111 = vsel %vm1105, %v1044, 0.0
  %v1112 = vadd.f32 %v1110, %v1111
  %v1113 = vsel %vm1105, %v1045, 0.0
  %v1114 = vadd.f32 %v1112, %v1113
  %v1115 = vsel %vm1105, %v1046, 0.0
  %v1116 = vadd.f32 %v1114, %v1115
  %v1117 = vsel %vm1105, %v1047, 0.0
  %v1118 = vadd.f32 %v1116, %v1117
  %v1119 = vsel %vm1105, %v1048, 0.0
  %v1120 = vadd.f32 %v1118, %v1119
  %v1121 = vsel %vm1105, %v1049, 0.0
  %v1122 = vadd.f32 %v1120, %v1121
  %v1123 = vsel %vm1105, %v1050, 0.0
  %v1124 = vadd.f32 %v1122, %v1123
  %v1125 = vsel %vm1105, %v1051, 0.0
  %v1126 = vadd.f32 %v1124, %v1125
  %v1127 = vsel %vm1105, %v1052, 0.0
  %v1128 = vadd.f32 %v1126, %v1127
  %v1129 = vsel %vm1105, %v1053, 0.0
  %v1130 = vadd.f32 %v1128, %v1129
  %v1131 = vsel %vm1105, %v1054, 0.0
  %v1132 = vadd.f32 %v1130, %v1131
  %v1133 = vsel %vm1105, %v1055, 0.0
  %v1134 = vadd.f32 %v1132, %v1133
  %v1135 = vsel %vm1105, %v1056, 0.0
  %v1136 = vadd.f32 %v1134, %v1135
  %v1137 = vsel %vm1105, %v1057, 0.0
  %v1138 = vadd.f32 %v1136, %v1137
  %v1139 = vsel %vm1105, %v1058, 0.0
  %v1140 = vadd.f32 %v1138, %v1139
  %v1141 = vsel %vm1105, %v1059, 0.0
  %v1142 = vadd.f32 %v1140, %v1141
  %v1143 = vsel %vm1105, %v1060, 0.0
  %v1144 = vadd.f32 %v1142, %v1143
  %v1145 = vsel %vm1105, %v1061, 0.0
  %v1146 = vadd.f32 %v1144, %v1145
  %v1147 = vsel %vm1105, %v1062, 0.0
  %v1148 = vadd.f32 %v1146, %v1147
  %v1149 = vsel %vm1105, %v1063, 0.0
  %v1150 = vadd.f32 %v1148, %v1149
  %v1151 = vsel %vm1105, %v1064, 0.0
  %v1152 = vadd.f32 %v1150, %v1151
  %v1153 = vsel %vm1105, %v1065, 0.0
  %v1154 = vadd.f32 %v1152, %v1153
  %v1155 = vsel %vm1105, %v1066, 0.0
  %v1156 = vadd.f32 %v1154, %v1155
  %v1157 = vsel %vm1105, %v1067, 0.0
  %v1158 = vadd.f32 %v1156, %v1157
  %v1159 = vsel %vm1105, %v1068, 0.0
  %v1160 = vadd.f32 %v1158, %v1159
  %v1161 = vsel %vm1105, %v1069, 0.0
  %v1162 = vadd.f32 %v1160, %v1161
  %v1163 = vsel %vm1105, %v1070, 0.0
  %v1164 = vadd.f32 %v1162, %v1163
  %v1165 = vsel %vm1105, %v1071, 0.0
  %v1166 = vadd.f32 %v1164, %v1165
  %v1167 = vsel %vm1105, %v1072, 0.0
  %v1168 = vadd.f32 %v1166, %v1167
  %v1169 = vsel %vm1105, %v1073, 0.0
  %v1170 = vadd.f32 %v1168, %v1169
  %v1171 = vsel %vm1105, %v1074, 0.0
  %v1172 = vadd.f32 %v1170, %v1171
  %v1173 = vsel %vm1105, %v1075, 0.0
  %v1174 = vadd.f32 %v1172, %v1173
  %v1175 = vsel %vm1105, %v1076, 0.0
  %v1176 = vadd.f32 %v1174, %v1175
  %v1177 = vsel %vm1105, %v1077, 0.0
  %v1178 = vadd.f32 %v1176, %v1177
  %v1179 = vsel %vm1105, %v1078, 0.0
  %v1180 = vadd.f32 %v1178, %v1179
  %v1181 = vsel %vm1105, %v1079, 0.0
  %v1182 = vadd.f32 %v1180, %v1181
  %v1183 = vsel %vm1105, %v1080, 0.0
  %v1184 = vadd.f32 %v1182, %v1183
  %v1185 = vsel %vm1105, %v1081, 0.0
  %v1186 = vadd.f32 %v1184, %v1185
  %v1187 = vsel %vm1105, %v1082, 0.0
  %v1188 = vadd.f32 %v1186, %v1187
  %v1189 = vsel %vm1105, %v1083, 0.0
  %v1190 = vadd.f32 %v1188, %v1189
  %v1191 = vsel %vm1105, %v1084, 0.0
  %v1192 = vadd.f32 %v1190, %v1191
  %v1193 = vsel %vm1105, %v1085, 0.0
  %v1194 = vadd.f32 %v1192, %v1193
  %v1195 = vsel %vm1105, %v1086, 0.0
  %v1196 = vadd.f32 %v1194, %v1195
  %v1197 = vsel %vm1105, %v1087, 0.0
  %v1198 = vadd.f32 %v1196, %v1197
  %v1199 = vsel %vm1105, %v1088, 0.0
  %v1200 = vadd.f32 %v1198, %v1199
  %v1201 = vsel %vm1105, %v1089, 0.0
  %v1202 = vadd.f32 %v1200, %v1201
  %v1203 = vsel %vm1105, %v1090, 0.0
  %v1204 = vadd.f32 %v1202, %v1203
  %v1205 = vsel %vm1105, %v1091, 0.0
  %v1206 = vadd.f32 %v1204, %v1205
  %v1207 = vsel %vm1105, %v1092, 0.0
  %v1208 = vadd.f32 %v1206, %v1207
  %v1209 = vsel %vm1105, %v1093, 0.0
  %v1210 = vadd.f32 %v1208, %v1209
  %v1211 = vsel %vm1105, %v1094, 0.0
  %v1212 = vadd.f32 %v1210, %v1211
  %v1213 = vsel %vm1105, %v1095, 0.0
  %v1214 = vadd.f32 %v1212, %v1213
  %v1215 = vsel %vm1105, %v1096, 0.0
  %v1216 = vadd.f32 %v1214, %v1215
  %v1217 = vsel %vm1105, %v1097, 0.0
  %v1218 = vadd.f32 %v1216, %v1217
  %v1219 = vsel %vm1105, %v1098, 0.0
  %v1220 = vadd.f32 %v1218, %v1219
  %v1221 = vsel %vm1105, %v1099, 0.0
  %v1222 = vadd.f32 %v1220, %v1221
  %v1223 = vsel %vm1105, %v1100, 0.0
  %v1224 = vadd.f32 %v1222, %v1223
  %v1225 = vsel %vm1105, %v1101, 0.0
  %v1226 = vadd.f32 %v1224, %v1225
  %v1227 = vsel %vm1105, %v1102, 0.0
  %v1228 = vadd.f32 %v1226, %v1227
  %v1229 = vsel %vm1105, %v1103, 0.0
  %v1230 = vadd.f32 %v1228, %v1229
  %v1231 = vsel %vm1105, %v1104, 0.0
  %v1232 = vadd.f32 %v1230, %v1231
  %v1233 = vrot.slane %v1232, 4
  %v1234 = vadd.f32 %v1232, %v1233
  %v1235 = vrot.slane %v1234, 2
  %v1236 = vadd.f32 %v1234, %v1235
  %v1237 = vrot.slane %v1236, 1
  %v1238 = vadd.f32 %v1236, %v1237
  %v1239 = vmul.f32 %v1238, 0.001953125
  %v1240 = vmul.f32 %v1041, %v1041
  %v1241 = vmul.f32 %v1042, %v1042
  %v1242 = vmul.f32 %v1043, %v1043
  %v1243 = vmul.f32 %v1044, %v1044
  %v1244 = vmul.f32 %v1045, %v1045
  %v1245 = vmul.f32 %v1046, %v1046
  %v1246 = vmul.f32 %v1047, %v1047
  %v1247 = vmul.f32 %v1048, %v1048
  %v1248 = vmul.f32 %v1049, %v1049
  %v1249 = vmul.f32 %v1050, %v1050
  %v1250 = vmul.f32 %v1051, %v1051
  %v1251 = vmul.f32 %v1052, %v1052
  %v1252 = vmul.f32 %v1053, %v1053
  %v1253 = vmul.f32 %v1054, %v1054
  %v1254 = vmul.f32 %v1055, %v1055
  %v1255 = vmul.f32 %v1056, %v1056
  %v1256 = vmul.f32 %v1057, %v1057
  %v1257 = vmul.f32 %v1058, %v1058
  %v1258 = vmul.f32 %v1059, %v1059
  %v1259 = vmul.f32 %v1060, %v1060
  %v1260 = vmul.f32 %v1061, %v1061
  %v1261 = vmul.f32 %v1062, %v1062
  %v1262 = vmul.f32 %v1063, %v1063
  %v1263 = vmul.f32 %v1064, %v1064
  %v1264 = vmul.f32 %v1065, %v1065
  %v1265 = vmul.f32 %v1066, %v1066
  %v1266 = vmul.f32 %v1067, %v1067
  %v1267 = vmul.f32 %v1068, %v1068
  %v1268 = vmul.f32 %v1069, %v1069
  %v1269 = vmul.f32 %v1070, %v1070
  %v1270 = vmul.f32 %v1071, %v1071
  %v1271 = vmul.f32 %v1072, %v1072
  %v1272 = vmul.f32 %v1073, %v1073
  %v1273 = vmul.f32 %v1074, %v1074
  %v1274 = vmul.f32 %v1075, %v1075
  %v1275 = vmul.f32 %v1076, %v1076
  %v1276 = vmul.f32 %v1077, %v1077
  %v1277 = vmul.f32 %v1078, %v1078
  %v1278 = vmul.f32 %v1079, %v1079
  %v1279 = vmul.f32 %v1080, %v1080
  %v1280 = vmul.f32 %v1081, %v1081
  %v1281 = vmul.f32 %v1082, %v1082
  %v1282 = vmul.f32 %v1083, %v1083
  %v1283 = vmul.f32 %v1084, %v1084
  %v1284 = vmul.f32 %v1085, %v1085
  %v1285 = vmul.f32 %v1086, %v1086
  %v1286 = vmul.f32 %v1087, %v1087
  %v1287 = vmul.f32 %v1088, %v1088
  %v1288 = vmul.f32 %v1089, %v1089
  %v1289 = vmul.f32 %v1090, %v1090
  %v1290 = vmul.f32 %v1091, %v1091
  %v1291 = vmul.f32 %v1092, %v1092
  %v1292 = vmul.f32 %v1093, %v1093
  %v1293 = vmul.f32 %v1094, %v1094
  %v1294 = vmul.f32 %v1095, %v1095
  %v1295 = vmul.f32 %v1096, %v1096
  %v1296 = vmul.f32 %v1097, %v1097
  %v1297 = vmul.f32 %v1098, %v1098
  %v1298 = vmul.f32 %v1099, %v1099
  %v1299 = vmul.f32 %v1100, %v1100
  %v1300 = vmul.f32 %v1101, %v1101
  %v1301 = vmul.f32 %v1102, %v1102
  %v1302 = vmul.f32 %v1103, %v1103
  %v1303 = vmul.f32 %v1104, %v1104
  %v1304 = vsel %vm1105, %v1240, 0.0
  %v1305 = vsel %vm1105, %v1241, 0.0
  %v1306 = vadd.f32 %v1304, %v1305
  %v1307 = vsel %vm1105, %v1242, 0.0
  %v1308 = vadd.f32 %v1306, %v1307
  %v1309 = vsel %vm1105, %v1243, 0.0
  %v1310 = vadd.f32 %v1308, %v1309
  %v1311 = vsel %vm1105, %v1244, 0.0
  %v1312 = vadd.f32 %v1310, %v1311
  %v1313 = vsel %vm1105, %v1245, 0.0
  %v1314 = vadd.f32 %v1312, %v1313
  %v1315 = vsel %vm1105, %v1246, 0.0
  %v1316 = vadd.f32 %v1314, %v1315
  %v1317 = vsel %vm1105, %v1247, 0.0
  %v1318 = vadd.f32 %v1316, %v1317
  %v1319 = vsel %vm1105, %v1248, 0.0
  %v1320 = vadd.f32 %v1318, %v1319
  %v1321 = vsel %vm1105, %v1249, 0.0
  %v1322 = vadd.f32 %v1320, %v1321
  %v1323 = vsel %vm1105, %v1250, 0.0
  %v1324 = vadd.f32 %v1322, %v1323
  %v1325 = vsel %vm1105, %v1251, 0.0
  %v1326 = vadd.f32 %v1324, %v1325
  %v1327 = vsel %vm1105, %v1252, 0.0
  %v1328 = vadd.f32 %v1326, %v1327
  %v1329 = vsel %vm1105, %v1253, 0.0
  %v1330 = vadd.f32 %v1328, %v1329
  %v1331 = vsel %vm1105, %v1254, 0.0
  %v1332 = vadd.f32 %v1330, %v1331
  %v1333 = vsel %vm1105, %v1255, 0.0
  %v1334 = vadd.f32 %v1332, %v1333
  %v1335 = vsel %vm1105, %v1256, 0.0
  %v1336 = vadd.f32 %v1334, %v1335
  %v1337 = vsel %vm1105, %v1257, 0.0
  %v1338 = vadd.f32 %v1336, %v1337
  %v1339 = vsel %vm1105, %v1258, 0.0
  %v1340 = vadd.f32 %v1338, %v1339
  %v1341 = vsel %vm1105, %v1259, 0.0
  %v1342 = vadd.f32 %v1340, %v1341
  %v1343 = vsel %vm1105, %v1260, 0.0
  %v1344 = vadd.f32 %v1342, %v1343
  %v1345 = vsel %vm1105, %v1261, 0.0
  %v1346 = vadd.f32 %v1344, %v1345
  %v1347 = vsel %vm1105, %v1262, 0.0
  %v1348 = vadd.f32 %v1346, %v1347
  %v1349 = vsel %vm1105, %v1263, 0.0
  %v1350 = vadd.f32 %v1348, %v1349
  %v1351 = vsel %vm1105, %v1264, 0.0
  %v1352 = vadd.f32 %v1350, %v1351
  %v1353 = vsel %vm1105, %v1265, 0.0
  %v1354 = vadd.f32 %v1352, %v1353
  %v1355 = vsel %vm1105, %v1266, 0.0
  %v1356 = vadd.f32 %v1354, %v1355
  %v1357 = vsel %vm1105, %v1267, 0.0
  %v1358 = vadd.f32 %v1356, %v1357
  %v1359 = vsel %vm1105, %v1268, 0.0
  %v1360 = vadd.f32 %v1358, %v1359
  %v1361 = vsel %vm1105, %v1269, 0.0
  %v1362 = vadd.f32 %v1360, %v1361
  %v1363 = vsel %vm1105, %v1270, 0.0
  %v1364 = vadd.f32 %v1362, %v1363
  %v1365 = vsel %vm1105, %v1271, 0.0
  %v1366 = vadd.f32 %v1364, %v1365
  %v1367 = vsel %vm1105, %v1272, 0.0
  %v1368 = vadd.f32 %v1366, %v1367
  %v1369 = vsel %vm1105, %v1273, 0.0
  %v1370 = vadd.f32 %v1368, %v1369
  %v1371 = vsel %vm1105, %v1274, 0.0
  %v1372 = vadd.f32 %v1370, %v1371
  %v1373 = vsel %vm1105, %v1275, 0.0
  %v1374 = vadd.f32 %v1372, %v1373
  %v1375 = vsel %vm1105, %v1276, 0.0
  %v1376 = vadd.f32 %v1374, %v1375
  %v1377 = vsel %vm1105, %v1277, 0.0
  %v1378 = vadd.f32 %v1376, %v1377
  %v1379 = vsel %vm1105, %v1278, 0.0
  %v1380 = vadd.f32 %v1378, %v1379
  %v1381 = vsel %vm1105, %v1279, 0.0
  %v1382 = vadd.f32 %v1380, %v1381
  %v1383 = vsel %vm1105, %v1280, 0.0
  %v1384 = vadd.f32 %v1382, %v1383
  %v1385 = vsel %vm1105, %v1281, 0.0
  %v1386 = vadd.f32 %v1384, %v1385
  %v1387 = vsel %vm1105, %v1282, 0.0
  %v1388 = vadd.f32 %v1386, %v1387
  %v1389 = vsel %vm1105, %v1283, 0.0
  %v1390 = vadd.f32 %v1388, %v1389
  %v1391 = vsel %vm1105, %v1284, 0.0
  %v1392 = vadd.f32 %v1390, %v1391
  %v1393 = vsel %vm1105, %v1285, 0.0
  %v1394 = vadd.f32 %v1392, %v1393
  %v1395 = vsel %vm1105, %v1286, 0.0
  %v1396 = vadd.f32 %v1394, %v1395
  %v1397 = vsel %vm1105, %v1287, 0.0
  %v1398 = vadd.f32 %v1396, %v1397
  %v1399 = vsel %vm1105, %v1288, 0.0
  %v1400 = vadd.f32 %v1398, %v1399
  %v1401 = vsel %vm1105, %v1289, 0.0
  %v1402 = vadd.f32 %v1400, %v1401
  %v1403 = vsel %vm1105, %v1290, 0.0
  %v1404 = vadd.f32 %v1402, %v1403
  %v1405 = vsel %vm1105, %v1291, 0.0
  %v1406 = vadd.f32 %v1404, %v1405
  %v1407 = vsel %vm1105, %v1292, 0.0
  %v1408 = vadd.f32 %v1406, %v1407
  %v1409 = vsel %vm1105, %v1293, 0.0
  %v1410 = vadd.f32 %v1408, %v1409
  %v1411 = vsel %vm1105, %v1294, 0.0
  %v1412 = vadd.f32 %v1410, %v1411
  %v1413 = vsel %vm1105, %v1295, 0.0
  %v1414 = vadd.f32 %v1412, %v1413
  %v1415 = vsel %vm1105, %v1296, 0.0
  %v1416 = vadd.f32 %v1414, %v1415
  %v1417 = vsel %vm1105, %v1297, 0.0
  %v1418 = vadd.f32 %v1416, %v1417
  %v1419 = vsel %vm1105, %v1298, 0.0
  %v1420 = vadd.f32 %v1418, %v1419
  %v1421 = vsel %vm1105, %v1299, 0.0
  %v1422 = vadd.f32 %v1420, %v1421
  %v1423 = vsel %vm1105, %v1300, 0.0
  %v1424 = vadd.f32 %v1422, %v1423
  %v1425 = vsel %vm1105, %v1301, 0.0
  %v1426 = vadd.f32 %v1424, %v1425
  %v1427 = vsel %vm1105, %v1302, 0.0
  %v1428 = vadd.f32 %v1426, %v1427
  %v1429 = vsel %vm1105, %v1303, 0.0
  %v1430 = vadd.f32 %v1428, %v1429
  %v1431 = vrot.slane %v1430, 4
  %v1432 = vadd.f32 %v1430, %v1431
  %v1433 = vrot.slane %v1432, 2
  %v1434 = vadd.f32 %v1432, %v1433
  %v1435 = vrot.slane %v1434, 1
  %v1436 = vadd.f32 %v1434, %v1435
  %v1437 = vmul.f32 %v1436, 0.001953125
  %v1438 = vmul.f32 %v1239, %v1239
  %v1439 = vsub.f32 %v1437, %v1438
  %v1440 = vsub.f32 %v654, %v1239
  %v1441 = vsub.f32 %v655, %v1239
  %v1442 = vsub.f32 %v656, %v1239
  %v1443 = vsub.f32 %v657, %v1239
  %v1444 = vsub.f32 %v658, %v1239
  %v1445 = vsub.f32 %v659, %v1239
  %v1446 = vsub.f32 %v660, %v1239
  %v1447 = vsub.f32 %v661, %v1239
  %v1448 = vsub.f32 %v662, %v1239
  %v1449 = vsub.f32 %v663, %v1239
  %v1450 = vsub.f32 %v664, %v1239
  %v1451 = vsub.f32 %v665, %v1239
  %v1452 = vsub.f32 %v666, %v1239
  %v1453 = vsub.f32 %v667, %v1239
  %v1454 = vsub.f32 %v668, %v1239
  %v1455 = vsub.f32 %v669, %v1239
  %v1456 = vsub.f32 %v670, %v1239
  %v1457 = vsub.f32 %v671, %v1239
  %v1458 = vsub.f32 %v672, %v1239
  %v1459 = vsub.f32 %v673, %v1239
  %v1460 = vsub.f32 %v674, %v1239
  %v1461 = vsub.f32 %v675, %v1239
  %v1462 = vsub.f32 %v676, %v1239
  %v1463 = vsub.f32 %v677, %v1239
  %v1464 = vsub.f32 %v678, %v1239
  %v1465 = vsub.f32 %v679, %v1239
  %v1466 = vsub.f32 %v680, %v1239
  %v1467 = vsub.f32 %v681, %v1239
  %v1468 = vsub.f32 %v682, %v1239
  %v1469 = vsub.f32 %v683, %v1239
  %v1470 = vsub.f32 %v684, %v1239
  %v1471 = vsub.f32 %v685, %v1239
  %v1472 = vsub.f32 %v686, %v1239
  %v1473 = vsub.f32 %v687, %v1239
  %v1474 = vsub.f32 %v688, %v1239
  %v1475 = vsub.f32 %v689, %v1239
  %v1476 = vsub.f32 %v690, %v1239
  %v1477 = vsub.f32 %v691, %v1239
  %v1478 = vsub.f32 %v692, %v1239
  %v1479 = vsub.f32 %v693, %v1239
  %v1480 = vsub.f32 %v694, %v1239
  %v1481 = vsub.f32 %v695, %v1239
  %v1482 = vsub.f32 %v696, %v1239
  %v1483 = vsub.f32 %v697, %v1239
  %v1484 = vsub.f32 %v698, %v1239
  %v1485 = vsub.f32 %v699, %v1239
  %v1486 = vsub.f32 %v700, %v1239
  %v1487 = vsub.f32 %v701, %v1239
  %v1488 = vsub.f32 %v702, %v1239
  %v1489 = vsub.f32 %v703, %v1239
  %v1490 = vsub.f32 %v704, %v1239
  %v1491 = vsub.f32 %v705, %v1239
  %v1492 = vsub.f32 %v706, %v1239
  %v1493 = vsub.f32 %v707, %v1239
  %v1494 = vsub.f32 %v708, %v1239
  %v1495 = vsub.f32 %v709, %v1239
  %v1496 = vsub.f32 %v710, %v1239
  %v1497 = vsub.f32 %v711, %v1239
  %v1498 = vsub.f32 %v712, %v1239
  %v1499 = vsub.f32 %v713, %v1239
  %v1500 = vsub.f32 %v714, %v1239
  %v1501 = vsub.f32 %v715, %v1239
  %v1502 = vsub.f32 %v716, %v1239
  %v1503 = vsub.f32 %v717, %v1239
  %v1504 = vadd.f32 %v1439, 1e-05
  %v1505 = vrsqrt.pop %v1504
  %v1506 = vmul.f32 %v1440, %v1505
  %v1507 = vmul.f32 %v1441, %v1505
  %v1508 = vmul.f32 %v1442, %v1505
  %v1509 = vmul.f32 %v1443, %v1505
  %v1510 = vmul.f32 %v1444, %v1505
  %v1511 = vmul.f32 %v1445, %v1505
  %v1512 = vmul.f32 %v1446, %v1505
  %v1513 = vmul.f32 %v1447, %v1505
  %v1514 = vmul.f32 %v1448, %v1505
  %v1515 = vmul.f32 %v1449, %v1505
  %v1516 = vmul.f32 %v1450, %v1505
  %v1517 = vmul.f32 %v1451, %v1505
  %v1518 = vmul.f32 %v1452, %v1505
  %v1519 = vmul.f32 %v1453, %v1505
  %v1520 = vmul.f32 %v1454, %v1505
  %v1521 = vmul.f32 %v1455, %v1505
  %v1522 = vmul.f32 %v1456, %v1505
  %v1523 = vmul.f32 %v1457, %v1505
  %v1524 = vmul.f32 %v1458, %v1505
  %v1525 = vmul.f32 %v1459, %v1505
  %v1526 = vmul.f32 %v1460, %v1505
  %v1527 = vmul.f32 %v1461, %v1505
  %v1528 = vmul.f32 %v1462, %v1505
  %v1529 = vmul.f32 %v1463, %v1505
  %v1530 = vmul.f32 %v1464, %v1505
  %v1531 = vmul.f32 %v1465, %v1505
  %v1532 = vmul.f32 %v1466, %v1505
  %v1533 = vmul.f32 %v1467, %v1505
  %v1534 = vmul.f32 %v1468, %v1505
  %v1535 = vmul.f32 %v1469, %v1505
  %v1536 = vmul.f32 %v1470, %v1505
  %v1537 = vmul.f32 %v1471, %v1505
  %v1538 = vmul.f32 %v1472, %v1505
  %v1539 = vmul.f32 %v1473, %v1505
  %v1540 = vmul.f32 %v1474, %v1505
  %v1541 = vmul.f32 %v1475, %v1505
  %v1542 = vmul.f32 %v1476, %v1505
  %v1543 = vmul.f32 %v1477, %v1505
  %v1544 = vmul.f32 %v1478, %v1505
  %v1545 = vmul.f32 %v1479, %v1505
  %v1546 = vmul.f32 %v1480, %v1505
  %v1547 = vmul.f32 %v1481, %v1505
  %v1548 = vmul.f32 %v1482, %v1505
  %v1549 = vmul.f32 %v1483, %v1505
  %v1550 = vmul.f32 %v1484, %v1505
  %v1551 = vmul.f32 %v1485, %v1505
  %v1552 = vmul.f32 %v1486, %v1505
  %v1553 = vmul.f32 %v1487, %v1505
  %v1554 = vmul.f32 %v1488, %v1505
  %v1555 = vmul.f32 %v1489, %v1505
  %v1556 = vmul.f32 %v1490, %v1505
  %v1557 = vmul.f32 %v1491, %v1505
  %v1558 = vmul.f32 %v1492, %v1505
  %v1559 = vmul.f32 %v1493, %v1505
  %v1560 = vmul.f32 %v1494, %v1505
  %v1561 = vmul.f32 %v1495, %v1505
  %v1562 = vmul.f32 %v1496, %v1505
  %v1563 = vmul.f32 %v1497, %v1505
  %v1564 = vmul.f32 %v1498, %v1505
  %v1565 = vmul.f32 %v1499, %v1505
  %v1566 = vmul.f32 %v1500, %v1505
  %v1567 = vmul.f32 %v1501, %v1505
  %v1568 = vmul.f32 %v1502, %v1505
  %v1569 = vmul.f32 %v1503, %v1505
  %v1570 = vld [vmem:[%s2 + $0x1] sm:$0x1]
  %v1571 = vlaneseq
  %v1572 = vshrl.u32 %v1571, 7
  %v1573 = vsub.s32 0, %v1572
  %v1574 = vrot.slane %v1570, %v1573
  %v1575 = vmul.f32 %v1506, %v1574
  %v1576 = vmul.f32 %v1507, %v1574
  %v1577 = vmul.f32 %v1508, %v1574
  %v1578 = vmul.f32 %v1509, %v1574
  %v1579 = vmul.f32 %v1510, %v1574
  %v1580 = vmul.f32 %v1511, %v1574
  %v1581 = vmul.f32 %v1512, %v1574
  %v1582 = vmul.f32 %v1513, %v1574
  %v1583 = vmul.f32 %v1514, %v1574
  %v1584 = vmul.f32 %v1515, %v1574
  %v1585 = vmul.f32 %v1516, %v1574
  %v1586 = vmul.f32 %v1517, %v1574
  %v1587 = vmul.f32 %v1518, %v1574
  %v1588 = vmul.f32 %v1519, %v1574
  %v1589 = vmul.f32 %v1520, %v1574
  %v1590 = vmul.f32 %v1521, %v1574
  %v1591 = vmul.f32 %v1522, %v1574
  %v1592 = vmul.f32 %v1523, %v1574
  %v1593 = vmul.f32 %v1524, %v1574
  %v1594 = vmul.f32 %v1525, %v1574
  %v1595 = vmul.f32 %v1526, %v1574
  %v1596 = vmul.f32 %v1527, %v1574
  %v1597 = vmul.f32 %v1528, %v1574
  %v1598 = vmul.f32 %v1529, %v1574
  %v1599 = vmul.f32 %v1530, %v1574
  %v1600 = vmul.f32 %v1531, %v1574
  %v1601 = vmul.f32 %v1532, %v1574
  %v1602 = vmul.f32 %v1533, %v1574
  %v1603 = vmul.f32 %v1534, %v1574
  %v1604 = vmul.f32 %v1535, %v1574
  %v1605 = vmul.f32 %v1536, %v1574
  %v1606 = vmul.f32 %v1537, %v1574
  %v1607 = vmul.f32 %v1538, %v1574
  %v1608 = vmul.f32 %v1539, %v1574
  %v1609 = vmul.f32 %v1540, %v1574
  %v1610 = vmul.f32 %v1541, %v1574
  %v1611 = vmul.f32 %v1542, %v1574
  %v1612 = vmul.f32 %v1543, %v1574
  %v1613 = vmul.f32 %v1544, %v1574
  %v1614 = vmul.f32 %v1545, %v1574
  %v1615 = vmul.f32 %v1546, %v1574
  %v1616 = vmul.f32 %v1547, %v1574
  %v1617 = vmul.f32 %v1548, %v1574
  %v1618 = vmul.f32 %v1549, %v1574
  %v1619 = vmul.f32 %v1550, %v1574
  %v1620 = vmul.f32 %v1551, %v1574
  %v1621 = vmul.f32 %v1552, %v1574
  %v1622 = vmul.f32 %v1553, %v1574
  %v1623 = vmul.f32 %v1554, %v1574
  %v1624 = vmul.f32 %v1555, %v1574
  %v1625 = vmul.f32 %v1556, %v1574
  %v1626 = vmul.f32 %v1557, %v1574
  %v1627 = vmul.f32 %v1558, %v1574
  %v1628 = vmul.f32 %v1559, %v1574
  %v1629 = vmul.f32 %v1560, %v1574
  %v1630 = vmul.f32 %v1561, %v1574
  %v1631 = vmul.f32 %v1562, %v1574
  %v1632 = vmul.f32 %v1563, %v1574
  %v1633 = vmul.f32 %v1564, %v1574
  %v1634 = vmul.f32 %v1565, %v1574
  %v1635 = vmul.f32 %v1566, %v1574
  %v1636 = vmul.f32 %v1567, %v1574
  %v1637 = vmul.f32 %v1568, %v1574
  %v1638 = vmul.f32 %v1569, %v1574
  %v1639 = vld [vmem:[%s2 + $0x2] sm:$0x1]
  %v1640 = vlaneseq
  %v1641 = vshrl.u32 %v1640, 7
  %v1642 = vsub.s32 0, %v1641
  %v1643 = vrot.slane %v1639, %v1642
  %v1644 = vadd.f32 %v1575, %v1643
  %v1645 = vadd.f32 %v1576, %v1643
  %v1646 = vadd.f32 %v1577, %v1643
  %v1647 = vadd.f32 %v1578, %v1643
  %v1648 = vadd.f32 %v1579, %v1643
  %v1649 = vadd.f32 %v1580, %v1643
  %v1650 = vadd.f32 %v1581, %v1643
  %v1651 = vadd.f32 %v1582, %v1643
  %v1652 = vadd.f32 %v1583, %v1643
  %v1653 = vadd.f32 %v1584, %v1643
  %v1654 = vadd.f32 %v1585, %v1643
  %v1655 = vadd.f32 %v1586, %v1643
  %v1656 = vadd.f32 %v1587, %v1643
  %v1657 = vadd.f32 %v1588, %v1643
  %v1658 = vadd.f32 %v1589, %v1643
  %v1659 = vadd.f32 %v1590, %v1643
  %v1660 = vadd.f32 %v1591, %v1643
  %v1661 = vadd.f32 %v1592, %v1643
  %v1662 = vadd.f32 %v1593, %v1643
  %v1663 = vadd.f32 %v1594, %v1643
  %v1664 = vadd.f32 %v1595, %v1643
  %v1665 = vadd.f32 %v1596, %v1643
  %v1666 = vadd.f32 %v1597, %v1643
  %v1667 = vadd.f32 %v1598, %v1643
  %v1668 = vadd.f32 %v1599, %v1643
  %v1669 = vadd.f32 %v1600, %v1643
  %v1670 = vadd.f32 %v1601, %v1643
  %v1671 = vadd.f32 %v1602, %v1643
  %v1672 = vadd.f32 %v1603, %v1643
  %v1673 = vadd.f32 %v1604, %v1643
  %v1674 = vadd.f32 %v1605, %v1643
  %v1675 = vadd.f32 %v1606, %v1643
  %v1676 = vadd.f32 %v1607, %v1643
  %v1677 = vadd.f32 %v1608, %v1643
  %v1678 = vadd.f32 %v1609, %v1643
  %v1679 = vadd.f32 %v1610, %v1643
  %v1680 = vadd.f32 %v1611, %v1643
  %v1681 = vadd.f32 %v1612, %v1643
  %v1682 = vadd.f32 %v1613, %v1643
  %v1683 = vadd.f32 %v1614, %v1643
  %v1684 = vadd.f32 %v1615, %v1643
  %v1685 = vadd.f32 %v1616, %v1643
  %v1686 = vadd.f32 %v1617, %v1643
  %v1687 = vadd.f32 %v1618, %v1643
  %v1688 = vadd.f32 %v1619, %v1643
  %v1689 = vadd.f32 %v1620, %v1643
  %v1690 = vadd.f32 %v1621, %v1643
  %v1691 = vadd.f32 %v1622, %v1643
  %v1692 = vadd.f32 %v1623, %v1643
  %v1693 = vadd.f32 %v1624, %v1643
  %v1694 = vadd.f32 %v1625, %v1643
  %v1695 = vadd.f32 %v1626, %v1643
  %v1696 = vadd.f32 %v1627, %v1643
  %v1697 = vadd.f32 %v1628, %v1643
  %v1698 = vadd.f32 %v1629, %v1643
  %v1699 = vadd.f32 %v1630, %v1643
  %v1700 = vadd.f32 %v1631, %v1643
  %v1701 = vadd.f32 %v1632, %v1643
  %v1702 = vadd.f32 %v1633, %v1643
  %v1703 = vadd.f32 %v1634, %v1643
  %v1704 = vadd.f32 %v1635, %v1643
  %v1705 = vadd.f32 %v1636, %v1643
  %v1706 = vadd.f32 %v1637, %v1643
  %v1707 = vadd.f32 %v1638, %v1643
  %1708 = vst.msk [vmem:[%s3] sm:$0xff] %vm1105, %v1644
  %1709 = vst.msk [vmem:[%s3 + $0x8] sm:$0xff] %vm1105, %v1645
  %1710 = vst.msk [vmem:[%s3 + $0x10] sm:$0xff] %vm1105, %v1646
  %1711 = vst.msk [vmem:[%s3 + $0x18] sm:$0xff] %vm1105, %v1647
  %1712 = vst.msk [vmem:[%s3 + $0x20] sm:$0xff] %vm1105, %v1648
  %1713 = vst.msk [vmem:[%s3 + $0x28] sm:$0xff] %vm1105, %v1649
  %1714 = vst.msk [vmem:[%s3 + $0x30] sm:$0xff] %vm1105, %v1650
  %1715 = vst.msk [vmem:[%s3 + $0x38] sm:$0xff] %vm1105, %v1651
  %1716 = vst.msk [vmem:[%s3 + $0x40] sm:$0xff] %vm1105, %v1652
  %1717 = vst.msk [vmem:[%s3 + $0x48] sm:$0xff] %vm1105, %v1653
  %1718 = vst.msk [vmem:[%s3 + $0x50] sm:$0xff] %vm1105, %v1654
  %1719 = vst.msk [vmem:[%s3 + $0x58] sm:$0xff] %vm1105, %v1655
  %1720 = vst.msk [vmem:[%s3 + $0x60] sm:$0xff] %vm1105, %v1656
  %1721 = vst.msk [vmem:[%s3 + $0x68] sm:$0xff] %vm1105, %v1657
  %1722 = vst.msk [vmem:[%s3 + $0x70] sm:$0xff] %vm1105, %v1658
  %1723 = vst.msk [vmem:[%s3 + $0x78] sm:$0xff] %vm1105, %v1659
  %1724 = vst.msk [vmem:[%s3 + $0x80] sm:$0xff] %vm1105, %v1660
  %1725 = vst.msk [vmem:[%s3 + $0x88] sm:$0xff] %vm1105, %v1661
  %1726 = vst.msk [vmem:[%s3 + $0x90] sm:$0xff] %vm1105, %v1662
  %1727 = vst.msk [vmem:[%s3 + $0x98] sm:$0xff] %vm1105, %v1663
  %1728 = vst.msk [vmem:[%s3 + $0xa0] sm:$0xff] %vm1105, %v1664
  %1729 = vst.msk [vmem:[%s3 + $0xa8] sm:$0xff] %vm1105, %v1665
  %1730 = vst.msk [vmem:[%s3 + $0xb0] sm:$0xff] %vm1105, %v1666
  %1731 = vst.msk [vmem:[%s3 + $0xb8] sm:$0xff] %vm1105, %v1667
  %1732 = vst.msk [vmem:[%s3 + $0xc0] sm:$0xff] %vm1105, %v1668
  %1733 = vst.msk [vmem:[%s3 + $0xc8] sm:$0xff] %vm1105, %v1669
  %1734 = vst.msk [vmem:[%s3 + $0xd0] sm:$0xff] %vm1105, %v1670
  %1735 = vst.msk [vmem:[%s3 + $0xd8] sm:$0xff] %vm1105, %v1671
  %1736 = vst.msk [vmem:[%s3 + $0xe0] sm:$0xff] %vm1105, %v1672
  %1737 = vst.msk [vmem:[%s3 + $0xe8] sm:$0xff] %vm1105, %v1673
  %1738 = vst.msk [vmem:[%s3 + $0xf0] sm:$0xff] %vm1105, %v1674
  %1739 = vst.msk [vmem:[%s3 + $0xf8] sm:$0xff] %vm1105, %v1675
  %1740 = vst.msk [vmem:[%s3 + $0x100] sm:$0xff] %vm1105, %v1676
  %1741 = vst.msk [vmem:[%s3 + $0x108] sm:$0xff] %vm1105, %v1677
  %1742 = vst.msk [vmem:[%s3 + $0x110] sm:$0xff] %vm1105, %v1678
  %1743 = vst.msk [vmem:[%s3 + $0x118] sm:$0xff] %vm1105, %v1679
  %1744 = vst.msk [vmem:[%s3 + $0x120] sm:$0xff] %vm1105, %v1680
  %1745 = vst.msk [vmem:[%s3 + $0x128] sm:$0xff] %vm1105, %v1681
  %1746 = vst.msk [vmem:[%s3 + $0x130] sm:$0xff] %vm1105, %v1682
  %1747 = vst.msk [vmem:[%s3 + $0x138] sm:$0xff] %vm1105, %v1683
  %1748 = vst.msk [vmem:[%s3 + $0x140] sm:$0xff] %vm1105, %v1684
  %1749 = vst.msk [vmem:[%s3 + $0x148] sm:$0xff] %vm1105, %v1685
  %1750 = vst.msk [vmem:[%s3 + $0x150] sm:$0xff] %vm1105, %v1686
  %1751 = vst.msk [vmem:[%s3 + $0x158] sm:$0xff] %vm1105, %v1687
  %1752 = vst.msk [vmem:[%s3 + $0x160] sm:$0xff] %vm1105, %v1688
  %1753 = vst.msk [vmem:[%s3 + $0x168] sm:$0xff] %vm1105, %v1689
  %1754 = vst.msk [vmem:[%s3 + $0x170] sm:$0xff] %vm1105, %v1690
  %1755 = vst.msk [vmem:[%s3 + $0x178] sm:$0xff] %vm1105, %v1691
  %1756 = vst.msk [vmem:[%s3 + $0x180] sm:$0xff] %vm1105, %v1692
  %1757 = vst.msk [vmem:[%s3 + $0x188] sm:$0xff] %vm1105, %v1693
  %1758 = vst.msk [vmem:[%s3 + $0x190] sm:$0xff] %vm1105, %v1694
  %1759 = vst.msk [vmem:[%s3 + $0x198] sm:$0xff] %vm1105, %v1695
  %1760 = vst.msk [vmem:[%s3 + $0x1a0] sm:$0xff] %vm1105, %v1696
  %1761 = vst.msk [vmem:[%s3 + $0x1a8] sm:$0xff] %vm1105, %v1697
  %1762 = vst.msk [vmem:[%s3 + $0x1b0] sm:$0xff] %vm1105, %v1698
  %1763 = vst.msk [vmem:[%s3 + $0x1b8] sm:$0xff] %vm1105, %v1699
  %1764 = vst.msk [vmem:[%s3 + $0x1c0] sm:$0xff] %vm1105, %v1700
  %1765 = vst.msk [vmem:[%s3 + $0x1c8] sm:$0xff] %vm1105, %v1701
  %1766 = vst.msk [vmem:[%s3 + $0x1d0] sm:$0xff] %vm1105, %v1702
  %1767 = vst.msk [vmem:[%s3 + $0x1d8] sm:$0xff] %vm1105, %v1703
  %1768 = vst.msk [vmem:[%s3 + $0x1e0] sm:$0xff] %vm1105, %v1704
  %1769 = vst.msk [vmem:[%s3 + $0x1e8] sm:$0xff] %vm1105, %v1705
  %1770 = vst.msk [vmem:[%s3 + $0x1f0] sm:$0xff] %vm1105, %v1706
  %1771 = vst.msk [vmem:[%s3 + $0x1f8] sm:$0xff] %vm1105, %v1707
  // Predicated region
  $region14: #{vae_forward.10} parent=0 // pred_check
    _
  $region15: #{vae_forward.10} parent=0 // pred_check_branch
    %1773 = sbr.rel (0) target = $region17
  $region16: #{vae_forward.10} parent=0 // pred_region
    _
  $region17: #{vae_forward.10} parent=0 // pred_fallthru
    _
  // Predicated region
  $region18: #{vae_forward.10} parent=0 // pred_check
    _
  $region19: #{vae_forward.10} parent=0 // pred_check_branch
    %1775 = sbr.rel (0) target = $region21
  $region20: #{vae_forward.10} parent=0 // pred_region
    _
  $region21: #{vae_forward.10} parent=0 // pred_fallthru
    _

// kernel: vae_forward.11
$region0: #{vae_forward.11}
  #allocation0 [shape = 'u32[]', space=smem, size = 0x4, offset = 0x4, fixed_abs, tag = 'smem constant byte address 0x4 - core index']
  #allocation1 [shape = 'u32[144,128]{1,0:T(1,128)}', space=vmem, size = 0x12000, scoped, tag = 'internal scratch']
  %s0 = inlined_call_operand.vmem [shape: bf16[1,128,192], index: 0, kind: input, shape index: {}]
  %s1 = inlined_call_operand.vmem [shape: bf16[1,192,24], index: 1, kind: input, shape index: {}]
  %s2 = inlined_call_operand.vmem [shape: f32[1,24], index: 2, kind: input, shape index: {}]
  %s3 = inlined_call_operand.vmem [shape: f32[1,128,24], index: 3, kind: output, shape index: {}]
  %s4 = sld [smem:[#allocation0]]
  $region22: #{vae_forward.11} parent=0
    _
  %s6 = ssub.s32 1, %s4
  %s7 = scalar_select 0, %s6, %s4
  // Predicated region
  $region2: #{vae_forward.11} parent=0 // pred_check
    _
  $region3: #{vae_forward.11} parent=0 // pred_check_branch
    %9 = sbr.rel (0) target = $region5
  $region4: #{vae_forward.11} parent=0 // pred_region
    _
  $region5: #{vae_forward.11} parent=0 // pred_fallthru
    _
  // Predicated region
  $region6: #{vae_forward.11} parent=0 // pred_check
    _
  $region7: #{vae_forward.11} parent=0 // pred_check_branch
    %11 = sbr.rel (0) target = $region9
  $region8: #{vae_forward.11} parent=0 // pred_region
    _
  $region9: #{vae_forward.11} parent=0 // pred_fallthru
    _
  // Predicated region
  $region10: #{vae_forward.11} parent=0 // pred_check
    _
  $region11: #{vae_forward.11} parent=0 // pred_check_branch
    %13 = sbr.rel (0) target = $region13
  $region12: #{vae_forward.11} parent=0 // pred_region
    _
  $region13: #{vae_forward.11} parent=0 // pred_fallthru
    _
  %v15 = vld [vmem:[%s0] sm:$0xff]
  %v16 = vld [vmem:[%s0 + $0x8] sm:$0xff]
  %v17 = vld [vmem:[%s0 + $0x10] sm:$0xff]
  %v18 = vld [vmem:[%s0 + $0x18] sm:$0xff]
  %v19 = vld [vmem:[%s0 + $0x20] sm:$0xff]
  %v20 = vld [vmem:[%s0 + $0x28] sm:$0xff]
  %v21 = vld [vmem:[%s0 + $0x30] sm:$0xff]
  %v22 = vld [vmem:[%s0 + $0x38] sm:$0xff]
  %v23 = vld [vmem:[%s0 + $0x40] sm:$0xff]
  %v24 = vld [vmem:[%s0 + $0x48] sm:$0xff]
  %v25 = vld [vmem:[%s0 + $0x50] sm:$0xff]
  %v26 = vld [vmem:[%s0 + $0x58] sm:$0xff]
  %v27 = vld [vmem:[%s0 + $0x60] sm:$0xff]
  %v28 = vld [vmem:[%s0 + $0x68] sm:$0xff]
  %v29 = vld [vmem:[%s0 + $0x70] sm:$0xff]
  %v30 = vld [vmem:[%s0 + $0x78] sm:$0xff]
  %v31 = vld [vmem:[%s1] sm:$0xf]
  %v32 = vld [vmem:[%s1 + $0x4] sm:$0xf]
  %v33 = vld [vmem:[%s1 + $0x8] sm:$0xf]
  %v34 = vld [vmem:[%s1 + $0xc] sm:$0xf]
  %v35 = vld [vmem:[%s1 + $0x10] sm:$0xf]
  %v36 = vld [vmem:[%s1 + $0x14] sm:$0xf]
  %v37 = vld [vmem:[%s1 + $0x18] sm:$0xf]
  %v38 = vld [vmem:[%s1 + $0x1c] sm:$0xf]
  %v39 = vld [vmem:[%s1 + $0x20] sm:$0xf]
  %v40 = vld [vmem:[%s1 + $0x24] sm:$0xf]
  %v41 = vld [vmem:[%s1 + $0x28] sm:$0xf]
  %v42 = vld [vmem:[%s1 + $0x2c] sm:$0xf]
  %v43 = vld [vmem:[%s1 + $0x30] sm:$0xf]
  %v44 = vld [vmem:[%s1 + $0x34] sm:$0xf]
  %v45 = vld [vmem:[%s1 + $0x38] sm:$0xf]
  %v46 = vld [vmem:[%s1 + $0x3c] sm:$0xf]
  %v47 = vld [vmem:[%s1 + $0x40] sm:$0xf]
  %v48 = vld [vmem:[%s1 + $0x44] sm:$0xf]
  %v49 = vld [vmem:[%s1 + $0x48] sm:$0xf]
  %v50 = vld [vmem:[%s1 + $0x4c] sm:$0xf]
  %v51 = vld [vmem:[%s1 + $0x50] sm:$0xf]
  %v52 = vld [vmem:[%s1 + $0x54] sm:$0xf]
  %v53 = vld [vmem:[%s1 + $0x58] sm:$0xf]
  %v54 = vld [vmem:[%s1 + $0x5c] sm:$0xf]
  %v55 = vld [vmem:[%s2] sm:$0x1]
  %v57 = vlaneseq
  %v58 = vshrl.u32 %v57, 7
  %v59 = vsub.s32 0, %v58
  %v60 = vrot.slane %v55, %v59
  %v78 = vunpack.c.l.b16 %v15
  %v79 = vunpack.c.h.b16 %v15
  %v80 = vunpack.c.l.b16 %v16
  %v81 = vunpack.c.h.b16 %v16
  %v82 = vunpack.c.l.b16 %v17
  %v83 = vunpack.c.h.b16 %v17
  %v84 = vunpack.c.l.b16 %v18
  %v85 = vunpack.c.h.b16 %v18
  %v86 = vunpack.c.l.b16 %v19
  %v87 = vunpack.c.h.b16 %v19
  %v88 = vunpack.c.l.b16 %v20
  %v89 = vunpack.c.h.b16 %v20
  %v90 = vunpack.c.l.b16 %v21
  %v91 = vunpack.c.h.b16 %v21
  %v92 = vunpack.c.l.b16 %v22
  %v93 = vunpack.c.h.b16 %v22
  %v94 = vunpack.c.l.b16 %v23
  %v95 = vunpack.c.h.b16 %v23
  %v96 = vunpack.c.l.b16 %v24
  %v97 = vunpack.c.h.b16 %v24
  %v98 = vunpack.c.l.b16 %v25
  %v99 = vunpack.c.h.b16 %v25
  %v100 = vunpack.c.l.b16 %v26
  %v101 = vunpack.c.h.b16 %v26
  %v102 = vunpack.c.l.b16 %v27
  %v103 = vunpack.c.h.b16 %v27
  %v104 = vunpack.c.l.b16 %v28
  %v105 = vunpack.c.h.b16 %v28
  %v106 = vunpack.c.l.b16 %v29
  %v107 = vunpack.c.h.b16 %v29
  %v108 = vunpack.c.l.b16 %v30
  %v109 = vunpack.c.h.b16 %v30
  %v110 = vpack.c.b16 %v80, %v78
  %v111 = vpack.c.b16 %v81, %v79
  %v112 = vpack.c.b16 %v84, %v82
  %v113 = vpack.c.b16 %v85, %v83
  %v114 = vpack.c.b16 %v88, %v86
  %v115 = vpack.c.b16 %v89, %v87
  %v116 = vpack.c.b16 %v92, %v90
  %v117 = vpack.c.b16 %v93, %v91
  %v118 = vpack.c.b16 %v96, %v94
  %v119 = vpack.c.b16 %v97, %v95
  %v120 = vpack.c.b16 %v100, %v98
  %v121 = vpack.c.b16 %v101, %v99
  %v122 = vpack.c.b16 %v104, %v102
  %v123 = vpack.c.b16 %v105, %v103
  %v124 = vpack.c.b16 %v108, %v106
  %v125 = vpack.c.b16 %v109, %v107
  %v158 = vunpack.c.l.b16 %v31
  %v159 = vunpack.c.l.b16 %v32
  %v160 = vunpack.c.l.b16 %v33
  %v161 = vunpack.c.l.b16 %v34
  %v162 = vunpack.c.l.b16 %v35
  %v163 = vunpack.c.l.b16 %v36
  %v164 = vunpack.c.l.b16 %v37
  %v165 = vunpack.c.l.b16 %v38
  %v166 = vunpack.c.l.b16 %v39
  %v167 = vunpack.c.l.b16 %v40
  %v168 = vunpack.c.l.b16 %v41
  %v169 = vunpack.c.l.b16 %v42
  %v170 = vunpack.c.l.b16 %v43
  %v171 = vunpack.c.l.b16 %v44
  %v172 = vunpack.c.l.b16 %v45
  %v173 = vunpack.c.l.b16 %v46
  %v174 = vunpack.c.l.b16 %v47
  %v175 = vunpack.c.l.b16 %v48
  %v176 = vunpack.c.l.b16 %v49
  %v177 = vunpack.c.l.b16 %v50
  %v178 = vunpack.c.l.b16 %v51
  %v179 = vunpack.c.l.b16 %v52
  %v180 = vunpack.c.l.b16 %v53
  %v181 = vunpack.c.l.b16 %v54
  %v182 = vpack.c.b16 %v159, %v158
  %v183 = vpack.c.b16 %v161, %v160
  %v184 = vpack.c.b16 %v163, %v162
  %v185 = vpack.c.b16 %v165, %v164
  %v186 = vpack.c.b16 %v167, %v166
  %v187 = vpack.c.b16 %v169, %v168
  %v188 = vpack.c.b16 %v171, %v170
  %v189 = vpack.c.b16 %v173, %v172
  %v190 = vpack.c.b16 %v175, %v174
  %v191 = vpack.c.b16 %v177, %v176
  %v192 = vpack.c.b16 %v179, %v178
  %v193 = vpack.c.b16 %v181, %v180
  %vm206 = vcmask 523264
  %v208 = vsel %vm206, %v111, 0
  %v211 = vsel %vm206, %v113, 0
  %v214 = vsel %vm206, %v115, 0
  %v217 = vsel %vm206, %v117, 0
  %v220 = vsel %vm206, %v119, 0
  %v223 = vsel %vm206, %v121, 0
  %v226 = vsel %vm206, %v123, 0
  %v229 = vsel %vm206, %v125, 0
  %231 = vmatprep.subr.bf16.mxu0 0
  %232 = vmatpush1.bf16.msra.mxu0 %v182
  %233 = vmatprep.subr.bf16.mxu0 0
  %234 = vmatpush1.bf16.msra.mxu0 %v183
  %235 = vmatprep.subr.bf16.mxu0 0
  %236 = vmatpush1.bf16.msra.mxu0 %v184
  %237 = vmatprep.subr.bf16.mxu0 0
  %238 = vmatpush1.bf16.msra.mxu0 %v185
  %239 = vmatprep.subr.bf16.mxu0 0
  %240 = vmatpush1.bf16.msra.mxu0 %v186
  %241 = vmatprep.subr.bf16.mxu0 0
  %242 = vmatpush1.bf16.msra.mxu0 %v187
  %243 = vmatprep.subr.bf16.mxu0 0
  %244 = vmatpush1.bf16.msra.mxu0 %v188
  %245 = vmatprep.subr.bf16.mxu0 0
  %246 = vmatpush1.bf16.msra.mxu0 %v189
  %247 = vmatprep.subr.bf16.mxu0 0
  %248 = vmatpush1.bf16.msra.mxu0 %v190
  %249 = vmatprep.subr.bf16.mxu0 0
  %250 = vmatpush1.bf16.msra.mxu0 %v191
  %251 = vmatprep.subr.bf16.mxu0 0
  %252 = vmatpush1.bf16.msra.mxu0 %v192
  %253 = vmatprep.subr.bf16.mxu0 0
  %254 = vmatpush1.bf16.msra.mxu0 %v193
  %255 = vmatprep.subr.bf16.mxu0 0
  %256 = vmatpush1.bf16.msra.mxu0 0
  %257 = vmatprep.subr.bf16.mxu0 0
  %258 = vmatpush1.bf16.msra.mxu0 0
  %259 = vmatprep.subr.bf16.mxu0 0
  %260 = vmatpush1.bf16.msra.mxu0 0
  %261 = vmatprep.subr.bf16.mxu0 0
  %262 = vmatpush1.bf16.msra.mxu0 0
  %263 = vmatprep.mubr.bf16.mxu0 %v208
  %264 = vmatmul.mubr.bf16.gmra.mrb[0].mxu0 %v110
  %v265 = vpop.f32.mrb[0].mxu0
  %v266 = vadd.f32 %v60, %v265
  %v267 = vpop.f32.mrb[0].mxu0
  %v268 = vpop.f32.mrb[0].mxu0
  %v269 = vadd.f32 %v60, %v268
  %v270 = vpop.f32.mrb[0].mxu0
  %271 = vmatprep.mubr.bf16.mxu0 %v211
  %272 = vmatmul.mubr.bf16.gmra.mrb[0].mxu0 %v112
  %v273 = vpop.f32.mrb[0].mxu0
  %v274 = vadd.f32 %v60, %v273
  %v275 = vpop.f32.mrb[0].mxu0
  %v276 = vpop.f32.mrb[0].mxu0
  %v277 = vadd.f32 %v60, %v276
  %v278 = vpop.f32.mrb[0].mxu0
  %279 = vmatprep.mubr.bf16.mxu0 %v214
  %280 = vmatmul.mubr.bf16.gmra.mrb[0].mxu0 %v114
  %v281 = vpop.f32.mrb[0].mxu0
  %v282 = vadd.f32 %v60, %v281
  %v283 = vpop.f32.mrb[0].mxu0
  %v284 = vpop.f32.mrb[0].mxu0
  %v285 = vadd.f32 %v60, %v284
  %v286 = vpop.f32.mrb[0].mxu0
  %287 = vmatprep.mubr.bf16.mxu0 %v217
  %288 = vmatmul.mubr.bf16.gmra.mrb[0].mxu0 %v116
  %v289 = vpop.f32.mrb[0].mxu0
  %v290 = vadd.f32 %v60, %v289
  %v291 = vpop.f32.mrb[0].mxu0
  %v292 = vpop.f32.mrb[0].mxu0
  %v293 = vadd.f32 %v60, %v292
  %v294 = vpop.f32.mrb[0].mxu0
  %295 = vmatprep.mubr.bf16.mxu0 %v220
  %296 = vmatmul.mubr.bf16.gmra.mrb[0].mxu0 %v118
  %v297 = vpop.f32.mrb[0].mxu0
  %v298 = vadd.f32 %v60, %v297
  %v299 = vpop.f32.mrb[0].mxu0
  %v300 = vpop.f32.mrb[0].mxu0
  %v301 = vadd.f32 %v60, %v300
  %v302 = vpop.f32.mrb[0].mxu0
  %303 = vmatprep.mubr.bf16.mxu0 %v223
  %304 = vmatmul.mubr.bf16.gmra.mrb[0].mxu0 %v120
  %v305 = vpop.f32.mrb[0].mxu0
  %v306 = vadd.f32 %v60, %v305
  %v307 = vpop.f32.mrb[0].mxu0
  %v308 = vpop.f32.mrb[0].mxu0
  %v309 = vadd.f32 %v60, %v308
  %v310 = vpop.f32.mrb[0].mxu0
  %311 = vmatprep.mubr.bf16.mxu0 %v226
  %312 = vmatmul.mubr.bf16.gmra.mrb[0].mxu0 %v122
  %v313 = vpop.f32.mrb[0].mxu0
  %v314 = vadd.f32 %v60, %v313
  %v315 = vpop.f32.mrb[0].mxu0
  %v316 = vpop.f32.mrb[0].mxu0
  %v317 = vadd.f32 %v60, %v316
  %v318 = vpop.f32.mrb[0].mxu0
  %319 = vmatprep.mubr.bf16.mxu0 %v229
  %320 = vmatmul.mubr.bf16.gmra.mrb[0].mxu0 %v124
  %v321 = vpop.f32.mrb[0].mxu0
  %v322 = vadd.f32 %v60, %v321
  %v323 = vpop.f32.mrb[0].mxu0
  %v324 = vpop.f32.mrb[0].mxu0
  %v325 = vadd.f32 %v60, %v324
  %v326 = vpop.f32.mrb[0].mxu0
  %327 = vdwg.mxu0
  %v328 = vmax.f32 %v266, 0.0
  %v329 = vmax.f32 %v269, 0.0
  %v330 = vmax.f32 %v274, 0.0
  %v331 = vmax.f32 %v277, 0.0
  %v332 = vmax.f32 %v282, 0.0
  %v333 = vmax.f32 %v285, 0.0
  %v334 = vmax.f32 %v290, 0.0
  %v335 = vmax.f32 %v293, 0.0
  %v336 = vmax.f32 %v298, 0.0
  %v337 = vmax.f32 %v301, 0.0
  %v338 = vmax.f32 %v306, 0.0
  %v339 = vmax.f32 %v309, 0.0
  %v340 = vmax.f32 %v314, 0.0
  %v341 = vmax.f32 %v317, 0.0
  %v342 = vmax.f32 %v322, 0.0
  %v343 = vmax.f32 %v325, 0.0
  %vm344 = vcmask 195584
  %345 = vst.msk [vmem:[%s3] sm:$0xff] %vm344, %v328
  %346 = vst.msk [vmem:[%s3 + $0x8] sm:$0xff] %vm344, %v329
  %347 = vst.msk [vmem:[%s3 + $0x10] sm:$0xff] %vm344, %v330
  %348 = vst.msk [vmem:[%s3 + $0x18] sm:$0xff] %vm344, %v331
  %349 = vst.msk [vmem:[%s3 + $0x20] sm:$0xff] %vm344, %v332
  %350 = vst.msk [vmem:[%s3 + $0x28] sm:$0xff] %vm344, %v333
  %351 = vst.msk [vmem:[%s3 + $0x30] sm:$0xff] %vm344, %v334
  %352 = vst.msk [vmem:[%s3 + $0x38] sm:$0xff] %vm344, %v335
  %353 = vst.msk [vmem:[%s3 + $0x40] sm:$0xff] %vm344, %v336
  %354 = vst.msk [vmem:[%s3 + $0x48] sm:$0xff] %vm344, %v337
  %355 = vst.msk [vmem:[%s3 + $0x50] sm:$0xff] %vm344, %v338
  %356 = vst.msk [vmem:[%s3 + $0x58] sm:$0xff] %vm344, %v339
  %357 = vst.msk [vmem:[%s3 + $0x60] sm:$0xff] %vm344, %v340
  %358 = vst.msk [vmem:[%s3 + $0x68] sm:$0xff] %vm344, %v341
  %359 = vst.msk [vmem:[%s3 + $0x70] sm:$0xff] %vm344, %v342
  %360 = vst.msk [vmem:[%s3 + $0x78] sm:$0xff] %vm344, %v343
  // Predicated region
  $region14: #{vae_forward.11} parent=0 // pred_check
    _
  $region15: #{vae_forward.11} parent=0 // pred_check_branch
    %362 = sbr.rel (0) target = $region17
  $region16: #{vae_forward.11} parent=0 // pred_region
    _
  $region17: #{vae_forward.11} parent=0 // pred_fallthru
    _
  // Predicated region
  $region18: #{vae_forward.11} parent=0 // pred_check
    _
  $region19: #{vae_forward.11} parent=0 // pred_check_branch
    %364 = sbr.rel (0) target = $region21
  $region20: #{vae_forward.11} parent=0 // pred_region
    _
  $region21: #{vae_forward.11} parent=0 // pred_fallthru
    _

// kernel: vae_forward.12
$region0: #{vae_forward.12}
  #allocation0 [shape = 'u32[]', space=smem, size = 0x4, offset = 0x4, fixed_abs, tag = 'smem constant byte address 0x4 - core index']
  #allocation1 [shape = 'u32[144,128]{1,0:T(1,128)}', space=vmem, size = 0x12000, scoped, tag = 'internal scratch']
  %s0 = inlined_call_operand.vmem [shape: bf16[1,32,384], index: 0, kind: input, shape index: {}]
  %s1 = inlined_call_operand.vmem [shape: bf16[1,384,48], index: 1, kind: input, shape index: {}]
  %s2 = inlined_call_operand.vmem [shape: f32[3,48], index: 2, kind: input, shape index: {}]
  %s3 = inlined_call_operand.vmem [shape: f32[1,32,48], index: 3, kind: output, shape index: {}]
  %s4 = sld [smem:[#allocation0]]
  $region22: #{vae_forward.12} parent=0
    _
  %s6 = ssub.s32 1, %s4
  %s7 = scalar_select 0, %s6, %s4
  // Predicated region
  $region2: #{vae_forward.12} parent=0 // pred_check
    _
  $region3: #{vae_forward.12} parent=0 // pred_check_branch
    %9 = sbr.rel (0) target = $region5
  $region4: #{vae_forward.12} parent=0 // pred_region
    _
  $region5: #{vae_forward.12} parent=0 // pred_fallthru
    _
  // Predicated region
  $region6: #{vae_forward.12} parent=0 // pred_check
    _
  $region7: #{vae_forward.12} parent=0 // pred_check_branch
    %11 = sbr.rel (0) target = $region9
  $region8: #{vae_forward.12} parent=0 // pred_region
    _
  $region9: #{vae_forward.12} parent=0 // pred_fallthru
    _
  // Predicated region
  $region10: #{vae_forward.12} parent=0 // pred_check
    _
  $region11: #{vae_forward.12} parent=0 // pred_check_branch
    %13 = sbr.rel (0) target = $region13
  $region12: #{vae_forward.12} parent=0 // pred_region
    _
  $region13: #{vae_forward.12} parent=0 // pred_fallthru
    _
  %v15 = vld [vmem:[%s0] sm:$0xff]
  %v16 = vld [vmem:[%s0 + $0x8] sm:$0xf]
  %v17 = vld [vmem:[%s0 + $0xc] sm:$0xff]
  %v18 = vld [vmem:[%s0 + $0x14] sm:$0xf]
  %v19 = vld [vmem:[%s0 + $0x18] sm:$0xff]
  %v20 = vld [vmem:[%s0 + $0x20] sm:$0xf]
  %v21 = vld [vmem:[%s0 + $0x24] sm:$0xff]
  %v22 = vld [vmem:[%s0 + $0x2c] sm:$0xf]
  %v23 = vld [vmem:[%s1] sm:$0xf]
  %v24 = vld [vmem:[%s1 + $0x4] sm:$0xf]
  %v25 = vld [vmem:[%s1 + $0x8] sm:$0xf]
  %v26 = vld [vmem:[%s1 + $0xc] sm:$0xf]
  %v27 = vld [vmem:[%s1 + $0x10] sm:$0xf]
  %v28 = vld [vmem:[%s1 + $0x14] sm:$0xf]
  %v29 = vld [vmem:[%s1 + $0x18] sm:$0xf]
  %v30 = vld [vmem:[%s1 + $0x1c] sm:$0xf]
  %v31 = vld [vmem:[%s1 + $0x20] sm:$0xf]
  %v32 = vld [vmem:[%s1 + $0x24] sm:$0xf]
  %v33 = vld [vmem:[%s1 + $0x28] sm:$0xf]
  %v34 = vld [vmem:[%s1 + $0x2c] sm:$0xf]
  %v35 = vld [vmem:[%s1 + $0x30] sm:$0xf]
  %v36 = vld [vmem:[%s1 + $0x34] sm:$0xf]
  %v37 = vld [vmem:[%s1 + $0x38] sm:$0xf]
  %v38 = vld [vmem:[%s1 + $0x3c] sm:$0xf]
  %v39 = vld [vmem:[%s1 + $0x40] sm:$0xf]
  %v40 = vld [vmem:[%s1 + $0x44] sm:$0xf]
  %v41 = vld [vmem:[%s1 + $0x48] sm:$0xf]
  %v42 = vld [vmem:[%s1 + $0x4c] sm:$0xf]
  %v43 = vld [vmem:[%s1 + $0x50] sm:$0xf]
  %v44 = vld [vmem:[%s1 + $0x54] sm:$0xf]
  %v45 = vld [vmem:[%s1 + $0x58] sm:$0xf]
  %v46 = vld [vmem:[%s1 + $0x5c] sm:$0xf]
  %v47 = vld [vmem:[%s1 + $0x60] sm:$0xf]
  %v48 = vld [vmem:[%s1 + $0x64] sm:$0xf]
  %v49 = vld [vmem:[%s1 + $0x68] sm:$0xf]
  %v50 = vld [vmem:[%s1 + $0x6c] sm:$0xf]
  %v51 = vld [vmem:[%s1 + $0x70] sm:$0xf]
  %v52 = vld [vmem:[%s1 + $0x74] sm:$0xf]
  %v53 = vld [vmem:[%s1 + $0x78] sm:$0xf]
  %v54 = vld [vmem:[%s1 + $0x7c] sm:$0xf]
  %v55 = vld [vmem:[%s1 + $0x80] sm:$0xf]
  %v56 = vld [vmem:[%s1 + $0x84] sm:$0xf]
  %v57 = vld [vmem:[%s1 + $0x88] sm:$0xf]
  %v58 = vld [vmem:[%s1 + $0x8c] sm:$0xf]
  %v59 = vld [vmem:[%s1 + $0x90] sm:$0xf]
  %v60 = vld [vmem:[%s1 + $0x94] sm:$0xf]
  %v61 = vld [vmem:[%s1 + $0x98] sm:$0xf]
  %v62 = vld [vmem:[%s1 + $0x9c] sm:$0xf]
  %v63 = vld [vmem:[%s1 + $0xa0] sm:$0xf]
  %v64 = vld [vmem:[%s1 + $0xa4] sm:$0xf]
  %v65 = vld [vmem:[%s1 + $0xa8] sm:$0xf]
  %v66 = vld [vmem:[%s1 + $0xac] sm:$0xf]
  %v67 = vld [vmem:[%s1 + $0xb0] sm:$0xf]
  %v68 = vld [vmem:[%s1 + $0xb4] sm:$0xf]
  %v69 = vld [vmem:[%s1 + $0xb8] sm:$0xf]
  %v70 = vld [vmem:[%s1 + $0xbc] sm:$0xf]
  %v71 = vld [vmem:[%s2] sm:$0x1]
  %v72 = vlaneseq
  %v73 = vshrl.u32 %v72, 7
  %v74 = vsub.s32 0, %v73
  %v75 = vrot.slane %v71, %v74
  %v84 = vunpack.c.l.b16 %v15
  %v85 = vunpack.c.h.b16 %v15
  %v86 = vunpack.c.l.b16 %v16
  %v87 = vunpack.c.l.b16 %v17
  %v88 = vunpack.c.h.b16 %v17
  %v89 = vunpack.c.l.b16 %v18
  %v90 = vunpack.c.l.b16 %v19
  %v91 = vunpack.c.h.b16 %v19
  %v92 = vunpack.c.l.b16 %v20
  %v93 = vunpack.c.l.b16 %v21
  %v94 = vunpack.c.h.b16 %v21
  %v95 = vunpack.c.l.b16 %v22
  %v96 = vpack.c.b16 %v87, %v84
  %v97 = vpack.c.b16 %v88, %v85
  %v98 = vpack.c.b16 %v89, %v86
  %v99 = vpack.c.b16 %v93, %v90
  %v100 = vpack.c.b16 %v94, %v91
  %v101 = vpack.c.b16 %v95, %v92
  %v156 = vunpack.c.l.b16 %v23
  %v157 = vunpack.c.l.b16 %v24
  %v158 = vunpack.c.l.b16 %v25
  %v159 = vunpack.c.l.b16 %v26
  %v160 = vunpack.c.l.b16 %v27
  %v161 = vunpack.c.l.b16 %v28
  %v162 = vunpack.c.l.b16 %v29
  %v163 = vunpack.c.l.b16 %v30
  %v164 = vunpack.c.l.b16 %v31
  %v165 = vunpack.c.l.b16 %v32
  %v166 = vunpack.c.l.b16 %v33
  %v167 = vunpack.c.l.b16 %v34
  %v168 = vunpack.c.l.b16 %v35
  %v169 = vunpack.c.l.b16 %v36
  %v170 = vunpack.c.l.b16 %v37
  %v171 = vunpack.c.l.b16 %v38
  %v172 = vunpack.c.l.b16 %v39
  %v173 = vunpack.c.l.b16 %v40
  %v174 = vunpack.c.l.b16 %v41
  %v175 = vunpack.c.l.b16 %v42
  %v176 = vunpack.c.l.b16 %v43
  %v177 = vunpack.c.l.b16 %v44
  %v178 = vunpack.c.l.b16 %v45
  %v179 = vunpack.c.l.b16 %v46
  %v180 = vunpack.c.l.b16 %v47
  %v181 = vunpack.c.l.b16 %v48
  %v182 = vunpack.c.l.b16 %v49
  %v183 = vunpack.c.l.b16 %v50
  %v184 = vunpack.c.l.b16 %v51
  %v185 = vunpack.c.l.b16 %v52
  %v186 = vunpack.c.l.b16 %v53
  %v187 = vunpack.c.l.b16 %v54
  %v188 = vunpack.c.l.b16 %v55
  %v189 = vunpack.c.l.b16 %v56
  %v190 = vunpack.c.l.b16 %v57
  %v191 = vunpack.c.l.b16 %v58
  %v192 = vunpack.c.l.b16 %v59
  %v193 = vunpack.c.l.b16 %v60
  %v194 = vunpack.c.l.b16 %v61
  %v195 = vunpack.c.l.b16 %v62
  %v196 = vunpack.c.l.b16 %v63
  %v197 = vunpack.c.l.b16 %v64
  %v198 = vunpack.c.l.b16 %v65
  %v199 = vunpack.c.l.b16 %v66
  %v200 = vunpack.c.l.b16 %v67
  %v201 = vunpack.c.l.b16 %v68
  %v202 = vunpack.c.l.b16 %v69
  %v203 = vunpack.c.l.b16 %v70
  %v204 = vpack.c.b16 %v157, %v156
  %v205 = vpack.c.b16 %v159, %v158
  %v206 = vpack.c.b16 %v161, %v160
  %v207 = vpack.c.b16 %v163, %v162
  %v208 = vpack.c.b16 %v165, %v164
  %v209 = vpack.c.b16 %v167, %v166
  %v210 = vpack.c.b16 %v169, %v168
  %v211 = vpack.c.b16 %v171, %v170
  %v212 = vpack.c.b16 %v173, %v172
  %v213 = vpack.c.b16 %v175, %v174
  %v214 = vpack.c.b16 %v177, %v176
  %v215 = vpack.c.b16 %v179, %v178
  %v216 = vpack.c.b16 %v181, %v180
  %v217 = vpack.c.b16 %v183, %v182
  %v218 = vpack.c.b16 %v185, %v184
  %v219 = vpack.c.b16 %v187, %v186
  %v220 = vpack.c.b16 %v189, %v188
  %v221 = vpack.c.b16 %v191, %v190
  %v222 = vpack.c.b16 %v193, %v192
  %v223 = vpack.c.b16 %v195, %v194
  %v224 = vpack.c.b16 %v197, %v196
  %v225 = vpack.c.b16 %v199, %v198
  %v226 = vpack.c.b16 %v201, %v200
  %v227 = vpack.c.b16 %v203, %v202
  %252 = vmatprep.subr.bf16.mxu0 0
  %253 = vmatpush1.bf16.msra.mxu0 %v204
  %254 = vmatprep.subr.bf16.mxu0 0
  %255 = vmatpush1.bf16.msra.mxu0 %v205
  %256 = vmatprep.subr.bf16.mxu0 0
  %257 = vmatpush1.bf16.msra.mxu0 %v206
  %258 = vmatprep.subr.bf16.mxu0 0
  %259 = vmatpush1.bf16.msra.mxu0 %v207
  %260 = vmatprep.subr.bf16.mxu0 0
  %261 = vmatpush1.bf16.msra.mxu0 %v208
  %262 = vmatprep.subr.bf16.mxu0 0
  %263 = vmatpush1.bf16.msra.mxu0 %v209
  %264 = vmatprep.subr.bf16.mxu0 0
  %265 = vmatpush1.bf16.msra.mxu0 %v210
  %266 = vmatprep.subr.bf16.mxu0 0
  %267 = vmatpush1.bf16.msra.mxu0 %v211
  %268 = vmatprep.subr.bf16.mxu0 0
  %269 = vmatpush1.bf16.msra.mxu0 %v212
  %270 = vmatprep.subr.bf16.mxu0 0
  %271 = vmatpush1.bf16.msra.mxu0 %v213
  %272 = vmatprep.subr.bf16.mxu0 0
  %273 = vmatpush1.bf16.msra.mxu0 %v214
  %274 = vmatprep.subr.bf16.mxu0 0
  %275 = vmatpush1.bf16.msra.mxu0 %v215
  %276 = vmatprep.subr.bf16.mxu0 0
  %277 = vmatpush1.bf16.msra.mxu0 %v216
  %278 = vmatprep.subr.bf16.mxu0 0
  %279 = vmatpush1.bf16.msra.mxu0 %v217
  %280 = vmatprep.subr.bf16.mxu0 0
  %281 = vmatpush1.bf16.msra.mxu0 %v218
  %282 = vmatprep.subr.bf16.mxu0 0
  %283 = vmatpush1.bf16.msra.mxu0 %v219
  %284 = vmatprep.mubr.bf16.mxu0 %v97
  %285 = vmatmul.mubr.bf16.gmra.mrb[0].mxu0 %v96
  %v286 = vpop.f32.mrb[0].mxu0
  %v287 = vadd.f32 %v75, %v286
  %v288 = vpop.f32.mrb[0].mxu0
  %v289 = vpop.f32.mrb[0].mxu0
  %v290 = vadd.f32 %v75, %v289
  %v291 = vpop.f32.mrb[0].mxu0
  %292 = vmatprep.mubr.bf16.mxu0 %v100
  %293 = vmatmul.mubr.bf16.gmra.mrb[0].mxu0 %v99
  %v294 = vpop.f32.mrb[0].mxu0
  %v295 = vadd.f32 %v75, %v294
  %v296 = vpop.f32.mrb[0].mxu0
  %v297 = vpop.f32.mrb[0].mxu0
  %v298 = vadd.f32 %v75, %v297
  %v299 = vpop.f32.mrb[0].mxu0
  %300 = vdwg.mxu0
  %301 = vmatprep.subr.bf16.mxu0 0
  %302 = vmatpush1.bf16.msra.mxu0 %v220
  %303 = vmatprep.subr.bf16.mxu0 0
  %304 = vmatpush1.bf16.msra.mxu0 %v221
  %305 = vmatprep.subr.bf16.mxu0 0
  %306 = vmatpush1.bf16.msra.mxu0 %v222
  %307 = vmatprep.subr.bf16.mxu0 0
  %308 = vmatpush1.bf16.msra.mxu0 %v223
  %309 = vmatprep.subr.bf16.mxu0 0
  %310 = vmatpush1.bf16.msra.mxu0 %v224
  %311 = vmatprep.subr.bf16.mxu0 0
  %312 = vmatpush1.bf16.msra.mxu0 %v225
  %313 = vmatprep.subr.bf16.mxu0 0
  %314 = vmatpush1.bf16.msra.mxu0 %v226
  %315 = vmatprep.subr.bf16.mxu0 0
  %316 = vmatpush1.bf16.msra.mxu0 %v227
  %317 = vmatprep.subr.bf16.mxu0 0
  %318 = vmatpush1.bf16.msra.mxu0 0
  %319 = vmatprep.subr.bf16.mxu0 0
  %320 = vmatpush1.bf16.msra.mxu0 0
  %321 = vmatprep.subr.bf16.mxu0 0
  %322 = vmatpush1.bf16.msra.mxu0 0
  %323 = vmatprep.subr.bf16.mxu0 0
  %324 = vmatpush1.bf16.msra.mxu0 0
  %325 = vmatprep.subr.bf16.mxu0 0
  %326 = vmatpush1.bf16.msra.mxu0 0
  %327 = vmatprep.subr.bf16.mxu0 0
  %328 = vmatpush1.bf16.msra.mxu0 0
  %329 = vmatprep.subr.bf16.mxu0 0
  %330 = vmatpush1.bf16.msra.mxu0 0
  %331 = vmatprep.subr.bf16.mxu0 0
  %332 = vmatpush1.bf16.msra.mxu0 0
  %333 = vmatprep.mubr.bf16.mxu0 0
  %334 = vmatmul.mubr.bf16.gmra.mrb[0].mxu0 %v98
  %v335 = vpop.f32.mrb[0].mxu0
  %v336 = vadd.f32 %v287, %v335
  %v337 = vpop.f32.mrb[0].mxu0
  %v338 = vpop.f32.mrb[0].mxu0
  %v339 = vadd.f32 %v290, %v338
  %v340 = vpop.f32.mrb[0].mxu0
  %341 = vmatprep.mubr.bf16.mxu0 0
  %342 = vmatmul.mubr.bf16.gmra.mrb[0].mxu0 %v101
  %v343 = vpop.f32.mrb[0].mxu0
  %v344 = vadd.f32 %v295, %v343
  %v345 = vpop.f32.mrb[0].mxu0
  %v346 = vpop.f32.mrb[0].mxu0
  %v347 = vadd.f32 %v298, %v346
  %v348 = vpop.f32.mrb[0].mxu0
  %349 = vdwg.mxu0
  %v350 = vmax.f32 %v336, 0.0
  %v351 = vmax.f32 %v339, 0.0
  %v352 = vmax.f32 %v344, 0.0
  %v353 = vmax.f32 %v347, 0.0
  %s354 = smul.u32 0, 32
  %v355 = vlaneseq
  %v356 = vshrl.u32 %v355, 7
  %v357 = vadd.s32 %v356, 8
  %v358 = vadd.s32 %v356, 16
  %v359 = vadd.s32 %v356, 24
  %v360 = vstv %s354
  %v361 = vadd.s32 %v360, %v356
  %v362 = vadd.s32 %v360, %v357
  %v363 = vadd.s32 %v360, %v358
  %v364 = vadd.s32 %v360, %v359
  %vm365 = vcmp.lt.s32.totalorder %v361, 32
  %vm366 = vcmp.lt.s32.totalorder %v362, 32
  %vm367 = vcmp.lt.s32.totalorder %v363, 32
  %vm368 = vcmp.lt.s32.totalorder %v364, 32
  %v369 = vsel %vm365, 1, 0
  %v370 = vsel %vm366, 1, 0
  %v371 = vsel %vm367, 1, 0
  %v372 = vsel %vm368, 1, 0
  %vm373 = vcmp.eq.s32.totalorder %v369, 1
  %vm374 = vcmp.eq.s32.totalorder %v370, 1
  %vm375 = vcmp.eq.s32.totalorder %v371, 1
  %vm376 = vcmp.eq.s32.totalorder %v372, 1
  %v377 = vsel %vm373, %v350, 0.0
  %v378 = vsel %vm374, %v351, 0.0
  %v379 = vsel %vm375, %v352, 0.0
  %v380 = vsel %vm376, %v353, 0.0
  %vm381 = vcmask 392192
  %v382 = vsel %vm381, %v377, 0.0
  %v383 = vsel %vm381, %v378, 0.0
  %v384 = vadd.f32 %v382, %v383
  %v385 = vsel %vm381, %v379, 0.0
  %v386 = vadd.f32 %v384, %v385
  %v387 = vsel %vm381, %v380, 0.0
  %v388 = vadd.f32 %v386, %v387
  %v389 = vrot.slane %v388, 4
  %v390 = vadd.f32 %v388, %v389
  %v391 = vrot.slane %v390, 2
  %v392 = vadd.f32 %v390, %v391
  %v393 = vrot.slane %v392, 1
  %v394 = vadd.f32 %v392, %v393
  %v395 = vmul.f32 %v394, 0.03125
  %v396 = vmul.f32 %v377, %v377
  %v397 = vmul.f32 %v378, %v378
  %v398 = vmul.f32 %v379, %v379
  %v399 = vmul.f32 %v380, %v380
  %v400 = vsel %vm381, %v396, 0.0
  %v401 = vsel %vm381, %v397, 0.0
  %v402 = vadd.f32 %v400, %v401
  %v403 = vsel %vm381, %v398, 0.0
  %v404 = vadd.f32 %v402, %v403
  %v405 = vsel %vm381, %v399, 0.0
  %v406 = vadd.f32 %v404, %v405
  %v407 = vrot.slane %v406, 4
  %v408 = vadd.f32 %v406, %v407
  %v409 = vrot.slane %v408, 2
  %v410 = vadd.f32 %v408, %v409
  %v411 = vrot.slane %v410, 1
  %v412 = vadd.f32 %v410, %v411
  %v413 = vmul.f32 %v412, 0.03125
  %v414 = vmul.f32 %v395, %v395
  %v415 = vsub.f32 %v413, %v414
  %v416 = vsub.f32 %v350, %v395
  %v417 = vsub.f32 %v351, %v395
  %v418 = vsub.f32 %v352, %v395
  %v419 = vsub.f32 %v353, %v395
  %v420 = vadd.f32 %v415, 1e-05
  %v421 = vrsqrt.pop %v420
  %v422 = vmul.f32 %v416, %v421
  %v423 = vmul.f32 %v417, %v421
  %v424 = vmul.f32 %v418, %v421
  %v425 = vmul.f32 %v419, %v421
  %v426 = vld [vmem:[%s2 + $0x1] sm:$0x1]
  %v427 = vlaneseq
  %v428 = vshrl.u32 %v427, 7
  %v429 = vsub.s32 0, %v428
  %v430 = vrot.slane %v426, %v429
  %v431 = vmul.f32 %v422, %v430
  %v432 = vmul.f32 %v423, %v430
  %v433 = vmul.f32 %v424, %v430
  %v434 = vmul.f32 %v425, %v430
  %v435 = vld [vmem:[%s2 + $0x2] sm:$0x1]
  %v436 = vlaneseq
  %v437 = vshrl.u32 %v436, 7
  %v438 = vsub.s32 0, %v437
  %v439 = vrot.slane %v435, %v438
  %v440 = vadd.f32 %v431, %v439
  %v441 = vadd.f32 %v432, %v439
  %v442 = vadd.f32 %v433, %v439
  %v443 = vadd.f32 %v434, %v439
  %444 = vst.msk [vmem:[%s3] sm:$0xff] %vm381, %v440
  %445 = vst.msk [vmem:[%s3 + $0x8] sm:$0xff] %vm381, %v441
  %446 = vst.msk [vmem:[%s3 + $0x10] sm:$0xff] %vm381, %v442
  %447 = vst.msk [vmem:[%s3 + $0x18] sm:$0xff] %vm381, %v443
  // Predicated region
  $region14: #{vae_forward.12} parent=0 // pred_check
    _
  $region15: #{vae_forward.12} parent=0 // pred_check_branch
    %449 = sbr.rel (0) target = $region17
  $region16: #{vae_forward.12} parent=0 // pred_region
    _
  $region17: #{vae_forward.12} parent=0 // pred_fallthru
    _
  // Predicated region
  $region18: #{vae_forward.12} parent=0 // pred_check
    _
  $region19: #{vae_forward.12} parent=0 // pred_check_branch
    %451 = sbr.rel (0) target = $region21
  $region20: #{vae_forward.12} parent=0 // pred_region
    _
  $region21: #{vae_forward.12} parent=0 // pred_fallthru
    _

// kernel: vae_forward.13
$region0: #{vae_forward.13}
  #allocation0 [shape = 'u32[]', space=smem, size = 0x4, offset = 0x4, fixed_abs, tag = 'smem constant byte address 0x4 - core index']
  #allocation1 [shape = 'u32[144,128]{1,0:T(1,128)}', space=vmem, size = 0x12000, scoped, tag = 'internal scratch']
  %s0 = inlined_call_operand.vmem [shape: bf16[1,8,768], index: 0, kind: input, shape index: {}]
  %s1 = inlined_call_operand.vmem [shape: bf16[1,768,96], index: 1, kind: input, shape index: {}]
  %s2 = inlined_call_operand.vmem [shape: f32[3,96], index: 2, kind: input, shape index: {}]
  %s3 = inlined_call_operand.vmem [shape: f32[1,8,96], index: 3, kind: output, shape index: {}]
  %s4 = sld [smem:[#allocation0]]
  $region22: #{vae_forward.13} parent=0
    _
  %s6 = ssub.s32 1, %s4
  %s7 = scalar_select 0, %s6, %s4
  // Predicated region
  $region2: #{vae_forward.13} parent=0 // pred_check
    _
  $region3: #{vae_forward.13} parent=0 // pred_check_branch
    %9 = sbr.rel (0) target = $region5
  $region4: #{vae_forward.13} parent=0 // pred_region
    _
  $region5: #{vae_forward.13} parent=0 // pred_fallthru
    _
  // Predicated region
  $region6: #{vae_forward.13} parent=0 // pred_check
    _
  $region7: #{vae_forward.13} parent=0 // pred_check_branch
    %11 = sbr.rel (0) target = $region9
  $region8: #{vae_forward.13} parent=0 // pred_region
    _
  $region9: #{vae_forward.13} parent=0 // pred_fallthru
    _
  // Predicated region
  $region10: #{vae_forward.13} parent=0 // pred_check
    _
  $region11: #{vae_forward.13} parent=0 // pred_check_branch
    %13 = sbr.rel (0) target = $region13
  $region12: #{vae_forward.13} parent=0 // pred_region
    _
  $region13: #{vae_forward.13} parent=0 // pred_fallthru
    _
  %v15 = vld [vmem:[%s0] sm:$0xff]
  %v16 = vld [vmem:[%s0 + $0x8] sm:$0xff]
  %v17 = vld [vmem:[%s0 + $0x10] sm:$0xff]
  %v18 = vld [vmem:[%s1] sm:$0xf]
  %v19 = vld [vmem:[%s1 + $0x4] sm:$0xf]
  %v20 = vld [vmem:[%s1 + $0x8] sm:$0xf]
  %v21 = vld [vmem:[%s1 + $0xc] sm:$0xf]
  %v22 = vld [vmem:[%s1 + $0x10] sm:$0xf]
  %v23 = vld [vmem:[%s1 + $0x14] sm:$0xf]
  %v24 = vld [vmem:[%s1 + $0x18] sm:$0xf]
  %v25 = vld [vmem:[%s1 + $0x1c] sm:$0xf]
  %v26 = vld [vmem:[%s1 + $0x20] sm:$0xf]
  %v27 = vld [vmem:[%s1 + $0x24] sm:$0xf]
  %v28 = vld [vmem:[%s1 + $0x28] sm:$0xf]
  %v29 = vld [vmem:[%s1 + $0x2c] sm:$0xf]
  %v30 = vld [vmem:[%s1 + $0x30] sm:$0xf]
  %v31 = vld [vmem:[%s1 + $0x34] sm:$0xf]
  %v32 = vld [vmem:[%s1 + $0x38] sm:$0xf]
  %v33 = vld [vmem:[%s1 + $0x3c] sm:$0xf]
  %v34 = vld [vmem:[%s1 + $0x40] sm:$0xf]
  %v35 = vld [vmem:[%s1 + $0x44] sm:$0xf]
  %v36 = vld [vmem:[%s1 + $0x48] sm:$0xf]
  %v37 = vld [vmem:[%s1 + $0x4c] sm:$0xf]
  %v38 = vld [vmem:[%s1 + $0x50] sm:$0xf]
  %v39 = vld [vmem:[%s1 + $0x54] sm:$0xf]
  %v40 = vld [vmem:[%s1 + $0x58] sm:$0xf]
  %v41 = vld [vmem:[%s1 + $0x5c] sm:$0xf]
  %v42 = vld [vmem:[%s1 + $0x60] sm:$0xf]
  %v43 = vld [vmem:[%s1 + $0x64] sm:$0xf]
  %v44 = vld [vmem:[%s1 + $0x68] sm:$0xf]
  %v45 = vld [vmem:[%s1 + $0x6c] sm:$0xf]
  %v46 = vld [vmem:[%s1 + $0x70] sm:$0xf]
  %v47 = vld [vmem:[%s1 + $0x74] sm:$0xf]
  %v48 = vld [vmem:[%s1 + $0x78] sm:$0xf]
  %v49 = vld [vmem:[%s1 + $0x7c] sm:$0xf]
  %v50 = vld [vmem:[%s1 + $0x80] sm:$0xf]
  %v51 = vld [vmem:[%s1 + $0x84] sm:$0xf]
  %v52 = vld [vmem:[%s1 + $0x88] sm:$0xf]
  %v53 = vld [vmem:[%s1 + $0x8c] sm:$0xf]
  %v54 = vld [vmem:[%s1 + $0x90] sm:$0xf]
  %v55 = vld [vmem:[%s1 + $0x94] sm:$0xf]
  %v56 = vld [vmem:[%s1 + $0x98] sm:$0xf]
  %v57 = vld [vmem:[%s1 + $0x9c] sm:$0xf]
  %v58 = vld [vmem:[%s1 + $0xa0] sm:$0xf]
  %v59 = vld [vmem:[%s1 + $0xa4] sm:$0xf]
  %v60 = vld [vmem:[%s1 + $0xa8] sm:$0xf]
  %v61 = vld [vmem:[%s1 + $0xac] sm:$0xf]
  %v62 = vld [vmem:[%s1 + $0xb0] sm:$0xf]
  %v63 = vld [vmem:[%s1 + $0xb4] sm:$0xf]
  %v64 = vld [vmem:[%s1 + $0xb8] sm:$0xf]
  %v65 = vld [vmem:[%s1 + $0xbc] sm:$0xf]
  %v66 = vld [vmem:[%s1 + $0xc0] sm:$0xf]
  %v67 = vld [vmem:[%s1 + $0xc4] sm:$0xf]
  %v68 = vld [vmem:[%s1 + $0xc8] sm:$0xf]
  %v69 = vld [vmem:[%s1 + $0xcc] sm:$0xf]
  %v70 = vld [vmem:[%s1 + $0xd0] sm:$0xf]
  %v71 = vld [vmem:[%s1 + $0xd4] sm:$0xf]
  %v72 = vld [vmem:[%s1 + $0xd8] sm:$0xf]
  %v73 = vld [vmem:[%s1 + $0xdc] sm:$0xf]
  %v74 = vld [vmem:[%s1 + $0xe0] sm:$0xf]
  %v75 = vld [vmem:[%s1 + $0xe4] sm:$0xf]
  %v76 = vld [vmem:[%s1 + $0xe8] sm:$0xf]
  %v77 = vld [vmem:[%s1 + $0xec] sm:$0xf]
  %v78 = vld [vmem:[%s1 + $0xf0] sm:$0xf]
  %v79 = vld [vmem:[%s1 + $0xf4] sm:$0xf]
  %v80 = vld [vmem:[%s1 + $0xf8] sm:$0xf]
  %v81 = vld [vmem:[%s1 + $0xfc] sm:$0xf]
  %v82 = vld [vmem:[%s1 + $0x100] sm:$0xf]
  %v83 = vld [vmem:[%s1 + $0x104] sm:$0xf]
  %v84 = vld [vmem:[%s1 + $0x108] sm:$0xf]
  %v85 = vld [vmem:[%s1 + $0x10c] sm:$0xf]
  %v86 = vld [vmem:[%s1 + $0x110] sm:$0xf]
  %v87 = vld [vmem:[%s1 + $0x114] sm:$0xf]
  %v88 = vld [vmem:[%s1 + $0x118] sm:$0xf]
  %v89 = vld [vmem:[%s1 + $0x11c] sm:$0xf]
  %v90 = vld [vmem:[%s1 + $0x120] sm:$0xf]
  %v91 = vld [vmem:[%s1 + $0x124] sm:$0xf]
  %v92 = vld [vmem:[%s1 + $0x128] sm:$0xf]
  %v93 = vld [vmem:[%s1 + $0x12c] sm:$0xf]
  %v94 = vld [vmem:[%s1 + $0x130] sm:$0xf]
  %v95 = vld [vmem:[%s1 + $0x134] sm:$0xf]
  %v96 = vld [vmem:[%s1 + $0x138] sm:$0xf]
  %v97 = vld [vmem:[%s1 + $0x13c] sm:$0xf]
  %v98 = vld [vmem:[%s1 + $0x140] sm:$0xf]
  %v99 = vld [vmem:[%s1 + $0x144] sm:$0xf]
  %v100 = vld [vmem:[%s1 + $0x148] sm:$0xf]
  %v101 = vld [vmem:[%s1 + $0x14c] sm:$0xf]
  %v102 = vld [vmem:[%s1 + $0x150] sm:$0xf]
  %v103 = vld [vmem:[%s1 + $0x154] sm:$0xf]
  %v104 = vld [vmem:[%s1 + $0x158] sm:$0xf]
  %v105 = vld [vmem:[%s1 + $0x15c] sm:$0xf]
  %v106 = vld [vmem:[%s1 + $0x160] sm:$0xf]
  %v107 = vld [vmem:[%s1 + $0x164] sm:$0xf]
  %v108 = vld [vmem:[%s1 + $0x168] sm:$0xf]
  %v109 = vld [vmem:[%s1 + $0x16c] sm:$0xf]
  %v110 = vld [vmem:[%s1 + $0x170] sm:$0xf]
  %v111 = vld [vmem:[%s1 + $0x174] sm:$0xf]
  %v112 = vld [vmem:[%s1 + $0x178] sm:$0xf]
  %v113 = vld [vmem:[%s1 + $0x17c] sm:$0xf]
  %v114 = vld [vmem:[%s2] sm:$0x1]
  %v115 = vlaneseq
  %v116 = vshrl.u32 %v115, 7
  %v117 = vsub.s32 0, %v116
  %v118 = vrot.slane %v114, %v117
  %v122 = vunpack.c.l.b16 %v15
  %v123 = vunpack.c.h.b16 %v15
  %v124 = vunpack.c.l.b16 %v16
  %v125 = vunpack.c.h.b16 %v16
  %v126 = vunpack.c.l.b16 %v17
  %v127 = vunpack.c.h.b16 %v17
  %v128 = vpack.c.b16 %v122, %v122
  %v129 = vpack.c.b16 %v123, %v123
  %v130 = vpack.c.b16 %v124, %v124
  %v131 = vpack.c.b16 %v125, %v125
  %v132 = vpack.c.b16 %v126, %v126
  %v133 = vpack.c.b16 %v127, %v127
  %v236 = vunpack.c.l.b16 %v18
  %v237 = vunpack.c.l.b16 %v19
  %v238 = vunpack.c.l.b16 %v20
  %v239 = vunpack.c.l.b16 %v21
  %v240 = vunpack.c.l.b16 %v22
  %v241 = vunpack.c.l.b16 %v23
  %v242 = vunpack.c.l.b16 %v24
  %v243 = vunpack.c.l.b16 %v25
  %v244 = vunpack.c.l.b16 %v26
  %v245 = vunpack.c.l.b16 %v27
  %v246 = vunpack.c.l.b16 %v28
  %v247 = vunpack.c.l.b16 %v29
  %v248 = vunpack.c.l.b16 %v30
  %v249 = vunpack.c.l.b16 %v31
  %v250 = vunpack.c.l.b16 %v32
  %v251 = vunpack.c.l.b16 %v33
  %v252 = vunpack.c.l.b16 %v34
  %v253 = vunpack.c.l.b16 %v35
  %v254 = vunpack.c.l.b16 %v36
  %v255 = vunpack.c.l.b16 %v37
  %v256 = vunpack.c.l.b16 %v38
  %v257 = vunpack.c.l.b16 %v39
  %v258 = vunpack.c.l.b16 %v40
  %v259 = vunpack.c.l.b16 %v41
  %v260 = vunpack.c.l.b16 %v42
  %v261 = vunpack.c.l.b16 %v43
  %v262 = vunpack.c.l.b16 %v44
  %v263 = vunpack.c.l.b16 %v45
  %v264 = vunpack.c.l.b16 %v46
  %v265 = vunpack.c.l.b16 %v47
  %v266 = vunpack.c.l.b16 %v48
  %v267 = vunpack.c.l.b16 %v49
  %v268 = vunpack.c.l.b16 %v50
  %v269 = vunpack.c.l.b16 %v51
  %v270 = vunpack.c.l.b16 %v52
  %v271 = vunpack.c.l.b16 %v53
  %v272 = vunpack.c.l.b16 %v54
  %v273 = vunpack.c.l.b16 %v55
  %v274 = vunpack.c.l.b16 %v56
  %v275 = vunpack.c.l.b16 %v57
  %v276 = vunpack.c.l.b16 %v58
  %v277 = vunpack.c.l.b16 %v59
  %v278 = vunpack.c.l.b16 %v60
  %v279 = vunpack.c.l.b16 %v61
  %v280 = vunpack.c.l.b16 %v62
  %v281 = vunpack.c.l.b16 %v63
  %v282 = vunpack.c.l.b16 %v64
  %v283 = vunpack.c.l.b16 %v65
  %v284 = vunpack.c.l.b16 %v66
  %v285 = vunpack.c.l.b16 %v67
  %v286 = vunpack.c.l.b16 %v68
  %v287 = vunpack.c.l.b16 %v69
  %v288 = vunpack.c.l.b16 %v70
  %v289 = vunpack.c.l.b16 %v71
  %v290 = vunpack.c.l.b16 %v72
  %v291 = vunpack.c.l.b16 %v73
  %v292 = vunpack.c.l.b16 %v74
  %v293 = vunpack.c.l.b16 %v75
  %v294 = vunpack.c.l.b16 %v76
  %v295 = vunpack.c.l.b16 %v77
  %v296 = vunpack.c.l.b16 %v78
  %v297 = vunpack.c.l.b16 %v79
  %v298 = vunpack.c.l.b16 %v80
  %v299 = vunpack.c.l.b16 %v81
  %v300 = vunpack.c.l.b16 %v82
  %v301 = vunpack.c.l.b16 %v83
  %v302 = vunpack.c.l.b16 %v84
  %v303 = vunpack.c.l.b16 %v85
  %v304 = vunpack.c.l.b16 %v86
  %v305 = vunpack.c.l.b16 %v87
  %v306 = vunpack.c.l.b16 %v88
  %v307 = vunpack.c.l.b16 %v89
  %v308 = vunpack.c.l.b16 %v90
  %v309 = vunpack.c.l.b16 %v91
  %v310 = vunpack.c.l.b16 %v92
  %v311 = vunpack.c.l.b16 %v93
  %v312 = vunpack.c.l.b16 %v94
  %v313 = vunpack.c.l.b16 %v95
  %v314 = vunpack.c.l.b16 %v96
  %v315 = vunpack.c.l.b16 %v97
  %v316 = vunpack.c.l.b16 %v98
  %v317 = vunpack.c.l.b16 %v99
  %v318 = vunpack.c.l.b16 %v100
  %v319 = vunpack.c.l.b16 %v101
  %v320 = vunpack.c.l.b16 %v102
  %v321 = vunpack.c.l.b16 %v103
  %v322 = vunpack.c.l.b16 %v104
  %v323 = vunpack.c.l.b16 %v105
  %v324 = vunpack.c.l.b16 %v106
  %v325 = vunpack.c.l.b16 %v107
  %v326 = vunpack.c.l.b16 %v108
  %v327 = vunpack.c.l.b16 %v109
  %v328 = vunpack.c.l.b16 %v110
  %v329 = vunpack.c.l.b16 %v111
  %v330 = vunpack.c.l.b16 %v112
  %v331 = vunpack.c.l.b16 %v113
  %v332 = vpack.c.b16 %v237, %v236
  %v333 = vpack.c.b16 %v239, %v238
  %v334 = vpack.c.b16 %v241, %v240
  %v335 = vpack.c.b16 %v243, %v242
  %v336 = vpack.c.b16 %v245, %v244
  %v337 = vpack.c.b16 %v247, %v246
  %v338 = vpack.c.b16 %v249, %v248
  %v339 = vpack.c.b16 %v251, %v250
  %v340 = vpack.c.b16 %v253, %v252
  %v341 = vpack.c.b16 %v255, %v254
  %v342 = vpack.c.b16 %v257, %v256
  %v343 = vpack.c.b16 %v259, %v258
  %v344 = vpack.c.b16 %v261, %v260
  %v345 = vpack.c.b16 %v263, %v262
  %v346 = vpack.c.b16 %v265, %v264
  %v347 = vpack.c.b16 %v267, %v266
  %v348 = vpack.c.b16 %v269, %v268
  %v349 = vpack.c.b16 %v271, %v270
  %v350 = vpack.c.b16 %v273, %v272
  %v351 = vpack.c.b16 %v275, %v274
  %v352 = vpack.c.b16 %v277, %v276
  %v353 = vpack.c.b16 %v279, %v278
  %v354 = vpack.c.b16 %v281, %v280
  %v355 = vpack.c.b16 %v283, %v282
  %v356 = vpack.c.b16 %v285, %v284
  %v357 = vpack.c.b16 %v287, %v286
  %v358 = vpack.c.b16 %v289, %v288
  %v359 = vpack.c.b16 %v291, %v290
  %v360 = vpack.c.b16 %v293, %v292
  %v361 = vpack.c.b16 %v295, %v294
  %v362 = vpack.c.b16 %v297, %v296
  %v363 = vpack.c.b16 %v299, %v298
  %v364 = vpack.c.b16 %v301, %v300
  %v365 = vpack.c.b16 %v303, %v302
  %v366 = vpack.c.b16 %v305, %v304
  %v367 = vpack.c.b16 %v307, %v306
  %v368 = vpack.c.b16 %v309, %v308
  %v369 = vpack.c.b16 %v311, %v310
  %v370 = vpack.c.b16 %v313, %v312
  %v371 = vpack.c.b16 %v315, %v314
  %v372 = vpack.c.b16 %v317, %v316
  %v373 = vpack.c.b16 %v319, %v318
  %v374 = vpack.c.b16 %v321, %v320
  %v375 = vpack.c.b16 %v323, %v322
  %v376 = vpack.c.b16 %v325, %v324
  %v377 = vpack.c.b16 %v327, %v326
  %v378 = vpack.c.b16 %v329, %v328
  %v379 = vpack.c.b16 %v331, %v330
  %428 = vmatprep.subr.bf16.mxu0 0
  %429 = vmatpush1.bf16.msra.mxu0 %v332
  %430 = vmatprep.subr.bf16.mxu0 0
  %431 = vmatpush1.bf16.msra.mxu0 %v333
  %432 = vmatprep.subr.bf16.mxu0 0
  %433 = vmatpush1.bf16.msra.mxu0 %v334
  %434 = vmatprep.subr.bf16.mxu0 0
  %435 = vmatpush1.bf16.msra.mxu0 %v335
  %436 = vmatprep.subr.bf16.mxu0 0
  %437 = vmatpush1.bf16.msra.mxu0 %v336
  %438 = vmatprep.subr.bf16.mxu0 0
  %439 = vmatpush1.bf16.msra.mxu0 %v337
  %440 = vmatprep.subr.bf16.mxu0 0
  %441 = vmatpush1.bf16.msra.mxu0 %v338
  %442 = vmatprep.subr.bf16.mxu0 0
  %443 = vmatpush1.bf16.msra.mxu0 %v339
  %444 = vmatprep.subr.bf16.mxu0 0
  %445 = vmatpush1.bf16.msra.mxu0 %v340
  %446 = vmatprep.subr.bf16.mxu0 0
  %447 = vmatpush1.bf16.msra.mxu0 %v341
  %448 = vmatprep.subr.bf16.mxu0 0
  %449 = vmatpush1.bf16.msra.mxu0 %v342
  %450 = vmatprep.subr.bf16.mxu0 0
  %451 = vmatpush1.bf16.msra.mxu0 %v343
  %452 = vmatprep.subr.bf16.mxu0 0
  %453 = vmatpush1.bf16.msra.mxu0 %v344
  %454 = vmatprep.subr.bf16.mxu0 0
  %455 = vmatpush1.bf16.msra.mxu0 %v345
  %456 = vmatprep.subr.bf16.mxu0 0
  %457 = vmatpush1.bf16.msra.mxu0 %v346
  %458 = vmatprep.subr.bf16.mxu0 0
  %459 = vmatpush1.bf16.msra.mxu0 %v347
  %460 = vmatprep.mubr.bf16.mxu0 %v129
  %461 = vmatmul.mubr.bf16.gmra.mrb[0].mxu0 %v128
  %v462 = vpop.f32.mrb[0].mxu0
  %v463 = vadd.f32 %v118, %v462
  %v464 = vpop.f32.mrb[0].mxu0
  %v465 = vpop.f32.mrb[0].mxu0
  %v466 = vpop.f32.mrb[0].mxu0
  %467 = vdwg.mxu0
  %468 = vmatprep.subr.bf16.mxu0 0
  %469 = vmatpush1.bf16.msra.mxu0 %v348
  %470 = vmatprep.subr.bf16.mxu0 0
  %471 = vmatpush1.bf16.msra.mxu0 %v349
  %472 = vmatprep.subr.bf16.mxu0 0
  %473 = vmatpush1.bf16.msra.mxu0 %v350
  %474 = vmatprep.subr.bf16.mxu0 0
  %475 = vmatpush1.bf16.msra.mxu0 %v351
  %476 = vmatprep.subr.bf16.mxu0 0
  %477 = vmatpush1.bf16.msra.mxu0 %v352
  %478 = vmatprep.subr.bf16.mxu0 0
  %479 = vmatpush1.bf16.msra.mxu0 %v353
  %480 = vmatprep.subr.bf16.mxu0 0
  %481 = vmatpush1.bf16.msra.mxu0 %v354
  %482 = vmatprep.subr.bf16.mxu0 0
  %483 = vmatpush1.bf16.msra.mxu0 %v355
  %484 = vmatprep.subr.bf16.mxu0 0
  %485 = vmatpush1.bf16.msra.mxu0 %v356
  %486 = vmatprep.subr.bf16.mxu0 0
  %487 = vmatpush1.bf16.msra.mxu0 %v357
  %488 = vmatprep.subr.bf16.mxu0 0
  %489 = vmatpush1.bf16.msra.mxu0 %v358
  %490 = vmatprep.subr.bf16.mxu0 0
  %491 = vmatpush1.bf16.msra.mxu0 %v359
  %492 = vmatprep.subr.bf16.mxu0 0
  %493 = vmatpush1.bf16.msra.mxu0 %v360
  %494 = vmatprep.subr.bf16.mxu0 0
  %495 = vmatpush1.bf16.msra.mxu0 %v361
  %496 = vmatprep.subr.bf16.mxu0 0
  %497 = vmatpush1.bf16.msra.mxu0 %v362
  %498 = vmatprep.subr.bf16.mxu0 0
  %499 = vmatpush1.bf16.msra.mxu0 %v363
  %500 = vmatprep.mubr.bf16.mxu0 %v131
  %501 = vmatmul.mubr.bf16.gmra.mrb[0].mxu0 %v130
  %v502 = vpop.f32.mrb[0].mxu0
  %v503 = vadd.f32 %v463, %v502
  %v504 = vpop.f32.mrb[0].mxu0
  %v505 = vpop.f32.mrb[0].mxu0
  %v506 = vpop.f32.mrb[0].mxu0
  %507 = vdwg.mxu0
  %508 = vmatprep.subr.bf16.mxu0 0
  %509 = vmatpush1.bf16.msra.mxu0 %v364
  %510 = vmatprep.subr.bf16.mxu0 0
  %511 = vmatpush1.bf16.msra.mxu0 %v365
  %512 = vmatprep.subr.bf16.mxu0 0
  %513 = vmatpush1.bf16.msra.mxu0 %v366
  %514 = vmatprep.subr.bf16.mxu0 0
  %515 = vmatpush1.bf16.msra.mxu0 %v367
  %516 = vmatprep.subr.bf16.mxu0 0
  %517 = vmatpush1.bf16.msra.mxu0 %v368
  %518 = vmatprep.subr.bf16.mxu0 0
  %519 = vmatpush1.bf16.msra.mxu0 %v369
  %520 = vmatprep.subr.bf16.mxu0 0
  %521 = vmatpush1.bf16.msra.mxu0 %v370
  %522 = vmatprep.subr.bf16.mxu0 0
  %523 = vmatpush1.bf16.msra.mxu0 %v371
  %524 = vmatprep.subr.bf16.mxu0 0
  %525 = vmatpush1.bf16.msra.mxu0 %v372
  %526 = vmatprep.subr.bf16.mxu0 0
  %527 = vmatpush1.bf16.msra.mxu0 %v373
  %528 = vmatprep.subr.bf16.mxu0 0
  %529 = vmatpush1.bf16.msra.mxu0 %v374
  %530 = vmatprep.subr.bf16.mxu0 0
  %531 = vmatpush1.bf16.msra.mxu0 %v375
  %532 = vmatprep.subr.bf16.mxu0 0
  %533 = vmatpush1.bf16.msra.mxu0 %v376
  %534 = vmatprep.subr.bf16.mxu0 0
  %535 = vmatpush1.bf16.msra.mxu0 %v377
  %536 = vmatprep.subr.bf16.mxu0 0
  %537 = vmatpush1.bf16.msra.mxu0 %v378
  %538 = vmatprep.subr.bf16.mxu0 0
  %539 = vmatpush1.bf16.msra.mxu0 %v379
  %540 = vmatprep.mubr.bf16.mxu0 %v133
  %541 = vmatmul.mubr.bf16.gmra.mrb[0].mxu0 %v132
  %v542 = vpop.f32.mrb[0].mxu0
  %v543 = vadd.f32 %v503, %v542
  %v544 = vpop.f32.mrb[0].mxu0
  %v545 = vpop.f32.mrb[0].mxu0
  %v546 = vpop.f32.mrb[0].mxu0
  %547 = vdwg.mxu0
  %v548 = vmax.f32 %v543, 0.0
  %s549 = smul.u32 0, 8
  %v550 = vlaneseq
  %v551 = vshrl.u32 %v550, 7
  %v552 = vstv %s549
  %v553 = vadd.s32 %v552, %v551
  %vm554 = vcmp.lt.s32.totalorder %v553, 8
  %v555 = vsel %vm554, 1, 0
  %vm556 = vcmp.eq.s32.totalorder %v555, 1
  %v557 = vsel %vm556, %v548, 0.0
  %vm558 = vcmask 785408
  %v559 = vsel %vm558, %v557, 0.0
  %v560 = vrot.slane %v559, 4
  %v561 = vadd.f32 %v559, %v560
  %v562 = vrot.slane %v561, 2
  %v563 = vadd.f32 %v561, %v562
  %v564 = vrot.slane %v563, 1
  %v565 = vadd.f32 %v563, %v564
  %v566 = vmul.f32 %v565, 0.125
  %v567 = vmul.f32 %v557, %v557
  %v568 = vsel %vm558, %v567, 0.0
  %v569 = vrot.slane %v568, 4
  %v570 = vadd.f32 %v568, %v569
  %v571 = vrot.slane %v570, 2
  %v572 = vadd.f32 %v570, %v571
  %v573 = vrot.slane %v572, 1
  %v574 = vadd.f32 %v572, %v573
  %v575 = vmul.f32 %v574, 0.125
  %v576 = vmul.f32 %v566, %v566
  %v577 = vsub.f32 %v575, %v576
  %v578 = vsub.f32 %v548, %v566
  %v579 = vadd.f32 %v577, 1e-05
  %v580 = vrsqrt.pop %v579
  %v581 = vmul.f32 %v578, %v580
  %v582 = vld [vmem:[%s2 + $0x1] sm:$0x1]
  %v583 = vlaneseq
  %v584 = vshrl.u32 %v583, 7
  %v585 = vsub.s32 0, %v584
  %v586 = vrot.slane %v582, %v585
  %v587 = vmul.f32 %v581, %v586
  %v588 = vld [vmem:[%s2 + $0x2] sm:$0x1]
  %v589 = vlaneseq
  %v590 = vshrl.u32 %v589, 7
  %v591 = vsub.s32 0, %v590
  %v592 = vrot.slane %v588, %v591
  %v593 = vadd.f32 %v587, %v592
  %594 = vst.msk [vmem:[%s3] sm:$0xff] %vm558, %v593
  // Predicated region
  $region14: #{vae_forward.13} parent=0 // pred_check
    _
  $region15: #{vae_forward.13} parent=0 // pred_check_branch
    %596 = sbr.rel (0) target = $region17
  $region16: #{vae_forward.13} parent=0 // pred_region
    _
  $region17: #{vae_forward.13} parent=0 // pred_fallthru
    _
  // Predicated region
  $region18: #{vae_forward.13} parent=0 // pred_check
    _
  $region19: #{vae_forward.13} parent=0 // pred_check_branch
    %598 = sbr.rel (0) target = $region21
  $region20: #{vae_forward.13} parent=0 // pred_region
    _
  $region21: #{vae_forward.13} parent=0 // pred_fallthru
    _

// kernel: vae_forward.15
$region0: #{vae_forward.15}
  #allocation0 [shape = 'u32[]', space=smem, size = 0x4, offset = 0x4, fixed_abs, tag = 'smem constant byte address 0x4 - core index']
  #allocation1 [shape = 'u32[144,128]{1,0:T(1,128)}', space=vmem, size = 0x12000, scoped, tag = 'internal scratch']
  #allocation2 [shape = 'f32[1,96]{1,0:T(1,128)}', space=vmem, size = 0x200, scoped, tag = 'scratch operand']
  #allocation3 [shape = 'f32[1,96]{1,0:T(1,128)}', space=vmem, size = 0x200, scoped, tag = 'scratch operand']
  %s0 = inlined_call_operand.vmem [shape: bf16[4,8,768], index: 0, kind: input, shape index: {}]
  %s1 = inlined_call_operand.vmem [shape: bf16[4,768,96], index: 1, kind: input, shape index: {}]
  %s2 = inlined_call_operand.vmem [shape: f32[3,96], index: 2, kind: input, shape index: {}]
  %s3 = inlined_call_operand.vmem [shape: f32[4,8,96], index: 3, kind: output, shape index: {}]
  %s4 = sld [smem:[#allocation0]]
  $region57: #{vae_forward.15} parent=0
    _
  %s6 = ssub.s32 1, %s4
  %s7 = scalar_select 0, %s6, %s4
  loop: start=0, step=1, limit=10
  $region2: #{vae_forward.15} parent=0 // loop_pre_header
    _
  $region3: #{vae_forward.15} parent=0 // loop_header
    %s9 = sphi 0, %s13
    %p10 = scmp.ge.s32.totalorder %s9, 10
    %s16 = sphi 0, %s35
    %s17 = sphi 0, %s31
    %s18 = sphi 0, %s27
    %s19 = sphi 0, %s16
    %s20 = sphi 0, %s17
    %s21 = sphi 0, %s18
    %s22 = sphi 0, %s19
    %s23 = sphi 0, %s20
    %s24 = sphi 0, %s21
    %s40 = sphi 0, %s42
    %s43 = sphi 0, %s40
    %s44 = sphi 0, %s43
    %s60 = sphi 0, %s44
    %s66 = sphi 0, %s68
    %s69 = sphi 0, %s66
    %s70 = sphi 0, %s69
    %s86 = sphi 0, %s70
    %s90 = sphi 0, %s90
    %s92 = sphi 0, %s90
    %s93 = sphi 0, %s92
    %s107 = sphi 0, %s93
    %s115 = sphi 0, %s117
    %s118 = sphi 0, %s115
    %s119 = sphi 0, %s118
    %s135 = sphi 0, %s119
  $region4: #{vae_forward.15} parent=0 // loop_header_branch
    %12 = sbr.rel (%p10) target = $region8
  $region5: #{vae_forward.15} parent=0 // loop_body
    %s14 = ssub.s32 %s9, 1
    %s15 = ssub.s32 %s9, 2
    %s25 = sadd.s32 1, %s18
    %p26 = scmp.ge.s32.totalorder %s25, 1
    %s27 = scalar_select %p26, 0, %s25
    %s28 = sadd.s32 1, %s17
    %s29 = scalar_select %p26, %s28, %s17
    %p30 = scmp.ge.s32.totalorder %s29, 4
    %s31 = scalar_select %p30, 0, %s29
    %s32 = sadd.s32 1, %s16
    %s33 = scalar_select %p30, %s32, %s16
    %p34 = scmp.ge.s32.totalorder %s33, 2
    %s35 = scalar_select %p34, 0, %s33
    %s36 = ssub.s32 %s17, %s31
    %s37 = ssub.s32 %s18, %s27
    %s38 = sor.u32 %s36, %s37
    %p39 = scmp.eq.s32.totalorder %s38, 0
    %s41 = sadd.s32 %s40, 1
    %s42 = scalar_select %p39, %s40, %s41
    %p45 = pneg %p39
    %p46 = scmp.eq.s32.totalorder %s9, 7
    %p47 = por %p45, %p46
    %p48 = scmp.ne.s32.totalorder %s40, %s43
    %p49 = scmp.eq.s32.totalorder %s9, 0
    %p50 = por %p48, %p49
    %p51 = scmp.ne.s32.totalorder %s40, %s43
    %p52 = scmp.eq.s32.totalorder %s14, 7
    %p53 = por %p51, %p52
    %p54 = scmp.ne.s32.totalorder %s43, %s44
    %p55 = scmp.eq.s32.totalorder %s14, 0
    %p56 = por %p54, %p55
    %p57 = scmp.ne.s32.totalorder %s43, %s44
    %p58 = scmp.eq.s32.totalorder %s15, 7
    %p59 = por %p57, %p58
    %p61 = scmp.ne.s32.totalorder %s44, %s60
    %p62 = scmp.eq.s32.totalorder %s15, 0
    %p63 = por %p61, %p62
    %s64 = ssub.s32 %s17, %s31
    %p65 = scmp.eq.s32.totalorder %s64, 0
    %s67 = sadd.s32 %s66, 1
    %s68 = scalar_select %p65, %s66, %s67
    %p71 = pneg %p65
    %p72 = scmp.eq.s32.totalorder %s9, 7
    %p73 = por %p71, %p72
    %p74 = scmp.ne.s32.totalorder %s66, %s69
    %p75 = scmp.eq.s32.totalorder %s9, 0
    %p76 = por %p74, %p75
    %p77 = scmp.ne.s32.totalorder %s66, %s69
    %p78 = scmp.eq.s32.totalorder %s14, 7
    %p79 = por %p77, %p78
    %p80 = scmp.ne.s32.totalorder %s69, %s70
    %p81 = scmp.eq.s32.totalorder %s14, 0
    %p82 = por %p80, %p81
    %p83 = scmp.ne.s32.totalorder %s69, %s70
    %p84 = scmp.eq.s32.totalorder %s15, 7
    %p85 = por %p83, %p84
    %p87 = scmp.ne.s32.totalorder %s70, %s86
    %p88 = scmp.eq.s32.totalorder %s15, 0
    %p89 = por %p87, %p88
    %s91 = sadd.s32 %s90, 1
    %p94 = scmp.eq.s32.totalorder %s9, 7
    %p95 = scmp.ne.s32.totalorder %s90, %s92
    %p96 = scmp.eq.s32.totalorder %s9, 0
    %p97 = por %p95, %p96
    %p98 = scmp.ne.s32.totalorder %s90, %s92
    %p99 = scmp.eq.s32.totalorder %s14, 7
    %p100 = por %p98, %p99
    %p101 = scmp.ne.s32.totalorder %s92, %s93
    %p102 = scmp.eq.s32.totalorder %s14, 0
    %p103 = por %p101, %p102
    %p104 = scmp.ne.s32.totalorder %s92, %s93
    %p105 = scmp.eq.s32.totalorder %s15, 7
    %p106 = por %p104, %p105
    %p108 = scmp.ne.s32.totalorder %s93, %s107
    %p109 = scmp.eq.s32.totalorder %s15, 0
    %p110 = por %p108, %p109
    %s111 = ssub.s32 %s17, %s31
    %s112 = ssub.s32 %s18, %s27
    %s113 = sor.u32 %s111, %s112
    %p114 = scmp.eq.s32.totalorder %s113, 0
    %s116 = sadd.s32 %s115, 1
    %s117 = scalar_select %p114, %s115, %s116
    %p120 = pneg %p114
    %p121 = scmp.eq.s32.totalorder %s9, 7
    %p122 = por %p120, %p121
    %p123 = scmp.ne.s32.totalorder %s115, %s118
    %p124 = scmp.eq.s32.totalorder %s9, 0
    %p125 = por %p123, %p124
    %p126 = scmp.ne.s32.totalorder %s115, %s118
    %p127 = scmp.eq.s32.totalorder %s14, 7
    %p128 = por %p126, %p127
    %p129 = scmp.ne.s32.totalorder %s118, %s119
    %p130 = scmp.eq.s32.totalorder %s14, 0
    %p131 = por %p129, %p130
    %p132 = scmp.ne.s32.totalorder %s118, %s119
    %p133 = scmp.eq.s32.totalorder %s15, 7
    %p134 = por %p132, %p133
    %p136 = scmp.ne.s32.totalorder %s119, %s135
    %p137 = scmp.eq.s32.totalorder %s15, 0
    %p138 = por %p136, %p137
    %p139 = scmp.le.s32.totalorder 1, %s9
    %p140 = scmp.lt.s32.totalorder %s9, 9
    %p141 = pnand %p139, %p140
    %p142 = pneg %p141
    // Predicated region
    $region9: #{vae_forward.15} parent=5 // pred_check
      _
    $region10: #{vae_forward.15} parent=5 // pred_check_branch
      %144 = sbr.rel (%p141) target = $region12
    $region11: #{vae_forward.15} parent=5 // pred_region
      %s145 = ssub.s32 %s9, 1
      // Predicated region
      $region13: #{vae_forward.15} parent=11 // pred_check
        %p146 = pneg %p103
      $region14: #{vae_forward.15} parent=11 // pred_check_branch
        %148 = sbr.rel (%p146) target = $region16
      $region15: #{vae_forward.15} parent=11 // pred_region
        _
      $region16: #{vae_forward.15} parent=11 // pred_fallthru
        _
    $region12: #{vae_forward.15} parent=5 // pred_fallthru
      _
    %p149 = scmp.lt.s32.totalorder %s9, 8
    // Predicated region
    $region17: #{vae_forward.15} parent=5 // pred_check
      %p150 = pneg %p149
    $region18: #{vae_forward.15} parent=5 // pred_check_branch
      %152 = sbr.rel (%p150) target = $region20
    $region19: #{vae_forward.15} parent=5 // pred_region
      // Predicated region
      $region21: #{vae_forward.15} parent=19 // pred_check
        %p153 = pneg %p50
      $region22: #{vae_forward.15} parent=19 // pred_check_branch
        %155 = sbr.rel (%p153) target = $region24
      $region23: #{vae_forward.15} parent=19 // pred_region
        %p156 = scmp.lt.s32.totalorder %s17, 3
        %s157 = scalar_select %p156, %s17, 3
        %p158 = scmp.lt.s32.totalorder %s18, 0
        %s159 = scalar_select %p158, %s18, 0
        %s160 = smul.addr %s159, 6
        %s161 = smul.addr %s157, 6
        %s162 = sadd.s32 %s160, %s161
        %s163 = smul.addr %s162, 4
        %s164 = scalar_lea.vmem %s0, %s163
      $region24: #{vae_forward.15} parent=19 // pred_fallthru
        _
      // Predicated region
      $region25: #{vae_forward.15} parent=19 // pred_check
        %p165 = pneg %p76
      $region26: #{vae_forward.15} parent=19 // pred_check_branch
        %167 = sbr.rel (%p165) target = $region28
      $region27: #{vae_forward.15} parent=19 // pred_region
        %p168 = scmp.lt.s32.totalorder %s17, 3
        %s169 = scalar_select %p168, %s17, 3
        %s170 = smul.addr %s169, 96
        %s171 = smul.addr %s170, 4
        %s172 = scalar_lea.vmem %s1, %s171
      $region28: #{vae_forward.15} parent=19 // pred_fallthru
        _
    $region20: #{vae_forward.15} parent=5 // pred_fallthru
      _
    %p173 = scmp.le.s32.totalorder 1, %s9
    %p174 = scmp.lt.s32.totalorder %s9, 9
    %p175 = pnand %p173, %p174
    %p176 = pneg %p175
    // Predicated region
    $region29: #{vae_forward.15} parent=5 // pred_check
      _
    $region30: #{vae_forward.15} parent=5 // pred_check_branch
      %178 = sbr.rel (%p175) target = $region32
    $region31: #{vae_forward.15} parent=5 // pred_region
      %s179 = ssub.s32 %s9, 1
      %p180 = scmp.lt.s32.totalorder %s20, 3
      %s181 = scalar_select %p180, %s20, 3
      %p182 = scmp.lt.s32.totalorder %s21, 0
      %s183 = scalar_select %p182, %s21, 0
      %s184 = smul.addr %s183, 6
      %s185 = smul.addr %s181, 6
      %s186 = sadd.s32 %s184, %s185
      %s187 = smul.addr %s186, 4
      %s188 = scalar_lea.vmem %s0, %s187
      %p189 = pneg %p56
      %p190 = pneg %p53
      %p191 = scmp.lt.s32.totalorder %s20, 3
      %s192 = scalar_select %p191, %s20, 3
      %s193 = smul.addr %s192, 96
      %s194 = smul.addr %s193, 4
      %s195 = scalar_lea.vmem %s1, %s194
      %p196 = pneg %p82
      %p197 = pneg %p79
      %p198 = pneg %p103
      %p199 = pneg %p100
      %p200 = pneg %p131
      %p201 = pneg %p128
      %p202 = scmp.lt.s32.totalorder %s20, 3
      %s203 = scalar_select %p202, %s20, 3
      %p204 = scmp.lt.s32.totalorder %s21, 0
      %s205 = scalar_select %p204, %s21, 0
      %s206 = sadd.s32 %s205, %s203
      %s207 = smul.addr %s206, 8
      %s208 = scalar_lea.vmem %s3, %s207
      %p209 = scmp.lt.s32.totalorder %s20, 3
      %s210 = scalar_select %p209, %s20, 3
      %p211 = scmp.lt.s32.totalorder %s21, 0
      %s212 = scalar_select %p211, %s21, 0
      %s213 = smul.addr %s212, 6
      %s214 = smul.addr %s210, 6
      %s215 = sadd.s32 %s213, %s214
      %s216 = smul.addr %s215, 4
      %s217 = scalar_lea.vmem %s0, %s216
      %p218 = scmp.lt.s32.totalorder %s20, 3
      %s219 = scalar_select %p218, %s20, 3
      %s220 = smul.addr %s219, 96
      %s221 = smul.addr %s220, 4
      %s222 = scalar_lea.vmem %s1, %s221
      %p223 = scmp.lt.s32.totalorder %s20, 3
      %s224 = scalar_select %p223, %s20, 3
      %p225 = scmp.lt.s32.totalorder %s21, 0
      %s226 = scalar_select %p225, %s21, 0
      %s227 = sadd.s32 %s226, %s224
      %s228 = smul.addr %s227, 8
      %s229 = scalar_lea.vmem %s3, %s228
      %v231 = vld [vmem:[%s217] sm:$0xff]
      %v232 = vld [vmem:[%s217 + $0x8] sm:$0xff]
      %v233 = vld [vmem:[%s217 + $0x10] sm:$0xff]
      %v234 = vld [vmem:[%s222] sm:$0xf]
      %v235 = vld [vmem:[%s222 + $0x4] sm:$0xf]
      %v236 = vld [vmem:[%s222 + $0x8] sm:$0xf]
      %v237 = vld [vmem:[%s222 + $0xc] sm:$0xf]
      %v238 = vld [vmem:[%s222 + $0x10] sm:$0xf]
      %v239 = vld [vmem:[%s222 + $0x14] sm:$0xf]
      %v240 = vld [vmem:[%s222 + $0x18] sm:$0xf]
      %v241 = vld [vmem:[%s222 + $0x1c] sm:$0xf]
      %v242 = vld [vmem:[%s222 + $0x20] sm:$0xf]
      %v243 = vld [vmem:[%s222 + $0x24] sm:$0xf]
      %v244 = vld [vmem:[%s222 + $0x28] sm:$0xf]
      %v245 = vld [vmem:[%s222 + $0x2c] sm:$0xf]
      %v246 = vld [vmem:[%s222 + $0x30] sm:$0xf]
      %v247 = vld [vmem:[%s222 + $0x34] sm:$0xf]
      %v248 = vld [vmem:[%s222 + $0x38] sm:$0xf]
      %v249 = vld [vmem:[%s222 + $0x3c] sm:$0xf]
      %v250 = vld [vmem:[%s222 + $0x40] sm:$0xf]
      %v251 = vld [vmem:[%s222 + $0x44] sm:$0xf]
      %v252 = vld [vmem:[%s222 + $0x48] sm:$0xf]
      %v253 = vld [vmem:[%s222 + $0x4c] sm:$0xf]
      %v254 = vld [vmem:[%s222 + $0x50] sm:$0xf]
      %v255 = vld [vmem:[%s222 + $0x54] sm:$0xf]
      %v256 = vld [vmem:[%s222 + $0x58] sm:$0xf]
      %v257 = vld [vmem:[%s222 + $0x5c] sm:$0xf]
      %v258 = vld [vmem:[%s222 + $0x60] sm:$0xf]
      %v259 = vld [vmem:[%s222 + $0x64] sm:$0xf]
      %v260 = vld [vmem:[%s222 + $0x68] sm:$0xf]
      %v261 = vld [vmem:[%s222 + $0x6c] sm:$0xf]
      %v262 = vld [vmem:[%s222 + $0x70] sm:$0xf]
      %v263 = vld [vmem:[%s222 + $0x74] sm:$0xf]
      %v264 = vld [vmem:[%s222 + $0x78] sm:$0xf]
      %v265 = vld [vmem:[%s222 + $0x7c] sm:$0xf]
      %v266 = vld [vmem:[%s222 + $0x80] sm:$0xf]
      %v267 = vld [vmem:[%s222 + $0x84] sm:$0xf]
      %v268 = vld [vmem:[%s222 + $0x88] sm:$0xf]
      %v269 = vld [vmem:[%s222 + $0x8c] sm:$0xf]
      %v270 = vld [vmem:[%s222 + $0x90] sm:$0xf]
      %v271 = vld [vmem:[%s222 + $0x94] sm:$0xf]
      %v272 = vld [vmem:[%s222 + $0x98] sm:$0xf]
      %v273 = vld [vmem:[%s222 + $0x9c] sm:$0xf]
      %v274 = vld [vmem:[%s222 + $0xa0] sm:$0xf]
      %v275 = vld [vmem:[%s222 + $0xa4] sm:$0xf]
      %v276 = vld [vmem:[%s222 + $0xa8] sm:$0xf]
      %v277 = vld [vmem:[%s222 + $0xac] sm:$0xf]
      %v278 = vld [vmem:[%s222 + $0xb0] sm:$0xf]
      %v279 = vld [vmem:[%s222 + $0xb4] sm:$0xf]
      %v280 = vld [vmem:[%s222 + $0xb8] sm:$0xf]
      %v281 = vld [vmem:[%s222 + $0xbc] sm:$0xf]
      %v282 = vld [vmem:[%s222 + $0xc0] sm:$0xf]
      %v283 = vld [vmem:[%s222 + $0xc4] sm:$0xf]
      %v284 = vld [vmem:[%s222 + $0xc8] sm:$0xf]
      %v285 = vld [vmem:[%s222 + $0xcc] sm:$0xf]
      %v286 = vld [vmem:[%s222 + $0xd0] sm:$0xf]
      %v287 = vld [vmem:[%s222 + $0xd4] sm:$0xf]
      %v288 = vld [vmem:[%s222 + $0xd8] sm:$0xf]
      %v289 = vld [vmem:[%s222 + $0xdc] sm:$0xf]
      %v290 = vld [vmem:[%s222 + $0xe0] sm:$0xf]
      %v291 = vld [vmem:[%s222 + $0xe4] sm:$0xf]
      %v292 = vld [vmem:[%s222 + $0xe8] sm:$0xf]
      %v293 = vld [vmem:[%s222 + $0xec] sm:$0xf]
      %v294 = vld [vmem:[%s222 + $0xf0] sm:$0xf]
      %v295 = vld [vmem:[%s222 + $0xf4] sm:$0xf]
      %v296 = vld [vmem:[%s222 + $0xf8] sm:$0xf]
      %v297 = vld [vmem:[%s222 + $0xfc] sm:$0xf]
      %v298 = vld [vmem:[%s222 + $0x100] sm:$0xf]
      %v299 = vld [vmem:[%s222 + $0x104] sm:$0xf]
      %v300 = vld [vmem:[%s222 + $0x108] sm:$0xf]
      %v301 = vld [vmem:[%s222 + $0x10c] sm:$0xf]
      %v302 = vld [vmem:[%s222 + $0x110] sm:$0xf]
      %v303 = vld [vmem:[%s222 + $0x114] sm:$0xf]
      %v304 = vld [vmem:[%s222 + $0x118] sm:$0xf]
      %v305 = vld [vmem:[%s222 + $0x11c] sm:$0xf]
      %v306 = vld [vmem:[%s222 + $0x120] sm:$0xf]
      %v307 = vld [vmem:[%s222 + $0x124] sm:$0xf]
      %v308 = vld [vmem:[%s222 + $0x128] sm:$0xf]
      %v309 = vld [vmem:[%s222 + $0x12c] sm:$0xf]
      %v310 = vld [vmem:[%s222 + $0x130] sm:$0xf]
      %v311 = vld [vmem:[%s222 + $0x134] sm:$0xf]
      %v312 = vld [vmem:[%s222 + $0x138] sm:$0xf]
      %v313 = vld [vmem:[%s222 + $0x13c] sm:$0xf]
      %v314 = vld [vmem:[%s222 + $0x140] sm:$0xf]
      %v315 = vld [vmem:[%s222 + $0x144] sm:$0xf]
      %v316 = vld [vmem:[%s222 + $0x148] sm:$0xf]
      %v317 = vld [vmem:[%s222 + $0x14c] sm:$0xf]
      %v318 = vld [vmem:[%s222 + $0x150] sm:$0xf]
      %v319 = vld [vmem:[%s222 + $0x154] sm:$0xf]
      %v320 = vld [vmem:[%s222 + $0x158] sm:$0xf]
      %v321 = vld [vmem:[%s222 + $0x15c] sm:$0xf]
      %v322 = vld [vmem:[%s222 + $0x160] sm:$0xf]
      %v323 = vld [vmem:[%s222 + $0x164] sm:$0xf]
      %v324 = vld [vmem:[%s222 + $0x168] sm:$0xf]
      %v325 = vld [vmem:[%s222 + $0x16c] sm:$0xf]
      %v326 = vld [vmem:[%s222 + $0x170] sm:$0xf]
      %v327 = vld [vmem:[%s222 + $0x174] sm:$0xf]
      %v328 = vld [vmem:[%s222 + $0x178] sm:$0xf]
      %v329 = vld [vmem:[%s222 + $0x17c] sm:$0xf]
      %v330 = vld [vmem:[%s2] sm:$0x1]
      %v331 = vlaneseq
      %v332 = vshrl.u32 %v331, 7
      %v333 = vsub.s32 0, %v332
      %v334 = vrot.slane %v330, %v333
      %v338 = vunpack.c.l.b16 %v231
      %v339 = vunpack.c.h.b16 %v231
      %v340 = vunpack.c.l.b16 %v232
      %v341 = vunpack.c.h.b16 %v232
      %v342 = vunpack.c.l.b16 %v233
      %v343 = vunpack.c.h.b16 %v233
      %v344 = vpack.c.b16 %v338, %v338
      %v345 = vpack.c.b16 %v339, %v339
      %v346 = vpack.c.b16 %v340, %v340
      %v347 = vpack.c.b16 %v341, %v341
      %v348 = vpack.c.b16 %v342, %v342
      %v349 = vpack.c.b16 %v343, %v343
      %v452 = vunpack.c.l.b16 %v234
      %v453 = vunpack.c.l.b16 %v235
      %v454 = vunpack.c.l.b16 %v236
      %v455 = vunpack.c.l.b16 %v237
      %v456 = vunpack.c.l.b16 %v238
      %v457 = vunpack.c.l.b16 %v239
      %v458 = vunpack.c.l.b16 %v240
      %v459 = vunpack.c.l.b16 %v241
      %v460 = vunpack.c.l.b16 %v242
      %v461 = vunpack.c.l.b16 %v243
      %v462 = vunpack.c.l.b16 %v244
      %v463 = vunpack.c.l.b16 %v245
      %v464 = vunpack.c.l.b16 %v246
      %v465 = vunpack.c.l.b16 %v247
      %v466 = vunpack.c.l.b16 %v248
      %v467 = vunpack.c.l.b16 %v249
      %v468 = vunpack.c.l.b16 %v250
      %v469 = vunpack.c.l.b16 %v251
      %v470 = vunpack.c.l.b16 %v252
      %v471 = vunpack.c.l.b16 %v253
      %v472 = vunpack.c.l.b16 %v254
      %v473 = vunpack.c.l.b16 %v255
      %v474 = vunpack.c.l.b16 %v256
      %v475 = vunpack.c.l.b16 %v257
      %v476 = vunpack.c.l.b16 %v258
      %v477 = vunpack.c.l.b16 %v259
      %v478 = vunpack.c.l.b16 %v260
      %v479 = vunpack.c.l.b16 %v261
      %v480 = vunpack.c.l.b16 %v262
      %v481 = vunpack.c.l.b16 %v263
      %v482 = vunpack.c.l.b16 %v264
      %v483 = vunpack.c.l.b16 %v265
      %v484 = vunpack.c.l.b16 %v266
      %v485 = vunpack.c.l.b16 %v267
      %v486 = vunpack.c.l.b16 %v268
      %v487 = vunpack.c.l.b16 %v269
      %v488 = vunpack.c.l.b16 %v270
      %v489 = vunpack.c.l.b16 %v271
      %v490 = vunpack.c.l.b16 %v272
      %v491 = vunpack.c.l.b16 %v273
      %v492 = vunpack.c.l.b16 %v274
      %v493 = vunpack.c.l.b16 %v275
      %v494 = vunpack.c.l.b16 %v276
      %v495 = vunpack.c.l.b16 %v277
      %v496 = vunpack.c.l.b16 %v278
      %v497 = vunpack.c.l.b16 %v279
      %v498 = vunpack.c.l.b16 %v280
      %v499 = vunpack.c.l.b16 %v281
      %v500 = vunpack.c.l.b16 %v282
      %v501 = vunpack.c.l.b16 %v283
      %v502 = vunpack.c.l.b16 %v284
      %v503 = vunpack.c.l.b16 %v285
      %v504 = vunpack.c.l.b16 %v286
      %v505 = vunpack.c.l.b16 %v287
      %v506 = vunpack.c.l.b16 %v288
      %v507 = vunpack.c.l.b16 %v289
      %v508 = vunpack.c.l.b16 %v290
      %v509 = vunpack.c.l.b16 %v291
      %v510 = vunpack.c.l.b16 %v292
      %v511 = vunpack.c.l.b16 %v293
      %v512 = vunpack.c.l.b16 %v294
      %v513 = vunpack.c.l.b16 %v295
      %v514 = vunpack.c.l.b16 %v296
      %v515 = vunpack.c.l.b16 %v297
      %v516 = vunpack.c.l.b16 %v298
      %v517 = vunpack.c.l.b16 %v299
      %v518 = vunpack.c.l.b16 %v300
      %v519 = vunpack.c.l.b16 %v301
      %v520 = vunpack.c.l.b16 %v302
      %v521 = vunpack.c.l.b16 %v303
      %v522 = vunpack.c.l.b16 %v304
      %v523 = vunpack.c.l.b16 %v305
      %v524 = vunpack.c.l.b16 %v306
      %v525 = vunpack.c.l.b16 %v307
      %v526 = vunpack.c.l.b16 %v308
      %v527 = vunpack.c.l.b16 %v309
      %v528 = vunpack.c.l.b16 %v310
      %v529 = vunpack.c.l.b16 %v311
      %v530 = vunpack.c.l.b16 %v312
      %v531 = vunpack.c.l.b16 %v313
      %v532 = vunpack.c.l.b16 %v314
      %v533 = vunpack.c.l.b16 %v315
      %v534 = vunpack.c.l.b16 %v316
      %v535 = vunpack.c.l.b16 %v317
      %v536 = vunpack.c.l.b16 %v318
      %v537 = vunpack.c.l.b16 %v319
      %v538 = vunpack.c.l.b16 %v320
      %v539 = vunpack.c.l.b16 %v321
      %v540 = vunpack.c.l.b16 %v322
      %v541 = vunpack.c.l.b16 %v323
      %v542 = vunpack.c.l.b16 %v324
      %v543 = vunpack.c.l.b16 %v325
      %v544 = vunpack.c.l.b16 %v326
      %v545 = vunpack.c.l.b16 %v327
      %v546 = vunpack.c.l.b16 %v328
      %v547 = vunpack.c.l.b16 %v329
      %v548 = vpack.c.b16 %v453, %v452
      %v549 = vpack.c.b16 %v455, %v454
      %v550 = vpack.c.b16 %v457, %v456
      %v551 = vpack.c.b16 %v459, %v458
      %v552 = vpack.c.b16 %v461, %v460
      %v553 = vpack.c.b16 %v463, %v462
      %v554 = vpack.c.b16 %v465, %v464
      %v555 = vpack.c.b16 %v467, %v466
      %v556 = vpack.c.b16 %v469, %v468
      %v557 = vpack.c.b16 %v471, %v470
      %v558 = vpack.c.b16 %v473, %v472
      %v559 = vpack.c.b16 %v475, %v474
      %v560 = vpack.c.b16 %v477, %v476
      %v561 = vpack.c.b16 %v479, %v478
      %v562 = vpack.c.b16 %v481, %v480
      %v563 = vpack.c.b16 %v483, %v482
      %v564 = vpack.c.b16 %v485, %v484
      %v565 = vpack.c.b16 %v487, %v486
      %v566 = vpack.c.b16 %v489, %v488
      %v567 = vpack.c.b16 %v491, %v490
      %v568 = vpack.c.b16 %v493, %v492
      %v569 = vpack.c.b16 %v495, %v494
      %v570 = vpack.c.b16 %v497, %v496
      %v571 = vpack.c.b16 %v499, %v498
      %v572 = vpack.c.b16 %v501, %v500
      %v573 = vpack.c.b16 %v503, %v502
      %v574 = vpack.c.b16 %v505, %v504
      %v575 = vpack.c.b16 %v507, %v506
      %v576 = vpack.c.b16 %v509, %v508
      %v577 = vpack.c.b16 %v511, %v510
      %v578 = vpack.c.b16 %v513, %v512
      %v579 = vpack.c.b16 %v515, %v514
      %v580 = vpack.c.b16 %v517, %v516
      %v581 = vpack.c.b16 %v519, %v518
      %v582 = vpack.c.b16 %v521, %v520
      %v583 = vpack.c.b16 %v523, %v522
      %v584 = vpack.c.b16 %v525, %v524
      %v585 = vpack.c.b16 %v527, %v526
      %v586 = vpack.c.b16 %v529, %v528
      %v587 = vpack.c.b16 %v531, %v530
      %v588 = vpack.c.b16 %v533, %v532
      %v589 = vpack.c.b16 %v535, %v534
      %v590 = vpack.c.b16 %v537, %v536
      %v591 = vpack.c.b16 %v539, %v538
      %v592 = vpack.c.b16 %v541, %v540
      %v593 = vpack.c.b16 %v543, %v542
      %v594 = vpack.c.b16 %v545, %v544
      %v595 = vpack.c.b16 %v547, %v546
      %644 = vmatprep.subr.bf16.mxu0 0
      %645 = vmatpush1.bf16.msra.mxu0 %v548
      %646 = vmatprep.subr.bf16.mxu0 0
      %647 = vmatpush1.bf16.msra.mxu0 %v549
      %648 = vmatprep.subr.bf16.mxu0 0
      %649 = vmatpush1.bf16.msra.mxu0 %v550
      %650 = vmatprep.subr.bf16.mxu0 0
      %651 = vmatpush1.bf16.msra.mxu0 %v551
      %652 = vmatprep.subr.bf16.mxu0 0
      %653 = vmatpush1.bf16.msra.mxu0 %v552
      %654 = vmatprep.subr.bf16.mxu0 0
      %655 = vmatpush1.bf16.msra.mxu0 %v553
      %656 = vmatprep.subr.bf16.mxu0 0
      %657 = vmatpush1.bf16.msra.mxu0 %v554
      %658 = vmatprep.subr.bf16.mxu0 0
      %659 = vmatpush1.bf16.msra.mxu0 %v555
      %660 = vmatprep.subr.bf16.mxu0 0
      %661 = vmatpush1.bf16.msra.mxu0 %v556
      %662 = vmatprep.subr.bf16.mxu0 0
      %663 = vmatpush1.bf16.msra.mxu0 %v557
      %664 = vmatprep.subr.bf16.mxu0 0
      %665 = vmatpush1.bf16.msra.mxu0 %v558
      %666 = vmatprep.subr.bf16.mxu0 0
      %667 = vmatpush1.bf16.msra.mxu0 %v559
      %668 = vmatprep.subr.bf16.mxu0 0
      %669 = vmatpush1.bf16.msra.mxu0 %v560
      %670 = vmatprep.subr.bf16.mxu0 0
      %671 = vmatpush1.bf16.msra.mxu0 %v561
      %672 = vmatprep.subr.bf16.mxu0 0
      %673 = vmatpush1.bf16.msra.mxu0 %v562
      %674 = vmatprep.subr.bf16.mxu0 0
      %675 = vmatpush1.bf16.msra.mxu0 %v563
      %676 = vmatprep.mubr.bf16.mxu0 %v345
      %677 = vmatmul.mubr.bf16.gmra.mrb[0].mxu0 %v344
      %v678 = vpop.f32.mrb[0].mxu0
      %v679 = vadd.f32 %v334, %v678
      %v680 = vpop.f32.mrb[0].mxu0
      %v681 = vpop.f32.mrb[0].mxu0
      %v682 = vpop.f32.mrb[0].mxu0
      %683 = vdwg.mxu0
      %684 = vmatprep.subr.bf16.mxu0 0
      %685 = vmatpush1.bf16.msra.mxu0 %v564
      %686 = vmatprep.subr.bf16.mxu0 0
      %687 = vmatpush1.bf16.msra.mxu0 %v565
      %688 = vmatprep.subr.bf16.mxu0 0
      %689 = vmatpush1.bf16.msra.mxu0 %v566
      %690 = vmatprep.subr.bf16.mxu0 0
      %691 = vmatpush1.bf16.msra.mxu0 %v567
      %692 = vmatprep.subr.bf16.mxu0 0
      %693 = vmatpush1.bf16.msra.mxu0 %v568
      %694 = vmatprep.subr.bf16.mxu0 0
      %695 = vmatpush1.bf16.msra.mxu0 %v569
      %696 = vmatprep.subr.bf16.mxu0 0
      %697 = vmatpush1.bf16.msra.mxu0 %v570
      %698 = vmatprep.subr.bf16.mxu0 0
      %699 = vmatpush1.bf16.msra.mxu0 %v571
      %700 = vmatprep.subr.bf16.mxu0 0
      %701 = vmatpush1.bf16.msra.mxu0 %v572
      %702 = vmatprep.subr.bf16.mxu0 0
      %703 = vmatpush1.bf16.msra.mxu0 %v573
      %704 = vmatprep.subr.bf16.mxu0 0
      %705 = vmatpush1.bf16.msra.mxu0 %v574
      %706 = vmatprep.subr.bf16.mxu0 0
      %707 = vmatpush1.bf16.msra.mxu0 %v575
      %708 = vmatprep.subr.bf16.mxu0 0
      %709 = vmatpush1.bf16.msra.mxu0 %v576
      %710 = vmatprep.subr.bf16.mxu0 0
      %711 = vmatpush1.bf16.msra.mxu0 %v577
      %712 = vmatprep.subr.bf16.mxu0 0
      %713 = vmatpush1.bf16.msra.mxu0 %v578
      %714 = vmatprep.subr.bf16.mxu0 0
      %715 = vmatpush1.bf16.msra.mxu0 %v579
      %716 = vmatprep.mubr.bf16.mxu0 %v347
      %717 = vmatmul.mubr.bf16.gmra.mrb[0].mxu0 %v346
      %v718 = vpop.f32.mrb[0].mxu0
      %v719 = vadd.f32 %v679, %v718
      %v720 = vpop.f32.mrb[0].mxu0
      %v721 = vpop.f32.mrb[0].mxu0
      %v722 = vpop.f32.mrb[0].mxu0
      %723 = vdwg.mxu0
      %724 = vmatprep.subr.bf16.mxu0 0
      %725 = vmatpush1.bf16.msra.mxu0 %v580
      %726 = vmatprep.subr.bf16.mxu0 0
      %727 = vmatpush1.bf16.msra.mxu0 %v581
      %728 = vmatprep.subr.bf16.mxu0 0
      %729 = vmatpush1.bf16.msra.mxu0 %v582
      %730 = vmatprep.subr.bf16.mxu0 0
      %731 = vmatpush1.bf16.msra.mxu0 %v583
      %732 = vmatprep.subr.bf16.mxu0 0
      %733 = vmatpush1.bf16.msra.mxu0 %v584
      %734 = vmatprep.subr.bf16.mxu0 0
      %735 = vmatpush1.bf16.msra.mxu0 %v585
      %736 = vmatprep.subr.bf16.mxu0 0
      %737 = vmatpush1.bf16.msra.mxu0 %v586
      %738 = vmatprep.subr.bf16.mxu0 0
      %739 = vmatpush1.bf16.msra.mxu0 %v587
      %740 = vmatprep.subr.bf16.mxu0 0
      %741 = vmatpush1.bf16.msra.mxu0 %v588
      %742 = vmatprep.subr.bf16.mxu0 0
      %743 = vmatpush1.bf16.msra.mxu0 %v589
      %744 = vmatprep.subr.bf16.mxu0 0
      %745 = vmatpush1.bf16.msra.mxu0 %v590
      %746 = vmatprep.subr.bf16.mxu0 0
      %747 = vmatpush1.bf16.msra.mxu0 %v591
      %748 = vmatprep.subr.bf16.mxu0 0
      %749 = vmatpush1.bf16.msra.mxu0 %v592
      %750 = vmatprep.subr.bf16.mxu0 0
      %751 = vmatpush1.bf16.msra.mxu0 %v593
      %752 = vmatprep.subr.bf16.mxu0 0
      %753 = vmatpush1.bf16.msra.mxu0 %v594
      %754 = vmatprep.subr.bf16.mxu0 0
      %755 = vmatpush1.bf16.msra.mxu0 %v595
      %756 = vmatprep.mubr.bf16.mxu0 %v349
      %757 = vmatmul.mubr.bf16.gmra.mrb[0].mxu0 %v348
      %v758 = vpop.f32.mrb[0].mxu0
      %v759 = vadd.f32 %v719, %v758
      %v760 = vpop.f32.mrb[0].mxu0
      %v761 = vpop.f32.mrb[0].mxu0
      %v762 = vpop.f32.mrb[0].mxu0
      %763 = vdwg.mxu0
      %v764 = vmax.f32 %v759, 0.0
      %s765 = smul.u32 %s21, 8
      %v766 = vlaneseq
      %v767 = vshrl.u32 %v766, 7
      %v768 = vstv %s765
      %v769 = vadd.s32 %v768, %v767
      %vm770 = vcmp.lt.s32.totalorder %v769, 2
      %v771 = vsel %vm770, 1, 0
      %vm772 = vcmp.eq.s32.totalorder %v771, 1
      %v773 = vsel %vm772, %v764, 0.0
      %p774 = scmp.eq.s32.totalorder %s19, 0
      %p775 = scmp.eq.s32.totalorder %s20, 0
      %p776 = pnand %p774, %p775
      %p777 = pneg %p776
      %p778 = scmp.eq.s32.totalorder %s21, 0
      %p779 = pnand %p777, %p778
      %p780 = pneg %p779
      // Predicated region
      $region33: #{vae_forward.15} parent=31 // pred_check
        _
      $region34: #{vae_forward.15} parent=31 // pred_check_branch
        %782 = sbr.rel (%p779) target = $region36
      $region35: #{vae_forward.15} parent=31 // pred_region
        %vm783 = vcmask 778240
        %784 = vst.msk [vmem:[#allocation2] sm:$0x1] %vm783, 0.0
        %785 = vst.msk [vmem:[#allocation3] sm:$0x1] %vm783, 0.0
      $region36: #{vae_forward.15} parent=31 // pred_fallthru
        _
      // Predicated region
      $region37: #{vae_forward.15} parent=31 // pred_check
        %p786 = pneg %p774
      $region38: #{vae_forward.15} parent=31 // pred_check_branch
        %788 = sbr.rel (%p786) target = $region40
      $region39: #{vae_forward.15} parent=31 // pred_region
        %v789 = vld [vmem:[#allocation2] sm:$0x1]
        %vm790 = vcmask 785408
        %v791 = vsel %vm790, %v773, 0.0
        %v792 = vrot.slane %v791, 4
        %v793 = vadd.f32 %v791, %v792
        %v794 = vrot.slane %v793, 2
        %v795 = vadd.f32 %v793, %v794
        %v796 = vrot.slane %v795, 1
        %v797 = vadd.f32 %v795, %v796
        %v798 = vadd.f32 %v789, %v797
        %vm799 = vcmask 778240
        %800 = vst.msk [vmem:[#allocation2] sm:$0x1] %vm799, %v798
        %v801 = vld [vmem:[#allocation3] sm:$0x1]
        %v802 = vmul.f32 %v773, %v773
        %v803 = vsel %vm790, %v802, 0.0
        %v804 = vrot.slane %v803, 4
        %v805 = vadd.f32 %v803, %v804
        %v806 = vrot.slane %v805, 2
        %v807 = vadd.f32 %v805, %v806
        %v808 = vrot.slane %v807, 1
        %v809 = vadd.f32 %v807, %v808
        %v810 = vadd.f32 %v801, %v809
        %811 = vst.msk [vmem:[#allocation3] sm:$0x1] %vm799, %v810
      $region40: #{vae_forward.15} parent=31 // pred_fallthru
        _
      %p812 = scmp.eq.s32.totalorder %s19, 1
      // Predicated region
      $region41: #{vae_forward.15} parent=31 // pred_check
        %p813 = pneg %p812
      $region42: #{vae_forward.15} parent=31 // pred_check_branch
        %815 = sbr.rel (%p813) target = $region44
      $region43: #{vae_forward.15} parent=31 // pred_region
        %v816 = vld [vmem:[#allocation2] sm:$0x1]
        %v817 = vmul.f32 %v816, 0.125
        %v818 = vld [vmem:[#allocation3] sm:$0x1]
        %v819 = vmul.f32 %v818, 0.125
        %v820 = vmul.f32 %v817, %v817
        %v821 = vsub.f32 %v819, %v820
        %v823 = vlaneseq
        %v824 = vshrl.u32 %v823, 7
        %v825 = vsub.s32 0, %v824
        %v826 = vrot.slane %v817, %v825
        %v828 = vsub.f32 %v764, %v826
        %v829 = vadd.f32 %v821, 1e-05
        %v830 = vrsqrt.pop %v829
        %v832 = vlaneseq
        %v833 = vshrl.u32 %v832, 7
        %v834 = vsub.s32 0, %v833
        %v835 = vrot.slane %v830, %v834
        %v837 = vmul.f32 %v828, %v835
        %v838 = vld [vmem:[%s2 + $0x1] sm:$0x1]
        %v839 = vlaneseq
        %v840 = vshrl.u32 %v839, 7
        %v841 = vsub.s32 0, %v840
        %v842 = vrot.slane %v838, %v841
        %v843 = vmul.f32 %v837, %v842
        %v844 = vld [vmem:[%s2 + $0x2] sm:$0x1]
        %v845 = vlaneseq
        %v846 = vshrl.u32 %v845, 7
        %v847 = vsub.s32 0, %v846
        %v848 = vrot.slane %v844, %v847
        %v849 = vadd.f32 %v843, %v848
        %vm850 = vcmask 785408
        %851 = vst.msk [vmem:[%s229] sm:$0xff] %vm850, %v849
      $region44: #{vae_forward.15} parent=31 // pred_fallthru
        _
      %p852 = scmp.lt.s32.totalorder %s20, 3
      %s853 = scalar_select %p852, %s20, 3
      %p854 = scmp.lt.s32.totalorder %s21, 0
      %s855 = scalar_select %p854, %s21, 0
      %s856 = sadd.s32 %s855, %s853
      %s857 = smul.addr %s856, 8
      %s858 = scalar_lea.vmem %s3, %s857
      // Predicated region
      $region45: #{vae_forward.15} parent=31 // pred_check
        %p859 = pneg %p128
      $region46: #{vae_forward.15} parent=31 // pred_check_branch
        %861 = sbr.rel (%p859) target = $region48
      $region47: #{vae_forward.15} parent=31 // pred_region
        _
      $region48: #{vae_forward.15} parent=31 // pred_fallthru
        _
    $region32: #{vae_forward.15} parent=5 // pred_fallthru
      _
    %p862 = scmp.le.s32.totalorder 2, %s9
    // Predicated region
    $region49: #{vae_forward.15} parent=5 // pred_check
      %p863 = pneg %p862
    $region50: #{vae_forward.15} parent=5 // pred_check_branch
      %865 = sbr.rel (%p863) target = $region52
    $region51: #{vae_forward.15} parent=5 // pred_region
      %s866 = ssub.s32 %s9, 2
      // Predicated region
      $region53: #{vae_forward.15} parent=51 // pred_check
        %p867 = pneg %p134
      $region54: #{vae_forward.15} parent=51 // pred_check_branch
        %869 = sbr.rel (%p867) target = $region56
      $region55: #{vae_forward.15} parent=51 // pred_region
        %p870 = scmp.lt.s32.totalorder %s23, 3
        %s871 = scalar_select %p870, %s23, 3
        %p872 = scmp.lt.s32.totalorder %s24, 0
        %s873 = scalar_select %p872, %s24, 0
        %s874 = sadd.s32 %s873, %s871
        %s875 = smul.addr %s874, 8
        %s876 = scalar_lea.vmem %s3, %s875
      $region56: #{vae_forward.15} parent=51 // pred_fallthru
        _
    $region52: #{vae_forward.15} parent=5 // pred_fallthru
      _
  $region6: #{vae_forward.15} parent=0 // loop_footer
    %s13 = sadd.s32 1, %s9
  $region7: #{vae_forward.15} parent=0 // loop_footer_branch
    %8 = sbr.rel target = $region3
  $region8: #{vae_forward.15} parent=0 // loop_exit
    _

// kernel: vae_forward.14
$region0: #{vae_forward.14}
  #allocation0 [shape = 'u32[]', space=smem, size = 0x4, offset = 0x4, fixed_abs, tag = 'smem constant byte address 0x4 - core index']
  #allocation1 [shape = 'u32[144,128]{1,0:T(1,128)}', space=vmem, size = 0x12000, scoped, tag = 'internal scratch']
  %s0 = inlined_call_operand.vmem [shape: bf16[1,8,1536], index: 0, kind: input, shape index: {}]
  %s1 = inlined_call_operand.vmem [shape: bf16[1,1536,512], index: 1, kind: input, shape index: {}]
  %s2 = inlined_call_operand.vmem [shape: f32[3,512], index: 2, kind: input, shape index: {}]
  %s3 = inlined_call_operand.vmem [shape: f32[8,256], index: 3, kind: input, shape index: {}]
  %s4 = inlined_call_operand.vmem [shape: f32[1,8,512], index: 4, kind: output, shape index: {0}]
  %s5 = inlined_call_operand.vmem [shape: f32[8,256], index: 5, kind: output, shape index: {1}]
  %6 = xla_tuple %s4, %s5
  %s7 = sld [smem:[#allocation0]]
  $region34: #{vae_forward.14} parent=0
    _
  %s9 = ssub.s32 1, %s7
  %s10 = scalar_select 0, %s9, %s7
  // Predicated region
  $region2: #{vae_forward.14} parent=0 // pred_check
    _
  $region3: #{vae_forward.14} parent=0 // pred_check_branch
    %12 = sbr.rel (0) target = $region5
  $region4: #{vae_forward.14} parent=0 // pred_region
    _
  $region5: #{vae_forward.14} parent=0 // pred_fallthru
    _
  // Predicated region
  $region6: #{vae_forward.14} parent=0 // pred_check
    _
  $region7: #{vae_forward.14} parent=0 // pred_check_branch
    %14 = sbr.rel (0) target = $region9
  $region8: #{vae_forward.14} parent=0 // pred_region
    _
  $region9: #{vae_forward.14} parent=0 // pred_fallthru
    _
  // Predicated region
  $region10: #{vae_forward.14} parent=0 // pred_check
    _
  $region11: #{vae_forward.14} parent=0 // pred_check_branch
    %16 = sbr.rel (0) target = $region13
  $region12: #{vae_forward.14} parent=0 // pred_region
    _
  $region13: #{vae_forward.14} parent=0 // pred_fallthru
    _
  // Predicated region
  $region14: #{vae_forward.14} parent=0 // pred_check
    _
  $region15: #{vae_forward.14} parent=0 // pred_check_branch
    %18 = sbr.rel (0) target = $region17
  $region16: #{vae_forward.14} parent=0 // pred_region
    _
  $region17: #{vae_forward.14} parent=0 // pred_fallthru
    _
  %v19 = vld [vmem:[%s0] sm:$0xff]
  %v20 = vld [vmem:[%s0 + $0x8] sm:$0xff]
  %v21 = vld [vmem:[%s0 + $0x10] sm:$0xff]
  %v22 = vld [vmem:[%s0 + $0x18] sm:$0xff]
  %v23 = vld [vmem:[%s0 + $0x20] sm:$0xff]
  %v24 = vld [vmem:[%s0 + $0x28] sm:$0xff]
  %v25 = vld [vmem:[%s1] sm:$0xff]
  %v26 = vld [vmem:[%s1 + $0x8] sm:$0xff]
  %v27 = vld [vmem:[%s1 + $0x10] sm:$0xff]
  %v28 = vld [vmem:[%s1 + $0x18] sm:$0xff]
  %v29 = vld [vmem:[%s1 + $0x20] sm:$0xff]
  %v30 = vld [vmem:[%s1 + $0x28] sm:$0xff]
  %v31 = vld [vmem:[%s1 + $0x30] sm:$0xff]
  %v32 = vld [vmem:[%s1 + $0x38] sm:$0xff]
  %v33 = vld [vmem:[%s1 + $0x40] sm:$0xff]
  %v34 = vld [vmem:[%s1 + $0x48] sm:$0xff]
  %v35 = vld [vmem:[%s1 + $0x50] sm:$0xff]
  %v36 = vld [vmem:[%s1 + $0x58] sm:$0xff]
  %v37 = vld [vmem:[%s1 + $0x60] sm:$0xff]
  %v38 = vld [vmem:[%s1 + $0x68] sm:$0xff]
  %v39 = vld [vmem:[%s1 + $0x70] sm:$0xff]
  %v40 = vld [vmem:[%s1 + $0x78] sm:$0xff]
  %v41 = vld [vmem:[%s1 + $0x80] sm:$0xff]
  %v42 = vld [vmem:[%s1 + $0x88] sm:$0xff]
  %v43 = vld [vmem:[%s1 + $0x90] sm:$0xff]
  %v44 = vld [vmem:[%s1 + $0x98] sm:$0xff]
  %v45 = vld [vmem:[%s1 + $0xa0] sm:$0xff]
  %v46 = vld [vmem:[%s1 + $0xa8] sm:$0xff]
  %v47 = vld [vmem:[%s1 + $0xb0] sm:$0xff]
  %v48 = vld [vmem:[%s1 + $0xb8] sm:$0xff]
  %v49 = vld [vmem:[%s1 + $0xc0] sm:$0xff]
  %v50 = vld [vmem:[%s1 + $0xc8] sm:$0xff]
  %v51 = vld [vmem:[%s1 + $0xd0] sm:$0xff]
  %v52 = vld [vmem:[%s1 + $0xd8] sm:$0xff]
  %v53 = vld [vmem:[%s1 + $0xe0] sm:$0xff]
  %v54 = vld [vmem:[%s1 + $0xe8] sm:$0xff]
  %v55 = vld [vmem:[%s1 + $0xf0] sm:$0xff]
  %v56 = vld [vmem:[%s1 + $0xf8] sm:$0xff]
  %v57 = vld [vmem:[%s1 + $0x100] sm:$0xff]
  %v58 = vld [vmem:[%s1 + $0x108] sm:$0xff]
  %v59 = vld [vmem:[%s1 + $0x110] sm:$0xff]
  %v60 = vld [vmem:[%s1 + $0x118] sm:$0xff]
  %v61 = vld [vmem:[%s1 + $0x120] sm:$0xff]
  %v62 = vld [vmem:[%s1 + $0x128] sm:$0xff]
  %v63 = vld [vmem:[%s1 + $0x130] sm:$0xff]
  %v64 = vld [vmem:[%s1 + $0x138] sm:$0xff]
  %v65 = vld [vmem:[%s1 + $0x140] sm:$0xff]
  %v66 = vld [vmem:[%s1 + $0x148] sm:$0xff]
  %v67 = vld [vmem:[%s1 + $0x150] sm:$0xff]
  %v68 = vld [vmem:[%s1 + $0x158] sm:$0xff]
  %v69 = vld [vmem:[%s1 + $0x160] sm:$0xff]
  %v70 = vld [vmem:[%s1 + $0x168] sm:$0xff]
  %v71 = vld [vmem:[%s1 + $0x170] sm:$0xff]
  %v72 = vld [vmem:[%s1 + $0x178] sm:$0xff]
  %v73 = vld [vmem:[%s1 + $0x180] sm:$0xff]
  %v74 = vld [vmem:[%s1 + $0x188] sm:$0xff]
  %v75 = vld [vmem:[%s1 + $0x190] sm:$0xff]
  %v76 = vld [vmem:[%s1 + $0x198] sm:$0xff]
  %v77 = vld [vmem:[%s1 + $0x1a0] sm:$0xff]
  %v78 = vld [vmem:[%s1 + $0x1a8] sm:$0xff]
  %v79 = vld [vmem:[%s1 + $0x1b0] sm:$0xff]
  %v80 = vld [vmem:[%s1 + $0x1b8] sm:$0xff]
  %v81 = vld [vmem:[%s1 + $0x1c0] sm:$0xff]
  %v82 = vld [vmem:[%s1 + $0x1c8] sm:$0xff]
  %v83 = vld [vmem:[%s1 + $0x1d0] sm:$0xff]
  %v84 = vld [vmem:[%s1 + $0x1d8] sm:$0xff]
  %v85 = vld [vmem:[%s1 + $0x1e0] sm:$0xff]
  %v86 = vld [vmem:[%s1 + $0x1e8] sm:$0xff]
  %v87 = vld [vmem:[%s1 + $0x1f0] sm:$0xff]
  %v88 = vld [vmem:[%s1 + $0x1f8] sm:$0xff]
  %v89 = vld [vmem:[%s1 + $0x200] sm:$0xff]
  %v90 = vld [vmem:[%s1 + $0x208] sm:$0xff]
  %v91 = vld [vmem:[%s1 + $0x210] sm:$0xff]
  %v92 = vld [vmem:[%s1 + $0x218] sm:$0xff]
  %v93 = vld [vmem:[%s1 + $0x220] sm:$0xff]
  %v94 = vld [vmem:[%s1 + $0x228] sm:$0xff]
  %v95 = vld [vmem:[%s1 + $0x230] sm:$0xff]
  %v96 = vld [vmem:[%s1 + $0x238] sm:$0xff]
  %v97 = vld [vmem:[%s1 + $0x240] sm:$0xff]
  %v98 = vld [vmem:[%s1 + $0x248] sm:$0xff]
  %v99 = vld [vmem:[%s1 + $0x250] sm:$0xff]
  %v100 = vld [vmem:[%s1 + $0x258] sm:$0xff]
  %v101 = vld [vmem:[%s1 + $0x260] sm:$0xff]
  %v102 = vld [vmem:[%s1 + $0x268] sm:$0xff]
  %v103 = vld [vmem:[%s1 + $0x270] sm:$0xff]
  %v104 = vld [vmem:[%s1 + $0x278] sm:$0xff]
  %v105 = vld [vmem:[%s1 + $0x280] sm:$0xff]
  %v106 = vld [vmem:[%s1 + $0x288] sm:$0xff]
  %v107 = vld [vmem:[%s1 + $0x290] sm:$0xff]
  %v108 = vld [vmem:[%s1 + $0x298] sm:$0xff]
  %v109 = vld [vmem:[%s1 + $0x2a0] sm:$0xff]
  %v110 = vld [vmem:[%s1 + $0x2a8] sm:$0xff]
  %v111 = vld [vmem:[%s1 + $0x2b0] sm:$0xff]
  %v112 = vld [vmem:[%s1 + $0x2b8] sm:$0xff]
  %v113 = vld [vmem:[%s1 + $0x2c0] sm:$0xff]
  %v114 = vld [vmem:[%s1 + $0x2c8] sm:$0xff]
  %v115 = vld [vmem:[%s1 + $0x2d0] sm:$0xff]
  %v116 = vld [vmem:[%s1 + $0x2d8] sm:$0xff]
  %v117 = vld [vmem:[%s1 + $0x2e0] sm:$0xff]
  %v118 = vld [vmem:[%s1 + $0x2e8] sm:$0xff]
  %v119 = vld [vmem:[%s1 + $0x2f0] sm:$0xff]
  %v120 = vld [vmem:[%s1 + $0x2f8] sm:$0xff]
  %v121 = vld [vmem:[%s1 + $0x300] sm:$0xff]
  %v122 = vld [vmem:[%s1 + $0x308] sm:$0xff]
  %v123 = vld [vmem:[%s1 + $0x310] sm:$0xff]
  %v124 = vld [vmem:[%s1 + $0x318] sm:$0xff]
  %v125 = vld [vmem:[%s1 + $0x320] sm:$0xff]
  %v126 = vld [vmem:[%s1 + $0x328] sm:$0xff]
  %v127 = vld [vmem:[%s1 + $0x330] sm:$0xff]
  %v128 = vld [vmem:[%s1 + $0x338] sm:$0xff]
  %v129 = vld [vmem:[%s1 + $0x340] sm:$0xff]
  %v130 = vld [vmem:[%s1 + $0x348] sm:$0xff]
  %v131 = vld [vmem:[%s1 + $0x350] sm:$0xff]
  %v132 = vld [vmem:[%s1 + $0x358] sm:$0xff]
  %v133 = vld [vmem:[%s1 + $0x360] sm:$0xff]
  %v134 = vld [vmem:[%s1 + $0x368] sm:$0xff]
  %v135 = vld [vmem:[%s1 + $0x370] sm:$0xff]
  %v136 = vld [vmem:[%s1 + $0x378] sm:$0xff]
  %v137 = vld [vmem:[%s1 + $0x380] sm:$0xff]
  %v138 = vld [vmem:[%s1 + $0x388] sm:$0xff]
  %v139 = vld [vmem:[%s1 + $0x390] sm:$0xff]
  %v140 = vld [vmem:[%s1 + $0x398] sm:$0xff]
  %v141 = vld [vmem:[%s1 + $0x3a0] sm:$0xff]
  %v142 = vld [vmem:[%s1 + $0x3a8] sm:$0xff]
  %v143 = vld [vmem:[%s1 + $0x3b0] sm:$0xff]
  %v144 = vld [vmem:[%s1 + $0x3b8] sm:$0xff]
  %v145 = vld [vmem:[%s1 + $0x3c0] sm:$0xff]
  %v146 = vld [vmem:[%s1 + $0x3c8] sm:$0xff]
  %v147 = vld [vmem:[%s1 + $0x3d0] sm:$0xff]
  %v148 = vld [vmem:[%s1 + $0x3d8] sm:$0xff]
  %v149 = vld [vmem:[%s1 + $0x3e0] sm:$0xff]
  %v150 = vld [vmem:[%s1 + $0x3e8] sm:$0xff]
  %v151 = vld [vmem:[%s1 + $0x3f0] sm:$0xff]
  %v152 = vld [vmem:[%s1 + $0x3f8] sm:$0xff]
  %v153 = vld [vmem:[%s1 + $0x400] sm:$0xff]
  %v154 = vld [vmem:[%s1 + $0x408] sm:$0xff]
  %v155 = vld [vmem:[%s1 + $0x410] sm:$0xff]
  %v156 = vld [vmem:[%s1 + $0x418] sm:$0xff]
  %v157 = vld [vmem:[%s1 + $0x420] sm:$0xff]
  %v158 = vld [vmem:[%s1 + $0x428] sm:$0xff]
  %v159 = vld [vmem:[%s1 + $0x430] sm:$0xff]
  %v160 = vld [vmem:[%s1 + $0x438] sm:$0xff]
  %v161 = vld [vmem:[%s1 + $0x440] sm:$0xff]
  %v162 = vld [vmem:[%s1 + $0x448] sm:$0xff]
  %v163 = vld [vmem:[%s1 + $0x450] sm:$0xff]
  %v164 = vld [vmem:[%s1 + $0x458] sm:$0xff]
  %v165 = vld [vmem:[%s1 + $0x460] sm:$0xff]
  %v166 = vld [vmem:[%s1 + $0x468] sm:$0xff]
  %v167 = vld [vmem:[%s1 + $0x470] sm:$0xff]
  %v168 = vld [vmem:[%s1 + $0x478] sm:$0xff]
  %v169 = vld [vmem:[%s1 + $0x480] sm:$0xff]
  %v170 = vld [vmem:[%s1 + $0x488] sm:$0xff]
  %v171 = vld [vmem:[%s1 + $0x490] sm:$0xff]
  %v172 = vld [vmem:[%s1 + $0x498] sm:$0xff]
  %v173 = vld [vmem:[%s1 + $0x4a0] sm:$0xff]
  %v174 = vld [vmem:[%s1 + $0x4a8] sm:$0xff]
  %v175 = vld [vmem:[%s1 + $0x4b0] sm:$0xff]
  %v176 = vld [vmem:[%s1 + $0x4b8] sm:$0xff]
  %v177 = vld [vmem:[%s1 + $0x4c0] sm:$0xff]
  %v178 = vld [vmem:[%s1 + $0x4c8] sm:$0xff]
  %v179 = vld [vmem:[%s1 + $0x4d0] sm:$0xff]
  %v180 = vld [vmem:[%s1 + $0x4d8] sm:$0xff]
  %v181 = vld [vmem:[%s1 + $0x4e0] sm:$0xff]
  %v182 = vld [vmem:[%s1 + $0x4e8] sm:$0xff]
  %v183 = vld [vmem:[%s1 + $0x4f0] sm:$0xff]
  %v184 = vld [vmem:[%s1 + $0x4f8] sm:$0xff]
  %v185 = vld [vmem:[%s1 + $0x500] sm:$0xff]
  %v186 = vld [vmem:[%s1 + $0x508] sm:$0xff]
  %v187 = vld [vmem:[%s1 + $0x510] sm:$0xff]
  %v188 = vld [vmem:[%s1 + $0x518] sm:$0xff]
  %v189 = vld [vmem:[%s1 + $0x520] sm:$0xff]
  %v190 = vld [vmem:[%s1 + $0x528] sm:$0xff]
  %v191 = vld [vmem:[%s1 + $0x530] sm:$0xff]
  %v192 = vld [vmem:[%s1 + $0x538] sm:$0xff]
  %v193 = vld [vmem:[%s1 + $0x540] sm:$0xff]
  %v194 = vld [vmem:[%s1 + $0x548] sm:$0xff]
  %v195 = vld [vmem:[%s1 + $0x550] sm:$0xff]
  %v196 = vld [vmem:[%s1 + $0x558] sm:$0xff]
  %v197 = vld [vmem:[%s1 + $0x560] sm:$0xff]
  %v198 = vld [vmem:[%s1 + $0x568] sm:$0xff]
  %v199 = vld [vmem:[%s1 + $0x570] sm:$0xff]
  %v200 = vld [vmem:[%s1 + $0x578] sm:$0xff]
  %v201 = vld [vmem:[%s1 + $0x580] sm:$0xff]
  %v202 = vld [vmem:[%s1 + $0x588] sm:$0xff]
  %v203 = vld [vmem:[%s1 + $0x590] sm:$0xff]
  %v204 = vld [vmem:[%s1 + $0x598] sm:$0xff]
  %v205 = vld [vmem:[%s1 + $0x5a0] sm:$0xff]
  %v206 = vld [vmem:[%s1 + $0x5a8] sm:$0xff]
  %v207 = vld [vmem:[%s1 + $0x5b0] sm:$0xff]
  %v208 = vld [vmem:[%s1 + $0x5b8] sm:$0xff]
  %v209 = vld [vmem:[%s1 + $0x5c0] sm:$0xff]
  %v210 = vld [vmem:[%s1 + $0x5c8] sm:$0xff]
  %v211 = vld [vmem:[%s1 + $0x5d0] sm:$0xff]
  %v212 = vld [vmem:[%s1 + $0x5d8] sm:$0xff]
  %v213 = vld [vmem:[%s1 + $0x5e0] sm:$0xff]
  %v214 = vld [vmem:[%s1 + $0x5e8] sm:$0xff]
  %v215 = vld [vmem:[%s1 + $0x5f0] sm:$0xff]
  %v216 = vld [vmem:[%s1 + $0x5f8] sm:$0xff]
  %v217 = vld [vmem:[%s1 + $0x600] sm:$0xff]
  %v218 = vld [vmem:[%s1 + $0x608] sm:$0xff]
  %v219 = vld [vmem:[%s1 + $0x610] sm:$0xff]
  %v220 = vld [vmem:[%s1 + $0x618] sm:$0xff]
  %v221 = vld [vmem:[%s1 + $0x620] sm:$0xff]
  %v222 = vld [vmem:[%s1 + $0x628] sm:$0xff]
  %v223 = vld [vmem:[%s1 + $0x630] sm:$0xff]
  %v224 = vld [vmem:[%s1 + $0x638] sm:$0xff]
  %v225 = vld [vmem:[%s1 + $0x640] sm:$0xff]
  %v226 = vld [vmem:[%s1 + $0x648] sm:$0xff]
  %v227 = vld [vmem:[%s1 + $0x650] sm:$0xff]
  %v228 = vld [vmem:[%s1 + $0x658] sm:$0xff]
  %v229 = vld [vmem:[%s1 + $0x660] sm:$0xff]
  %v230 = vld [vmem:[%s1 + $0x668] sm:$0xff]
  %v231 = vld [vmem:[%s1 + $0x670] sm:$0xff]
  %v232 = vld [vmem:[%s1 + $0x678] sm:$0xff]
  %v233 = vld [vmem:[%s1 + $0x680] sm:$0xff]
  %v234 = vld [vmem:[%s1 + $0x688] sm:$0xff]
  %v235 = vld [vmem:[%s1 + $0x690] sm:$0xff]
  %v236 = vld [vmem:[%s1 + $0x698] sm:$0xff]
  %v237 = vld [vmem:[%s1 + $0x6a0] sm:$0xff]
  %v238 = vld [vmem:[%s1 + $0x6a8] sm:$0xff]
  %v239 = vld [vmem:[%s1 + $0x6b0] sm:$0xff]
  %v240 = vld [vmem:[%s1 + $0x6b8] sm:$0xff]
  %v241 = vld [vmem:[%s1 + $0x6c0] sm:$0xff]
  %v242 = vld [vmem:[%s1 + $0x6c8] sm:$0xff]
  %v243 = vld [vmem:[%s1 + $0x6d0] sm:$0xff]
  %v244 = vld [vmem:[%s1 + $0x6d8] sm:$0xff]
  %v245 = vld [vmem:[%s1 + $0x6e0] sm:$0xff]
  %v246 = vld [vmem:[%s1 + $0x6e8] sm:$0xff]
  %v247 = vld [vmem:[%s1 + $0x6f0] sm:$0xff]
  %v248 = vld [vmem:[%s1 + $0x6f8] sm:$0xff]
  %v249 = vld [vmem:[%s1 + $0x700] sm:$0xff]
  %v250 = vld [vmem:[%s1 + $0x708] sm:$0xff]
  %v251 = vld [vmem:[%s1 + $0x710] sm:$0xff]
  %v252 = vld [vmem:[%s1 + $0x718] sm:$0xff]
  %v253 = vld [vmem:[%s1 + $0x720] sm:$0xff]
  %v254 = vld [vmem:[%s1 + $0x728] sm:$0xff]
  %v255 = vld [vmem:[%s1 + $0x730] sm:$0xff]
  %v256 = vld [vmem:[%s1 + $0x738] sm:$0xff]
  %v257 = vld [vmem:[%s1 + $0x740] sm:$0xff]
  %v258 = vld [vmem:[%s1 + $0x748] sm:$0xff]
  %v259 = vld [vmem:[%s1 + $0x750] sm:$0xff]
  %v260 = vld [vmem:[%s1 + $0x758] sm:$0xff]
  %v261 = vld [vmem:[%s1 + $0x760] sm:$0xff]
  %v262 = vld [vmem:[%s1 + $0x768] sm:$0xff]
  %v263 = vld [vmem:[%s1 + $0x770] sm:$0xff]
  %v264 = vld [vmem:[%s1 + $0x778] sm:$0xff]
  %v265 = vld [vmem:[%s1 + $0x780] sm:$0xff]
  %v266 = vld [vmem:[%s1 + $0x788] sm:$0xff]
  %v267 = vld [vmem:[%s1 + $0x790] sm:$0xff]
  %v268 = vld [vmem:[%s1 + $0x798] sm:$0xff]
  %v269 = vld [vmem:[%s1 + $0x7a0] sm:$0xff]
  %v270 = vld [vmem:[%s1 + $0x7a8] sm:$0xff]
  %v271 = vld [vmem:[%s1 + $0x7b0] sm:$0xff]
  %v272 = vld [vmem:[%s1 + $0x7b8] sm:$0xff]
  %v273 = vld [vmem:[%s1 + $0x7c0] sm:$0xff]
  %v274 = vld [vmem:[%s1 + $0x7c8] sm:$0xff]
  %v275 = vld [vmem:[%s1 + $0x7d0] sm:$0xff]
  %v276 = vld [vmem:[%s1 + $0x7d8] sm:$0xff]
  %v277 = vld [vmem:[%s1 + $0x7e0] sm:$0xff]
  %v278 = vld [vmem:[%s1 + $0x7e8] sm:$0xff]
  %v279 = vld [vmem:[%s1 + $0x7f0] sm:$0xff]
  %v280 = vld [vmem:[%s1 + $0x7f8] sm:$0xff]
  %v281 = vld [vmem:[%s1 + $0x800] sm:$0xff]
  %v282 = vld [vmem:[%s1 + $0x808] sm:$0xff]
  %v283 = vld [vmem:[%s1 + $0x810] sm:$0xff]
  %v284 = vld [vmem:[%s1 + $0x818] sm:$0xff]
  %v285 = vld [vmem:[%s1 + $0x820] sm:$0xff]
  %v286 = vld [vmem:[%s1 + $0x828] sm:$0xff]
  %v287 = vld [vmem:[%s1 + $0x830] sm:$0xff]
  %v288 = vld [vmem:[%s1 + $0x838] sm:$0xff]
  %v289 = vld [vmem:[%s1 + $0x840] sm:$0xff]
  %v290 = vld [vmem:[%s1 + $0x848] sm:$0xff]
  %v291 = vld [vmem:[%s1 + $0x850] sm:$0xff]
  %v292 = vld [vmem:[%s1 + $0x858] sm:$0xff]
  %v293 = vld [vmem:[%s1 + $0x860] sm:$0xff]
  %v294 = vld [vmem:[%s1 + $0x868] sm:$0xff]
  %v295 = vld [vmem:[%s1 + $0x870] sm:$0xff]
  %v296 = vld [vmem:[%s1 + $0x878] sm:$0xff]
  %v297 = vld [vmem:[%s1 + $0x880] sm:$0xff]
  %v298 = vld [vmem:[%s1 + $0x888] sm:$0xff]
  %v299 = vld [vmem:[%s1 + $0x890] sm:$0xff]
  %v300 = vld [vmem:[%s1 + $0x898] sm:$0xff]
  %v301 = vld [vmem:[%s1 + $0x8a0] sm:$0xff]
  %v302 = vld [vmem:[%s1 + $0x8a8] sm:$0xff]
  %v303 = vld [vmem:[%s1 + $0x8b0] sm:$0xff]
  %v304 = vld [vmem:[%s1 + $0x8b8] sm:$0xff]
  %v305 = vld [vmem:[%s1 + $0x8c0] sm:$0xff]
  %v306 = vld [vmem:[%s1 + $0x8c8] sm:$0xff]
  %v307 = vld [vmem:[%s1 + $0x8d0] sm:$0xff]
  %v308 = vld [vmem:[%s1 + $0x8d8] sm:$0xff]
  %v309 = vld [vmem:[%s1 + $0x8e0] sm:$0xff]
  %v310 = vld [vmem:[%s1 + $0x8e8] sm:$0xff]
  %v311 = vld [vmem:[%s1 + $0x8f0] sm:$0xff]
  %v312 = vld [vmem:[%s1 + $0x8f8] sm:$0xff]
  %v313 = vld [vmem:[%s1 + $0x900] sm:$0xff]
  %v314 = vld [vmem:[%s1 + $0x908] sm:$0xff]
  %v315 = vld [vmem:[%s1 + $0x910] sm:$0xff]
  %v316 = vld [vmem:[%s1 + $0x918] sm:$0xff]
  %v317 = vld [vmem:[%s1 + $0x920] sm:$0xff]
  %v318 = vld [vmem:[%s1 + $0x928] sm:$0xff]
  %v319 = vld [vmem:[%s1 + $0x930] sm:$0xff]
  %v320 = vld [vmem:[%s1 + $0x938] sm:$0xff]
  %v321 = vld [vmem:[%s1 + $0x940] sm:$0xff]
  %v322 = vld [vmem:[%s1 + $0x948] sm:$0xff]
  %v323 = vld [vmem:[%s1 + $0x950] sm:$0xff]
  %v324 = vld [vmem:[%s1 + $0x958] sm:$0xff]
  %v325 = vld [vmem:[%s1 + $0x960] sm:$0xff]
  %v326 = vld [vmem:[%s1 + $0x968] sm:$0xff]
  %v327 = vld [vmem:[%s1 + $0x970] sm:$0xff]
  %v328 = vld [vmem:[%s1 + $0x978] sm:$0xff]
  %v329 = vld [vmem:[%s1 + $0x980] sm:$0xff]
  %v330 = vld [vmem:[%s1 + $0x988] sm:$0xff]
  %v331 = vld [vmem:[%s1 + $0x990] sm:$0xff]
  %v332 = vld [vmem:[%s1 + $0x998] sm:$0xff]
  %v333 = vld [vmem:[%s1 + $0x9a0] sm:$0xff]
  %v334 = vld [vmem:[%s1 + $0x9a8] sm:$0xff]
  %v335 = vld [vmem:[%s1 + $0x9b0] sm:$0xff]
  %v336 = vld [vmem:[%s1 + $0x9b8] sm:$0xff]
  %v337 = vld [vmem:[%s1 + $0x9c0] sm:$0xff]
  %v338 = vld [vmem:[%s1 + $0x9c8] sm:$0xff]
  %v339 = vld [vmem:[%s1 + $0x9d0] sm:$0xff]
  %v340 = vld [vmem:[%s1 + $0x9d8] sm:$0xff]
  %v341 = vld [vmem:[%s1 + $0x9e0] sm:$0xff]
  %v342 = vld [vmem:[%s1 + $0x9e8] sm:$0xff]
  %v343 = vld [vmem:[%s1 + $0x9f0] sm:$0xff]
  %v344 = vld [vmem:[%s1 + $0x9f8] sm:$0xff]
  %v345 = vld [vmem:[%s1 + $0xa00] sm:$0xff]
  %v346 = vld [vmem:[%s1 + $0xa08] sm:$0xff]
  %v347 = vld [vmem:[%s1 + $0xa10] sm:$0xff]
  %v348 = vld [vmem:[%s1 + $0xa18] sm:$0xff]
  %v349 = vld [vmem:[%s1 + $0xa20] sm:$0xff]
  %v350 = vld [vmem:[%s1 + $0xa28] sm:$0xff]
  %v351 = vld [vmem:[%s1 + $0xa30] sm:$0xff]
  %v352 = vld [vmem:[%s1 + $0xa38] sm:$0xff]
  %v353 = vld [vmem:[%s1 + $0xa40] sm:$0xff]
  %v354 = vld [vmem:[%s1 + $0xa48] sm:$0xff]
  %v355 = vld [vmem:[%s1 + $0xa50] sm:$0xff]
  %v356 = vld [vmem:[%s1 + $0xa58] sm:$0xff]
  %v357 = vld [vmem:[%s1 + $0xa60] sm:$0xff]
  %v358 = vld [vmem:[%s1 + $0xa68] sm:$0xff]
  %v359 = vld [vmem:[%s1 + $0xa70] sm:$0xff]
  %v360 = vld [vmem:[%s1 + $0xa78] sm:$0xff]
  %v361 = vld [vmem:[%s1 + $0xa80] sm:$0xff]
  %v362 = vld [vmem:[%s1 + $0xa88] sm:$0xff]
  %v363 = vld [vmem:[%s1 + $0xa90] sm:$0xff]
  %v364 = vld [vmem:[%s1 + $0xa98] sm:$0xff]
  %v365 = vld [vmem:[%s1 + $0xaa0] sm:$0xff]
  %v366 = vld [vmem:[%s1 + $0xaa8] sm:$0xff]
  %v367 = vld [vmem:[%s1 + $0xab0] sm:$0xff]
  %v368 = vld [vmem:[%s1 + $0xab8] sm:$0xff]
  %v369 = vld [vmem:[%s1 + $0xac0] sm:$0xff]
  %v370 = vld [vmem:[%s1 + $0xac8] sm:$0xff]
  %v371 = vld [vmem:[%s1 + $0xad0] sm:$0xff]
  %v372 = vld [vmem:[%s1 + $0xad8] sm:$0xff]
  %v373 = vld [vmem:[%s1 + $0xae0] sm:$0xff]
  %v374 = vld [vmem:[%s1 + $0xae8] sm:$0xff]
  %v375 = vld [vmem:[%s1 + $0xaf0] sm:$0xff]
  %v376 = vld [vmem:[%s1 + $0xaf8] sm:$0xff]
  %v377 = vld [vmem:[%s1 + $0xb00] sm:$0xff]
  %v378 = vld [vmem:[%s1 + $0xb08] sm:$0xff]
  %v379 = vld [vmem:[%s1 + $0xb10] sm:$0xff]
  %v380 = vld [vmem:[%s1 + $0xb18] sm:$0xff]
  %v381 = vld [vmem:[%s1 + $0xb20] sm:$0xff]
  %v382 = vld [vmem:[%s1 + $0xb28] sm:$0xff]
  %v383 = vld [vmem:[%s1 + $0xb30] sm:$0xff]
  %v384 = vld [vmem:[%s1 + $0xb38] sm:$0xff]
  %v385 = vld [vmem:[%s1 + $0xb40] sm:$0xff]
  %v386 = vld [vmem:[%s1 + $0xb48] sm:$0xff]
  %v387 = vld [vmem:[%s1 + $0xb50] sm:$0xff]
  %v388 = vld [vmem:[%s1 + $0xb58] sm:$0xff]
  %v389 = vld [vmem:[%s1 + $0xb60] sm:$0xff]
  %v390 = vld [vmem:[%s1 + $0xb68] sm:$0xff]
  %v391 = vld [vmem:[%s1 + $0xb70] sm:$0xff]
  %v392 = vld [vmem:[%s1 + $0xb78] sm:$0xff]
  %v393 = vld [vmem:[%s1 + $0xb80] sm:$0xff]
  %v394 = vld [vmem:[%s1 + $0xb88] sm:$0xff]
  %v395 = vld [vmem:[%s1 + $0xb90] sm:$0xff]
  %v396 = vld [vmem:[%s1 + $0xb98] sm:$0xff]
  %v397 = vld [vmem:[%s1 + $0xba0] sm:$0xff]
  %v398 = vld [vmem:[%s1 + $0xba8] sm:$0xff]
  %v399 = vld [vmem:[%s1 + $0xbb0] sm:$0xff]
  %v400 = vld [vmem:[%s1 + $0xbb8] sm:$0xff]
  %v401 = vld [vmem:[%s1 + $0xbc0] sm:$0xff]
  %v402 = vld [vmem:[%s1 + $0xbc8] sm:$0xff]
  %v403 = vld [vmem:[%s1 + $0xbd0] sm:$0xff]
  %v404 = vld [vmem:[%s1 + $0xbd8] sm:$0xff]
  %v405 = vld [vmem:[%s1 + $0xbe0] sm:$0xff]
  %v406 = vld [vmem:[%s1 + $0xbe8] sm:$0xff]
  %v407 = vld [vmem:[%s1 + $0xbf0] sm:$0xff]
  %v408 = vld [vmem:[%s1 + $0xbf8] sm:$0xff]
  %v409 = vld [vmem:[%s2] ss:$4 sm:$0xf]
  %v411 = vlaneseq
  %v412 = vshrl.u32 %v411, 7
  %v413 = vsub.s32 0, %v412
  %v414 = vrot.slane %v409, %v413
  %v415 = vlaneseq
  %v416 = vshrl.u32 %v415, 7
  %v417 = vsub.s32 1, %v416
  %v418 = vrot.slane %v409, %v417
  %v419 = vlaneseq
  %v420 = vshrl.u32 %v419, 7
  %v421 = vsub.s32 2, %v420
  %v422 = vrot.slane %v409, %v421
  %v423 = vlaneseq
  %v424 = vshrl.u32 %v423, 7
  %v425 = vsub.s32 3, %v424
  %v426 = vrot.slane %v409, %v425
  %v437 = vunpack.c.l.b16 %v19
  %v438 = vunpack.c.h.b16 %v19
  %v439 = vunpack.c.l.b16 %v20
  %v440 = vunpack.c.h.b16 %v20
  %v441 = vunpack.c.l.b16 %v21
  %v442 = vunpack.c.h.b16 %v21
  %v443 = vunpack.c.l.b16 %v22
  %v444 = vunpack.c.h.b16 %v22
  %v445 = vunpack.c.l.b16 %v23
  %v446 = vunpack.c.h.b16 %v23
  %v447 = vunpack.c.l.b16 %v24
  %v448 = vunpack.c.h.b16 %v24
  %v449 = vpack.c.b16 %v437, %v437
  %v450 = vpack.c.b16 %v438, %v438
  %v451 = vpack.c.b16 %v439, %v439
  %v452 = vpack.c.b16 %v440, %v440
  %v453 = vpack.c.b16 %v441, %v441
  %v454 = vpack.c.b16 %v442, %v442
  %v455 = vpack.c.b16 %v443, %v443
  %v456 = vpack.c.b16 %v444, %v444
  %v457 = vpack.c.b16 %v445, %v445
  %v458 = vpack.c.b16 %v446, %v446
  %v459 = vpack.c.b16 %v447, %v447
  %v460 = vpack.c.b16 %v448, %v448
  %v857 = vunpack.c.l.b16 %v25
  %v858 = vunpack.c.h.b16 %v25
  %v859 = vunpack.c.l.b16 %v26
  %v860 = vunpack.c.h.b16 %v26
  %v861 = vunpack.c.l.b16 %v27
  %v862 = vunpack.c.h.b16 %v27
  %v863 = vunpack.c.l.b16 %v28
  %v864 = vunpack.c.h.b16 %v28
  %v865 = vunpack.c.l.b16 %v29
  %v866 = vunpack.c.h.b16 %v29
  %v867 = vunpack.c.l.b16 %v30
  %v868 = vunpack.c.h.b16 %v30
  %v869 = vunpack.c.l.b16 %v31
  %v870 = vunpack.c.h.b16 %v31
  %v871 = vunpack.c.l.b16 %v32
  %v872 = vunpack.c.h.b16 %v32
  %v873 = vunpack.c.l.b16 %v33
  %v874 = vunpack.c.h.b16 %v33
  %v875 = vunpack.c.l.b16 %v34
  %v876 = vunpack.c.h.b16 %v34
  %v877 = vunpack.c.l.b16 %v35
  %v878 = vunpack.c.h.b16 %v35
  %v879 = vunpack.c.l.b16 %v36
  %v880 = vunpack.c.h.b16 %v36
  %v881 = vunpack.c.l.b16 %v37
  %v882 = vunpack.c.h.b16 %v37
  %v883 = vunpack.c.l.b16 %v38
  %v884 = vunpack.c.h.b16 %v38
  %v885 = vunpack.c.l.b16 %v39
  %v886 = vunpack.c.h.b16 %v39
  %v887 = vunpack.c.l.b16 %v40
  %v888 = vunpack.c.h.b16 %v40
  %v889 = vunpack.c.l.b16 %v41
  %v890 = vunpack.c.h.b16 %v41
  %v891 = vunpack.c.l.b16 %v42
  %v892 = vunpack.c.h.b16 %v42
  %v893 = vunpack.c.l.b16 %v43
  %v894 = vunpack.c.h.b16 %v43
  %v895 = vunpack.c.l.b16 %v44
  %v896 = vunpack.c.h.b16 %v44
  %v897 = vunpack.c.l.b16 %v45
  %v898 = vunpack.c.h.b16 %v45
  %v899 = vunpack.c.l.b16 %v46
  %v900 = vunpack.c.h.b16 %v46
  %v901 = vunpack.c.l.b16 %v47
  %v902 = vunpack.c.h.b16 %v47
  %v903 = vunpack.c.l.b16 %v48
  %v904 = vunpack.c.h.b16 %v48
  %v905 = vunpack.c.l.b16 %v49
  %v906 = vunpack.c.h.b16 %v49
  %v907 = vunpack.c.l.b16 %v50
  %v908 = vunpack.c.h.b16 %v50
  %v909 = vunpack.c.l.b16 %v51
  %v910 = vunpack.c.h.b16 %v51
  %v911 = vunpack.c.l.b16 %v52
  %v912 = vunpack.c.h.b16 %v52
  %v913 = vunpack.c.l.b16 %v53
  %v914 = vunpack.c.h.b16 %v53
  %v915 = vunpack.c.l.b16 %v54
  %v916 = vunpack.c.h.b16 %v54
  %v917 = vunpack.c.l.b16 %v55
  %v918 = vunpack.c.h.b16 %v55
  %v919 = vunpack.c.l.b16 %v56
  %v920 = vunpack.c.h.b16 %v56
  %v921 = vunpack.c.l.b16 %v57
  %v922 = vunpack.c.h.b16 %v57
  %v923 = vunpack.c.l.b16 %v58
  %v924 = vunpack.c.h.b16 %v58
  %v925 = vunpack.c.l.b16 %v59
  %v926 = vunpack.c.h.b16 %v59
  %v927 = vunpack.c.l.b16 %v60
  %v928 = vunpack.c.h.b16 %v60
  %v929 = vunpack.c.l.b16 %v61
  %v930 = vunpack.c.h.b16 %v61
  %v931 = vunpack.c.l.b16 %v62
  %v932 = vunpack.c.h.b16 %v62
  %v933 = vunpack.c.l.b16 %v63
  %v934 = vunpack.c.h.b16 %v63
  %v935 = vunpack.c.l.b16 %v64
  %v936 = vunpack.c.h.b16 %v64
  %v937 = vunpack.c.l.b16 %v65
  %v938 = vunpack.c.h.b16 %v65
  %v939 = vunpack.c.l.b16 %v66
  %v940 = vunpack.c.h.b16 %v66
  %v941 = vunpack.c.l.b16 %v67
  %v942 = vunpack.c.h.b16 %v67
  %v943 = vunpack.c.l.b16 %v68
  %v944 = vunpack.c.h.b16 %v68
  %v945 = vunpack.c.l.b16 %v69
  %v946 = vunpack.c.h.b16 %v69
  %v947 = vunpack.c.l.b16 %v70
  %v948 = vunpack.c.h.b16 %v70
  %v949 = vunpack.c.l.b16 %v71
  %v950 = vunpack.c.h.b16 %v71
  %v951 = vunpack.c.l.b16 %v72
  %v952 = vunpack.c.h.b16 %v72
  %v953 = vunpack.c.l.b16 %v73
  %v954 = vunpack.c.h.b16 %v73
  %v955 = vunpack.c.l.b16 %v74
  %v956 = vunpack.c.h.b16 %v74
  %v957 = vunpack.c.l.b16 %v75
  %v958 = vunpack.c.h.b16 %v75
  %v959 = vunpack.c.l.b16 %v76
  %v960 = vunpack.c.h.b16 %v76
  %v961 = vunpack.c.l.b16 %v77
  %v962 = vunpack.c.h.b16 %v77
  %v963 = vunpack.c.l.b16 %v78
  %v964 = vunpack.c.h.b16 %v78
  %v965 = vunpack.c.l.b16 %v79
  %v966 = vunpack.c.h.b16 %v79
  %v967 = vunpack.c.l.b16 %v80
  %v968 = vunpack.c.h.b16 %v80
  %v969 = vunpack.c.l.b16 %v81
  %v970 = vunpack.c.h.b16 %v81
  %v971 = vunpack.c.l.b16 %v82
  %v972 = vunpack.c.h.b16 %v82
  %v973 = vunpack.c.l.b16 %v83
  %v974 = vunpack.c.h.b16 %v83
  %v975 = vunpack.c.l.b16 %v84
  %v976 = vunpack.c.h.b16 %v84
  %v977 = vunpack.c.l.b16 %v85
  %v978 = vunpack.c.h.b16 %v85
  %v979 = vunpack.c.l.b16 %v86
  %v980 = vunpack.c.h.b16 %v86
  %v981 = vunpack.c.l.b16 %v87
  %v982 = vunpack.c.h.b16 %v87
  %v983 = vunpack.c.l.b16 %v88
  %v984 = vunpack.c.h.b16 %v88
  %v985 = vunpack.c.l.b16 %v89
  %v986 = vunpack.c.h.b16 %v89
  %v987 = vunpack.c.l.b16 %v90
  %v988 = vunpack.c.h.b16 %v90
  %v989 = vunpack.c.l.b16 %v91
  %v990 = vunpack.c.h.b16 %v91
  %v991 = vunpack.c.l.b16 %v92
  %v992 = vunpack.c.h.b16 %v92
  %v993 = vunpack.c.l.b16 %v93
  %v994 = vunpack.c.h.b16 %v93
  %v995 = vunpack.c.l.b16 %v94
  %v996 = vunpack.c.h.b16 %v94
  %v997 = vunpack.c.l.b16 %v95
  %v998 = vunpack.c.h.b16 %v95
  %v999 = vunpack.c.l.b16 %v96
  %v1000 = vunpack.c.h.b16 %v96
  %v1001 = vunpack.c.l.b16 %v97
  %v1002 = vunpack.c.h.b16 %v97
  %v1003 = vunpack.c.l.b16 %v98
  %v1004 = vunpack.c.h.b16 %v98
  %v1005 = vunpack.c.l.b16 %v99
  %v1006 = vunpack.c.h.b16 %v99
  %v1007 = vunpack.c.l.b16 %v100
  %v1008 = vunpack.c.h.b16 %v100
  %v1009 = vunpack.c.l.b16 %v101
  %v1010 = vunpack.c.h.b16 %v101
  %v1011 = vunpack.c.l.b16 %v102
  %v1012 = vunpack.c.h.b16 %v102
  %v1013 = vunpack.c.l.b16 %v103
  %v1014 = vunpack.c.h.b16 %v103
  %v1015 = vunpack.c.l.b16 %v104
  %v1016 = vunpack.c.h.b16 %v104
  %v1017 = vunpack.c.l.b16 %v105
  %v1018 = vunpack.c.h.b16 %v105
  %v1019 = vunpack.c.l.b16 %v106
  %v1020 = vunpack.c.h.b16 %v106
  %v1021 = vunpack.c.l.b16 %v107
  %v1022 = vunpack.c.h.b16 %v107
  %v1023 = vunpack.c.l.b16 %v108
  %v1024 = vunpack.c.h.b16 %v108
  %v1025 = vunpack.c.l.b16 %v109
  %v1026 = vunpack.c.h.b16 %v109
  %v1027 = vunpack.c.l.b16 %v110
  %v1028 = vunpack.c.h.b16 %v110
  %v1029 = vunpack.c.l.b16 %v111
  %v1030 = vunpack.c.h.b16 %v111
  %v1031 = vunpack.c.l.b16 %v112
  %v1032 = vunpack.c.h.b16 %v112
  %v1033 = vunpack.c.l.b16 %v113
  %v1034 = vunpack.c.h.b16 %v113
  %v1035 = vunpack.c.l.b16 %v114
  %v1036 = vunpack.c.h.b16 %v114
  %v1037 = vunpack.c.l.b16 %v115
  %v1038 = vunpack.c.h.b16 %v115
  %v1039 = vunpack.c.l.b16 %v116
  %v1040 = vunpack.c.h.b16 %v116
  %v1041 = vunpack.c.l.b16 %v117
  %v1042 = vunpack.c.h.b16 %v117
  %v1043 = vunpack.c.l.b16 %v118
  %v1044 = vunpack.c.h.b16 %v118
  %v1045 = vunpack.c.l.b16 %v119
  %v1046 = vunpack.c.h.b16 %v119
  %v1047 = vunpack.c.l.b16 %v120
  %v1048 = vunpack.c.h.b16 %v120
  %v1049 = vunpack.c.l.b16 %v121
  %v1050 = vunpack.c.h.b16 %v121
  %v1051 = vunpack.c.l.b16 %v122
  %v1052 = vunpack.c.h.b16 %v122
  %v1053 = vunpack.c.l.b16 %v123
  %v1054 = vunpack.c.h.b16 %v123
  %v1055 = vunpack.c.l.b16 %v124
  %v1056 = vunpack.c.h.b16 %v124
  %v1057 = vunpack.c.l.b16 %v125
  %v1058 = vunpack.c.h.b16 %v125
  %v1059 = vunpack.c.l.b16 %v126
  %v1060 = vunpack.c.h.b16 %v126
  %v1061 = vunpack.c.l.b16 %v127
  %v1062 = vunpack.c.h.b16 %v127
  %v1063 = vunpack.c.l.b16 %v128
  %v1064 = vunpack.c.h.b16 %v128
  %v1065 = vunpack.c.l.b16 %v129
  %v1066 = vunpack.c.h.b16 %v129
  %v1067 = vunpack.c.l.b16 %v130
  %v1068 = vunpack.c.h.b16 %v130
  %v1069 = vunpack.c.l.b16 %v131
  %v1070 = vunpack.c.h.b16 %v131
  %v1071 = vunpack.c.l.b16 %v132
  %v1072 = vunpack.c.h.b16 %v132
  %v1073 = vunpack.c.l.b16 %v133
  %v1074 = vunpack.c.h.b16 %v133
  %v1075 = vunpack.c.l.b16 %v134
  %v1076 = vunpack.c.h.b16 %v134
  %v1077 = vunpack.c.l.b16 %v135
  %v1078 = vunpack.c.h.b16 %v135
  %v1079 = vunpack.c.l.b16 %v136
  %v1080 = vunpack.c.h.b16 %v136
  %v1081 = vunpack.c.l.b16 %v137
  %v1082 = vunpack.c.h.b16 %v137
  %v1083 = vunpack.c.l.b16 %v138
  %v1084 = vunpack.c.h.b16 %v138
  %v1085 = vunpack.c.l.b16 %v139
  %v1086 = vunpack.c.h.b16 %v139
  %v1087 = vunpack.c.l.b16 %v140
  %v1088 = vunpack.c.h.b16 %v140
  %v1089 = vunpack.c.l.b16 %v141
  %v1090 = vunpack.c.h.b16 %v141
  %v1091 = vunpack.c.l.b16 %v142
  %v1092 = vunpack.c.h.b16 %v142
  %v1093 = vunpack.c.l.b16 %v143
  %v1094 = vunpack.c.h.b16 %v143
  %v1095 = vunpack.c.l.b16 %v144
  %v1096 = vunpack.c.h.b16 %v144
  %v1097 = vunpack.c.l.b16 %v145
  %v1098 = vunpack.c.h.b16 %v145
  %v1099 = vunpack.c.l.b16 %v146
  %v1100 = vunpack.c.h.b16 %v146
  %v1101 = vunpack.c.l.b16 %v147
  %v1102 = vunpack.c.h.b16 %v147
  %v1103 = vunpack.c.l.b16 %v148
  %v1104 = vunpack.c.h.b16 %v148
  %v1105 = vunpack.c.l.b16 %v149
  %v1106 = vunpack.c.h.b16 %v149
  %v1107 = vunpack.c.l.b16 %v150
  %v1108 = vunpack.c.h.b16 %v150
  %v1109 = vunpack.c.l.b16 %v151
  %v1110 = vunpack.c.h.b16 %v151
  %v1111 = vunpack.c.l.b16 %v152
  %v1112 = vunpack.c.h.b16 %v152
  %v1113 = vunpack.c.l.b16 %v153
  %v1114 = vunpack.c.h.b16 %v153
  %v1115 = vunpack.c.l.b16 %v154
  %v1116 = vunpack.c.h.b16 %v154
  %v1117 = vunpack.c.l.b16 %v155
  %v1118 = vunpack.c.h.b16 %v155
  %v1119 = vunpack.c.l.b16 %v156
  %v1120 = vunpack.c.h.b16 %v156
  %v1121 = vunpack.c.l.b16 %v157
  %v1122 = vunpack.c.h.b16 %v157
  %v1123 = vunpack.c.l.b16 %v158
  %v1124 = vunpack.c.h.b16 %v158
  %v1125 = vunpack.c.l.b16 %v159
  %v1126 = vunpack.c.h.b16 %v159
  %v1127 = vunpack.c.l.b16 %v160
  %v1128 = vunpack.c.h.b16 %v160
  %v1129 = vunpack.c.l.b16 %v161
  %v1130 = vunpack.c.h.b16 %v161
  %v1131 = vunpack.c.l.b16 %v162
  %v1132 = vunpack.c.h.b16 %v162
  %v1133 = vunpack.c.l.b16 %v163
  %v1134 = vunpack.c.h.b16 %v163
  %v1135 = vunpack.c.l.b16 %v164
  %v1136 = vunpack.c.h.b16 %v164
  %v1137 = vunpack.c.l.b16 %v165
  %v1138 = vunpack.c.h.b16 %v165
  %v1139 = vunpack.c.l.b16 %v166
  %v1140 = vunpack.c.h.b16 %v166
  %v1141 = vunpack.c.l.b16 %v167
  %v1142 = vunpack.c.h.b16 %v167
  %v1143 = vunpack.c.l.b16 %v168
  %v1144 = vunpack.c.h.b16 %v168
  %v1145 = vunpack.c.l.b16 %v169
  %v1146 = vunpack.c.h.b16 %v169
  %v1147 = vunpack.c.l.b16 %v170
  %v1148 = vunpack.c.h.b16 %v170
  %v1149 = vunpack.c.l.b16 %v171
  %v1150 = vunpack.c.h.b16 %v171
  %v1151 = vunpack.c.l.b16 %v172
  %v1152 = vunpack.c.h.b16 %v172
  %v1153 = vunpack.c.l.b16 %v173
  %v1154 = vunpack.c.h.b16 %v173
  %v1155 = vunpack.c.l.b16 %v174
  %v1156 = vunpack.c.h.b16 %v174
  %v1157 = vunpack.c.l.b16 %v175
  %v1158 = vunpack.c.h.b16 %v175
  %v1159 = vunpack.c.l.b16 %v176
  %v1160 = vunpack.c.h.b16 %v176
  %v1161 = vunpack.c.l.b16 %v177
  %v1162 = vunpack.c.h.b16 %v177
  %v1163 = vunpack.c.l.b16 %v178
  %v1164 = vunpack.c.h.b16 %v178
  %v1165 = vunpack.c.l.b16 %v179
  %v1166 = vunpack.c.h.b16 %v179
  %v1167 = vunpack.c.l.b16 %v180
  %v1168 = vunpack.c.h.b16 %v180
  %v1169 = vunpack.c.l.b16 %v181
  %v1170 = vunpack.c.h.b16 %v181
  %v1171 = vunpack.c.l.b16 %v182
  %v1172 = vunpack.c.h.b16 %v182
  %v1173 = vunpack.c.l.b16 %v183
  %v1174 = vunpack.c.h.b16 %v183
  %v1175 = vunpack.c.l.b16 %v184
  %v1176 = vunpack.c.h.b16 %v184
  %v1177 = vunpack.c.l.b16 %v185
  %v1178 = vunpack.c.h.b16 %v185
  %v1179 = vunpack.c.l.b16 %v186
  %v1180 = vunpack.c.h.b16 %v186
  %v1181 = vunpack.c.l.b16 %v187
  %v1182 = vunpack.c.h.b16 %v187
  %v1183 = vunpack.c.l.b16 %v188
  %v1184 = vunpack.c.h.b16 %v188
  %v1185 = vunpack.c.l.b16 %v189
  %v1186 = vunpack.c.h.b16 %v189
  %v1187 = vunpack.c.l.b16 %v190
  %v1188 = vunpack.c.h.b16 %v190
  %v1189 = vunpack.c.l.b16 %v191
  %v1190 = vunpack.c.h.b16 %v191
  %v1191 = vunpack.c.l.b16 %v192
  %v1192 = vunpack.c.h.b16 %v192
  %v1193 = vunpack.c.l.b16 %v193
  %v1194 = vunpack.c.h.b16 %v193
  %v1195 = vunpack.c.l.b16 %v194
  %v1196 = vunpack.c.h.b16 %v194
  %v1197 = vunpack.c.l.b16 %v195
  %v1198 = vunpack.c.h.b16 %v195
  %v1199 = vunpack.c.l.b16 %v196
  %v1200 = vunpack.c.h.b16 %v196
  %v1201 = vunpack.c.l.b16 %v197
  %v1202 = vunpack.c.h.b16 %v197
  %v1203 = vunpack.c.l.b16 %v198
  %v1204 = vunpack.c.h.b16 %v198
  %v1205 = vunpack.c.l.b16 %v199
  %v1206 = vunpack.c.h.b16 %v199
  %v1207 = vunpack.c.l.b16 %v200
  %v1208 = vunpack.c.h.b16 %v200
  %v1209 = vunpack.c.l.b16 %v201
  %v1210 = vunpack.c.h.b16 %v201
  %v1211 = vunpack.c.l.b16 %v202
  %v1212 = vunpack.c.h.b16 %v202
  %v1213 = vunpack.c.l.b16 %v203
  %v1214 = vunpack.c.h.b16 %v203
  %v1215 = vunpack.c.l.b16 %v204
  %v1216 = vunpack.c.h.b16 %v204
  %v1217 = vunpack.c.l.b16 %v205
  %v1218 = vunpack.c.h.b16 %v205
  %v1219 = vunpack.c.l.b16 %v206
  %v1220 = vunpack.c.h.b16 %v206
  %v1221 = vunpack.c.l.b16 %v207
  %v1222 = vunpack.c.h.b16 %v207
  %v1223 = vunpack.c.l.b16 %v208
  %v1224 = vunpack.c.h.b16 %v208
  %v1225 = vunpack.c.l.b16 %v209
  %v1226 = vunpack.c.h.b16 %v209
  %v1227 = vunpack.c.l.b16 %v210
  %v1228 = vunpack.c.h.b16 %v210
  %v1229 = vunpack.c.l.b16 %v211
  %v1230 = vunpack.c.h.b16 %v211
  %v1231 = vunpack.c.l.b16 %v212
  %v1232 = vunpack.c.h.b16 %v212
  %v1233 = vunpack.c.l.b16 %v213
  %v1234 = vunpack.c.h.b16 %v213
  %v1235 = vunpack.c.l.b16 %v214
  %v1236 = vunpack.c.h.b16 %v214
  %v1237 = vunpack.c.l.b16 %v215
  %v1238 = vunpack.c.h.b16 %v215
  %v1239 = vunpack.c.l.b16 %v216
  %v1240 = vunpack.c.h.b16 %v216
  %v1241 = vunpack.c.l.b16 %v217
  %v1242 = vunpack.c.h.b16 %v217
  %v1243 = vunpack.c.l.b16 %v218
  %v1244 = vunpack.c.h.b16 %v218
  %v1245 = vunpack.c.l.b16 %v219
  %v1246 = vunpack.c.h.b16 %v219
  %v1247 = vunpack.c.l.b16 %v220
  %v1248 = vunpack.c.h.b16 %v220
  %v1249 = vunpack.c.l.b16 %v221
  %v1250 = vunpack.c.h.b16 %v221
  %v1251 = vunpack.c.l.b16 %v222
  %v1252 = vunpack.c.h.b16 %v222
  %v1253 = vunpack.c.l.b16 %v223
  %v1254 = vunpack.c.h.b16 %v223
  %v1255 = vunpack.c.l.b16 %v224
  %v1256 = vunpack.c.h.b16 %v224
  %v1257 = vunpack.c.l.b16 %v225
  %v1258 = vunpack.c.h.b16 %v225
  %v1259 = vunpack.c.l.b16 %v226
  %v1260 = vunpack.c.h.b16 %v226
  %v1261 = vunpack.c.l.b16 %v227
  %v1262 = vunpack.c.h.b16 %v227
  %v1263 = vunpack.c.l.b16 %v228
  %v1264 = vunpack.c.h.b16 %v228
  %v1265 = vunpack.c.l.b16 %v229
  %v1266 = vunpack.c.h.b16 %v229
  %v1267 = vunpack.c.l.b16 %v230
  %v1268 = vunpack.c.h.b16 %v230
  %v1269 = vunpack.c.l.b16 %v231
  %v1270 = vunpack.c.h.b16 %v231
  %v1271 = vunpack.c.l.b16 %v232
  %v1272 = vunpack.c.h.b16 %v232
  %v1273 = vunpack.c.l.b16 %v233
  %v1274 = vunpack.c.h.b16 %v233
  %v1275 = vunpack.c.l.b16 %v234
  %v1276 = vunpack.c.h.b16 %v234
  %v1277 = vunpack.c.l.b16 %v235
  %v1278 = vunpack.c.h.b16 %v235
  %v1279 = vunpack.c.l.b16 %v236
  %v1280 = vunpack.c.h.b16 %v236
  %v1281 = vunpack.c.l.b16 %v237
  %v1282 = vunpack.c.h.b16 %v237
  %v1283 = vunpack.c.l.b16 %v238
  %v1284 = vunpack.c.h.b16 %v238
  %v1285 = vunpack.c.l.b16 %v239
  %v1286 = vunpack.c.h.b16 %v239
  %v1287 = vunpack.c.l.b16 %v240
  %v1288 = vunpack.c.h.b16 %v240
  %v1289 = vunpack.c.l.b16 %v241
  %v1290 = vunpack.c.h.b16 %v241
  %v1291 = vunpack.c.l.b16 %v242
  %v1292 = vunpack.c.h.b16 %v242
  %v1293 = vunpack.c.l.b16 %v243
  %v1294 = vunpack.c.h.b16 %v243
  %v1295 = vunpack.c.l.b16 %v244
  %v1296 = vunpack.c.h.b16 %v244
  %v1297 = vunpack.c.l.b16 %v245
  %v1298 = vunpack.c.h.b16 %v245
  %v1299 = vunpack.c.l.b16 %v246
  %v1300 = vunpack.c.h.b16 %v246
  %v1301 = vunpack.c.l.b16 %v247
  %v1302 = vunpack.c.h.b16 %v247
  %v1303 = vunpack.c.l.b16 %v248
  %v1304 = vunpack.c.h.b16 %v248
  %v1305 = vunpack.c.l.b16 %v249
  %v1306 = vunpack.c.h.b16 %v249
  %v1307 = vunpack.c.l.b16 %v250
  %v1308 = vunpack.c.h.b16 %v250
  %v1309 = vunpack.c.l.b16 %v251
  %v1310 = vunpack.c.h.b16 %v251
  %v1311 = vunpack.c.l.b16 %v252
  %v1312 = vunpack.c.h.b16 %v252
  %v1313 = vunpack.c.l.b16 %v253
  %v1314 = vunpack.c.h.b16 %v253
  %v1315 = vunpack.c.l.b16 %v254
  %v1316 = vunpack.c.h.b16 %v254
  %v1317 = vunpack.c.l.b16 %v255
  %v1318 = vunpack.c.h.b16 %v255
  %v1319 = vunpack.c.l.b16 %v256
  %v1320 = vunpack.c.h.b16 %v256
  %v1321 = vunpack.c.l.b16 %v257
  %v1322 = vunpack.c.h.b16 %v257
  %v1323 = vunpack.c.l.b16 %v258
  %v1324 = vunpack.c.h.b16 %v258
  %v1325 = vunpack.c.l.b16 %v259
  %v1326 = vunpack.c.h.b16 %v259
  %v1327 = vunpack.c.l.b16 %v260
  %v1328 = vunpack.c.h.b16 %v260
  %v1329 = vunpack.c.l.b16 %v261
  %v1330 = vunpack.c.h.b16 %v261
  %v1331 = vunpack.c.l.b16 %v262
  %v1332 = vunpack.c.h.b16 %v262
  %v1333 = vunpack.c.l.b16 %v263
  %v1334 = vunpack.c.h.b16 %v263
  %v1335 = vunpack.c.l.b16 %v264
  %v1336 = vunpack.c.h.b16 %v264
  %v1337 = vunpack.c.l.b16 %v265
  %v1338 = vunpack.c.h.b16 %v265
  %v1339 = vunpack.c.l.b16 %v266
  %v1340 = vunpack.c.h.b16 %v266
  %v1341 = vunpack.c.l.b16 %v267
  %v1342 = vunpack.c.h.b16 %v267
  %v1343 = vunpack.c.l.b16 %v268
  %v1344 = vunpack.c.h.b16 %v268
  %v1345 = vunpack.c.l.b16 %v269
  %v1346 = vunpack.c.h.b16 %v269
  %v1347 = vunpack.c.l.b16 %v270
  %v1348 = vunpack.c.h.b16 %v270
  %v1349 = vunpack.c.l.b16 %v271
  %v1350 = vunpack.c.h.b16 %v271
  %v1351 = vunpack.c.l.b16 %v272
  %v1352 = vunpack.c.h.b16 %v272
  %v1353 = vunpack.c.l.b16 %v273
  %v1354 = vunpack.c.h.b16 %v273
  %v1355 = vunpack.c.l.b16 %v274
  %v1356 = vunpack.c.h.b16 %v274
  %v1357 = vunpack.c.l.b16 %v275
  %v1358 = vunpack.c.h.b16 %v275
  %v1359 = vunpack.c.l.b16 %v276
  %v1360 = vunpack.c.h.b16 %v276
  %v1361 = vunpack.c.l.b16 %v277
  %v1362 = vunpack.c.h.b16 %v277
  %v1363 = vunpack.c.l.b16 %v278
  %v1364 = vunpack.c.h.b16 %v278
  %v1365 = vunpack.c.l.b16 %v279
  %v1366 = vunpack.c.h.b16 %v279
  %v1367 = vunpack.c.l.b16 %v280
  %v1368 = vunpack.c.h.b16 %v280
  %v1369 = vunpack.c.l.b16 %v281
  %v1370 = vunpack.c.h.b16 %v281
  %v1371 = vunpack.c.l.b16 %v282
  %v1372 = vunpack.c.h.b16 %v282
  %v1373 = vunpack.c.l.b16 %v283
  %v1374 = vunpack.c.h.b16 %v283
  %v1375 = vunpack.c.l.b16 %v284
  %v1376 = vunpack.c.h.b16 %v284
  %v1377 = vunpack.c.l.b16 %v285
  %v1378 = vunpack.c.h.b16 %v285
  %v1379 = vunpack.c.l.b16 %v286
  %v1380 = vunpack.c.h.b16 %v286
  %v1381 = vunpack.c.l.b16 %v287
  %v1382 = vunpack.c.h.b16 %v287
  %v1383 = vunpack.c.l.b16 %v288
  %v1384 = vunpack.c.h.b16 %v288
  %v1385 = vunpack.c.l.b16 %v289
  %v1386 = vunpack.c.h.b16 %v289
  %v1387 = vunpack.c.l.b16 %v290
  %v1388 = vunpack.c.h.b16 %v290
  %v1389 = vunpack.c.l.b16 %v291
  %v1390 = vunpack.c.h.b16 %v291
  %v1391 = vunpack.c.l.b16 %v292
  %v1392 = vunpack.c.h.b16 %v292
  %v1393 = vunpack.c.l.b16 %v293
  %v1394 = vunpack.c.h.b16 %v293
  %v1395 = vunpack.c.l.b16 %v294
  %v1396 = vunpack.c.h.b16 %v294
  %v1397 = vunpack.c.l.b16 %v295
  %v1398 = vunpack.c.h.b16 %v295
  %v1399 = vunpack.c.l.b16 %v296
  %v1400 = vunpack.c.h.b16 %v296
  %v1401 = vunpack.c.l.b16 %v297
  %v1402 = vunpack.c.h.b16 %v297
  %v1403 = vunpack.c.l.b16 %v298
  %v1404 = vunpack.c.h.b16 %v298
  %v1405 = vunpack.c.l.b16 %v299
  %v1406 = vunpack.c.h.b16 %v299
  %v1407 = vunpack.c.l.b16 %v300
  %v1408 = vunpack.c.h.b16 %v300
  %v1409 = vunpack.c.l.b16 %v301
  %v1410 = vunpack.c.h.b16 %v301
  %v1411 = vunpack.c.l.b16 %v302
  %v1412 = vunpack.c.h.b16 %v302
  %v1413 = vunpack.c.l.b16 %v303
  %v1414 = vunpack.c.h.b16 %v303
  %v1415 = vunpack.c.l.b16 %v304
  %v1416 = vunpack.c.h.b16 %v304
  %v1417 = vunpack.c.l.b16 %v305
  %v1418 = vunpack.c.h.b16 %v305
  %v1419 = vunpack.c.l.b16 %v306
  %v1420 = vunpack.c.h.b16 %v306
  %v1421 = vunpack.c.l.b16 %v307
  %v1422 = vunpack.c.h.b16 %v307
  %v1423 = vunpack.c.l.b16 %v308
  %v1424 = vunpack.c.h.b16 %v308
  %v1425 = vunpack.c.l.b16 %v309
  %v1426 = vunpack.c.h.b16 %v309
  %v1427 = vunpack.c.l.b16 %v310
  %v1428 = vunpack.c.h.b16 %v310
  %v1429 = vunpack.c.l.b16 %v311
  %v1430 = vunpack.c.h.b16 %v311
  %v1431 = vunpack.c.l.b16 %v312
  %v1432 = vunpack.c.h.b16 %v312
  %v1433 = vunpack.c.l.b16 %v313
  %v1434 = vunpack.c.h.b16 %v313
  %v1435 = vunpack.c.l.b16 %v314
  %v1436 = vunpack.c.h.b16 %v314
  %v1437 = vunpack.c.l.b16 %v315
  %v1438 = vunpack.c.h.b16 %v315
  %v1439 = vunpack.c.l.b16 %v316
  %v1440 = vunpack.c.h.b16 %v316
  %v1441 = vunpack.c.l.b16 %v317
  %v1442 = vunpack.c.h.b16 %v317
  %v1443 = vunpack.c.l.b16 %v318
  %v1444 = vunpack.c.h.b16 %v318
  %v1445 = vunpack.c.l.b16 %v319
  %v1446 = vunpack.c.h.b16 %v319
  %v1447 = vunpack.c.l.b16 %v320
  %v1448 = vunpack.c.h.b16 %v320
  %v1449 = vunpack.c.l.b16 %v321
  %v1450 = vunpack.c.h.b16 %v321
  %v1451 = vunpack.c.l.b16 %v322
  %v1452 = vunpack.c.h.b16 %v322
  %v1453 = vunpack.c.l.b16 %v323
  %v1454 = vunpack.c.h.b16 %v323
  %v1455 = vunpack.c.l.b16 %v324
  %v1456 = vunpack.c.h.b16 %v324
  %v1457 = vunpack.c.l.b16 %v325
  %v1458 = vunpack.c.h.b16 %v325
  %v1459 = vunpack.c.l.b16 %v326
  %v1460 = vunpack.c.h.b16 %v326
  %v1461 = vunpack.c.l.b16 %v327
  %v1462 = vunpack.c.h.b16 %v327
  %v1463 = vunpack.c.l.b16 %v328
  %v1464 = vunpack.c.h.b16 %v328
  %v1465 = vunpack.c.l.b16 %v329
  %v1466 = vunpack.c.h.b16 %v329
  %v1467 = vunpack.c.l.b16 %v330
  %v1468 = vunpack.c.h.b16 %v330
  %v1469 = vunpack.c.l.b16 %v331
  %v1470 = vunpack.c.h.b16 %v331
  %v1471 = vunpack.c.l.b16 %v332
  %v1472 = vunpack.c.h.b16 %v332
  %v1473 = vunpack.c.l.b16 %v333
  %v1474 = vunpack.c.h.b16 %v333
  %v1475 = vunpack.c.l.b16 %v334
  %v1476 = vunpack.c.h.b16 %v334
  %v1477 = vunpack.c.l.b16 %v335
  %v1478 = vunpack.c.h.b16 %v335
  %v1479 = vunpack.c.l.b16 %v336
  %v1480 = vunpack.c.h.b16 %v336
  %v1481 = vunpack.c.l.b16 %v337
  %v1482 = vunpack.c.h.b16 %v337
  %v1483 = vunpack.c.l.b16 %v338
  %v1484 = vunpack.c.h.b16 %v338
  %v1485 = vunpack.c.l.b16 %v339
  %v1486 = vunpack.c.h.b16 %v339
  %v1487 = vunpack.c.l.b16 %v340
  %v1488 = vunpack.c.h.b16 %v340
  %v1489 = vunpack.c.l.b16 %v341
  %v1490 = vunpack.c.h.b16 %v341
  %v1491 = vunpack.c.l.b16 %v342
  %v1492 = vunpack.c.h.b16 %v342
  %v1493 = vunpack.c.l.b16 %v343
  %v1494 = vunpack.c.h.b16 %v343
  %v1495 = vunpack.c.l.b16 %v344
  %v1496 = vunpack.c.h.b16 %v344
  %v1497 = vunpack.c.l.b16 %v345
  %v1498 = vunpack.c.h.b16 %v345
  %v1499 = vunpack.c.l.b16 %v346
  %v1500 = vunpack.c.h.b16 %v346
  %v1501 = vunpack.c.l.b16 %v347
  %v1502 = vunpack.c.h.b16 %v347
  %v1503 = vunpack.c.l.b16 %v348
  %v1504 = vunpack.c.h.b16 %v348
  %v1505 = vunpack.c.l.b16 %v349
  %v1506 = vunpack.c.h.b16 %v349
  %v1507 = vunpack.c.l.b16 %v350
  %v1508 = vunpack.c.h.b16 %v350
  %v1509 = vunpack.c.l.b16 %v351
  %v1510 = vunpack.c.h.b16 %v351
  %v1511 = vunpack.c.l.b16 %v352
  %v1512 = vunpack.c.h.b16 %v352
  %v1513 = vunpack.c.l.b16 %v353
  %v1514 = vunpack.c.h.b16 %v353
  %v1515 = vunpack.c.l.b16 %v354
  %v1516 = vunpack.c.h.b16 %v354
  %v1517 = vunpack.c.l.b16 %v355
  %v1518 = vunpack.c.h.b16 %v355
  %v1519 = vunpack.c.l.b16 %v356
  %v1520 = vunpack.c.h.b16 %v356
  %v1521 = vunpack.c.l.b16 %v357
  %v1522 = vunpack.c.h.b16 %v357
  %v1523 = vunpack.c.l.b16 %v358
  %v1524 = vunpack.c.h.b16 %v358
  %v1525 = vunpack.c.l.b16 %v359
  %v1526 = vunpack.c.h.b16 %v359
  %v1527 = vunpack.c.l.b16 %v360
  %v1528 = vunpack.c.h.b16 %v360
  %v1529 = vunpack.c.l.b16 %v361
  %v1530 = vunpack.c.h.b16 %v361
  %v1531 = vunpack.c.l.b16 %v362
  %v1532 = vunpack.c.h.b16 %v362
  %v1533 = vunpack.c.l.b16 %v363
  %v1534 = vunpack.c.h.b16 %v363
  %v1535 = vunpack.c.l.b16 %v364
  %v1536 = vunpack.c.h.b16 %v364
  %v1537 = vunpack.c.l.b16 %v365
  %v1538 = vunpack.c.h.b16 %v365
  %v1539 = vunpack.c.l.b16 %v366
  %v1540 = vunpack.c.h.b16 %v366
  %v1541 = vunpack.c.l.b16 %v367
  %v1542 = vunpack.c.h.b16 %v367
  %v1543 = vunpack.c.l.b16 %v368
  %v1544 = vunpack.c.h.b16 %v368
  %v1545 = vunpack.c.l.b16 %v369
  %v1546 = vunpack.c.h.b16 %v369
  %v1547 = vunpack.c.l.b16 %v370
  %v1548 = vunpack.c.h.b16 %v370
  %v1549 = vunpack.c.l.b16 %v371
  %v1550 = vunpack.c.h.b16 %v371
  %v1551 = vunpack.c.l.b16 %v372
  %v1552 = vunpack.c.h.b16 %v372
  %v1553 = vunpack.c.l.b16 %v373
  %v1554 = vunpack.c.h.b16 %v373
  %v1555 = vunpack.c.l.b16 %v374
  %v1556 = vunpack.c.h.b16 %v374
  %v1557 = vunpack.c.l.b16 %v375
  %v1558 = vunpack.c.h.b16 %v375
  %v1559 = vunpack.c.l.b16 %v376
  %v1560 = vunpack.c.h.b16 %v376
  %v1561 = vunpack.c.l.b16 %v377
  %v1562 = vunpack.c.h.b16 %v377
  %v1563 = vunpack.c.l.b16 %v378
  %v1564 = vunpack.c.h.b16 %v378
  %v1565 = vunpack.c.l.b16 %v379
  %v1566 = vunpack.c.h.b16 %v379
  %v1567 = vunpack.c.l.b16 %v380
  %v1568 = vunpack.c.h.b16 %v380
  %v1569 = vunpack.c.l.b16 %v381
  %v1570 = vunpack.c.h.b16 %v381
  %v1571 = vunpack.c.l.b16 %v382
  %v1572 = vunpack.c.h.b16 %v382
  %v1573 = vunpack.c.l.b16 %v383
  %v1574 = vunpack.c.h.b16 %v383
  %v1575 = vunpack.c.l.b16 %v384
  %v1576 = vunpack.c.h.b16 %v384
  %v1577 = vunpack.c.l.b16 %v385
  %v1578 = vunpack.c.h.b16 %v385
  %v1579 = vunpack.c.l.b16 %v386
  %v1580 = vunpack.c.h.b16 %v386
  %v1581 = vunpack.c.l.b16 %v387
  %v1582 = vunpack.c.h.b16 %v387
  %v1583 = vunpack.c.l.b16 %v388
  %v1584 = vunpack.c.h.b16 %v388
  %v1585 = vunpack.c.l.b16 %v389
  %v1586 = vunpack.c.h.b16 %v389
  %v1587 = vunpack.c.l.b16 %v390
  %v1588 = vunpack.c.h.b16 %v390
  %v1589 = vunpack.c.l.b16 %v391
  %v1590 = vunpack.c.h.b16 %v391
  %v1591 = vunpack.c.l.b16 %v392
  %v1592 = vunpack.c.h.b16 %v392
  %v1593 = vunpack.c.l.b16 %v393
  %v1594 = vunpack.c.h.b16 %v393
  %v1595 = vunpack.c.l.b16 %v394
  %v1596 = vunpack.c.h.b16 %v394
  %v1597 = vunpack.c.l.b16 %v395
  %v1598 = vunpack.c.h.b16 %v395
  %v1599 = vunpack.c.l.b16 %v396
  %v1600 = vunpack.c.h.b16 %v396
  %v1601 = vunpack.c.l.b16 %v397
  %v1602 = vunpack.c.h.b16 %v397
  %v1603 = vunpack.c.l.b16 %v398
  %v1604 = vunpack.c.h.b16 %v398
  %v1605 = vunpack.c.l.b16 %v399
  %v1606 = vunpack.c.h.b16 %v399
  %v1607 = vunpack.c.l.b16 %v400
  %v1608 = vunpack.c.h.b16 %v400
  %v1609 = vunpack.c.l.b16 %v401
  %v1610 = vunpack.c.h.b16 %v401
  %v1611 = vunpack.c.l.b16 %v402
  %v1612 = vunpack.c.h.b16 %v402
  %v1613 = vunpack.c.l.b16 %v403
  %v1614 = vunpack.c.h.b16 %v403
  %v1615 = vunpack.c.l.b16 %v404
  %v1616 = vunpack.c.h.b16 %v404
  %v1617 = vunpack.c.l.b16 %v405
  %v1618 = vunpack.c.h.b16 %v405
  %v1619 = vunpack.c.l.b16 %v406
  %v1620 = vunpack.c.h.b16 %v406
  %v1621 = vunpack.c.l.b16 %v407
  %v1622 = vunpack.c.h.b16 %v407
  %v1623 = vunpack.c.l.b16 %v408
  %v1624 = vunpack.c.h.b16 %v408
  %v1625 = vpack.c.b16 %v861, %v857
  %v1626 = vpack.c.b16 %v862, %v858
  %v1627 = vpack.c.b16 %v863, %v859
  %v1628 = vpack.c.b16 %v864, %v860
  %v1629 = vpack.c.b16 %v869, %v865
  %v1630 = vpack.c.b16 %v870, %v866
  %v1631 = vpack.c.b16 %v871, %v867
  %v1632 = vpack.c.b16 %v872, %v868
  %v1633 = vpack.c.b16 %v877, %v873
  %v1634 = vpack.c.b16 %v878, %v874
  %v1635 = vpack.c.b16 %v879, %v875
  %v1636 = vpack.c.b16 %v880, %v876
  %v1637 = vpack.c.b16 %v885, %v881
  %v1638 = vpack.c.b16 %v886, %v882
  %v1639 = vpack.c.b16 %v887, %v883
  %v1640 = vpack.c.b16 %v888, %v884
  %v1641 = vpack.c.b16 %v893, %v889
  %v1642 = vpack.c.b16 %v894, %v890
  %v1643 = vpack.c.b16 %v895, %v891
  %v1644 = vpack.c.b16 %v896, %v892
  %v1645 = vpack.c.b16 %v901, %v897
  %v1646 = vpack.c.b16 %v902, %v898
  %v1647 = vpack.c.b16 %v903, %v899
  %v1648 = vpack.c.b16 %v904, %v900
  %v1649 = vpack.c.b16 %v909, %v905
  %v1650 = vpack.c.b16 %v910, %v906
  %v1651 = vpack.c.b16 %v911, %v907
  %v1652 = vpack.c.b16 %v912, %v908
  %v1653 = vpack.c.b16 %v917, %v913
  %v1654 = vpack.c.b16 %v918, %v914
  %v1655 = vpack.c.b16 %v919, %v915
  %v1656 = vpack.c.b16 %v920, %v916
  %v1657 = vpack.c.b16 %v925, %v921
  %v1658 = vpack.c.b16 %v926, %v922
  %v1659 = vpack.c.b16 %v927, %v923
  %v1660 = vpack.c.b16 %v928, %v924
  %v1661 = vpack.c.b16 %v933, %v929
  %v1662 = vpack.c.b16 %v934, %v930
  %v1663 = vpack.c.b16 %v935, %v931
  %v1664 = vpack.c.b16 %v936, %v932
  %v1665 = vpack.c.b16 %v941, %v937
  %v1666 = vpack.c.b16 %v942, %v938
  %v1667 = vpack.c.b16 %v943, %v939
  %v1668 = vpack.c.b16 %v944, %v940
  %v1669 = vpack.c.b16 %v949, %v945
  %v1670 = vpack.c.b16 %v950, %v946
  %v1671 = vpack.c.b16 %v951, %v947
  %v1672 = vpack.c.b16 %v952, %v948
  %v1673 = vpack.c.b16 %v957, %v953
  %v1674 = vpack.c.b16 %v958, %v954
  %v1675 = vpack.c.b16 %v959, %v955
  %v1676 = vpack.c.b16 %v960, %v956
  %v1677 = vpack.c.b16 %v965, %v961
  %v1678 = vpack.c.b16 %v966, %v962
  %v1679 = vpack.c.b16 %v967, %v963
  %v1680 = vpack.c.b16 %v968, %v964
  %v1681 = vpack.c.b16 %v973, %v969
  %v1682 = vpack.c.b16 %v974, %v970
  %v1683 = vpack.c.b16 %v975, %v971
  %v1684 = vpack.c.b16 %v976, %v972
  %v1685 = vpack.c.b16 %v981, %v977
  %v1686 = vpack.c.b16 %v982, %v978
  %v1687 = vpack.c.b16 %v983, %v979
  %v1688 = vpack.c.b16 %v984, %v980
  %v1689 = vpack.c.b16 %v989, %v985
  %v1690 = vpack.c.b16 %v990, %v986
  %v1691 = vpack.c.b16 %v991, %v987
  %v1692 = vpack.c.b16 %v992, %v988
  %v1693 = vpack.c.b16 %v997, %v993
  %v1694 = vpack.c.b16 %v998, %v994
  %v1695 = vpack.c.b16 %v999, %v995
  %v1696 = vpack.c.b16 %v1000, %v996
  %v1697 = vpack.c.b16 %v1005, %v1001
  %v1698 = vpack.c.b16 %v1006, %v1002
  %v1699 = vpack.c.b16 %v1007, %v1003
  %v1700 = vpack.c.b16 %v1008, %v1004
  %v1701 = vpack.c.b16 %v1013, %v1009
  %v1702 = vpack.c.b16 %v1014, %v1010
  %v1703 = vpack.c.b16 %v1015, %v1011
  %v1704 = vpack.c.b16 %v1016, %v1012
  %v1705 = vpack.c.b16 %v1021, %v1017
  %v1706 = vpack.c.b16 %v1022, %v1018
  %v1707 = vpack.c.b16 %v1023, %v1019
  %v1708 = vpack.c.b16 %v1024, %v1020
  %v1709 = vpack.c.b16 %v1029, %v1025
  %v1710 = vpack.c.b16 %v1030, %v1026
  %v1711 = vpack.c.b16 %v1031, %v1027
  %v1712 = vpack.c.b16 %v1032, %v1028
  %v1713 = vpack.c.b16 %v1037, %v1033
  %v1714 = vpack.c.b16 %v1038, %v1034
  %v1715 = vpack.c.b16 %v1039, %v1035
  %v1716 = vpack.c.b16 %v1040, %v1036
  %v1717 = vpack.c.b16 %v1045, %v1041
  %v1718 = vpack.c.b16 %v1046, %v1042
  %v1719 = vpack.c.b16 %v1047, %v1043
  %v1720 = vpack.c.b16 %v1048, %v1044
  %v1721 = vpack.c.b16 %v1053, %v1049
  %v1722 = vpack.c.b16 %v1054, %v1050
  %v1723 = vpack.c.b16 %v1055, %v1051
  %v1724 = vpack.c.b16 %v1056, %v1052
  %v1725 = vpack.c.b16 %v1061, %v1057
  %v1726 = vpack.c.b16 %v1062, %v1058
  %v1727 = vpack.c.b16 %v1063, %v1059
  %v1728 = vpack.c.b16 %v1064, %v1060
  %v1729 = vpack.c.b16 %v1069, %v1065
  %v1730 = vpack.c.b16 %v1070, %v1066
  %v1731 = vpack.c.b16 %v1071, %v1067
  %v1732 = vpack.c.b16 %v1072, %v1068
  %v1733 = vpack.c.b16 %v1077, %v1073
  %v1734 = vpack.c.b16 %v1078, %v1074
  %v1735 = vpack.c.b16 %v1079, %v1075
  %v1736 = vpack.c.b16 %v1080, %v1076
  %v1737 = vpack.c.b16 %v1085, %v1081
  %v1738 = vpack.c.b16 %v1086, %v1082
  %v1739 = vpack.c.b16 %v1087, %v1083
  %v1740 = vpack.c.b16 %v1088, %v1084
  %v1741 = vpack.c.b16 %v1093, %v1089
  %v1742 = vpack.c.b16 %v1094, %v1090
  %v1743 = vpack.c.b16 %v1095, %v1091
  %v1744 = vpack.c.b16 %v1096, %v1092
  %v1745 = vpack.c.b16 %v1101, %v1097
  %v1746 = vpack.c.b16 %v1102, %v1098
  %v1747 = vpack.c.b16 %v1103, %v1099
  %v1748 = vpack.c.b16 %v1104, %v1100
  %v1749 = vpack.c.b16 %v1109, %v1105
  %v1750 = vpack.c.b16 %v1110, %v1106
  %v1751 = vpack.c.b16 %v1111, %v1107
  %v1752 = vpack.c.b16 %v1112, %v1108
  %v1753 = vpack.c.b16 %v1117, %v1113
  %v1754 = vpack.c.b16 %v1118, %v1114
  %v1755 = vpack.c.b16 %v1119, %v1115
  %v1756 = vpack.c.b16 %v1120, %v1116
  %v1757 = vpack.c.b16 %v1125, %v1121
  %v1758 = vpack.c.b16 %v1126, %v1122
  %v1759 = vpack.c.b16 %v1127, %v1123
  %v1760 = vpack.c.b16 %v1128, %v1124
  %v1761 = vpack.c.b16 %v1133, %v1129
  %v1762 = vpack.c.b16 %v1134, %v1130
  %v1763 = vpack.c.b16 %v1135, %v1131
  %v1764 = vpack.c.b16 %v1136, %v1132
  %v1765 = vpack.c.b16 %v1141, %v1137
  %v1766 = vpack.c.b16 %v1142, %v1138
  %v1767 = vpack.c.b16 %v1143, %v1139
  %v1768 = vpack.c.b16 %v1144, %v1140
  %v1769 = vpack.c.b16 %v1149, %v1145
  %v1770 = vpack.c.b16 %v1150, %v1146
  %v1771 = vpack.c.b16 %v1151, %v1147
  %v1772 = vpack.c.b16 %v1152, %v1148
  %v1773 = vpack.c.b16 %v1157, %v1153
  %v1774 = vpack.c.b16 %v1158, %v1154
  %v1775 = vpack.c.b16 %v1159, %v1155
  %v1776 = vpack.c.b16 %v1160, %v1156
  %v1777 = vpack.c.b16 %v1165, %v1161
  %v1778 = vpack.c.b16 %v1166, %v1162
  %v1779 = vpack.c.b16 %v1167, %v1163
  %v1780 = vpack.c.b16 %v1168, %v1164
  %v1781 = vpack.c.b16 %v1173, %v1169
  %v1782 = vpack.c.b16 %v1174, %v1170
  %v1783 = vpack.c.b16 %v1175, %v1171
  %v1784 = vpack.c.b16 %v1176, %v1172
  %v1785 = vpack.c.b16 %v1181, %v1177
  %v1786 = vpack.c.b16 %v1182, %v1178
  %v1787 = vpack.c.b16 %v1183, %v1179
  %v1788 = vpack.c.b16 %v1184, %v1180
  %v1789 = vpack.c.b16 %v1189, %v1185
  %v1790 = vpack.c.b16 %v1190, %v1186
  %v1791 = vpack.c.b16 %v1191, %v1187
  %v1792 = vpack.c.b16 %v1192, %v1188
  %v1793 = vpack.c.b16 %v1197, %v1193
  %v1794 = vpack.c.b16 %v1198, %v1194
  %v1795 = vpack.c.b16 %v1199, %v1195
  %v1796 = vpack.c.b16 %v1200, %v1196
  %v1797 = vpack.c.b16 %v1205, %v1201
  %v1798 = vpack.c.b16 %v1206, %v1202
  %v1799 = vpack.c.b16 %v1207, %v1203
  %v1800 = vpack.c.b16 %v1208, %v1204
  %v1801 = vpack.c.b16 %v1213, %v1209
  %v1802 = vpack.c.b16 %v1214, %v1210
  %v1803 = vpack.c.b16 %v1215, %v1211
  %v1804 = vpack.c.b16 %v1216, %v1212
  %v1805 = vpack.c.b16 %v1221, %v1217
  %v1806 = vpack.c.b16 %v1222, %v1218
  %v1807 = vpack.c.b16 %v1223, %v1219
  %v1808 = vpack.c.b16 %v1224, %v1220
  %v1809 = vpack.c.b16 %v1229, %v1225
  %v1810 = vpack.c.b16 %v1230, %v1226
  %v1811 = vpack.c.b16 %v1231, %v1227
  %v1812 = vpack.c.b16 %v1232, %v1228
  %v1813 = vpack.c.b16 %v1237, %v1233
  %v1814 = vpack.c.b16 %v1238, %v1234
  %v1815 = vpack.c.b16 %v1239, %v1235
  %v1816 = vpack.c.b16 %v1240, %v1236
  %v1817 = vpack.c.b16 %v1245, %v1241
  %v1818 = vpack.c.b16 %v1246, %v1242
  %v1819 = vpack.c.b16 %v1247, %v1243
  %v1820 = vpack.c.b16 %v1248, %v1244
  %v1821 = vpack.c.b16 %v1253, %v1249
  %v1822 = vpack.c.b16 %v1254, %v1250
  %v1823 = vpack.c.b16 %v1255, %v1251
  %v1824 = vpack.c.b16 %v1256, %v1252
  %v1825 = vpack.c.b16 %v1261, %v1257
  %v1826 = vpack.c.b16 %v1262, %v1258
  %v1827 = vpack.c.b16 %v1263, %v1259
  %v1828 = vpack.c.b16 %v1264, %v1260
  %v1829 = vpack.c.b16 %v1269, %v1265
  %v1830 = vpack.c.b16 %v1270, %v1266
  %v1831 = vpack.c.b16 %v1271, %v1267
  %v1832 = vpack.c.b16 %v1272, %v1268
  %v1833 = vpack.c.b16 %v1277, %v1273
  %v1834 = vpack.c.b16 %v1278, %v1274
  %v1835 = vpack.c.b16 %v1279, %v1275
  %v1836 = vpack.c.b16 %v1280, %v1276
  %v1837 = vpack.c.b16 %v1285, %v1281
  %v1838 = vpack.c.b16 %v1286, %v1282
  %v1839 = vpack.c.b16 %v1287, %v1283
  %v1840 = vpack.c.b16 %v1288, %v1284
  %v1841 = vpack.c.b16 %v1293, %v1289
  %v1842 = vpack.c.b16 %v1294, %v1290
  %v1843 = vpack.c.b16 %v1295, %v1291
  %v1844 = vpack.c.b16 %v1296, %v1292
  %v1845 = vpack.c.b16 %v1301, %v1297
  %v1846 = vpack.c.b16 %v1302, %v1298
  %v1847 = vpack.c.b16 %v1303, %v1299
  %v1848 = vpack.c.b16 %v1304, %v1300
  %v1849 = vpack.c.b16 %v1309, %v1305
  %v1850 = vpack.c.b16 %v1310, %v1306
  %v1851 = vpack.c.b16 %v1311, %v1307
  %v1852 = vpack.c.b16 %v1312, %v1308
  %v1853 = vpack.c.b16 %v1317, %v1313
  %v1854 = vpack.c.b16 %v1318, %v1314
  %v1855 = vpack.c.b16 %v1319, %v1315
  %v1856 = vpack.c.b16 %v1320, %v1316
  %v1857 = vpack.c.b16 %v1325, %v1321
  %v1858 = vpack.c.b16 %v1326, %v1322
  %v1859 = vpack.c.b16 %v1327, %v1323
  %v1860 = vpack.c.b16 %v1328, %v1324
  %v1861 = vpack.c.b16 %v1333, %v1329
  %v1862 = vpack.c.b16 %v1334, %v1330
  %v1863 = vpack.c.b16 %v1335, %v1331
  %v1864 = vpack.c.b16 %v1336, %v1332
  %v1865 = vpack.c.b16 %v1341, %v1337
  %v1866 = vpack.c.b16 %v1342, %v1338
  %v1867 = vpack.c.b16 %v1343, %v1339
  %v1868 = vpack.c.b16 %v1344, %v1340
  %v1869 = vpack.c.b16 %v1349, %v1345
  %v1870 = vpack.c.b16 %v1350, %v1346
  %v1871 = vpack.c.b16 %v1351, %v1347
  %v1872 = vpack.c.b16 %v1352, %v1348
  %v1873 = vpack.c.b16 %v1357, %v1353
  %v1874 = vpack.c.b16 %v1358, %v1354
  %v1875 = vpack.c.b16 %v1359, %v1355
  %v1876 = vpack.c.b16 %v1360, %v1356
  %v1877 = vpack.c.b16 %v1365, %v1361
  %v1878 = vpack.c.b16 %v1366, %v1362
  %v1879 = vpack.c.b16 %v1367, %v1363
  %v1880 = vpack.c.b16 %v1368, %v1364
  %v1881 = vpack.c.b16 %v1373, %v1369
  %v1882 = vpack.c.b16 %v1374, %v1370
  %v1883 = vpack.c.b16 %v1375, %v1371
  %v1884 = vpack.c.b16 %v1376, %v1372
  %v1885 = vpack.c.b16 %v1381, %v1377
  %v1886 = vpack.c.b16 %v1382, %v1378
  %v1887 = vpack.c.b16 %v1383, %v1379
  %v1888 = vpack.c.b16 %v1384, %v1380
  %v1889 = vpack.c.b16 %v1389, %v1385
  %v1890 = vpack.c.b16 %v1390, %v1386
  %v1891 = vpack.c.b16 %v1391, %v1387
  %v1892 = vpack.c.b16 %v1392, %v1388
  %v1893 = vpack.c.b16 %v1397, %v1393
  %v1894 = vpack.c.b16 %v1398, %v1394
  %v1895 = vpack.c.b16 %v1399, %v1395
  %v1896 = vpack.c.b16 %v1400, %v1396
  %v1897 = vpack.c.b16 %v1405, %v1401
  %v1898 = vpack.c.b16 %v1406, %v1402
  %v1899 = vpack.c.b16 %v1407, %v1403
  %v1900 = vpack.c.b16 %v1408, %v1404
  %v1901 = vpack.c.b16 %v1413, %v1409
  %v1902 = vpack.c.b16 %v1414, %v1410
  %v1903 = vpack.c.b16 %v1415, %v1411
  %v1904 = vpack.c.b16 %v1416, %v1412
  %v1905 = vpack.c.b16 %v1421, %v1417
  %v1906 = vpack.c.b16 %v1422, %v1418
  %v1907 = vpack.c.b16 %v1423, %v1419
  %v1908 = vpack.c.b16 %v1424, %v1420
  %v1909 = vpack.c.b16 %v1429, %v1425
  %v1910 = vpack.c.b16 %v1430, %v1426
  %v1911 = vpack.c.b16 %v1431, %v1427
  %v1912 = vpack.c.b16 %v1432, %v1428
  %v1913 = vpack.c.b16 %v1437, %v1433
  %v1914 = vpack.c.b16 %v1438, %v1434
  %v1915 = vpack.c.b16 %v1439, %v1435
  %v1916 = vpack.c.b16 %v1440, %v1436
  %v1917 = vpack.c.b16 %v1445, %v1441
  %v1918 = vpack.c.b16 %v1446, %v1442
  %v1919 = vpack.c.b16 %v1447, %v1443
  %v1920 = vpack.c.b16 %v1448, %v1444
  %v1921 = vpack.c.b16 %v1453, %v1449
  %v1922 = vpack.c.b16 %v1454, %v1450
  %v1923 = vpack.c.b16 %v1455, %v1451
  %v1924 = vpack.c.b16 %v1456, %v1452
  %v1925 = vpack.c.b16 %v1461, %v1457
  %v1926 = vpack.c.b16 %v1462, %v1458
  %v1927 = vpack.c.b16 %v1463, %v1459
  %v1928 = vpack.c.b16 %v1464, %v1460
  %v1929 = vpack.c.b16 %v1469, %v1465
  %v1930 = vpack.c.b16 %v1470, %v1466
  %v1931 = vpack.c.b16 %v1471, %v1467
  %v1932 = vpack.c.b16 %v1472, %v1468
  %v1933 = vpack.c.b16 %v1477, %v1473
  %v1934 = vpack.c.b16 %v1478, %v1474
  %v1935 = vpack.c.b16 %v1479, %v1475
  %v1936 = vpack.c.b16 %v1480, %v1476
  %v1937 = vpack.c.b16 %v1485, %v1481
  %v1938 = vpack.c.b16 %v1486, %v1482
  %v1939 = vpack.c.b16 %v1487, %v1483
  %v1940 = vpack.c.b16 %v1488, %v1484
  %v1941 = vpack.c.b16 %v1493, %v1489
  %v1942 = vpack.c.b16 %v1494, %v1490
  %v1943 = vpack.c.b16 %v1495, %v1491
  %v1944 = vpack.c.b16 %v1496, %v1492
  %v1945 = vpack.c.b16 %v1501, %v1497
  %v1946 = vpack.c.b16 %v1502, %v1498
  %v1947 = vpack.c.b16 %v1503, %v1499
  %v1948 = vpack.c.b16 %v1504, %v1500
  %v1949 = vpack.c.b16 %v1509, %v1505
  %v1950 = vpack.c.b16 %v1510, %v1506
  %v1951 = vpack.c.b16 %v1511, %v1507
  %v1952 = vpack.c.b16 %v1512, %v1508
  %v1953 = vpack.c.b16 %v1517, %v1513
  %v1954 = vpack.c.b16 %v1518, %v1514
  %v1955 = vpack.c.b16 %v1519, %v1515
  %v1956 = vpack.c.b16 %v1520, %v1516
  %v1957 = vpack.c.b16 %v1525, %v1521
  %v1958 = vpack.c.b16 %v1526, %v1522
  %v1959 = vpack.c.b16 %v1527, %v1523
  %v1960 = vpack.c.b16 %v1528, %v1524
  %v1961 = vpack.c.b16 %v1533, %v1529
  %v1962 = vpack.c.b16 %v1534, %v1530
  %v1963 = vpack.c.b16 %v1535, %v1531
  %v1964 = vpack.c.b16 %v1536, %v1532
  %v1965 = vpack.c.b16 %v1541, %v1537
  %v1966 = vpack.c.b16 %v1542, %v1538
  %v1967 = vpack.c.b16 %v1543, %v1539
  %v1968 = vpack.c.b16 %v1544, %v1540
  %v1969 = vpack.c.b16 %v1549, %v1545
  %v1970 = vpack.c.b16 %v1550, %v1546
  %v1971 = vpack.c.b16 %v1551, %v1547
  %v1972 = vpack.c.b16 %v1552, %v1548
  %v1973 = vpack.c.b16 %v1557, %v1553
  %v1974 = vpack.c.b16 %v1558, %v1554
  %v1975 = vpack.c.b16 %v1559, %v1555
  %v1976 = vpack.c.b16 %v1560, %v1556
  %v1977 = vpack.c.b16 %v1565, %v1561
  %v1978 = vpack.c.b16 %v1566, %v1562
  %v1979 = vpack.c.b16 %v1567, %v1563
  %v1980 = vpack.c.b16 %v1568, %v1564
  %v1981 = vpack.c.b16 %v1573, %v1569
  %v1982 = vpack.c.b16 %v1574, %v1570
  %v1983 = vpack.c.b16 %v1575, %v1571
  %v1984 = vpack.c.b16 %v1576, %v1572
  %v1985 = vpack.c.b16 %v1581, %v1577
  %v1986 = vpack.c.b16 %v1582, %v1578
  %v1987 = vpack.c.b16 %v1583, %v1579
  %v1988 = vpack.c.b16 %v1584, %v1580
  %v1989 = vpack.c.b16 %v1589, %v1585
  %v1990 = vpack.c.b16 %v1590, %v1586
  %v1991 = vpack.c.b16 %v1591, %v1587
  %v1992 = vpack.c.b16 %v1592, %v1588
  %v1993 = vpack.c.b16 %v1597, %v1593
  %v1994 = vpack.c.b16 %v1598, %v1594
  %v1995 = vpack.c.b16 %v1599, %v1595
  %v1996 = vpack.c.b16 %v1600, %v1596
  %v1997 = vpack.c.b16 %v1605, %v1601
  %v1998 = vpack.c.b16 %v1606, %v1602
  %v1999 = vpack.c.b16 %v1607, %v1603
  %v2000 = vpack.c.b16 %v1608, %v1604
  %v2001 = vpack.c.b16 %v1613, %v1609
  %v2002 = vpack.c.b16 %v1614, %v1610
  %v2003 = vpack.c.b16 %v1615, %v1611
  %v2004 = vpack.c.b16 %v1616, %v1612
  %v2005 = vpack.c.b16 %v1621, %v1617
  %v2006 = vpack.c.b16 %v1622, %v1618
  %v2007 = vpack.c.b16 %v1623, %v1619
  %v2008 = vpack.c.b16 %v1624, %v1620
  %2393 = vmatprep.subr.bf16.mxu0 %v1626
  %2394 = vmatpush1.bf16.msra.mxu0 %v1625
  %2395 = vmatprep.subr.bf16.mxu0 %v1630
  %2396 = vmatpush1.bf16.msra.mxu0 %v1629
  %2397 = vmatprep.subr.bf16.mxu0 %v1634
  %2398 = vmatpush1.bf16.msra.mxu0 %v1633
  %2399 = vmatprep.subr.bf16.mxu0 %v1638
  %2400 = vmatpush1.bf16.msra.mxu0 %v1637
  %2401 = vmatprep.subr.bf16.mxu0 %v1642
  %2402 = vmatpush1.bf16.msra.mxu0 %v1641
  %2403 = vmatprep.subr.bf16.mxu0 %v1646
  %2404 = vmatpush1.bf16.msra.mxu0 %v1645
  %2405 = vmatprep.subr.bf16.mxu0 %v1650
  %2406 = vmatpush1.bf16.msra.mxu0 %v1649
  %2407 = vmatprep.subr.bf16.mxu0 %v1654
  %2408 = vmatpush1.bf16.msra.mxu0 %v1653
  %2409 = vmatprep.subr.bf16.mxu0 %v1658
  %2410 = vmatpush1.bf16.msra.mxu0 %v1657
  %2411 = vmatprep.subr.bf16.mxu0 %v1662
  %2412 = vmatpush1.bf16.msra.mxu0 %v1661
  %2413 = vmatprep.subr.bf16.mxu0 %v1666
  %2414 = vmatpush1.bf16.msra.mxu0 %v1665
  %2415 = vmatprep.subr.bf16.mxu0 %v1670
  %2416 = vmatpush1.bf16.msra.mxu0 %v1669
  %2417 = vmatprep.subr.bf16.mxu0 %v1674
  %2418 = vmatpush1.bf16.msra.mxu0 %v1673
  %2419 = vmatprep.subr.bf16.mxu0 %v1678
  %2420 = vmatpush1.bf16.msra.mxu0 %v1677
  %2421 = vmatprep.subr.bf16.mxu0 %v1682
  %2422 = vmatpush1.bf16.msra.mxu0 %v1681
  %2423 = vmatprep.subr.bf16.mxu0 %v1686
  %2424 = vmatpush1.bf16.msra.mxu0 %v1685
  %2425 = vmatprep.mubr.bf16.mxu0 %v450
  %2426 = vmatmul.mubr.bf16.gmra.mrb[0].mxu0 %v449
  %v2427 = vpop.f32.mrb[0].mxu0
  %v2428 = vadd.f32 %v414, %v2427
  %v2429 = vpop.f32.mrb[0].mxu0
  %v2430 = vadd.f32 %v418, %v2429
  %v2431 = vpop.f32.mrb[0].mxu0
  %v2432 = vpop.f32.mrb[0].mxu0
  %2433 = vdwg.mxu0
  %2434 = vmatprep.subr.bf16.mxu0 %v1690
  %2435 = vmatpush1.bf16.msra.mxu0 %v1689
  %2436 = vmatprep.subr.bf16.mxu0 %v1694
  %2437 = vmatpush1.bf16.msra.mxu0 %v1693
  %2438 = vmatprep.subr.bf16.mxu0 %v1698
  %2439 = vmatpush1.bf16.msra.mxu0 %v1697
  %2440 = vmatprep.subr.bf16.mxu0 %v1702
  %2441 = vmatpush1.bf16.msra.mxu0 %v1701
  %2442 = vmatprep.subr.bf16.mxu0 %v1706
  %2443 = vmatpush1.bf16.msra.mxu0 %v1705
  %2444 = vmatprep.subr.bf16.mxu0 %v1710
  %2445 = vmatpush1.bf16.msra.mxu0 %v1709
  %2446 = vmatprep.subr.bf16.mxu0 %v1714
  %2447 = vmatpush1.bf16.msra.mxu0 %v1713
  %2448 = vmatprep.subr.bf16.mxu0 %v1718
  %2449 = vmatpush1.bf16.msra.mxu0 %v1717
  %2450 = vmatprep.subr.bf16.mxu0 %v1722
  %2451 = vmatpush1.bf16.msra.mxu0 %v1721
  %2452 = vmatprep.subr.bf16.mxu0 %v1726
  %2453 = vmatpush1.bf16.msra.mxu0 %v1725
  %2454 = vmatprep.subr.bf16.mxu0 %v1730
  %2455 = vmatpush1.bf16.msra.mxu0 %v1729
  %2456 = vmatprep.subr.bf16.mxu0 %v1734
  %2457 = vmatpush1.bf16.msra.mxu0 %v1733
  %2458 = vmatprep.subr.bf16.mxu0 %v1738
  %2459 = vmatpush1.bf16.msra.mxu0 %v1737
  %2460 = vmatprep.subr.bf16.mxu0 %v1742
  %2461 = vmatpush1.bf16.msra.mxu0 %v1741
  %2462 = vmatprep.subr.bf16.mxu0 %v1746
  %2463 = vmatpush1.bf16.msra.mxu0 %v1745
  %2464 = vmatprep.subr.bf16.mxu0 %v1750
  %2465 = vmatpush1.bf16.msra.mxu0 %v1749
  %2466 = vmatprep.mubr.bf16.mxu0 %v452
  %2467 = vmatmul.mubr.bf16.gmra.mrb[0].mxu0 %v451
  %v2468 = vpop.f32.mrb[0].mxu0
  %v2469 = vadd.f32 %v2428, %v2468
  %v2470 = vpop.f32.mrb[0].mxu0
  %v2471 = vadd.f32 %v2430, %v2470
  %v2472 = vpop.f32.mrb[0].mxu0
  %v2473 = vpop.f32.mrb[0].mxu0
  %2474 = vdwg.mxu0
  %2475 = vmatprep.subr.bf16.mxu0 %v1754
  %2476 = vmatpush1.bf16.msra.mxu0 %v1753
  %2477 = vmatprep.subr.bf16.mxu0 %v1758
  %2478 = vmatpush1.bf16.msra.mxu0 %v1757
  %2479 = vmatprep.subr.bf16.mxu0 %v1762
  %2480 = vmatpush1.bf16.msra.mxu0 %v1761
  %2481 = vmatprep.subr.bf16.mxu0 %v1766
  %2482 = vmatpush1.bf16.msra.mxu0 %v1765
  %2483 = vmatprep.subr.bf16.mxu0 %v1770
  %2484 = vmatpush1.bf16.msra.mxu0 %v1769
  %2485 = vmatprep.subr.bf16.mxu0 %v1774
  %2486 = vmatpush1.bf16.msra.mxu0 %v1773
  %2487 = vmatprep.subr.bf16.mxu0 %v1778
  %2488 = vmatpush1.bf16.msra.mxu0 %v1777
  %2489 = vmatprep.subr.bf16.mxu0 %v1782
  %2490 = vmatpush1.bf16.msra.mxu0 %v1781
  %2491 = vmatprep.subr.bf16.mxu0 %v1786
  %2492 = vmatpush1.bf16.msra.mxu0 %v1785
  %2493 = vmatprep.subr.bf16.mxu0 %v1790
  %2494 = vmatpush1.bf16.msra.mxu0 %v1789
  %2495 = vmatprep.subr.bf16.mxu0 %v1794
  %2496 = vmatpush1.bf16.msra.mxu0 %v1793
  %2497 = vmatprep.subr.bf16.mxu0 %v1798
  %2498 = vmatpush1.bf16.msra.mxu0 %v1797
  %2499 = vmatprep.subr.bf16.mxu0 %v1802
  %2500 = vmatpush1.bf16.msra.mxu0 %v1801
  %2501 = vmatprep.subr.bf16.mxu0 %v1806
  %2502 = vmatpush1.bf16.msra.mxu0 %v1805
  %2503 = vmatprep.subr.bf16.mxu0 %v1810
  %2504 = vmatpush1.bf16.msra.mxu0 %v1809
  %2505 = vmatprep.subr.bf16.mxu0 %v1814
  %2506 = vmatpush1.bf16.msra.mxu0 %v1813
  %2507 = vmatprep.mubr.bf16.mxu0 %v454
  %2508 = vmatmul.mubr.bf16.gmra.mrb[0].mxu0 %v453
  %v2509 = vpop.f32.mrb[0].mxu0
  %v2510 = vadd.f32 %v2469, %v2509
  %v2511 = vpop.f32.mrb[0].mxu0
  %v2512 = vadd.f32 %v2471, %v2511
  %v2513 = vpop.f32.mrb[0].mxu0
  %v2514 = vpop.f32.mrb[0].mxu0
  %2515 = vdwg.mxu0
  %2516 = vmatprep.subr.bf16.mxu0 %v1818
  %2517 = vmatpush1.bf16.msra.mxu0 %v1817
  %2518 = vmatprep.subr.bf16.mxu0 %v1822
  %2519 = vmatpush1.bf16.msra.mxu0 %v1821
  %2520 = vmatprep.subr.bf16.mxu0 %v1826
  %2521 = vmatpush1.bf16.msra.mxu0 %v1825
  %2522 = vmatprep.subr.bf16.mxu0 %v1830
  %2523 = vmatpush1.bf16.msra.mxu0 %v1829
  %2524 = vmatprep.subr.bf16.mxu0 %v1834
  %2525 = vmatpush1.bf16.msra.mxu0 %v1833
  %2526 = vmatprep.subr.bf16.mxu0 %v1838
  %2527 = vmatpush1.bf16.msra.mxu0 %v1837
  %2528 = vmatprep.subr.bf16.mxu0 %v1842
  %2529 = vmatpush1.bf16.msra.mxu0 %v1841
  %2530 = vmatprep.subr.bf16.mxu0 %v1846
  %2531 = vmatpush1.bf16.msra.mxu0 %v1845
  %2532 = vmatprep.subr.bf16.mxu0 %v1850
  %2533 = vmatpush1.bf16.msra.mxu0 %v1849
  %2534 = vmatprep.subr.bf16.mxu0 %v1854
  %2535 = vmatpush1.bf16.msra.mxu0 %v1853
  %2536 = vmatprep.subr.bf16.mxu0 %v1858
  %2537 = vmatpush1.bf16.msra.mxu0 %v1857
  %2538 = vmatprep.subr.bf16.mxu0 %v1862
  %2539 = vmatpush1.bf16.msra.mxu0 %v1861
  %2540 = vmatprep.subr.bf16.mxu0 %v1866
  %2541 = vmatpush1.bf16.msra.mxu0 %v1865
  %2542 = vmatprep.subr.bf16.mxu0 %v1870
  %2543 = vmatpush1.bf16.msra.mxu0 %v1869
  %2544 = vmatprep.subr.bf16.mxu0 %v1874
  %2545 = vmatpush1.bf16.msra.mxu0 %v1873
  %2546 = vmatprep.subr.bf16.mxu0 %v1878
  %2547 = vmatpush1.bf16.msra.mxu0 %v1877
  %2548 = vmatprep.mubr.bf16.mxu0 %v456
  %2549 = vmatmul.mubr.bf16.gmra.mrb[0].mxu0 %v455
  %v2550 = vpop.f32.mrb[0].mxu0
  %v2551 = vadd.f32 %v2510, %v2550
  %v2552 = vpop.f32.mrb[0].mxu0
  %v2553 = vadd.f32 %v2512, %v2552
  %v2554 = vpop.f32.mrb[0].mxu0
  %v2555 = vpop.f32.mrb[0].mxu0
  %2556 = vdwg.mxu0
  %2557 = vmatprep.subr.bf16.mxu0 %v1882
  %2558 = vmatpush1.bf16.msra.mxu0 %v1881
  %2559 = vmatprep.subr.bf16.mxu0 %v1886
  %2560 = vmatpush1.bf16.msra.mxu0 %v1885
  %2561 = vmatprep.subr.bf16.mxu0 %v1890
  %2562 = vmatpush1.bf16.msra.mxu0 %v1889
  %2563 = vmatprep.subr.bf16.mxu0 %v1894
  %2564 = vmatpush1.bf16.msra.mxu0 %v1893
  %2565 = vmatprep.subr.bf16.mxu0 %v1898
  %2566 = vmatpush1.bf16.msra.mxu0 %v1897
  %2567 = vmatprep.subr.bf16.mxu0 %v1902
  %2568 = vmatpush1.bf16.msra.mxu0 %v1901
  %2569 = vmatprep.subr.bf16.mxu0 %v1906
  %2570 = vmatpush1.bf16.msra.mxu0 %v1905
  %2571 = vmatprep.subr.bf16.mxu0 %v1910
  %2572 = vmatpush1.bf16.msra.mxu0 %v1909
  %2573 = vmatprep.subr.bf16.mxu0 %v1914
  %2574 = vmatpush1.bf16.msra.mxu0 %v1913
  %2575 = vmatprep.subr.bf16.mxu0 %v1918
  %2576 = vmatpush1.bf16.msra.mxu0 %v1917
  %2577 = vmatprep.subr.bf16.mxu0 %v1922
  %2578 = vmatpush1.bf16.msra.mxu0 %v1921
  %2579 = vmatprep.subr.bf16.mxu0 %v1926
  %2580 = vmatpush1.bf16.msra.mxu0 %v1925
  %2581 = vmatprep.subr.bf16.mxu0 %v1930
  %2582 = vmatpush1.bf16.msra.mxu0 %v1929
  %2583 = vmatprep.subr.bf16.mxu0 %v1934
  %2584 = vmatpush1.bf16.msra.mxu0 %v1933
  %2585 = vmatprep.subr.bf16.mxu0 %v1938
  %2586 = vmatpush1.bf16.msra.mxu0 %v1937
  %2587 = vmatprep.subr.bf16.mxu0 %v1942
  %2588 = vmatpush1.bf16.msra.mxu0 %v1941
  %2589 = vmatprep.mubr.bf16.mxu0 %v458
  %2590 = vmatmul.mubr.bf16.gmra.mrb[0].mxu0 %v457
  %v2591 = vpop.f32.mrb[0].mxu0
  %v2592 = vadd.f32 %v2551, %v2591
  %v2593 = vpop.f32.mrb[0].mxu0
  %v2594 = vadd.f32 %v2553, %v2593
  %v2595 = vpop.f32.mrb[0].mxu0
  %v2596 = vpop.f32.mrb[0].mxu0
  %2597 = vdwg.mxu0
  %2598 = vmatprep.subr.bf16.mxu0 %v1946
  %2599 = vmatpush1.bf16.msra.mxu0 %v1945
  %2600 = vmatprep.subr.bf16.mxu0 %v1950
  %2601 = vmatpush1.bf16.msra.mxu0 %v1949
  %2602 = vmatprep.subr.bf16.mxu0 %v1954
  %2603 = vmatpush1.bf16.msra.mxu0 %v1953
  %2604 = vmatprep.subr.bf16.mxu0 %v1958
  %2605 = vmatpush1.bf16.msra.mxu0 %v1957
  %2606 = vmatprep.subr.bf16.mxu0 %v1962
  %2607 = vmatpush1.bf16.msra.mxu0 %v1961
  %2608 = vmatprep.subr.bf16.mxu0 %v1966
  %2609 = vmatpush1.bf16.msra.mxu0 %v1965
  %2610 = vmatprep.subr.bf16.mxu0 %v1970
  %2611 = vmatpush1.bf16.msra.mxu0 %v1969
  %2612 = vmatprep.subr.bf16.mxu0 %v1974
  %2613 = vmatpush1.bf16.msra.mxu0 %v1973
  %2614 = vmatprep.subr.bf16.mxu0 %v1978
  %2615 = vmatpush1.bf16.msra.mxu0 %v1977
  %2616 = vmatprep.subr.bf16.mxu0 %v1982
  %2617 = vmatpush1.bf16.msra.mxu0 %v1981
  %2618 = vmatprep.subr.bf16.mxu0 %v1986
  %2619 = vmatpush1.bf16.msra.mxu0 %v1985
  %2620 = vmatprep.subr.bf16.mxu0 %v1990
  %2621 = vmatpush1.bf16.msra.mxu0 %v1989
  %2622 = vmatprep.subr.bf16.mxu0 %v1994
  %2623 = vmatpush1.bf16.msra.mxu0 %v1993
  %2624 = vmatprep.subr.bf16.mxu0 %v1998
  %2625 = vmatpush1.bf16.msra.mxu0 %v1997
  %2626 = vmatprep.subr.bf16.mxu0 %v2002
  %2627 = vmatpush1.bf16.msra.mxu0 %v2001
  %2628 = vmatprep.subr.bf16.mxu0 %v2006
  %2629 = vmatpush1.bf16.msra.mxu0 %v2005
  %2630 = vmatprep.mubr.bf16.mxu0 %v460
  %2631 = vmatmul.mubr.bf16.gmra.mrb[0].mxu0 %v459
  %v2632 = vpop.f32.mrb[0].mxu0
  %v2633 = vadd.f32 %v2592, %v2632
  %v2634 = vpop.f32.mrb[0].mxu0
  %v2635 = vadd.f32 %v2594, %v2634
  %v2636 = vpop.f32.mrb[0].mxu0
  %v2637 = vpop.f32.mrb[0].mxu0
  %2638 = vdwg.mxu0
  %2639 = vmatprep.subr.bf16.mxu0 %v1628
  %2640 = vmatpush1.bf16.msra.mxu0 %v1627
  %2641 = vmatprep.subr.bf16.mxu0 %v1632
  %2642 = vmatpush1.bf16.msra.mxu0 %v1631
  %2643 = vmatprep.subr.bf16.mxu0 %v1636
  %2644 = vmatpush1.bf16.msra.mxu0 %v1635
  %2645 = vmatprep.subr.bf16.mxu0 %v1640
  %2646 = vmatpush1.bf16.msra.mxu0 %v1639
  %2647 = vmatprep.subr.bf16.mxu0 %v1644
  %2648 = vmatpush1.bf16.msra.mxu0 %v1643
  %2649 = vmatprep.subr.bf16.mxu0 %v1648
  %2650 = vmatpush1.bf16.msra.mxu0 %v1647
  %2651 = vmatprep.subr.bf16.mxu0 %v1652
  %2652 = vmatpush1.bf16.msra.mxu0 %v1651
  %2653 = vmatprep.subr.bf16.mxu0 %v1656
  %2654 = vmatpush1.bf16.msra.mxu0 %v1655
  %2655 = vmatprep.subr.bf16.mxu0 %v1660
  %2656 = vmatpush1.bf16.msra.mxu0 %v1659
  %2657 = vmatprep.subr.bf16.mxu0 %v1664
  %2658 = vmatpush1.bf16.msra.mxu0 %v1663
  %2659 = vmatprep.subr.bf16.mxu0 %v1668
  %2660 = vmatpush1.bf16.msra.mxu0 %v1667
  %2661 = vmatprep.subr.bf16.mxu0 %v1672
  %2662 = vmatpush1.bf16.msra.mxu0 %v1671
  %2663 = vmatprep.subr.bf16.mxu0 %v1676
  %2664 = vmatpush1.bf16.msra.mxu0 %v1675
  %2665 = vmatprep.subr.bf16.mxu0 %v1680
  %2666 = vmatpush1.bf16.msra.mxu0 %v1679
  %2667 = vmatprep.subr.bf16.mxu0 %v1684
  %2668 = vmatpush1.bf16.msra.mxu0 %v1683
  %2669 = vmatprep.subr.bf16.mxu0 %v1688
  %2670 = vmatpush1.bf16.msra.mxu0 %v1687
  %2671 = vmatprep.mubr.bf16.mxu0 %v450
  %2672 = vmatmul.mubr.bf16.gmra.mrb[0].mxu0 %v449
  %v2673 = vpop.f32.mrb[0].mxu0
  %v2674 = vadd.f32 %v422, %v2673
  %v2675 = vpop.f32.mrb[0].mxu0
  %v2676 = vadd.f32 %v426, %v2675
  %v2677 = vpop.f32.mrb[0].mxu0
  %v2678 = vpop.f32.mrb[0].mxu0
  %2679 = vdwg.mxu0
  %2680 = vmatprep.subr.bf16.mxu0 %v1692
  %2681 = vmatpush1.bf16.msra.mxu0 %v1691
  %2682 = vmatprep.subr.bf16.mxu0 %v1696
  %2683 = vmatpush1.bf16.msra.mxu0 %v1695
  %2684 = vmatprep.subr.bf16.mxu0 %v1700
  %2685 = vmatpush1.bf16.msra.mxu0 %v1699
  %2686 = vmatprep.subr.bf16.mxu0 %v1704
  %2687 = vmatpush1.bf16.msra.mxu0 %v1703
  %2688 = vmatprep.subr.bf16.mxu0 %v1708
  %2689 = vmatpush1.bf16.msra.mxu0 %v1707
  %2690 = vmatprep.subr.bf16.mxu0 %v1712
  %2691 = vmatpush1.bf16.msra.mxu0 %v1711
  %2692 = vmatprep.subr.bf16.mxu0 %v1716
  %2693 = vmatpush1.bf16.msra.mxu0 %v1715
  %2694 = vmatprep.subr.bf16.mxu0 %v1720
  %2695 = vmatpush1.bf16.msra.mxu0 %v1719
  %2696 = vmatprep.subr.bf16.mxu0 %v1724
  %2697 = vmatpush1.bf16.msra.mxu0 %v1723
  %2698 = vmatprep.subr.bf16.mxu0 %v1728
  %2699 = vmatpush1.bf16.msra.mxu0 %v1727
  %2700 = vmatprep.subr.bf16.mxu0 %v1732
  %2701 = vmatpush1.bf16.msra.mxu0 %v1731
  %2702 = vmatprep.subr.bf16.mxu0 %v1736
  %2703 = vmatpush1.bf16.msra.mxu0 %v1735
  %2704 = vmatprep.subr.bf16.mxu0 %v1740
  %2705 = vmatpush1.bf16.msra.mxu0 %v1739
  %2706 = vmatprep.subr.bf16.mxu0 %v1744
  %2707 = vmatpush1.bf16.msra.mxu0 %v1743
  %2708 = vmatprep.subr.bf16.mxu0 %v1748
  %2709 = vmatpush1.bf16.msra.mxu0 %v1747
  %2710 = vmatprep.subr.bf16.mxu0 %v1752
  %2711 = vmatpush1.bf16.msra.mxu0 %v1751
  %2712 = vmatprep.mubr.bf16.mxu0 %v452
  %2713 = vmatmul.mubr.bf16.gmra.mrb[0].mxu0 %v451
  %v2714 = vpop.f32.mrb[0].mxu0
  %v2715 = vadd.f32 %v2674, %v2714
  %v2716 = vpop.f32.mrb[0].mxu0
  %v2717 = vadd.f32 %v2676, %v2716
  %v2718 = vpop.f32.mrb[0].mxu0
  %v2719 = vpop.f32.mrb[0].mxu0
  %2720 = vdwg.mxu0
  %2721 = vmatprep.subr.bf16.mxu0 %v1756
  %2722 = vmatpush1.bf16.msra.mxu0 %v1755
  %2723 = vmatprep.subr.bf16.mxu0 %v1760
  %2724 = vmatpush1.bf16.msra.mxu0 %v1759
  %2725 = vmatprep.subr.bf16.mxu0 %v1764
  %2726 = vmatpush1.bf16.msra.mxu0 %v1763
  %2727 = vmatprep.subr.bf16.mxu0 %v1768
  %2728 = vmatpush1.bf16.msra.mxu0 %v1767
  %2729 = vmatprep.subr.bf16.mxu0 %v1772
  %2730 = vmatpush1.bf16.msra.mxu0 %v1771
  %2731 = vmatprep.subr.bf16.mxu0 %v1776
  %2732 = vmatpush1.bf16.msra.mxu0 %v1775
  %2733 = vmatprep.subr.bf16.mxu0 %v1780
  %2734 = vmatpush1.bf16.msra.mxu0 %v1779
  %2735 = vmatprep.subr.bf16.mxu0 %v1784
  %2736 = vmatpush1.bf16.msra.mxu0 %v1783
  %2737 = vmatprep.subr.bf16.mxu0 %v1788
  %2738 = vmatpush1.bf16.msra.mxu0 %v1787
  %2739 = vmatprep.subr.bf16.mxu0 %v1792
  %2740 = vmatpush1.bf16.msra.mxu0 %v1791
  %2741 = vmatprep.subr.bf16.mxu0 %v1796
  %2742 = vmatpush1.bf16.msra.mxu0 %v1795
  %2743 = vmatprep.subr.bf16.mxu0 %v1800
  %2744 = vmatpush1.bf16.msra.mxu0 %v1799
  %2745 = vmatprep.subr.bf16.mxu0 %v1804
  %2746 = vmatpush1.bf16.msra.mxu0 %v1803
  %2747 = vmatprep.subr.bf16.mxu0 %v1808
  %2748 = vmatpush1.bf16.msra.mxu0 %v1807
  %2749 = vmatprep.subr.bf16.mxu0 %v1812
  %2750 = vmatpush1.bf16.msra.mxu0 %v1811
  %2751 = vmatprep.subr.bf16.mxu0 %v1816
  %2752 = vmatpush1.bf16.msra.mxu0 %v1815
  %2753 = vmatprep.mubr.bf16.mxu0 %v454
  %2754 = vmatmul.mubr.bf16.gmra.mrb[0].mxu0 %v453
  %v2755 = vpop.f32.mrb[0].mxu0
  %v2756 = vadd.f32 %v2715, %v2755
  %v2757 = vpop.f32.mrb[0].mxu0
  %v2758 = vadd.f32 %v2717, %v2757
  %v2759 = vpop.f32.mrb[0].mxu0
  %v2760 = vpop.f32.mrb[0].mxu0
  %2761 = vdwg.mxu0
  %2762 = vmatprep.subr.bf16.mxu0 %v1820
  %2763 = vmatpush1.bf16.msra.mxu0 %v1819
  %2764 = vmatprep.subr.bf16.mxu0 %v1824
  %2765 = vmatpush1.bf16.msra.mxu0 %v1823
  %2766 = vmatprep.subr.bf16.mxu0 %v1828
  %2767 = vmatpush1.bf16.msra.mxu0 %v1827
  %2768 = vmatprep.subr.bf16.mxu0 %v1832
  %2769 = vmatpush1.bf16.msra.mxu0 %v1831
  %2770 = vmatprep.subr.bf16.mxu0 %v1836
  %2771 = vmatpush1.bf16.msra.mxu0 %v1835
  %2772 = vmatprep.subr.bf16.mxu0 %v1840
  %2773 = vmatpush1.bf16.msra.mxu0 %v1839
  %2774 = vmatprep.subr.bf16.mxu0 %v1844
  %2775 = vmatpush1.bf16.msra.mxu0 %v1843
  %2776 = vmatprep.subr.bf16.mxu0 %v1848
  %2777 = vmatpush1.bf16.msra.mxu0 %v1847
  %2778 = vmatprep.subr.bf16.mxu0 %v1852
  %2779 = vmatpush1.bf16.msra.mxu0 %v1851
  %2780 = vmatprep.subr.bf16.mxu0 %v1856
  %2781 = vmatpush1.bf16.msra.mxu0 %v1855
  %2782 = vmatprep.subr.bf16.mxu0 %v1860
  %2783 = vmatpush1.bf16.msra.mxu0 %v1859
  %2784 = vmatprep.subr.bf16.mxu0 %v1864
  %2785 = vmatpush1.bf16.msra.mxu0 %v1863
  %2786 = vmatprep.subr.bf16.mxu0 %v1868
  %2787 = vmatpush1.bf16.msra.mxu0 %v1867
  %2788 = vmatprep.subr.bf16.mxu0 %v1872
  %2789 = vmatpush1.bf16.msra.mxu0 %v1871
  %2790 = vmatprep.subr.bf16.mxu0 %v1876
  %2791 = vmatpush1.bf16.msra.mxu0 %v1875
  %2792 = vmatprep.subr.bf16.mxu0 %v1880
  %2793 = vmatpush1.bf16.msra.mxu0 %v1879
  %2794 = vmatprep.mubr.bf16.mxu0 %v456
  %2795 = vmatmul.mubr.bf16.gmra.mrb[0].mxu0 %v455
  %v2796 = vpop.f32.mrb[0].mxu0
  %v2797 = vadd.f32 %v2756, %v2796
  %v2798 = vpop.f32.mrb[0].mxu0
  %v2799 = vadd.f32 %v2758, %v2798
  %v2800 = vpop.f32.mrb[0].mxu0
  %v2801 = vpop.f32.mrb[0].mxu0
  %2802 = vdwg.mxu0
  %2803 = vmatprep.subr.bf16.mxu0 %v1884
  %2804 = vmatpush1.bf16.msra.mxu0 %v1883
  %2805 = vmatprep.subr.bf16.mxu0 %v1888
  %2806 = vmatpush1.bf16.msra.mxu0 %v1887
  %2807 = vmatprep.subr.bf16.mxu0 %v1892
  %2808 = vmatpush1.bf16.msra.mxu0 %v1891
  %2809 = vmatprep.subr.bf16.mxu0 %v1896
  %2810 = vmatpush1.bf16.msra.mxu0 %v1895
  %2811 = vmatprep.subr.bf16.mxu0 %v1900
  %2812 = vmatpush1.bf16.msra.mxu0 %v1899
  %2813 = vmatprep.subr.bf16.mxu0 %v1904
  %2814 = vmatpush1.bf16.msra.mxu0 %v1903
  %2815 = vmatprep.subr.bf16.mxu0 %v1908
  %2816 = vmatpush1.bf16.msra.mxu0 %v1907
  %2817 = vmatprep.subr.bf16.mxu0 %v1912
  %2818 = vmatpush1.bf16.msra.mxu0 %v1911
  %2819 = vmatprep.subr.bf16.mxu0 %v1916
  %2820 = vmatpush1.bf16.msra.mxu0 %v1915
  %2821 = vmatprep.subr.bf16.mxu0 %v1920
  %2822 = vmatpush1.bf16.msra.mxu0 %v1919
  %2823 = vmatprep.subr.bf16.mxu0 %v1924
  %2824 = vmatpush1.bf16.msra.mxu0 %v1923
  %2825 = vmatprep.subr.bf16.mxu0 %v1928
  %2826 = vmatpush1.bf16.msra.mxu0 %v1927
  %2827 = vmatprep.subr.bf16.mxu0 %v1932
  %2828 = vmatpush1.bf16.msra.mxu0 %v1931
  %2829 = vmatprep.subr.bf16.mxu0 %v1936
  %2830 = vmatpush1.bf16.msra.mxu0 %v1935
  %2831 = vmatprep.subr.bf16.mxu0 %v1940
  %2832 = vmatpush1.bf16.msra.mxu0 %v1939
  %2833 = vmatprep.subr.bf16.mxu0 %v1944
  %2834 = vmatpush1.bf16.msra.mxu0 %v1943
  %2835 = vmatprep.mubr.bf16.mxu0 %v458
  %2836 = vmatmul.mubr.bf16.gmra.mrb[0].mxu0 %v457
  %v2837 = vpop.f32.mrb[0].mxu0
  %v2838 = vadd.f32 %v2797, %v2837
  %v2839 = vpop.f32.mrb[0].mxu0
  %v2840 = vadd.f32 %v2799, %v2839
  %v2841 = vpop.f32.mrb[0].mxu0
  %v2842 = vpop.f32.mrb[0].mxu0
  %2843 = vdwg.mxu0
  %2844 = vmatprep.subr.bf16.mxu0 %v1948
  %2845 = vmatpush1.bf16.msra.mxu0 %v1947
  %2846 = vmatprep.subr.bf16.mxu0 %v1952
  %2847 = vmatpush1.bf16.msra.mxu0 %v1951
  %2848 = vmatprep.subr.bf16.mxu0 %v1956
  %2849 = vmatpush1.bf16.msra.mxu0 %v1955
  %2850 = vmatprep.subr.bf16.mxu0 %v1960
  %2851 = vmatpush1.bf16.msra.mxu0 %v1959
  %2852 = vmatprep.subr.bf16.mxu0 %v1964
  %2853 = vmatpush1.bf16.msra.mxu0 %v1963
  %2854 = vmatprep.subr.bf16.mxu0 %v1968
  %2855 = vmatpush1.bf16.msra.mxu0 %v1967
  %2856 = vmatprep.subr.bf16.mxu0 %v1972
  %2857 = vmatpush1.bf16.msra.mxu0 %v1971
  %2858 = vmatprep.subr.bf16.mxu0 %v1976
  %2859 = vmatpush1.bf16.msra.mxu0 %v1975
  %2860 = vmatprep.subr.bf16.mxu0 %v1980
  %2861 = vmatpush1.bf16.msra.mxu0 %v1979
  %2862 = vmatprep.subr.bf16.mxu0 %v1984
  %2863 = vmatpush1.bf16.msra.mxu0 %v1983
  %2864 = vmatprep.subr.bf16.mxu0 %v1988
  %2865 = vmatpush1.bf16.msra.mxu0 %v1987
  %2866 = vmatprep.subr.bf16.mxu0 %v1992
  %2867 = vmatpush1.bf16.msra.mxu0 %v1991
  %2868 = vmatprep.subr.bf16.mxu0 %v1996
  %2869 = vmatpush1.bf16.msra.mxu0 %v1995
  %2870 = vmatprep.subr.bf16.mxu0 %v2000
  %2871 = vmatpush1.bf16.msra.mxu0 %v1999
  %2872 = vmatprep.subr.bf16.mxu0 %v2004
  %2873 = vmatpush1.bf16.msra.mxu0 %v2003
  %2874 = vmatprep.subr.bf16.mxu0 %v2008
  %2875 = vmatpush1.bf16.msra.mxu0 %v2007
  %2876 = vmatprep.mubr.bf16.mxu0 %v460
  %2877 = vmatmul.mubr.bf16.gmra.mrb[0].mxu0 %v459
  %v2878 = vpop.f32.mrb[0].mxu0
  %v2879 = vadd.f32 %v2838, %v2878
  %v2880 = vpop.f32.mrb[0].mxu0
  %v2881 = vadd.f32 %v2840, %v2880
  %v2882 = vpop.f32.mrb[0].mxu0
  %v2883 = vpop.f32.mrb[0].mxu0
  %2884 = vdwg.mxu0
  %v2885 = vmax.f32 %v2633, 0.0
  %v2886 = vmax.f32 %v2635, 0.0
  %v2887 = vmax.f32 %v2879, 0.0
  %v2888 = vmax.f32 %v2881, 0.0
  %s2889 = smul.u32 0, 8
  %v2890 = vlaneseq
  %v2891 = vshrl.u32 %v2890, 7
  %v2892 = vstv %s2889
  %v2893 = vadd.s32 %v2892, %v2891
  %vm2894 = vcmp.lt.s32.totalorder %v2893, 2
  %v2895 = vsel %vm2894, 1, 0
  %vm2896 = vcmp.eq.s32.totalorder %v2895, 1
  %v2897 = vsel %vm2896, %v2885, 0.0
  %v2898 = vsel %vm2896, %v2886, 0.0
  %v2899 = vsel %vm2896, %v2887, 0.0
  %v2900 = vsel %vm2896, %v2888, 0.0
  %v2901 = vrot.slane %v2897, 4
  %v2902 = vadd.f32 %v2897, %v2901
  %v2903 = vrot.slane %v2902, 2
  %v2904 = vadd.f32 %v2902, %v2903
  %v2905 = vrot.slane %v2904, 1
  %v2906 = vadd.f32 %v2904, %v2905
  %v2907 = vrot.slane %v2898, 4
  %v2908 = vadd.f32 %v2898, %v2907
  %v2909 = vrot.slane %v2908, 2
  %v2910 = vadd.f32 %v2908, %v2909
  %v2911 = vrot.slane %v2910, 1
  %v2912 = vadd.f32 %v2910, %v2911
  %v2913 = vrot.slane %v2899, 4
  %v2914 = vadd.f32 %v2899, %v2913
  %v2915 = vrot.slane %v2914, 2
  %v2916 = vadd.f32 %v2914, %v2915
  %v2917 = vrot.slane %v2916, 1
  %v2918 = vadd.f32 %v2916, %v2917
  %v2919 = vrot.slane %v2900, 4
  %v2920 = vadd.f32 %v2900, %v2919
  %v2921 = vrot.slane %v2920, 2
  %v2922 = vadd.f32 %v2920, %v2921
  %v2923 = vrot.slane %v2922, 1
  %v2924 = vadd.f32 %v2922, %v2923
  %v2925 = vmul.f32 %v2906, 0.5
  %v2926 = vmul.f32 %v2912, 0.5
  %v2927 = vmul.f32 %v2918, 0.5
  %v2928 = vmul.f32 %v2924, 0.5
  %v2929 = vmul.f32 %v2897, %v2897
  %v2930 = vmul.f32 %v2898, %v2898
  %v2931 = vmul.f32 %v2899, %v2899
  %v2932 = vmul.f32 %v2900, %v2900
  %v2933 = vrot.slane %v2929, 4
  %v2934 = vadd.f32 %v2929, %v2933
  %v2935 = vrot.slane %v2934, 2
  %v2936 = vadd.f32 %v2934, %v2935
  %v2937 = vrot.slane %v2936, 1
  %v2938 = vadd.f32 %v2936, %v2937
  %v2939 = vrot.slane %v2930, 4
  %v2940 = vadd.f32 %v2930, %v2939
  %v2941 = vrot.slane %v2940, 2
  %v2942 = vadd.f32 %v2940, %v2941
  %v2943 = vrot.slane %v2942, 1
  %v2944 = vadd.f32 %v2942, %v2943
  %v2945 = vrot.slane %v2931, 4
  %v2946 = vadd.f32 %v2931, %v2945
  %v2947 = vrot.slane %v2946, 2
  %v2948 = vadd.f32 %v2946, %v2947
  %v2949 = vrot.slane %v2948, 1
  %v2950 = vadd.f32 %v2948, %v2949
  %v2951 = vrot.slane %v2932, 4
  %v2952 = vadd.f32 %v2932, %v2951
  %v2953 = vrot.slane %v2952, 2
  %v2954 = vadd.f32 %v2952, %v2953
  %v2955 = vrot.slane %v2954, 1
  %v2956 = vadd.f32 %v2954, %v2955
  %v2957 = vmul.f32 %v2938, 0.5
  %v2958 = vmul.f32 %v2944, 0.5
  %v2959 = vmul.f32 %v2950, 0.5
  %v2960 = vmul.f32 %v2956, 0.5
  %v2961 = vmul.f32 %v2925, %v2925
  %v2962 = vmul.f32 %v2926, %v2926
  %v2963 = vmul.f32 %v2927, %v2927
  %v2964 = vmul.f32 %v2928, %v2928
  %v2965 = vsub.f32 %v2957, %v2961
  %v2966 = vsub.f32 %v2958, %v2962
  %v2967 = vsub.f32 %v2959, %v2963
  %v2968 = vsub.f32 %v2960, %v2964
  %v2969 = vsub.f32 %v2885, %v2925
  %v2970 = vsub.f32 %v2886, %v2926
  %v2971 = vsub.f32 %v2887, %v2927
  %v2972 = vsub.f32 %v2888, %v2928
  %v2973 = vadd.f32 %v2965, 1e-05
  %v2974 = vadd.f32 %v2966, 1e-05
  %v2975 = vadd.f32 %v2967, 1e-05
  %v2976 = vadd.f32 %v2968, 1e-05
  %v2977 = vrsqrt.pop %v2973
  %v2978 = vrsqrt.pop %v2974
  %v2979 = vrsqrt.pop %v2975
  %v2980 = vrsqrt.pop %v2976
  %v2981 = vmul.f32 %v2969, %v2977
  %v2982 = vmul.f32 %v2970, %v2978
  %v2983 = vmul.f32 %v2971, %v2979
  %v2984 = vmul.f32 %v2972, %v2980
  %s2985 = scalar_lea.vmem %s2, 1
  %v2986 = vld [vmem:[%s2985] ss:$4 sm:$0xf]
  %v2988 = vlaneseq
  %v2989 = vshrl.u32 %v2988, 7
  %v2990 = vsub.s32 0, %v2989
  %v2991 = vrot.slane %v2986, %v2990
  %v2992 = vlaneseq
  %v2993 = vshrl.u32 %v2992, 7
  %v2994 = vsub.s32 1, %v2993
  %v2995 = vrot.slane %v2986, %v2994
  %v2996 = vlaneseq
  %v2997 = vshrl.u32 %v2996, 7
  %v2998 = vsub.s32 2, %v2997
  %v2999 = vrot.slane %v2986, %v2998
  %v3000 = vlaneseq
  %v3001 = vshrl.u32 %v3000, 7
  %v3002 = vsub.s32 3, %v3001
  %v3003 = vrot.slane %v2986, %v3002
  %v3008 = vmul.f32 %v2981, %v2991
  %v3009 = vmul.f32 %v2982, %v2995
  %v3010 = vmul.f32 %v2983, %v2999
  %v3011 = vmul.f32 %v2984, %v3003
  %s3012 = scalar_lea.vmem %s2, 2
  %v3013 = vld [vmem:[%s3012] ss:$4 sm:$0xf]
  %v3015 = vlaneseq
  %v3016 = vshrl.u32 %v3015, 7
  %v3017 = vsub.s32 0, %v3016
  %v3018 = vrot.slane %v3013, %v3017
  %v3019 = vlaneseq
  %v3020 = vshrl.u32 %v3019, 7
  %v3021 = vsub.s32 1, %v3020
  %v3022 = vrot.slane %v3013, %v3021
  %v3023 = vlaneseq
  %v3024 = vshrl.u32 %v3023, 7
  %v3025 = vsub.s32 2, %v3024
  %v3026 = vrot.slane %v3013, %v3025
  %v3027 = vlaneseq
  %v3028 = vshrl.u32 %v3027, 7
  %v3029 = vsub.s32 3, %v3028
  %v3030 = vrot.slane %v3013, %v3029
  %v3035 = vadd.f32 %v3008, %v3018
  %v3036 = vadd.f32 %v3009, %v3022
  %v3037 = vadd.f32 %v3010, %v3026
  %v3038 = vadd.f32 %v3011, %v3030
  %v3039 = vld [vmem:[%s3] sm:$0xff]
  %v3040 = vld [vmem:[%s3 + $0x8] sm:$0xff]
  %v3041 = vmul.f32 %v3037, 0.5
  %v3042 = vmul.f32 %v3038, 0.5
  %v3043 = vmul.f32 %v3041, 1.442695
  %v3044 = vpow.pop %v3043
  %v3045 = vmul.f32 %v3042, 1.442695
  %v3046 = vpow.pop %v3045
  %v3047 = vmul.f32 %v3039, %v3044
  %v3048 = vmul.f32 %v3040, %v3046
  %v3049 = vadd.f32 %v3047, %v3035
  %v3050 = vadd.f32 %v3048, %v3036
  %3051 = vst [vmem:[%s5] sm:$0xff] %v3049
  %3052 = vst [vmem:[%s5 + $0x8] sm:$0xff] %v3050
  %3053 = vst [vmem:[%s4] sm:$0xff] %v3035
  %3054 = vst [vmem:[%s4 + $0x8] sm:$0xff] %v3036
  %3055 = vst [vmem:[%s4 + $0x10] sm:$0xff] %v3037
  %3056 = vst [vmem:[%s4 + $0x18] sm:$0xff] %v3038
  // Predicated region
  $region18: #{vae_forward.14} parent=0 // pred_check
    _
  $region19: #{vae_forward.14} parent=0 // pred_check_branch
    %3058 = sbr.rel (0) target = $region21
  $region20: #{vae_forward.14} parent=0 // pred_region
    _
  $region21: #{vae_forward.14} parent=0 // pred_fallthru
    _
  // Predicated region
  $region22: #{vae_forward.14} parent=0 // pred_check
    _
  $region23: #{vae_forward.14} parent=0 // pred_check_branch
    %3060 = sbr.rel (0) target = $region25
  $region24: #{vae_forward.14} parent=0 // pred_region
    _
  $region25: #{vae_forward.14} parent=0 // pred_fallthru
    _
  // Predicated region
  $region26: #{vae_forward.14} parent=0 // pred_check
    _
  $region27: #{vae_forward.14} parent=0 // pred_check_branch
    %3062 = sbr.rel (0) target = $region29
  $region28: #{vae_forward.14} parent=0 // pred_region
    _
  $region29: #{vae_forward.14} parent=0 // pred_fallthru
    _
  // Predicated region
  $region30: #{vae_forward.14} parent=0 // pred_check
    _
  $region31: #{vae_forward.14} parent=0 // pred_check_branch
    %3064 = sbr.rel (0) target = $region33
  $region32: #{vae_forward.14} parent=0 // pred_region
    _
  $region33: #{vae_forward.14} parent=0 // pred_fallthru
    _

// kernel: vae_forward.16
$region0: #{vae_forward.16}
  #allocation0 [shape = 'u32[]', space=smem, size = 0x4, offset = 0x4, fixed_abs, tag = 'smem constant byte address 0x4 - core index']
  #allocation1 [shape = 'u32[144,128]{1,0:T(1,128)}', space=vmem, size = 0x12000, scoped, tag = 'internal scratch']
  #allocation2 [shape = 'f32[1,48]{1,0:T(1,128)}', space=vmem, size = 0x200, scoped, tag = 'scratch operand']
  #allocation3 [shape = 'f32[1,48]{1,0:T(1,128)}', space=vmem, size = 0x200, scoped, tag = 'scratch operand']
  %s0 = inlined_call_operand.vmem [shape: bf16[4,8,384], index: 0, kind: input, shape index: {}]
  %s1 = inlined_call_operand.vmem [shape: bf16[4,384,48], index: 1, kind: input, shape index: {}]
  %s2 = inlined_call_operand.vmem [shape: f32[3,48], index: 2, kind: input, shape index: {}]
  %s3 = inlined_call_operand.vmem [shape: f32[4,8,48], index: 3, kind: output, shape index: {}]
  %s4 = sld [smem:[#allocation0]]
  $region57: #{vae_forward.16} parent=0
    _
  %s6 = ssub.s32 1, %s4
  %s7 = scalar_select 0, %s6, %s4
  loop: start=0, step=1, limit=10
  $region2: #{vae_forward.16} parent=0 // loop_pre_header
    _
  $region3: #{vae_forward.16} parent=0 // loop_header
    %s9 = sphi 0, %s13
    %p10 = scmp.ge.s32.totalorder %s9, 10
    %s16 = sphi 0, %s35
    %s17 = sphi 0, %s31
    %s18 = sphi 0, %s27
    %s19 = sphi 0, %s16
    %s20 = sphi 0, %s17
    %s21 = sphi 0, %s18
    %s22 = sphi 0, %s19
    %s23 = sphi 0, %s20
    %s24 = sphi 0, %s21
    %s40 = sphi 0, %s42
    %s43 = sphi 0, %s40
    %s44 = sphi 0, %s43
    %s60 = sphi 0, %s44
    %s66 = sphi 0, %s68
    %s69 = sphi 0, %s66
    %s70 = sphi 0, %s69
    %s86 = sphi 0, %s70
    %s90 = sphi 0, %s90
    %s92 = sphi 0, %s90
    %s93 = sphi 0, %s92
    %s107 = sphi 0, %s93
    %s115 = sphi 0, %s117
    %s118 = sphi 0, %s115
    %s119 = sphi 0, %s118
    %s135 = sphi 0, %s119
  $region4: #{vae_forward.16} parent=0 // loop_header_branch
    %12 = sbr.rel (%p10) target = $region8
  $region5: #{vae_forward.16} parent=0 // loop_body
    %s14 = ssub.s32 %s9, 1
    %s15 = ssub.s32 %s9, 2
    %s25 = sadd.s32 1, %s18
    %p26 = scmp.ge.s32.totalorder %s25, 1
    %s27 = scalar_select %p26, 0, %s25
    %s28 = sadd.s32 1, %s17
    %s29 = scalar_select %p26, %s28, %s17
    %p30 = scmp.ge.s32.totalorder %s29, 4
    %s31 = scalar_select %p30, 0, %s29
    %s32 = sadd.s32 1, %s16
    %s33 = scalar_select %p30, %s32, %s16
    %p34 = scmp.ge.s32.totalorder %s33, 2
    %s35 = scalar_select %p34, 0, %s33
    %s36 = ssub.s32 %s17, %s31
    %s37 = ssub.s32 %s18, %s27
    %s38 = sor.u32 %s36, %s37
    %p39 = scmp.eq.s32.totalorder %s38, 0
    %s41 = sadd.s32 %s40, 1
    %s42 = scalar_select %p39, %s40, %s41
    %p45 = pneg %p39
    %p46 = scmp.eq.s32.totalorder %s9, 7
    %p47 = por %p45, %p46
    %p48 = scmp.ne.s32.totalorder %s40, %s43
    %p49 = scmp.eq.s32.totalorder %s9, 0
    %p50 = por %p48, %p49
    %p51 = scmp.ne.s32.totalorder %s40, %s43
    %p52 = scmp.eq.s32.totalorder %s14, 7
    %p53 = por %p51, %p52
    %p54 = scmp.ne.s32.totalorder %s43, %s44
    %p55 = scmp.eq.s32.totalorder %s14, 0
    %p56 = por %p54, %p55
    %p57 = scmp.ne.s32.totalorder %s43, %s44
    %p58 = scmp.eq.s32.totalorder %s15, 7
    %p59 = por %p57, %p58
    %p61 = scmp.ne.s32.totalorder %s44, %s60
    %p62 = scmp.eq.s32.totalorder %s15, 0
    %p63 = por %p61, %p62
    %s64 = ssub.s32 %s17, %s31
    %p65 = scmp.eq.s32.totalorder %s64, 0
    %s67 = sadd.s32 %s66, 1
    %s68 = scalar_select %p65, %s66, %s67
    %p71 = pneg %p65
    %p72 = scmp.eq.s32.totalorder %s9, 7
    %p73 = por %p71, %p72
    %p74 = scmp.ne.s32.totalorder %s66, %s69
    %p75 = scmp.eq.s32.totalorder %s9, 0
    %p76 = por %p74, %p75
    %p77 = scmp.ne.s32.totalorder %s66, %s69
    %p78 = scmp.eq.s32.totalorder %s14, 7
    %p79 = por %p77, %p78
    %p80 = scmp.ne.s32.totalorder %s69, %s70
    %p81 = scmp.eq.s32.totalorder %s14, 0
    %p82 = por %p80, %p81
    %p83 = scmp.ne.s32.totalorder %s69, %s70
    %p84 = scmp.eq.s32.totalorder %s15, 7
    %p85 = por %p83, %p84
    %p87 = scmp.ne.s32.totalorder %s70, %s86
    %p88 = scmp.eq.s32.totalorder %s15, 0
    %p89 = por %p87, %p88
    %s91 = sadd.s32 %s90, 1
    %p94 = scmp.eq.s32.totalorder %s9, 7
    %p95 = scmp.ne.s32.totalorder %s90, %s92
    %p96 = scmp.eq.s32.totalorder %s9, 0
    %p97 = por %p95, %p96
    %p98 = scmp.ne.s32.totalorder %s90, %s92
    %p99 = scmp.eq.s32.totalorder %s14, 7
    %p100 = por %p98, %p99
    %p101 = scmp.ne.s32.totalorder %s92, %s93
    %p102 = scmp.eq.s32.totalorder %s14, 0
    %p103 = por %p101, %p102
    %p104 = scmp.ne.s32.totalorder %s92, %s93
    %p105 = scmp.eq.s32.totalorder %s15, 7
    %p106 = por %p104, %p105
    %p108 = scmp.ne.s32.totalorder %s93, %s107
    %p109 = scmp.eq.s32.totalorder %s15, 0
    %p110 = por %p108, %p109
    %s111 = ssub.s32 %s17, %s31
    %s112 = ssub.s32 %s18, %s27
    %s113 = sor.u32 %s111, %s112
    %p114 = scmp.eq.s32.totalorder %s113, 0
    %s116 = sadd.s32 %s115, 1
    %s117 = scalar_select %p114, %s115, %s116
    %p120 = pneg %p114
    %p121 = scmp.eq.s32.totalorder %s9, 7
    %p122 = por %p120, %p121
    %p123 = scmp.ne.s32.totalorder %s115, %s118
    %p124 = scmp.eq.s32.totalorder %s9, 0
    %p125 = por %p123, %p124
    %p126 = scmp.ne.s32.totalorder %s115, %s118
    %p127 = scmp.eq.s32.totalorder %s14, 7
    %p128 = por %p126, %p127
    %p129 = scmp.ne.s32.totalorder %s118, %s119
    %p130 = scmp.eq.s32.totalorder %s14, 0
    %p131 = por %p129, %p130
    %p132 = scmp.ne.s32.totalorder %s118, %s119
    %p133 = scmp.eq.s32.totalorder %s15, 7
    %p134 = por %p132, %p133
    %p136 = scmp.ne.s32.totalorder %s119, %s135
    %p137 = scmp.eq.s32.totalorder %s15, 0
    %p138 = por %p136, %p137
    %p139 = scmp.le.s32.totalorder 1, %s9
    %p140 = scmp.lt.s32.totalorder %s9, 9
    %p141 = pnand %p139, %p140
    %p142 = pneg %p141
    // Predicated region
    $region9: #{vae_forward.16} parent=5 // pred_check
      _
    $region10: #{vae_forward.16} parent=5 // pred_check_branch
      %144 = sbr.rel (%p141) target = $region12
    $region11: #{vae_forward.16} parent=5 // pred_region
      %s145 = ssub.s32 %s9, 1
      // Predicated region
      $region13: #{vae_forward.16} parent=11 // pred_check
        %p146 = pneg %p103
      $region14: #{vae_forward.16} parent=11 // pred_check_branch
        %148 = sbr.rel (%p146) target = $region16
      $region15: #{vae_forward.16} parent=11 // pred_region
        _
      $region16: #{vae_forward.16} parent=11 // pred_fallthru
        _
    $region12: #{vae_forward.16} parent=5 // pred_fallthru
      _
    %p149 = scmp.lt.s32.totalorder %s9, 8
    // Predicated region
    $region17: #{vae_forward.16} parent=5 // pred_check
      %p150 = pneg %p149
    $region18: #{vae_forward.16} parent=5 // pred_check_branch
      %152 = sbr.rel (%p150) target = $region20
    $region19: #{vae_forward.16} parent=5 // pred_region
      // Predicated region
      $region21: #{vae_forward.16} parent=19 // pred_check
        %p153 = pneg %p50
      $region22: #{vae_forward.16} parent=19 // pred_check_branch
        %155 = sbr.rel (%p153) target = $region24
      $region23: #{vae_forward.16} parent=19 // pred_region
        %p156 = scmp.lt.s32.totalorder %s17, 3
        %s157 = scalar_select %p156, %s17, 3
        %p158 = scmp.lt.s32.totalorder %s18, 0
        %s159 = scalar_select %p158, %s18, 0
        %s160 = smul.addr %s159, 3
        %s161 = smul.addr %s157, 3
        %s162 = sadd.s32 %s160, %s161
        %s163 = smul.addr %s162, 4
        %s164 = scalar_lea.vmem %s0, %s163
      $region24: #{vae_forward.16} parent=19 // pred_fallthru
        _
      // Predicated region
      $region25: #{vae_forward.16} parent=19 // pred_check
        %p165 = pneg %p76
      $region26: #{vae_forward.16} parent=19 // pred_check_branch
        %167 = sbr.rel (%p165) target = $region28
      $region27: #{vae_forward.16} parent=19 // pred_region
        %p168 = scmp.lt.s32.totalorder %s17, 3
        %s169 = scalar_select %p168, %s17, 3
        %s170 = smul.addr %s169, 48
        %s171 = smul.addr %s170, 4
        %s172 = scalar_lea.vmem %s1, %s171
      $region28: #{vae_forward.16} parent=19 // pred_fallthru
        _
    $region20: #{vae_forward.16} parent=5 // pred_fallthru
      _
    %p173 = scmp.le.s32.totalorder 1, %s9
    %p174 = scmp.lt.s32.totalorder %s9, 9
    %p175 = pnand %p173, %p174
    %p176 = pneg %p175
    // Predicated region
    $region29: #{vae_forward.16} parent=5 // pred_check
      _
    $region30: #{vae_forward.16} parent=5 // pred_check_branch
      %178 = sbr.rel (%p175) target = $region32
    $region31: #{vae_forward.16} parent=5 // pred_region
      %s179 = ssub.s32 %s9, 1
      %p180 = scmp.lt.s32.totalorder %s20, 3
      %s181 = scalar_select %p180, %s20, 3
      %p182 = scmp.lt.s32.totalorder %s21, 0
      %s183 = scalar_select %p182, %s21, 0
      %s184 = smul.addr %s183, 3
      %s185 = smul.addr %s181, 3
      %s186 = sadd.s32 %s184, %s185
      %s187 = smul.addr %s186, 4
      %s188 = scalar_lea.vmem %s0, %s187
      %p189 = pneg %p56
      %p190 = pneg %p53
      %p191 = scmp.lt.s32.totalorder %s20, 3
      %s192 = scalar_select %p191, %s20, 3
      %s193 = smul.addr %s192, 48
      %s194 = smul.addr %s193, 4
      %s195 = scalar_lea.vmem %s1, %s194
      %p196 = pneg %p82
      %p197 = pneg %p79
      %p198 = pneg %p103
      %p199 = pneg %p100
      %p200 = pneg %p131
      %p201 = pneg %p128
      %p202 = scmp.lt.s32.totalorder %s20, 3
      %s203 = scalar_select %p202, %s20, 3
      %p204 = scmp.lt.s32.totalorder %s21, 0
      %s205 = scalar_select %p204, %s21, 0
      %s206 = sadd.s32 %s205, %s203
      %s207 = smul.addr %s206, 8
      %s208 = scalar_lea.vmem %s3, %s207
      %p209 = scmp.lt.s32.totalorder %s20, 3
      %s210 = scalar_select %p209, %s20, 3
      %p211 = scmp.lt.s32.totalorder %s21, 0
      %s212 = scalar_select %p211, %s21, 0
      %s213 = smul.addr %s212, 3
      %s214 = smul.addr %s210, 3
      %s215 = sadd.s32 %s213, %s214
      %s216 = smul.addr %s215, 4
      %s217 = scalar_lea.vmem %s0, %s216
      %p218 = scmp.lt.s32.totalorder %s20, 3
      %s219 = scalar_select %p218, %s20, 3
      %s220 = smul.addr %s219, 48
      %s221 = smul.addr %s220, 4
      %s222 = scalar_lea.vmem %s1, %s221
      %p223 = scmp.lt.s32.totalorder %s20, 3
      %s224 = scalar_select %p223, %s20, 3
      %p225 = scmp.lt.s32.totalorder %s21, 0
      %s226 = scalar_select %p225, %s21, 0
      %s227 = sadd.s32 %s226, %s224
      %s228 = smul.addr %s227, 8
      %s229 = scalar_lea.vmem %s3, %s228
      %v231 = vld [vmem:[%s217] sm:$0xff]
      %v232 = vld [vmem:[%s217 + $0x8] sm:$0xf]
      %v233 = vld [vmem:[%s222] sm:$0xf]
      %v234 = vld [vmem:[%s222 + $0x4] sm:$0xf]
      %v235 = vld [vmem:[%s222 + $0x8] sm:$0xf]
      %v236 = vld [vmem:[%s222 + $0xc] sm:$0xf]
      %v237 = vld [vmem:[%s222 + $0x10] sm:$0xf]
      %v238 = vld [vmem:[%s222 + $0x14] sm:$0xf]
      %v239 = vld [vmem:[%s222 + $0x18] sm:$0xf]
      %v240 = vld [vmem:[%s222 + $0x1c] sm:$0xf]
      %v241 = vld [vmem:[%s222 + $0x20] sm:$0xf]
      %v242 = vld [vmem:[%s222 + $0x24] sm:$0xf]
      %v243 = vld [vmem:[%s222 + $0x28] sm:$0xf]
      %v244 = vld [vmem:[%s222 + $0x2c] sm:$0xf]
      %v245 = vld [vmem:[%s222 + $0x30] sm:$0xf]
      %v246 = vld [vmem:[%s222 + $0x34] sm:$0xf]
      %v247 = vld [vmem:[%s222 + $0x38] sm:$0xf]
      %v248 = vld [vmem:[%s222 + $0x3c] sm:$0xf]
      %v249 = vld [vmem:[%s222 + $0x40] sm:$0xf]
      %v250 = vld [vmem:[%s222 + $0x44] sm:$0xf]
      %v251 = vld [vmem:[%s222 + $0x48] sm:$0xf]
      %v252 = vld [vmem:[%s222 + $0x4c] sm:$0xf]
      %v253 = vld [vmem:[%s222 + $0x50] sm:$0xf]
      %v254 = vld [vmem:[%s222 + $0x54] sm:$0xf]
      %v255 = vld [vmem:[%s222 + $0x58] sm:$0xf]
      %v256 = vld [vmem:[%s222 + $0x5c] sm:$0xf]
      %v257 = vld [vmem:[%s222 + $0x60] sm:$0xf]
      %v258 = vld [vmem:[%s222 + $0x64] sm:$0xf]
      %v259 = vld [vmem:[%s222 + $0x68] sm:$0xf]
      %v260 = vld [vmem:[%s222 + $0x6c] sm:$0xf]
      %v261 = vld [vmem:[%s222 + $0x70] sm:$0xf]
      %v262 = vld [vmem:[%s222 + $0x74] sm:$0xf]
      %v263 = vld [vmem:[%s222 + $0x78] sm:$0xf]
      %v264 = vld [vmem:[%s222 + $0x7c] sm:$0xf]
      %v265 = vld [vmem:[%s222 + $0x80] sm:$0xf]
      %v266 = vld [vmem:[%s222 + $0x84] sm:$0xf]
      %v267 = vld [vmem:[%s222 + $0x88] sm:$0xf]
      %v268 = vld [vmem:[%s222 + $0x8c] sm:$0xf]
      %v269 = vld [vmem:[%s222 + $0x90] sm:$0xf]
      %v270 = vld [vmem:[%s222 + $0x94] sm:$0xf]
      %v271 = vld [vmem:[%s222 + $0x98] sm:$0xf]
      %v272 = vld [vmem:[%s222 + $0x9c] sm:$0xf]
      %v273 = vld [vmem:[%s222 + $0xa0] sm:$0xf]
      %v274 = vld [vmem:[%s222 + $0xa4] sm:$0xf]
      %v275 = vld [vmem:[%s222 + $0xa8] sm:$0xf]
      %v276 = vld [vmem:[%s222 + $0xac] sm:$0xf]
      %v277 = vld [vmem:[%s222 + $0xb0] sm:$0xf]
      %v278 = vld [vmem:[%s222 + $0xb4] sm:$0xf]
      %v279 = vld [vmem:[%s222 + $0xb8] sm:$0xf]
      %v280 = vld [vmem:[%s222 + $0xbc] sm:$0xf]
      %v281 = vld [vmem:[%s2] sm:$0x1]
      %v282 = vlaneseq
      %v283 = vshrl.u32 %v282, 7
      %v284 = vsub.s32 0, %v283
      %v285 = vrot.slane %v281, %v284
      %v288 = vunpack.c.l.b16 %v231
      %v289 = vunpack.c.h.b16 %v231
      %v290 = vunpack.c.l.b16 %v232
      %v291 = vpack.c.b16 %v288, %v288
      %v292 = vpack.c.b16 %v289, %v289
      %v293 = vpack.c.b16 %v290, %v290
      %v345 = vunpack.c.l.b16 %v233
      %v346 = vunpack.c.l.b16 %v234
      %v347 = vunpack.c.l.b16 %v235
      %v348 = vunpack.c.l.b16 %v236
      %v349 = vunpack.c.l.b16 %v237
      %v350 = vunpack.c.l.b16 %v238
      %v351 = vunpack.c.l.b16 %v239
      %v352 = vunpack.c.l.b16 %v240
      %v353 = vunpack.c.l.b16 %v241
      %v354 = vunpack.c.l.b16 %v242
      %v355 = vunpack.c.l.b16 %v243
      %v356 = vunpack.c.l.b16 %v244
      %v357 = vunpack.c.l.b16 %v245
      %v358 = vunpack.c.l.b16 %v246
      %v359 = vunpack.c.l.b16 %v247
      %v360 = vunpack.c.l.b16 %v248
      %v361 = vunpack.c.l.b16 %v249
      %v362 = vunpack.c.l.b16 %v250
      %v363 = vunpack.c.l.b16 %v251
      %v364 = vunpack.c.l.b16 %v252
      %v365 = vunpack.c.l.b16 %v253
      %v366 = vunpack.c.l.b16 %v254
      %v367 = vunpack.c.l.b16 %v255
      %v368 = vunpack.c.l.b16 %v256
      %v369 = vunpack.c.l.b16 %v257
      %v370 = vunpack.c.l.b16 %v258
      %v371 = vunpack.c.l.b16 %v259
      %v372 = vunpack.c.l.b16 %v260
      %v373 = vunpack.c.l.b16 %v261
      %v374 = vunpack.c.l.b16 %v262
      %v375 = vunpack.c.l.b16 %v263
      %v376 = vunpack.c.l.b16 %v264
      %v377 = vunpack.c.l.b16 %v265
      %v378 = vunpack.c.l.b16 %v266
      %v379 = vunpack.c.l.b16 %v267
      %v380 = vunpack.c.l.b16 %v268
      %v381 = vunpack.c.l.b16 %v269
      %v382 = vunpack.c.l.b16 %v270
      %v383 = vunpack.c.l.b16 %v271
      %v384 = vunpack.c.l.b16 %v272
      %v385 = vunpack.c.l.b16 %v273
      %v386 = vunpack.c.l.b16 %v274
      %v387 = vunpack.c.l.b16 %v275
      %v388 = vunpack.c.l.b16 %v276
      %v389 = vunpack.c.l.b16 %v277
      %v390 = vunpack.c.l.b16 %v278
      %v391 = vunpack.c.l.b16 %v279
      %v392 = vunpack.c.l.b16 %v280
      %v393 = vpack.c.b16 %v346, %v345
      %v394 = vpack.c.b16 %v348, %v347
      %v395 = vpack.c.b16 %v350, %v349
      %v396 = vpack.c.b16 %v352, %v351
      %v397 = vpack.c.b16 %v354, %v353
      %v398 = vpack.c.b16 %v356, %v355
      %v399 = vpack.c.b16 %v358, %v357
      %v400 = vpack.c.b16 %v360, %v359
      %v401 = vpack.c.b16 %v362, %v361
      %v402 = vpack.c.b16 %v364, %v363
      %v403 = vpack.c.b16 %v366, %v365
      %v404 = vpack.c.b16 %v368, %v367
      %v405 = vpack.c.b16 %v370, %v369
      %v406 = vpack.c.b16 %v372, %v371
      %v407 = vpack.c.b16 %v374, %v373
      %v408 = vpack.c.b16 %v376, %v375
      %v409 = vpack.c.b16 %v378, %v377
      %v410 = vpack.c.b16 %v380, %v379
      %v411 = vpack.c.b16 %v382, %v381
      %v412 = vpack.c.b16 %v384, %v383
      %v413 = vpack.c.b16 %v386, %v385
      %v414 = vpack.c.b16 %v388, %v387
      %v415 = vpack.c.b16 %v390, %v389
      %v416 = vpack.c.b16 %v392, %v391
      %441 = vmatprep.subr.bf16.mxu0 0
      %442 = vmatpush1.bf16.msra.mxu0 %v393
      %443 = vmatprep.subr.bf16.mxu0 0
      %444 = vmatpush1.bf16.msra.mxu0 %v394
      %445 = vmatprep.subr.bf16.mxu0 0
      %446 = vmatpush1.bf16.msra.mxu0 %v395
      %447 = vmatprep.subr.bf16.mxu0 0
      %448 = vmatpush1.bf16.msra.mxu0 %v396
      %449 = vmatprep.subr.bf16.mxu0 0
      %450 = vmatpush1.bf16.msra.mxu0 %v397
      %451 = vmatprep.subr.bf16.mxu0 0
      %452 = vmatpush1.bf16.msra.mxu0 %v398
      %453 = vmatprep.subr.bf16.mxu0 0
      %454 = vmatpush1.bf16.msra.mxu0 %v399
      %455 = vmatprep.subr.bf16.mxu0 0
      %456 = vmatpush1.bf16.msra.mxu0 %v400
      %457 = vmatprep.subr.bf16.mxu0 0
      %458 = vmatpush1.bf16.msra.mxu0 %v401
      %459 = vmatprep.subr.bf16.mxu0 0
      %460 = vmatpush1.bf16.msra.mxu0 %v402
      %461 = vmatprep.subr.bf16.mxu0 0
      %462 = vmatpush1.bf16.msra.mxu0 %v403
      %463 = vmatprep.subr.bf16.mxu0 0
      %464 = vmatpush1.bf16.msra.mxu0 %v404
      %465 = vmatprep.subr.bf16.mxu0 0
      %466 = vmatpush1.bf16.msra.mxu0 %v405
      %467 = vmatprep.subr.bf16.mxu0 0
      %468 = vmatpush1.bf16.msra.mxu0 %v406
      %469 = vmatprep.subr.bf16.mxu0 0
      %470 = vmatpush1.bf16.msra.mxu0 %v407
      %471 = vmatprep.subr.bf16.mxu0 0
      %472 = vmatpush1.bf16.msra.mxu0 %v408
      %473 = vmatprep.mubr.bf16.mxu0 %v292
      %474 = vmatmul.mubr.bf16.gmra.mrb[0].mxu0 %v291
      %v475 = vpop.f32.mrb[0].mxu0
      %v476 = vadd.f32 %v285, %v475
      %v477 = vpop.f32.mrb[0].mxu0
      %v478 = vpop.f32.mrb[0].mxu0
      %v479 = vpop.f32.mrb[0].mxu0
      %480 = vdwg.mxu0
      %481 = vmatprep.subr.bf16.mxu0 0
      %482 = vmatpush1.bf16.msra.mxu0 %v409
      %483 = vmatprep.subr.bf16.mxu0 0
      %484 = vmatpush1.bf16.msra.mxu0 %v410
      %485 = vmatprep.subr.bf16.mxu0 0
      %486 = vmatpush1.bf16.msra.mxu0 %v411
      %487 = vmatprep.subr.bf16.mxu0 0
      %488 = vmatpush1.bf16.msra.mxu0 %v412
      %489 = vmatprep.subr.bf16.mxu0 0
      %490 = vmatpush1.bf16.msra.mxu0 %v413
      %491 = vmatprep.subr.bf16.mxu0 0
      %492 = vmatpush1.bf16.msra.mxu0 %v414
      %493 = vmatprep.subr.bf16.mxu0 0
      %494 = vmatpush1.bf16.msra.mxu0 %v415
      %495 = vmatprep.subr.bf16.mxu0 0
      %496 = vmatpush1.bf16.msra.mxu0 %v416
      %497 = vmatprep.subr.bf16.mxu0 0
      %498 = vmatpush1.bf16.msra.mxu0 0
      %499 = vmatprep.subr.bf16.mxu0 0
      %500 = vmatpush1.bf16.msra.mxu0 0
      %501 = vmatprep.subr.bf16.mxu0 0
      %502 = vmatpush1.bf16.msra.mxu0 0
      %503 = vmatprep.subr.bf16.mxu0 0
      %504 = vmatpush1.bf16.msra.mxu0 0
      %505 = vmatprep.subr.bf16.mxu0 0
      %506 = vmatpush1.bf16.msra.mxu0 0
      %507 = vmatprep.subr.bf16.mxu0 0
      %508 = vmatpush1.bf16.msra.mxu0 0
      %509 = vmatprep.subr.bf16.mxu0 0
      %510 = vmatpush1.bf16.msra.mxu0 0
      %511 = vmatprep.subr.bf16.mxu0 0
      %512 = vmatpush1.bf16.msra.mxu0 0
      %513 = vmatprep.mubr.bf16.mxu0 0
      %514 = vmatmul.mubr.bf16.gmra.mrb[0].mxu0 %v293
      %v515 = vpop.f32.mrb[0].mxu0
      %v516 = vadd.f32 %v476, %v515
      %v517 = vpop.f32.mrb[0].mxu0
      %v518 = vpop.f32.mrb[0].mxu0
      %v519 = vpop.f32.mrb[0].mxu0
      %520 = vdwg.mxu0
      %v521 = vmax.f32 %v516, 0.0
      %s522 = smul.u32 %s21, 8
      %v523 = vlaneseq
      %v524 = vshrl.u32 %v523, 7
      %v525 = vstv %s522
      %v526 = vadd.s32 %v525, %v524
      %vm527 = vcmp.lt.s32.totalorder %v526, 8
      %v528 = vsel %vm527, 1, 0
      %vm529 = vcmp.eq.s32.totalorder %v528, 1
      %v530 = vsel %vm529, %v521, 0.0
      %p531 = scmp.eq.s32.totalorder %s19, 0
      %p532 = scmp.eq.s32.totalorder %s20, 0
      %p533 = pnand %p531, %p532
      %p534 = pneg %p533
      %p535 = scmp.eq.s32.totalorder %s21, 0
      %p536 = pnand %p534, %p535
      %p537 = pneg %p536
      // Predicated region
      $region33: #{vae_forward.16} parent=31 // pred_check
        _
      $region34: #{vae_forward.16} parent=31 // pred_check_branch
        %539 = sbr.rel (%p536) target = $region36
      $region35: #{vae_forward.16} parent=31 // pred_region
        %vm540 = vcmask 385024
        %541 = vst.msk [vmem:[#allocation2] sm:$0x1] %vm540, 0.0
        %542 = vst.msk [vmem:[#allocation3] sm:$0x1] %vm540, 0.0
      $region36: #{vae_forward.16} parent=31 // pred_fallthru
        _
      // Predicated region
      $region37: #{vae_forward.16} parent=31 // pred_check
        %p543 = pneg %p531
      $region38: #{vae_forward.16} parent=31 // pred_check_branch
        %545 = sbr.rel (%p543) target = $region40
      $region39: #{vae_forward.16} parent=31 // pred_region
        %v546 = vld [vmem:[#allocation2] sm:$0x1]
        %vm547 = vcmask 392192
        %v548 = vsel %vm547, %v530, 0.0
        %v549 = vrot.slane %v548, 4
        %v550 = vadd.f32 %v548, %v549
        %v551 = vrot.slane %v550, 2
        %v552 = vadd.f32 %v550, %v551
        %v553 = vrot.slane %v552, 1
        %v554 = vadd.f32 %v552, %v553
        %v555 = vadd.f32 %v546, %v554
        %vm556 = vcmask 385024
        %557 = vst.msk [vmem:[#allocation2] sm:$0x1] %vm556, %v555
        %v558 = vld [vmem:[#allocation3] sm:$0x1]
        %v559 = vmul.f32 %v530, %v530
        %v560 = vsel %vm547, %v559, 0.0
        %v561 = vrot.slane %v560, 4
        %v562 = vadd.f32 %v560, %v561
        %v563 = vrot.slane %v562, 2
        %v564 = vadd.f32 %v562, %v563
        %v565 = vrot.slane %v564, 1
        %v566 = vadd.f32 %v564, %v565
        %v567 = vadd.f32 %v558, %v566
        %568 = vst.msk [vmem:[#allocation3] sm:$0x1] %vm556, %v567
      $region40: #{vae_forward.16} parent=31 // pred_fallthru
        _
      %p569 = scmp.eq.s32.totalorder %s19, 1
      // Predicated region
      $region41: #{vae_forward.16} parent=31 // pred_check
        %p570 = pneg %p569
      $region42: #{vae_forward.16} parent=31 // pred_check_branch
        %572 = sbr.rel (%p570) target = $region44
      $region43: #{vae_forward.16} parent=31 // pred_region
        %v573 = vld [vmem:[#allocation2] sm:$0x1]
        %v574 = vmul.f32 %v573, 0.03125
        %v575 = vld [vmem:[#allocation3] sm:$0x1]
        %v576 = vmul.f32 %v575, 0.03125
        %v577 = vmul.f32 %v574, %v574
        %v578 = vsub.f32 %v576, %v577
        %v580 = vlaneseq
        %v581 = vshrl.u32 %v580, 7
        %v582 = vsub.s32 0, %v581
        %v583 = vrot.slane %v574, %v582
        %v585 = vsub.f32 %v521, %v583
        %v586 = vadd.f32 %v578, 1e-05
        %v587 = vrsqrt.pop %v586
        %v589 = vlaneseq
        %v590 = vshrl.u32 %v589, 7
        %v591 = vsub.s32 0, %v590
        %v592 = vrot.slane %v587, %v591
        %v594 = vmul.f32 %v585, %v592
        %v595 = vld [vmem:[%s2 + $0x1] sm:$0x1]
        %v596 = vlaneseq
        %v597 = vshrl.u32 %v596, 7
        %v598 = vsub.s32 0, %v597
        %v599 = vrot.slane %v595, %v598
        %v600 = vmul.f32 %v594, %v599
        %v601 = vld [vmem:[%s2 + $0x2] sm:$0x1]
        %v602 = vlaneseq
        %v603 = vshrl.u32 %v602, 7
        %v604 = vsub.s32 0, %v603
        %v605 = vrot.slane %v601, %v604
        %v606 = vadd.f32 %v600, %v605
        %vm607 = vcmask 392192
        %608 = vst.msk [vmem:[%s229] sm:$0xff] %vm607, %v606
      $region44: #{vae_forward.16} parent=31 // pred_fallthru
        _
      %p609 = scmp.lt.s32.totalorder %s20, 3
      %s610 = scalar_select %p609, %s20, 3
      %p611 = scmp.lt.s32.totalorder %s21, 0
      %s612 = scalar_select %p611, %s21, 0
      %s613 = sadd.s32 %s612, %s610
      %s614 = smul.addr %s613, 8
      %s615 = scalar_lea.vmem %s3, %s614
      // Predicated region
      $region45: #{vae_forward.16} parent=31 // pred_check
        %p616 = pneg %p128
      $region46: #{vae_forward.16} parent=31 // pred_check_branch
        %618 = sbr.rel (%p616) target = $region48
      $region47: #{vae_forward.16} parent=31 // pred_region
        _
      $region48: #{vae_forward.16} parent=31 // pred_fallthru
        _
    $region32: #{vae_forward.16} parent=5 // pred_fallthru
      _
    %p619 = scmp.le.s32.totalorder 2, %s9
    // Predicated region
    $region49: #{vae_forward.16} parent=5 // pred_check
      %p620 = pneg %p619
    $region50: #{vae_forward.16} parent=5 // pred_check_branch
      %622 = sbr.rel (%p620) target = $region52
    $region51: #{vae_forward.16} parent=5 // pred_region
      %s623 = ssub.s32 %s9, 2
      // Predicated region
      $region53: #{vae_forward.16} parent=51 // pred_check
        %p624 = pneg %p134
      $region54: #{vae_forward.16} parent=51 // pred_check_branch
        %626 = sbr.rel (%p624) target = $region56
      $region55: #{vae_forward.16} parent=51 // pred_region
        %p627 = scmp.lt.s32.totalorder %s23, 3
        %s628 = scalar_select %p627, %s23, 3
        %p629 = scmp.lt.s32.totalorder %s24, 0
        %s630 = scalar_select %p629, %s24, 0
        %s631 = sadd.s32 %s630, %s628
        %s632 = smul.addr %s631, 8
        %s633 = scalar_lea.vmem %s3, %s632
      $region56: #{vae_forward.16} parent=51 // pred_fallthru
        _
    $region52: #{vae_forward.16} parent=5 // pred_fallthru
      _
  $region6: #{vae_forward.16} parent=0 // loop_footer
    %s13 = sadd.s32 1, %s9
  $region7: #{vae_forward.16} parent=0 // loop_footer_branch
    %8 = sbr.rel target = $region3
  $region8: #{vae_forward.16} parent=0 // loop_exit
    _

// kernel: vae_forward.17
$region0: #{vae_forward.17}
  #allocation0 [shape = 'u32[]', space=smem, size = 0x4, offset = 0x4, fixed_abs, tag = 'smem constant byte address 0x4 - core index']
  #allocation1 [shape = 'u32[144,128]{1,0:T(1,128)}', space=vmem, size = 0x12000, scoped, tag = 'internal scratch']
  #allocation2 [shape = 'f32[1,24]{1,0:T(1,128)}', space=vmem, size = 0x200, scoped, tag = 'scratch operand']
  #allocation3 [shape = 'f32[1,24]{1,0:T(1,128)}', space=vmem, size = 0x200, scoped, tag = 'scratch operand']
  %s0 = inlined_call_operand.vmem [shape: bf16[4,32,192], index: 0, kind: input, shape index: {}]
  %s1 = inlined_call_operand.vmem [shape: bf16[4,192,24], index: 1, kind: input, shape index: {}]
  %s2 = inlined_call_operand.vmem [shape: f32[3,24], index: 2, kind: input, shape index: {}]
  %s3 = inlined_call_operand.vmem [shape: f32[4,32,24], index: 3, kind: output, shape index: {}]
  %s4 = sld [smem:[#allocation0]]
  $region57: #{vae_forward.17} parent=0
    _
  %s6 = ssub.s32 1, %s4
  %s7 = scalar_select 0, %s6, %s4
  loop: start=0, step=1, limit=10
  $region2: #{vae_forward.17} parent=0 // loop_pre_header
    _
  $region3: #{vae_forward.17} parent=0 // loop_header
    %s9 = sphi 0, %s13
    %p10 = scmp.ge.s32.totalorder %s9, 10
    %s16 = sphi 0, %s35
    %s17 = sphi 0, %s31
    %s18 = sphi 0, %s27
    %s19 = sphi 0, %s16
    %s20 = sphi 0, %s17
    %s21 = sphi 0, %s18
    %s22 = sphi 0, %s19
    %s23 = sphi 0, %s20
    %s24 = sphi 0, %s21
    %s40 = sphi 0, %s42
    %s43 = sphi 0, %s40
    %s44 = sphi 0, %s43
    %s60 = sphi 0, %s44
    %s66 = sphi 0, %s68
    %s69 = sphi 0, %s66
    %s70 = sphi 0, %s69
    %s86 = sphi 0, %s70
    %s90 = sphi 0, %s90
    %s92 = sphi 0, %s90
    %s93 = sphi 0, %s92
    %s107 = sphi 0, %s93
    %s115 = sphi 0, %s117
    %s118 = sphi 0, %s115
    %s119 = sphi 0, %s118
    %s135 = sphi 0, %s119
  $region4: #{vae_forward.17} parent=0 // loop_header_branch
    %12 = sbr.rel (%p10) target = $region8
  $region5: #{vae_forward.17} parent=0 // loop_body
    %s14 = ssub.s32 %s9, 1
    %s15 = ssub.s32 %s9, 2
    %s25 = sadd.s32 1, %s18
    %p26 = scmp.ge.s32.totalorder %s25, 1
    %s27 = scalar_select %p26, 0, %s25
    %s28 = sadd.s32 1, %s17
    %s29 = scalar_select %p26, %s28, %s17
    %p30 = scmp.ge.s32.totalorder %s29, 4
    %s31 = scalar_select %p30, 0, %s29
    %s32 = sadd.s32 1, %s16
    %s33 = scalar_select %p30, %s32, %s16
    %p34 = scmp.ge.s32.totalorder %s33, 2
    %s35 = scalar_select %p34, 0, %s33
    %s36 = ssub.s32 %s17, %s31
    %s37 = ssub.s32 %s18, %s27
    %s38 = sor.u32 %s36, %s37
    %p39 = scmp.eq.s32.totalorder %s38, 0
    %s41 = sadd.s32 %s40, 1
    %s42 = scalar_select %p39, %s40, %s41
    %p45 = pneg %p39
    %p46 = scmp.eq.s32.totalorder %s9, 7
    %p47 = por %p45, %p46
    %p48 = scmp.ne.s32.totalorder %s40, %s43
    %p49 = scmp.eq.s32.totalorder %s9, 0
    %p50 = por %p48, %p49
    %p51 = scmp.ne.s32.totalorder %s40, %s43
    %p52 = scmp.eq.s32.totalorder %s14, 7
    %p53 = por %p51, %p52
    %p54 = scmp.ne.s32.totalorder %s43, %s44
    %p55 = scmp.eq.s32.totalorder %s14, 0
    %p56 = por %p54, %p55
    %p57 = scmp.ne.s32.totalorder %s43, %s44
    %p58 = scmp.eq.s32.totalorder %s15, 7
    %p59 = por %p57, %p58
    %p61 = scmp.ne.s32.totalorder %s44, %s60
    %p62 = scmp.eq.s32.totalorder %s15, 0
    %p63 = por %p61, %p62
    %s64 = ssub.s32 %s17, %s31
    %p65 = scmp.eq.s32.totalorder %s64, 0
    %s67 = sadd.s32 %s66, 1
    %s68 = scalar_select %p65, %s66, %s67
    %p71 = pneg %p65
    %p72 = scmp.eq.s32.totalorder %s9, 7
    %p73 = por %p71, %p72
    %p74 = scmp.ne.s32.totalorder %s66, %s69
    %p75 = scmp.eq.s32.totalorder %s9, 0
    %p76 = por %p74, %p75
    %p77 = scmp.ne.s32.totalorder %s66, %s69
    %p78 = scmp.eq.s32.totalorder %s14, 7
    %p79 = por %p77, %p78
    %p80 = scmp.ne.s32.totalorder %s69, %s70
    %p81 = scmp.eq.s32.totalorder %s14, 0
    %p82 = por %p80, %p81
    %p83 = scmp.ne.s32.totalorder %s69, %s70
    %p84 = scmp.eq.s32.totalorder %s15, 7
    %p85 = por %p83, %p84
    %p87 = scmp.ne.s32.totalorder %s70, %s86
    %p88 = scmp.eq.s32.totalorder %s15, 0
    %p89 = por %p87, %p88
    %s91 = sadd.s32 %s90, 1
    %p94 = scmp.eq.s32.totalorder %s9, 7
    %p95 = scmp.ne.s32.totalorder %s90, %s92
    %p96 = scmp.eq.s32.totalorder %s9, 0
    %p97 = por %p95, %p96
    %p98 = scmp.ne.s32.totalorder %s90, %s92
    %p99 = scmp.eq.s32.totalorder %s14, 7
    %p100 = por %p98, %p99
    %p101 = scmp.ne.s32.totalorder %s92, %s93
    %p102 = scmp.eq.s32.totalorder %s14, 0
    %p103 = por %p101, %p102
    %p104 = scmp.ne.s32.totalorder %s92, %s93
    %p105 = scmp.eq.s32.totalorder %s15, 7
    %p106 = por %p104, %p105
    %p108 = scmp.ne.s32.totalorder %s93, %s107
    %p109 = scmp.eq.s32.totalorder %s15, 0
    %p110 = por %p108, %p109
    %s111 = ssub.s32 %s17, %s31
    %s112 = ssub.s32 %s18, %s27
    %s113 = sor.u32 %s111, %s112
    %p114 = scmp.eq.s32.totalorder %s113, 0
    %s116 = sadd.s32 %s115, 1
    %s117 = scalar_select %p114, %s115, %s116
    %p120 = pneg %p114
    %p121 = scmp.eq.s32.totalorder %s9, 7
    %p122 = por %p120, %p121
    %p123 = scmp.ne.s32.totalorder %s115, %s118
    %p124 = scmp.eq.s32.totalorder %s9, 0
    %p125 = por %p123, %p124
    %p126 = scmp.ne.s32.totalorder %s115, %s118
    %p127 = scmp.eq.s32.totalorder %s14, 7
    %p128 = por %p126, %p127
    %p129 = scmp.ne.s32.totalorder %s118, %s119
    %p130 = scmp.eq.s32.totalorder %s14, 0
    %p131 = por %p129, %p130
    %p132 = scmp.ne.s32.totalorder %s118, %s119
    %p133 = scmp.eq.s32.totalorder %s15, 7
    %p134 = por %p132, %p133
    %p136 = scmp.ne.s32.totalorder %s119, %s135
    %p137 = scmp.eq.s32.totalorder %s15, 0
    %p138 = por %p136, %p137
    %p139 = scmp.le.s32.totalorder 1, %s9
    %p140 = scmp.lt.s32.totalorder %s9, 9
    %p141 = pnand %p139, %p140
    %p142 = pneg %p141
    // Predicated region
    $region9: #{vae_forward.17} parent=5 // pred_check
      _
    $region10: #{vae_forward.17} parent=5 // pred_check_branch
      %144 = sbr.rel (%p141) target = $region12
    $region11: #{vae_forward.17} parent=5 // pred_region
      %s145 = ssub.s32 %s9, 1
      // Predicated region
      $region13: #{vae_forward.17} parent=11 // pred_check
        %p146 = pneg %p103
      $region14: #{vae_forward.17} parent=11 // pred_check_branch
        %148 = sbr.rel (%p146) target = $region16
      $region15: #{vae_forward.17} parent=11 // pred_region
        _
      $region16: #{vae_forward.17} parent=11 // pred_fallthru
        _
    $region12: #{vae_forward.17} parent=5 // pred_fallthru
      _
    %p149 = scmp.lt.s32.totalorder %s9, 8
    // Predicated region
    $region17: #{vae_forward.17} parent=5 // pred_check
      %p150 = pneg %p149
    $region18: #{vae_forward.17} parent=5 // pred_check_branch
      %152 = sbr.rel (%p150) target = $region20
    $region19: #{vae_forward.17} parent=5 // pred_region
      // Predicated region
      $region21: #{vae_forward.17} parent=19 // pred_check
        %p153 = pneg %p50
      $region22: #{vae_forward.17} parent=19 // pred_check_branch
        %155 = sbr.rel (%p153) target = $region24
      $region23: #{vae_forward.17} parent=19 // pred_region
        %s156 = smul.u32 4, %s18
        %p157 = scmp.lt.s32.totalorder %s17, 3
        %s158 = scalar_select %p157, %s17, 3
        %p159 = scmp.lt.s32.totalorder %s156, 3
        %s160 = scalar_select %p159, %s156, 3
        %s161 = smul.addr %s160, 2
        %s162 = smul.addr %s158, 8
        %s163 = sadd.s32 %s161, %s162
        %s164 = smul.addr %s163, 4
        %s165 = scalar_lea.vmem %s0, %s164
        %s166 = smul.u32 4, %s18
      $region24: #{vae_forward.17} parent=19 // pred_fallthru
        _
      // Predicated region
      $region25: #{vae_forward.17} parent=19 // pred_check
        %p167 = pneg %p76
      $region26: #{vae_forward.17} parent=19 // pred_check_branch
        %169 = sbr.rel (%p167) target = $region28
      $region27: #{vae_forward.17} parent=19 // pred_region
        %p170 = scmp.lt.s32.totalorder %s17, 3
        %s171 = scalar_select %p170, %s17, 3
        %s172 = smul.addr %s171, 24
        %s173 = smul.addr %s172, 4
        %s174 = scalar_lea.vmem %s1, %s173
      $region28: #{vae_forward.17} parent=19 // pred_fallthru
        _
    $region20: #{vae_forward.17} parent=5 // pred_fallthru
      _
    %p175 = scmp.le.s32.totalorder 1, %s9
    %p176 = scmp.lt.s32.totalorder %s9, 9
    %p177 = pnand %p175, %p176
    %p178 = pneg %p177
    // Predicated region
    $region29: #{vae_forward.17} parent=5 // pred_check
      _
    $region30: #{vae_forward.17} parent=5 // pred_check_branch
      %180 = sbr.rel (%p177) target = $region32
    $region31: #{vae_forward.17} parent=5 // pred_region
      %s181 = ssub.s32 %s9, 1
      %s182 = smul.u32 4, %s21
      %p183 = scmp.lt.s32.totalorder %s20, 3
      %s184 = scalar_select %p183, %s20, 3
      %p185 = scmp.lt.s32.totalorder %s182, 3
      %s186 = scalar_select %p185, %s182, 3
      %s187 = smul.addr %s186, 2
      %s188 = smul.addr %s184, 8
      %s189 = sadd.s32 %s187, %s188
      %s190 = smul.addr %s189, 4
      %s191 = scalar_lea.vmem %s0, %s190
      %p192 = pneg %p56
      %p193 = pneg %p53
      %p194 = scmp.lt.s32.totalorder %s20, 3
      %s195 = scalar_select %p194, %s20, 3
      %s196 = smul.addr %s195, 24
      %s197 = smul.addr %s196, 4
      %s198 = scalar_lea.vmem %s1, %s197
      %p199 = pneg %p82
      %p200 = pneg %p79
      %p201 = pneg %p103
      %p202 = pneg %p100
      %p203 = pneg %p131
      %p204 = pneg %p128
      %s205 = smul.u32 4, %s21
      %p206 = scmp.lt.s32.totalorder %s20, 3
      %s207 = scalar_select %p206, %s20, 3
      %p208 = scmp.lt.s32.totalorder %s205, 3
      %s209 = scalar_select %p208, %s205, 3
      %s210 = smul.addr %s207, 4
      %s211 = sadd.s32 %s209, %s210
      %s212 = smul.addr %s211, 8
      %s213 = scalar_lea.vmem %s3, %s212
      %s214 = smul.u32 4, %s21
      %p215 = scmp.lt.s32.totalorder %s20, 3
      %s216 = scalar_select %p215, %s20, 3
      %p217 = scmp.lt.s32.totalorder %s214, 3
      %s218 = scalar_select %p217, %s214, 3
      %s219 = smul.addr %s218, 2
      %s220 = smul.addr %s216, 8
      %s221 = sadd.s32 %s219, %s220
      %s222 = smul.addr %s221, 4
      %s223 = scalar_lea.vmem %s0, %s222
      %s224 = smul.u32 4, %s21
      %p225 = scmp.lt.s32.totalorder %s20, 3
      %s226 = scalar_select %p225, %s20, 3
      %s227 = smul.addr %s226, 24
      %s228 = smul.addr %s227, 4
      %s229 = scalar_lea.vmem %s1, %s228
      %s230 = smul.u32 4, %s21
      %p231 = scmp.lt.s32.totalorder %s20, 3
      %s232 = scalar_select %p231, %s20, 3
      %p233 = scmp.lt.s32.totalorder %s230, 3
      %s234 = scalar_select %p233, %s230, 3
      %s235 = smul.addr %s232, 4
      %s236 = sadd.s32 %s234, %s235
      %s237 = smul.addr %s236, 8
      %s238 = scalar_lea.vmem %s3, %s237
      %s239 = smul.u32 4, %s21
      %v241 = vld [vmem:[%s223] sm:$0xff]
      %v242 = vld [vmem:[%s223 + $0x8] sm:$0xff]
      %v243 = vld [vmem:[%s223 + $0x10] sm:$0xff]
      %v244 = vld [vmem:[%s223 + $0x18] sm:$0xff]
      %v245 = vld [vmem:[%s229] sm:$0xf]
      %v246 = vld [vmem:[%s229 + $0x4] sm:$0xf]
      %v247 = vld [vmem:[%s229 + $0x8] sm:$0xf]
      %v248 = vld [vmem:[%s229 + $0xc] sm:$0xf]
      %v249 = vld [vmem:[%s229 + $0x10] sm:$0xf]
      %v250 = vld [vmem:[%s229 + $0x14] sm:$0xf]
      %v251 = vld [vmem:[%s229 + $0x18] sm:$0xf]
      %v252 = vld [vmem:[%s229 + $0x1c] sm:$0xf]
      %v253 = vld [vmem:[%s229 + $0x20] sm:$0xf]
      %v254 = vld [vmem:[%s229 + $0x24] sm:$0xf]
      %v255 = vld [vmem:[%s229 + $0x28] sm:$0xf]
      %v256 = vld [vmem:[%s229 + $0x2c] sm:$0xf]
      %v257 = vld [vmem:[%s229 + $0x30] sm:$0xf]
      %v258 = vld [vmem:[%s229 + $0x34] sm:$0xf]
      %v259 = vld [vmem:[%s229 + $0x38] sm:$0xf]
      %v260 = vld [vmem:[%s229 + $0x3c] sm:$0xf]
      %v261 = vld [vmem:[%s229 + $0x40] sm:$0xf]
      %v262 = vld [vmem:[%s229 + $0x44] sm:$0xf]
      %v263 = vld [vmem:[%s229 + $0x48] sm:$0xf]
      %v264 = vld [vmem:[%s229 + $0x4c] sm:$0xf]
      %v265 = vld [vmem:[%s229 + $0x50] sm:$0xf]
      %v266 = vld [vmem:[%s229 + $0x54] sm:$0xf]
      %v267 = vld [vmem:[%s229 + $0x58] sm:$0xf]
      %v268 = vld [vmem:[%s229 + $0x5c] sm:$0xf]
      %v269 = vld [vmem:[%s2] sm:$0x1]
      %v270 = vlaneseq
      %v271 = vshrl.u32 %v270, 7
      %v272 = vsub.s32 0, %v271
      %v273 = vrot.slane %v269, %v272
      %v278 = vunpack.c.l.b16 %v241
      %v279 = vunpack.c.h.b16 %v241
      %v280 = vunpack.c.l.b16 %v242
      %v281 = vunpack.c.h.b16 %v242
      %v282 = vunpack.c.l.b16 %v243
      %v283 = vunpack.c.h.b16 %v243
      %v284 = vunpack.c.l.b16 %v244
      %v285 = vunpack.c.h.b16 %v244
      %v286 = vpack.c.b16 %v280, %v278
      %v287 = vpack.c.b16 %v281, %v279
      %v288 = vpack.c.b16 %v284, %v282
      %v289 = vpack.c.b16 %v285, %v283
      %v316 = vunpack.c.l.b16 %v245
      %v317 = vunpack.c.l.b16 %v246
      %v318 = vunpack.c.l.b16 %v247
      %v319 = vunpack.c.l.b16 %v248
      %v320 = vunpack.c.l.b16 %v249
      %v321 = vunpack.c.l.b16 %v250
      %v322 = vunpack.c.l.b16 %v251
      %v323 = vunpack.c.l.b16 %v252
      %v324 = vunpack.c.l.b16 %v253
      %v325 = vunpack.c.l.b16 %v254
      %v326 = vunpack.c.l.b16 %v255
      %v327 = vunpack.c.l.b16 %v256
      %v328 = vunpack.c.l.b16 %v257
      %v329 = vunpack.c.l.b16 %v258
      %v330 = vunpack.c.l.b16 %v259
      %v331 = vunpack.c.l.b16 %v260
      %v332 = vunpack.c.l.b16 %v261
      %v333 = vunpack.c.l.b16 %v262
      %v334 = vunpack.c.l.b16 %v263
      %v335 = vunpack.c.l.b16 %v264
      %v336 = vunpack.c.l.b16 %v265
      %v337 = vunpack.c.l.b16 %v266
      %v338 = vunpack.c.l.b16 %v267
      %v339 = vunpack.c.l.b16 %v268
      %v340 = vpack.c.b16 %v317, %v316
      %v341 = vpack.c.b16 %v319, %v318
      %v342 = vpack.c.b16 %v321, %v320
      %v343 = vpack.c.b16 %v323, %v322
      %v344 = vpack.c.b16 %v325, %v324
      %v345 = vpack.c.b16 %v327, %v326
      %v346 = vpack.c.b16 %v329, %v328
      %v347 = vpack.c.b16 %v331, %v330
      %v348 = vpack.c.b16 %v333, %v332
      %v349 = vpack.c.b16 %v335, %v334
      %v350 = vpack.c.b16 %v337, %v336
      %v351 = vpack.c.b16 %v339, %v338
      %vm364 = vcmask 523264
      %v366 = vsel %vm364, %v287, 0
      %v369 = vsel %vm364, %v289, 0
      %371 = vmatprep.subr.bf16.mxu0 0
      %372 = vmatpush1.bf16.msra.mxu0 %v340
      %373 = vmatprep.subr.bf16.mxu0 0
      %374 = vmatpush1.bf16.msra.mxu0 %v341
      %375 = vmatprep.subr.bf16.mxu0 0
      %376 = vmatpush1.bf16.msra.mxu0 %v342
      %377 = vmatprep.subr.bf16.mxu0 0
      %378 = vmatpush1.bf16.msra.mxu0 %v343
      %379 = vmatprep.subr.bf16.mxu0 0
      %380 = vmatpush1.bf16.msra.mxu0 %v344
      %381 = vmatprep.subr.bf16.mxu0 0
      %382 = vmatpush1.bf16.msra.mxu0 %v345
      %383 = vmatprep.subr.bf16.mxu0 0
      %384 = vmatpush1.bf16.msra.mxu0 %v346
      %385 = vmatprep.subr.bf16.mxu0 0
      %386 = vmatpush1.bf16.msra.mxu0 %v347
      %387 = vmatprep.subr.bf16.mxu0 0
      %388 = vmatpush1.bf16.msra.mxu0 %v348
      %389 = vmatprep.subr.bf16.mxu0 0
      %390 = vmatpush1.bf16.msra.mxu0 %v349
      %391 = vmatprep.subr.bf16.mxu0 0
      %392 = vmatpush1.bf16.msra.mxu0 %v350
      %393 = vmatprep.subr.bf16.mxu0 0
      %394 = vmatpush1.bf16.msra.mxu0 %v351
      %395 = vmatprep.subr.bf16.mxu0 0
      %396 = vmatpush1.bf16.msra.mxu0 0
      %397 = vmatprep.subr.bf16.mxu0 0
      %398 = vmatpush1.bf16.msra.mxu0 0
      %399 = vmatprep.subr.bf16.mxu0 0
      %400 = vmatpush1.bf16.msra.mxu0 0
      %401 = vmatprep.subr.bf16.mxu0 0
      %402 = vmatpush1.bf16.msra.mxu0 0
      %403 = vmatprep.mubr.bf16.mxu0 %v366
      %404 = vmatmul.mubr.bf16.gmra.mrb[0].mxu0 %v286
      %v405 = vpop.f32.mrb[0].mxu0
      %v406 = vadd.f32 %v273, %v405
      %v407 = vpop.f32.mrb[0].mxu0
      %v408 = vpop.f32.mrb[0].mxu0
      %v409 = vadd.f32 %v273, %v408
      %v410 = vpop.f32.mrb[0].mxu0
      %411 = vmatprep.mubr.bf16.mxu0 %v369
      %412 = vmatmul.mubr.bf16.gmra.mrb[0].mxu0 %v288
      %v413 = vpop.f32.mrb[0].mxu0
      %v414 = vadd.f32 %v273, %v413
      %v415 = vpop.f32.mrb[0].mxu0
      %v416 = vpop.f32.mrb[0].mxu0
      %v417 = vadd.f32 %v273, %v416
      %v418 = vpop.f32.mrb[0].mxu0
      %419 = vdwg.mxu0
      %v420 = vmax.f32 %v406, 0.0
      %v421 = vmax.f32 %v409, 0.0
      %v422 = vmax.f32 %v414, 0.0
      %v423 = vmax.f32 %v417, 0.0
      %s424 = smul.u32 %s21, 32
      %v425 = vlaneseq
      %v426 = vshrl.u32 %v425, 7
      %v427 = vadd.s32 %v426, 8
      %v428 = vadd.s32 %v426, 16
      %v429 = vadd.s32 %v426, 24
      %v430 = vstv %s424
      %v431 = vadd.s32 %v430, %v426
      %v432 = vadd.s32 %v430, %v427
      %v433 = vadd.s32 %v430, %v428
      %v434 = vadd.s32 %v430, %v429
      %vm435 = vcmp.lt.s32.totalorder %v431, 32
      %vm436 = vcmp.lt.s32.totalorder %v432, 32
      %vm437 = vcmp.lt.s32.totalorder %v433, 32
      %vm438 = vcmp.lt.s32.totalorder %v434, 32
      %v439 = vsel %vm435, 1, 0
      %v440 = vsel %vm436, 1, 0
      %v441 = vsel %vm437, 1, 0
      %v442 = vsel %vm438, 1, 0
      %vm443 = vcmp.eq.s32.totalorder %v439, 1
      %vm444 = vcmp.eq.s32.totalorder %v440, 1
      %vm445 = vcmp.eq.s32.totalorder %v441, 1
      %vm446 = vcmp.eq.s32.totalorder %v442, 1
      %v447 = vsel %vm443, %v420, 0.0
      %v448 = vsel %vm444, %v421, 0.0
      %v449 = vsel %vm445, %v422, 0.0
      %v450 = vsel %vm446, %v423, 0.0
      %p451 = scmp.eq.s32.totalorder %s19, 0
      %p452 = scmp.eq.s32.totalorder %s20, 0
      %p453 = pnand %p451, %p452
      %p454 = pneg %p453
      %p455 = scmp.eq.s32.totalorder %s21, 0
      %p456 = pnand %p454, %p455
      %p457 = pneg %p456
      // Predicated region
      $region33: #{vae_forward.17} parent=31 // pred_check
        _
      $region34: #{vae_forward.17} parent=31 // pred_check_branch
        %459 = sbr.rel (%p456) target = $region36
      $region35: #{vae_forward.17} parent=31 // pred_region
        %vm460 = vcmask 188416
        %461 = vst.msk [vmem:[#allocation2] sm:$0x1] %vm460, 0.0
        %462 = vst.msk [vmem:[#allocation3] sm:$0x1] %vm460, 0.0
      $region36: #{vae_forward.17} parent=31 // pred_fallthru
        _
      // Predicated region
      $region37: #{vae_forward.17} parent=31 // pred_check
        %p463 = pneg %p451
      $region38: #{vae_forward.17} parent=31 // pred_check_branch
        %465 = sbr.rel (%p463) target = $region40
      $region39: #{vae_forward.17} parent=31 // pred_region
        %v466 = vld [vmem:[#allocation2] sm:$0x1]
        %vm467 = vcmask 195584
        %v468 = vsel %vm467, %v447, 0.0
        %v469 = vsel %vm467, %v448, 0.0
        %v470 = vadd.f32 %v468, %v469
        %v471 = vsel %vm467, %v449, 0.0
        %v472 = vadd.f32 %v470, %v471
        %v473 = vsel %vm467, %v450, 0.0
        %v474 = vadd.f32 %v472, %v473
        %v475 = vrot.slane %v474, 4
        %v476 = vadd.f32 %v474, %v475
        %v477 = vrot.slane %v476, 2
        %v478 = vadd.f32 %v476, %v477
        %v479 = vrot.slane %v478, 1
        %v480 = vadd.f32 %v478, %v479
        %v481 = vadd.f32 %v466, %v480
        %vm482 = vcmask 188416
        %483 = vst.msk [vmem:[#allocation2] sm:$0x1] %vm482, %v481
        %v484 = vld [vmem:[#allocation3] sm:$0x1]
        %v485 = vmul.f32 %v447, %v447
        %v486 = vmul.f32 %v448, %v448
        %v487 = vmul.f32 %v449, %v449
        %v488 = vmul.f32 %v450, %v450
        %v489 = vsel %vm467, %v485, 0.0
        %v490 = vsel %vm467, %v486, 0.0
        %v491 = vadd.f32 %v489, %v490
        %v492 = vsel %vm467, %v487, 0.0
        %v493 = vadd.f32 %v491, %v492
        %v494 = vsel %vm467, %v488, 0.0
        %v495 = vadd.f32 %v493, %v494
        %v496 = vrot.slane %v495, 4
        %v497 = vadd.f32 %v495, %v496
        %v498 = vrot.slane %v497, 2
        %v499 = vadd.f32 %v497, %v498
        %v500 = vrot.slane %v499, 1
        %v501 = vadd.f32 %v499, %v500
        %v502 = vadd.f32 %v484, %v501
        %503 = vst.msk [vmem:[#allocation3] sm:$0x1] %vm482, %v502
      $region40: #{vae_forward.17} parent=31 // pred_fallthru
        _
      %p504 = scmp.eq.s32.totalorder %s19, 1
      // Predicated region
      $region41: #{vae_forward.17} parent=31 // pred_check
        %p505 = pneg %p504
      $region42: #{vae_forward.17} parent=31 // pred_check_branch
        %507 = sbr.rel (%p505) target = $region44
      $region43: #{vae_forward.17} parent=31 // pred_region
        %v508 = vld [vmem:[#allocation2] sm:$0x1]
        %v509 = vmul.f32 %v508, 0.0078125
        %v510 = vld [vmem:[#allocation3] sm:$0x1]
        %v511 = vmul.f32 %v510, 0.0078125
        %v512 = vmul.f32 %v509, %v509
        %v513 = vsub.f32 %v511, %v512
        %v515 = vlaneseq
        %v516 = vshrl.u32 %v515, 7
        %v517 = vsub.s32 0, %v516
        %v518 = vrot.slane %v509, %v517
        %v520 = vsub.f32 %v420, %v518
        %v521 = vsub.f32 %v421, %v518
        %v522 = vsub.f32 %v422, %v518
        %v523 = vsub.f32 %v423, %v518
        %v524 = vadd.f32 %v513, 1e-05
        %v525 = vrsqrt.pop %v524
        %v527 = vlaneseq
        %v528 = vshrl.u32 %v527, 7
        %v529 = vsub.s32 0, %v528
        %v530 = vrot.slane %v525, %v529
        %v532 = vmul.f32 %v520, %v530
        %v533 = vmul.f32 %v521, %v530
        %v534 = vmul.f32 %v522, %v530
        %v535 = vmul.f32 %v523, %v530
        %v536 = vld [vmem:[%s2 + $0x1] sm:$0x1]
        %v537 = vlaneseq
        %v538 = vshrl.u32 %v537, 7
        %v539 = vsub.s32 0, %v538
        %v540 = vrot.slane %v536, %v539
        %v541 = vmul.f32 %v532, %v540
        %v542 = vmul.f32 %v533, %v540
        %v543 = vmul.f32 %v534, %v540
        %v544 = vmul.f32 %v535, %v540
        %v545 = vld [vmem:[%s2 + $0x2] sm:$0x1]
        %v546 = vlaneseq
        %v547 = vshrl.u32 %v546, 7
        %v548 = vsub.s32 0, %v547
        %v549 = vrot.slane %v545, %v548
        %v550 = vadd.f32 %v541, %v549
        %v551 = vadd.f32 %v542, %v549
        %v552 = vadd.f32 %v543, %v549
        %v553 = vadd.f32 %v544, %v549
        %vm554 = vcmask 195584
        %555 = vst.msk [vmem:[%s238] sm:$0xff] %vm554, %v550
        %556 = vst.msk [vmem:[%s238 + $0x8] sm:$0xff] %vm554, %v551
        %557 = vst.msk [vmem:[%s238 + $0x10] sm:$0xff] %vm554, %v552
        %558 = vst.msk [vmem:[%s238 + $0x18] sm:$0xff] %vm554, %v553
      $region44: #{vae_forward.17} parent=31 // pred_fallthru
        _
      %s559 = smul.u32 4, %s21
      %p560 = scmp.lt.s32.totalorder %s20, 3
      %s561 = scalar_select %p560, %s20, 3
      %p562 = scmp.lt.s32.totalorder %s559, 3
      %s563 = scalar_select %p562, %s559, 3
      %s564 = smul.addr %s561, 4
      %s565 = sadd.s32 %s563, %s564
      %s566 = smul.addr %s565, 8
      %s567 = scalar_lea.vmem %s3, %s566
      // Predicated region
      $region45: #{vae_forward.17} parent=31 // pred_check
        %p568 = pneg %p128
      $region46: #{vae_forward.17} parent=31 // pred_check_branch
        %570 = sbr.rel (%p568) target = $region48
      $region47: #{vae_forward.17} parent=31 // pred_region
        %s571 = smul.u32 4, %s21
      $region48: #{vae_forward.17} parent=31 // pred_fallthru
        _
    $region32: #{vae_forward.17} parent=5 // pred_fallthru
      _
    %p572 = scmp.le.s32.totalorder 2, %s9
    // Predicated region
    $region49: #{vae_forward.17} parent=5 // pred_check
      %p573 = pneg %p572
    $region50: #{vae_forward.17} parent=5 // pred_check_branch
      %575 = sbr.rel (%p573) target = $region52
    $region51: #{vae_forward.17} parent=5 // pred_region
      %s576 = ssub.s32 %s9, 2
      // Predicated region
      $region53: #{vae_forward.17} parent=51 // pred_check
        %p577 = pneg %p134
      $region54: #{vae_forward.17} parent=51 // pred_check_branch
        %579 = sbr.rel (%p577) target = $region56
      $region55: #{vae_forward.17} parent=51 // pred_region
        %s580 = smul.u32 4, %s24
        %p581 = scmp.lt.s32.totalorder %s23, 3
        %s582 = scalar_select %p581, %s23, 3
        %p583 = scmp.lt.s32.totalorder %s580, 3
        %s584 = scalar_select %p583, %s580, 3
        %s585 = smul.addr %s582, 4
        %s586 = sadd.s32 %s584, %s585
        %s587 = smul.addr %s586, 8
        %s588 = scalar_lea.vmem %s3, %s587
      $region56: #{vae_forward.17} parent=51 // pred_fallthru
        _
    $region52: #{vae_forward.17} parent=5 // pred_fallthru
      _
  $region6: #{vae_forward.17} parent=0 // loop_footer
    %s13 = sadd.s32 1, %s9
  $region7: #{vae_forward.17} parent=0 // loop_footer_branch
    %8 = sbr.rel target = $region3
  $region8: #{vae_forward.17} parent=0 // loop_exit
    _

// kernel: vae_forward.18
$region0: #{vae_forward.18}
  #allocation0 [shape = 'u32[]', space=smem, size = 0x4, offset = 0x4, fixed_abs, tag = 'smem constant byte address 0x4 - core index']
  #allocation1 [shape = 'u32[144,128]{1,0:T(1,128)}', space=vmem, size = 0x12000, scoped, tag = 'internal scratch']
  #allocation2 [shape = 'f32[1,12]{1,0:T(1,128)}', space=vmem, size = 0x200, scoped, tag = 'scratch operand']
  #allocation3 [shape = 'f32[1,12]{1,0:T(1,128)}', space=vmem, size = 0x200, scoped, tag = 'scratch operand']
  %s0 = inlined_call_operand.vmem [shape: bf16[4,128,96], index: 0, kind: input, shape index: {}]
  %s1 = inlined_call_operand.vmem [shape: bf16[4,96,12], index: 1, kind: input, shape index: {}]
  %s2 = inlined_call_operand.vmem [shape: f32[3,12], index: 2, kind: input, shape index: {}]
  %s3 = inlined_call_operand.vmem [shape: f32[4,128,12], index: 3, kind: output, shape index: {}]
  %s4 = sld [smem:[#allocation0]]
  $region57: #{vae_forward.18} parent=0
    _
  %s6 = ssub.s32 1, %s4
  %s7 = scalar_select 0, %s6, %s4
  loop: start=0, step=1, limit=10
  $region2: #{vae_forward.18} parent=0 // loop_pre_header
    _
  $region3: #{vae_forward.18} parent=0 // loop_header
    %s9 = sphi 0, %s13
    %p10 = scmp.ge.s32.totalorder %s9, 10
    %s16 = sphi 0, %s35
    %s17 = sphi 0, %s31
    %s18 = sphi 0, %s27
    %s19 = sphi 0, %s16
    %s20 = sphi 0, %s17
    %s21 = sphi 0, %s18
    %s22 = sphi 0, %s19
    %s23 = sphi 0, %s20
    %s24 = sphi 0, %s21
    %s40 = sphi 0, %s42
    %s43 = sphi 0, %s40
    %s44 = sphi 0, %s43
    %s60 = sphi 0, %s44
    %s66 = sphi 0, %s68
    %s69 = sphi 0, %s66
    %s70 = sphi 0, %s69
    %s86 = sphi 0, %s70
    %s90 = sphi 0, %s90
    %s92 = sphi 0, %s90
    %s93 = sphi 0, %s92
    %s107 = sphi 0, %s93
    %s115 = sphi 0, %s117
    %s118 = sphi 0, %s115
    %s119 = sphi 0, %s118
    %s135 = sphi 0, %s119
  $region4: #{vae_forward.18} parent=0 // loop_header_branch
    %12 = sbr.rel (%p10) target = $region8
  $region5: #{vae_forward.18} parent=0 // loop_body
    %s14 = ssub.s32 %s9, 1
    %s15 = ssub.s32 %s9, 2
    %s25 = sadd.s32 1, %s18
    %p26 = scmp.ge.s32.totalorder %s25, 1
    %s27 = scalar_select %p26, 0, %s25
    %s28 = sadd.s32 1, %s17
    %s29 = scalar_select %p26, %s28, %s17
    %p30 = scmp.ge.s32.totalorder %s29, 4
    %s31 = scalar_select %p30, 0, %s29
    %s32 = sadd.s32 1, %s16
    %s33 = scalar_select %p30, %s32, %s16
    %p34 = scmp.ge.s32.totalorder %s33, 2
    %s35 = scalar_select %p34, 0, %s33
    %s36 = ssub.s32 %s17, %s31
    %s37 = ssub.s32 %s18, %s27
    %s38 = sor.u32 %s36, %s37
    %p39 = scmp.eq.s32.totalorder %s38, 0
    %s41 = sadd.s32 %s40, 1
    %s42 = scalar_select %p39, %s40, %s41
    %p45 = pneg %p39
    %p46 = scmp.eq.s32.totalorder %s9, 7
    %p47 = por %p45, %p46
    %p48 = scmp.ne.s32.totalorder %s40, %s43
    %p49 = scmp.eq.s32.totalorder %s9, 0
    %p50 = por %p48, %p49
    %p51 = scmp.ne.s32.totalorder %s40, %s43
    %p52 = scmp.eq.s32.totalorder %s14, 7
    %p53 = por %p51, %p52
    %p54 = scmp.ne.s32.totalorder %s43, %s44
    %p55 = scmp.eq.s32.totalorder %s14, 0
    %p56 = por %p54, %p55
    %p57 = scmp.ne.s32.totalorder %s43, %s44
    %p58 = scmp.eq.s32.totalorder %s15, 7
    %p59 = por %p57, %p58
    %p61 = scmp.ne.s32.totalorder %s44, %s60
    %p62 = scmp.eq.s32.totalorder %s15, 0
    %p63 = por %p61, %p62
    %s64 = ssub.s32 %s17, %s31
    %p65 = scmp.eq.s32.totalorder %s64, 0
    %s67 = sadd.s32 %s66, 1
    %s68 = scalar_select %p65, %s66, %s67
    %p71 = pneg %p65
    %p72 = scmp.eq.s32.totalorder %s9, 7
    %p73 = por %p71, %p72
    %p74 = scmp.ne.s32.totalorder %s66, %s69
    %p75 = scmp.eq.s32.totalorder %s9, 0
    %p76 = por %p74, %p75
    %p77 = scmp.ne.s32.totalorder %s66, %s69
    %p78 = scmp.eq.s32.totalorder %s14, 7
    %p79 = por %p77, %p78
    %p80 = scmp.ne.s32.totalorder %s69, %s70
    %p81 = scmp.eq.s32.totalorder %s14, 0
    %p82 = por %p80, %p81
    %p83 = scmp.ne.s32.totalorder %s69, %s70
    %p84 = scmp.eq.s32.totalorder %s15, 7
    %p85 = por %p83, %p84
    %p87 = scmp.ne.s32.totalorder %s70, %s86
    %p88 = scmp.eq.s32.totalorder %s15, 0
    %p89 = por %p87, %p88
    %s91 = sadd.s32 %s90, 1
    %p94 = scmp.eq.s32.totalorder %s9, 7
    %p95 = scmp.ne.s32.totalorder %s90, %s92
    %p96 = scmp.eq.s32.totalorder %s9, 0
    %p97 = por %p95, %p96
    %p98 = scmp.ne.s32.totalorder %s90, %s92
    %p99 = scmp.eq.s32.totalorder %s14, 7
    %p100 = por %p98, %p99
    %p101 = scmp.ne.s32.totalorder %s92, %s93
    %p102 = scmp.eq.s32.totalorder %s14, 0
    %p103 = por %p101, %p102
    %p104 = scmp.ne.s32.totalorder %s92, %s93
    %p105 = scmp.eq.s32.totalorder %s15, 7
    %p106 = por %p104, %p105
    %p108 = scmp.ne.s32.totalorder %s93, %s107
    %p109 = scmp.eq.s32.totalorder %s15, 0
    %p110 = por %p108, %p109
    %s111 = ssub.s32 %s17, %s31
    %s112 = ssub.s32 %s18, %s27
    %s113 = sor.u32 %s111, %s112
    %p114 = scmp.eq.s32.totalorder %s113, 0
    %s116 = sadd.s32 %s115, 1
    %s117 = scalar_select %p114, %s115, %s116
    %p120 = pneg %p114
    %p121 = scmp.eq.s32.totalorder %s9, 7
    %p122 = por %p120, %p121
    %p123 = scmp.ne.s32.totalorder %s115, %s118
    %p124 = scmp.eq.s32.totalorder %s9, 0
    %p125 = por %p123, %p124
    %p126 = scmp.ne.s32.totalorder %s115, %s118
    %p127 = scmp.eq.s32.totalorder %s14, 7
    %p128 = por %p126, %p127
    %p129 = scmp.ne.s32.totalorder %s118, %s119
    %p130 = scmp.eq.s32.totalorder %s14, 0
    %p131 = por %p129, %p130
    %p132 = scmp.ne.s32.totalorder %s118, %s119
    %p133 = scmp.eq.s32.totalorder %s15, 7
    %p134 = por %p132, %p133
    %p136 = scmp.ne.s32.totalorder %s119, %s135
    %p137 = scmp.eq.s32.totalorder %s15, 0
    %p138 = por %p136, %p137
    %p139 = scmp.le.s32.totalorder 1, %s9
    %p140 = scmp.lt.s32.totalorder %s9, 9
    %p141 = pnand %p139, %p140
    %p142 = pneg %p141
    // Predicated region
    $region9: #{vae_forward.18} parent=5 // pred_check
      _
    $region10: #{vae_forward.18} parent=5 // pred_check_branch
      %144 = sbr.rel (%p141) target = $region12
    $region11: #{vae_forward.18} parent=5 // pred_region
      %s145 = ssub.s32 %s9, 1
      // Predicated region
      $region13: #{vae_forward.18} parent=11 // pred_check
        %p146 = pneg %p103
      $region14: #{vae_forward.18} parent=11 // pred_check_branch
        %148 = sbr.rel (%p146) target = $region16
      $region15: #{vae_forward.18} parent=11 // pred_region
        _
      $region16: #{vae_forward.18} parent=11 // pred_fallthru
        _
    $region12: #{vae_forward.18} parent=5 // pred_fallthru
      _
    %p149 = scmp.lt.s32.totalorder %s9, 8
    // Predicated region
    $region17: #{vae_forward.18} parent=5 // pred_check
      %p150 = pneg %p149
    $region18: #{vae_forward.18} parent=5 // pred_check_branch
      %152 = sbr.rel (%p150) target = $region20
    $region19: #{vae_forward.18} parent=5 // pred_region
      // Predicated region
      $region21: #{vae_forward.18} parent=19 // pred_check
        %p153 = pneg %p50
      $region22: #{vae_forward.18} parent=19 // pred_check_branch
        %155 = sbr.rel (%p153) target = $region24
      $region23: #{vae_forward.18} parent=19 // pred_region
        %s156 = smul.u32 16, %s18
        %p157 = scmp.lt.s32.totalorder %s17, 3
        %s158 = scalar_select %p157, %s17, 3
        %p159 = scmp.lt.s32.totalorder %s156, 15
        %s160 = scalar_select %p159, %s156, 15
        %s161 = smul.addr %s158, 16
        %s162 = sadd.s32 %s160, %s161
        %s163 = smul.addr %s162, 4
        %s164 = scalar_lea.vmem %s0, %s163
        %s165 = smul.u32 16, %s18
      $region24: #{vae_forward.18} parent=19 // pred_fallthru
        _
      // Predicated region
      $region25: #{vae_forward.18} parent=19 // pred_check
        %p166 = pneg %p76
      $region26: #{vae_forward.18} parent=19 // pred_check_branch
        %168 = sbr.rel (%p166) target = $region28
      $region27: #{vae_forward.18} parent=19 // pred_region
        %p169 = scmp.lt.s32.totalorder %s17, 3
        %s170 = scalar_select %p169, %s17, 3
        %s171 = smul.addr %s170, 12
        %s172 = smul.addr %s171, 4
        %s173 = scalar_lea.vmem %s1, %s172
      $region28: #{vae_forward.18} parent=19 // pred_fallthru
        _
    $region20: #{vae_forward.18} parent=5 // pred_fallthru
      _
    %p174 = scmp.le.s32.totalorder 1, %s9
    %p175 = scmp.lt.s32.totalorder %s9, 9
    %p176 = pnand %p174, %p175
    %p177 = pneg %p176
    // Predicated region
    $region29: #{vae_forward.18} parent=5 // pred_check
      _
    $region30: #{vae_forward.18} parent=5 // pred_check_branch
      %179 = sbr.rel (%p176) target = $region32
    $region31: #{vae_forward.18} parent=5 // pred_region
      %s180 = ssub.s32 %s9, 1
      %s181 = smul.u32 16, %s21
      %p182 = scmp.lt.s32.totalorder %s20, 3
      %s183 = scalar_select %p182, %s20, 3
      %p184 = scmp.lt.s32.totalorder %s181, 15
      %s185 = scalar_select %p184, %s181, 15
      %s186 = smul.addr %s183, 16
      %s187 = sadd.s32 %s185, %s186
      %s188 = smul.addr %s187, 4
      %s189 = scalar_lea.vmem %s0, %s188
      %p190 = pneg %p56
      %p191 = pneg %p53
      %p192 = scmp.lt.s32.totalorder %s20, 3
      %s193 = scalar_select %p192, %s20, 3
      %s194 = smul.addr %s193, 12
      %s195 = smul.addr %s194, 4
      %s196 = scalar_lea.vmem %s1, %s195
      %p197 = pneg %p82
      %p198 = pneg %p79
      %p199 = pneg %p103
      %p200 = pneg %p100
      %p201 = pneg %p131
      %p202 = pneg %p128
      %s203 = smul.u32 16, %s21
      %p204 = scmp.lt.s32.totalorder %s20, 3
      %s205 = scalar_select %p204, %s20, 3
      %p206 = scmp.lt.s32.totalorder %s203, 15
      %s207 = scalar_select %p206, %s203, 15
      %s208 = smul.addr %s205, 16
      %s209 = sadd.s32 %s207, %s208
      %s210 = smul.addr %s209, 8
      %s211 = scalar_lea.vmem %s3, %s210
      %s212 = smul.u32 16, %s21
      %p213 = scmp.lt.s32.totalorder %s20, 3
      %s214 = scalar_select %p213, %s20, 3
      %p215 = scmp.lt.s32.totalorder %s212, 15
      %s216 = scalar_select %p215, %s212, 15
      %s217 = smul.addr %s214, 16
      %s218 = sadd.s32 %s216, %s217
      %s219 = smul.addr %s218, 4
      %s220 = scalar_lea.vmem %s0, %s219
      %s221 = smul.u32 16, %s21
      %p222 = scmp.lt.s32.totalorder %s20, 3
      %s223 = scalar_select %p222, %s20, 3
      %s224 = smul.addr %s223, 12
      %s225 = smul.addr %s224, 4
      %s226 = scalar_lea.vmem %s1, %s225
      %s227 = smul.u32 16, %s21
      %p228 = scmp.lt.s32.totalorder %s20, 3
      %s229 = scalar_select %p228, %s20, 3
      %p230 = scmp.lt.s32.totalorder %s227, 15
      %s231 = scalar_select %p230, %s227, 15
      %s232 = smul.addr %s229, 16
      %s233 = sadd.s32 %s231, %s232
      %s234 = smul.addr %s233, 8
      %s235 = scalar_lea.vmem %s3, %s234
      %s236 = smul.u32 16, %s21
      %v238 = vld [vmem:[%s220] sm:$0xf]
      %v239 = vld [vmem:[%s220 + $0x4] sm:$0xf]
      %v240 = vld [vmem:[%s220 + $0x8] sm:$0xf]
      %v241 = vld [vmem:[%s220 + $0xc] sm:$0xf]
      %v242 = vld [vmem:[%s220 + $0x10] sm:$0xf]
      %v243 = vld [vmem:[%s220 + $0x14] sm:$0xf]
      %v244 = vld [vmem:[%s220 + $0x18] sm:$0xf]
      %v245 = vld [vmem:[%s220 + $0x1c] sm:$0xf]
      %v246 = vld [vmem:[%s220 + $0x20] sm:$0xf]
      %v247 = vld [vmem:[%s220 + $0x24] sm:$0xf]
      %v248 = vld [vmem:[%s220 + $0x28] sm:$0xf]
      %v249 = vld [vmem:[%s220 + $0x2c] sm:$0xf]
      %v250 = vld [vmem:[%s220 + $0x30] sm:$0xf]
      %v251 = vld [vmem:[%s220 + $0x34] sm:$0xf]
      %v252 = vld [vmem:[%s220 + $0x38] sm:$0xf]
      %v253 = vld [vmem:[%s220 + $0x3c] sm:$0xf]
      %v254 = vld [vmem:[%s226] sm:$0xf]
      %v255 = vld [vmem:[%s226 + $0x4] sm:$0xf]
      %v256 = vld [vmem:[%s226 + $0x8] sm:$0xf]
      %v257 = vld [vmem:[%s226 + $0xc] sm:$0xf]
      %v258 = vld [vmem:[%s226 + $0x10] sm:$0xf]
      %v259 = vld [vmem:[%s226 + $0x14] sm:$0xf]
      %v260 = vld [vmem:[%s226 + $0x18] sm:$0xf]
      %v261 = vld [vmem:[%s226 + $0x1c] sm:$0xf]
      %v262 = vld [vmem:[%s226 + $0x20] sm:$0xf]
      %v263 = vld [vmem:[%s226 + $0x24] sm:$0xf]
      %v264 = vld [vmem:[%s226 + $0x28] sm:$0xf]
      %v265 = vld [vmem:[%s226 + $0x2c] sm:$0xf]
      %v266 = vld [vmem:[%s2] sm:$0x1]
      %v267 = vlaneseq
      %v268 = vshrl.u32 %v267, 7
      %v269 = vsub.s32 0, %v268
      %v270 = vrot.slane %v266, %v269
      %v287 = vunpack.c.l.b16 %v238
      %v288 = vunpack.c.l.b16 %v239
      %v289 = vunpack.c.l.b16 %v240
      %v290 = vunpack.c.l.b16 %v241
      %v291 = vunpack.c.l.b16 %v242
      %v292 = vunpack.c.l.b16 %v243
      %v293 = vunpack.c.l.b16 %v244
      %v294 = vunpack.c.l.b16 %v245
      %v295 = vunpack.c.l.b16 %v246
      %v296 = vunpack.c.l.b16 %v247
      %v297 = vunpack.c.l.b16 %v248
      %v298 = vunpack.c.l.b16 %v249
      %v299 = vunpack.c.l.b16 %v250
      %v300 = vunpack.c.l.b16 %v251
      %v301 = vunpack.c.l.b16 %v252
      %v302 = vunpack.c.l.b16 %v253
      %v303 = vpack.c.b16 %v288, %v287
      %v304 = vpack.c.b16 %v290, %v289
      %v305 = vpack.c.b16 %v292, %v291
      %v306 = vpack.c.b16 %v294, %v293
      %v307 = vpack.c.b16 %v296, %v295
      %v308 = vpack.c.b16 %v298, %v297
      %v309 = vpack.c.b16 %v300, %v299
      %v310 = vpack.c.b16 %v302, %v301
      %v323 = vunpack.c.l.b16 %v254
      %v324 = vunpack.c.l.b16 %v255
      %v325 = vunpack.c.l.b16 %v256
      %v326 = vunpack.c.l.b16 %v257
      %v327 = vunpack.c.l.b16 %v258
      %v328 = vunpack.c.l.b16 %v259
      %v329 = vunpack.c.l.b16 %v260
      %v330 = vunpack.c.l.b16 %v261
      %v331 = vunpack.c.l.b16 %v262
      %v332 = vunpack.c.l.b16 %v263
      %v333 = vunpack.c.l.b16 %v264
      %v334 = vunpack.c.l.b16 %v265
      %v335 = vpack.c.b16 %v324, %v323
      %v336 = vpack.c.b16 %v326, %v325
      %v337 = vpack.c.b16 %v328, %v327
      %v338 = vpack.c.b16 %v330, %v329
      %v339 = vpack.c.b16 %v332, %v331
      %v340 = vpack.c.b16 %v334, %v333
      %vm347 = vcmask 785408
      %v349 = vsel %vm347, %v303, 0
      %v352 = vsel %vm347, %v304, 0
      %v355 = vsel %vm347, %v305, 0
      %v358 = vsel %vm347, %v306, 0
      %v361 = vsel %vm347, %v307, 0
      %v364 = vsel %vm347, %v308, 0
      %v367 = vsel %vm347, %v309, 0
      %v370 = vsel %vm347, %v310, 0
      %372 = vmatprep.subr.bf16.mxu0 0
      %373 = vmatpush1.bf16.msra.mxu0 %v335
      %374 = vmatprep.subr.bf16.mxu0 0
      %375 = vmatpush1.bf16.msra.mxu0 %v336
      %376 = vmatprep.subr.bf16.mxu0 0
      %377 = vmatpush1.bf16.msra.mxu0 %v337
      %378 = vmatprep.subr.bf16.mxu0 0
      %379 = vmatpush1.bf16.msra.mxu0 %v338
      %380 = vmatprep.subr.bf16.mxu0 0
      %381 = vmatpush1.bf16.msra.mxu0 %v339
      %382 = vmatprep.subr.bf16.mxu0 0
      %383 = vmatpush1.bf16.msra.mxu0 %v340
      %384 = vmatprep.subr.bf16.mxu0 0
      %385 = vmatpush1.bf16.msra.mxu0 0
      %386 = vmatprep.subr.bf16.mxu0 0
      %387 = vmatpush1.bf16.msra.mxu0 0
      %388 = vmatprep.subr.bf16.mxu0 0
      %389 = vmatpush1.bf16.msra.mxu0 0
      %390 = vmatprep.subr.bf16.mxu0 0
      %391 = vmatpush1.bf16.msra.mxu0 0
      %392 = vmatprep.subr.bf16.mxu0 0
      %393 = vmatpush1.bf16.msra.mxu0 0
      %394 = vmatprep.subr.bf16.mxu0 0
      %395 = vmatpush1.bf16.msra.mxu0 0
      %396 = vmatprep.subr.bf16.mxu0 0
      %397 = vmatpush1.bf16.msra.mxu0 0
      %398 = vmatprep.subr.bf16.mxu0 0
      %399 = vmatpush1.bf16.msra.mxu0 0
      %400 = vmatprep.subr.bf16.mxu0 0
      %401 = vmatpush1.bf16.msra.mxu0 0
      %402 = vmatprep.subr.bf16.mxu0 0
      %403 = vmatpush1.bf16.msra.mxu0 0
      %404 = vmatprep.mubr.bf16.mxu0 0
      %405 = vmatmul.mubr.bf16.gmra.mrb[0].mxu0 %v349
      %v406 = vpop.f32.mrb[0].mxu0
      %v407 = vadd.f32 %v270, %v406
      %v408 = vpop.f32.mrb[0].mxu0
      %v409 = vpop.f32.mrb[0].mxu0
      %v410 = vadd.f32 %v270, %v409
      %v411 = vpop.f32.mrb[0].mxu0
      %412 = vmatprep.mubr.bf16.mxu0 0
      %413 = vmatmul.mubr.bf16.gmra.mrb[0].mxu0 %v352
      %v414 = vpop.f32.mrb[0].mxu0
      %v415 = vadd.f32 %v270, %v414
      %v416 = vpop.f32.mrb[0].mxu0
      %v417 = vpop.f32.mrb[0].mxu0
      %v418 = vadd.f32 %v270, %v417
      %v419 = vpop.f32.mrb[0].mxu0
      %420 = vmatprep.mubr.bf16.mxu0 0
      %421 = vmatmul.mubr.bf16.gmra.mrb[0].mxu0 %v355
      %v422 = vpop.f32.mrb[0].mxu0
      %v423 = vadd.f32 %v270, %v422
      %v424 = vpop.f32.mrb[0].mxu0
      %v425 = vpop.f32.mrb[0].mxu0
      %v426 = vadd.f32 %v270, %v425
      %v427 = vpop.f32.mrb[0].mxu0
      %428 = vmatprep.mubr.bf16.mxu0 0
      %429 = vmatmul.mubr.bf16.gmra.mrb[0].mxu0 %v358
      %v430 = vpop.f32.mrb[0].mxu0
      %v431 = vadd.f32 %v270, %v430
      %v432 = vpop.f32.mrb[0].mxu0
      %v433 = vpop.f32.mrb[0].mxu0
      %v434 = vadd.f32 %v270, %v433
      %v435 = vpop.f32.mrb[0].mxu0
      %436 = vmatprep.mubr.bf16.mxu0 0
      %437 = vmatmul.mubr.bf16.gmra.mrb[0].mxu0 %v361
      %v438 = vpop.f32.mrb[0].mxu0
      %v439 = vadd.f32 %v270, %v438
      %v440 = vpop.f32.mrb[0].mxu0
      %v441 = vpop.f32.mrb[0].mxu0
      %v442 = vadd.f32 %v270, %v441
      %v443 = vpop.f32.mrb[0].mxu0
      %444 = vmatprep.mubr.bf16.mxu0 0
      %445 = vmatmul.mubr.bf16.gmra.mrb[0].mxu0 %v364
      %v446 = vpop.f32.mrb[0].mxu0
      %v447 = vadd.f32 %v270, %v446
      %v448 = vpop.f32.mrb[0].mxu0
      %v449 = vpop.f32.mrb[0].mxu0
      %v450 = vadd.f32 %v270, %v449
      %v451 = vpop.f32.mrb[0].mxu0
      %452 = vmatprep.mubr.bf16.mxu0 0
      %453 = vmatmul.mubr.bf16.gmra.mrb[0].mxu0 %v367
      %v454 = vpop.f32.mrb[0].mxu0
      %v455 = vadd.f32 %v270, %v454
      %v456 = vpop.f32.mrb[0].mxu0
      %v457 = vpop.f32.mrb[0].mxu0
      %v458 = vadd.f32 %v270, %v457
      %v459 = vpop.f32.mrb[0].mxu0
      %460 = vmatprep.mubr.bf16.mxu0 0
      %461 = vmatmul.mubr.bf16.gmra.mrb[0].mxu0 %v370
      %v462 = vpop.f32.mrb[0].mxu0
      %v463 = vadd.f32 %v270, %v462
      %v464 = vpop.f32.mrb[0].mxu0
      %v465 = vpop.f32.mrb[0].mxu0
      %v466 = vadd.f32 %v270, %v465
      %v467 = vpop.f32.mrb[0].mxu0
      %468 = vdwg.mxu0
      %v469 = vmax.f32 %v407, 0.0
      %v470 = vmax.f32 %v410, 0.0
      %v471 = vmax.f32 %v415, 0.0
      %v472 = vmax.f32 %v418, 0.0
      %v473 = vmax.f32 %v423, 0.0
      %v474 = vmax.f32 %v426, 0.0
      %v475 = vmax.f32 %v431, 0.0
      %v476 = vmax.f32 %v434, 0.0
      %v477 = vmax.f32 %v439, 0.0
      %v478 = vmax.f32 %v442, 0.0
      %v479 = vmax.f32 %v447, 0.0
      %v480 = vmax.f32 %v450, 0.0
      %v481 = vmax.f32 %v455, 0.0
      %v482 = vmax.f32 %v458, 0.0
      %v483 = vmax.f32 %v463, 0.0
      %v484 = vmax.f32 %v466, 0.0
      %s485 = smul.u32 %s21, 128
      %v486 = vlaneseq
      %v487 = vshrl.u32 %v486, 7
      %v488 = vadd.s32 %v487, 8
      %v489 = vadd.s32 %v487, 16
      %v490 = vadd.s32 %v487, 24
      %v491 = vadd.s32 %v487, 32
      %v492 = vadd.s32 %v487, 40
      %v493 = vadd.s32 %v487, 48
      %v494 = vadd.s32 %v487, 56
      %v495 = vadd.s32 %v487, 64
      %v496 = vadd.s32 %v487, 72
      %v497 = vadd.s32 %v487, 80
      %v498 = vadd.s32 %v487, 88
      %v499 = vadd.s32 %v487, 96
      %v500 = vadd.s32 %v487, 104
      %v501 = vadd.s32 %v487, 112
      %v502 = vadd.s32 %v487, 120
      %v503 = vstv %s485
      %v504 = vadd.s32 %v503, %v487
      %v505 = vadd.s32 %v503, %v488
      %v506 = vadd.s32 %v503, %v489
      %v507 = vadd.s32 %v503, %v490
      %v508 = vadd.s32 %v503, %v491
      %v509 = vadd.s32 %v503, %v492
      %v510 = vadd.s32 %v503, %v493
      %v511 = vadd.s32 %v503, %v494
      %v512 = vadd.s32 %v503, %v495
      %v513 = vadd.s32 %v503, %v496
      %v514 = vadd.s32 %v503, %v497
      %v515 = vadd.s32 %v503, %v498
      %v516 = vadd.s32 %v503, %v499
      %v517 = vadd.s32 %v503, %v500
      %v518 = vadd.s32 %v503, %v501
      %v519 = vadd.s32 %v503, %v502
      %vm520 = vcmp.lt.s32.totalorder %v504, 128
      %vm521 = vcmp.lt.s32.totalorder %v505, 128
      %vm522 = vcmp.lt.s32.totalorder %v506, 128
      %vm523 = vcmp.lt.s32.totalorder %v507, 128
      %vm524 = vcmp.lt.s32.totalorder %v508, 128
      %vm525 = vcmp.lt.s32.totalorder %v509, 128
      %vm526 = vcmp.lt.s32.totalorder %v510, 128
      %vm527 = vcmp.lt.s32.totalorder %v511, 128
      %vm528 = vcmp.lt.s32.totalorder %v512, 128
      %vm529 = vcmp.lt.s32.totalorder %v513, 128
      %vm530 = vcmp.lt.s32.totalorder %v514, 128
      %vm531 = vcmp.lt.s32.totalorder %v515, 128
      %vm532 = vcmp.lt.s32.totalorder %v516, 128
      %vm533 = vcmp.lt.s32.totalorder %v517, 128
      %vm534 = vcmp.lt.s32.totalorder %v518, 128
      %vm535 = vcmp.lt.s32.totalorder %v519, 128
      %v536 = vsel %vm520, 1, 0
      %v537 = vsel %vm521, 1, 0
      %v538 = vsel %vm522, 1, 0
      %v539 = vsel %vm523, 1, 0
      %v540 = vsel %vm524, 1, 0
      %v541 = vsel %vm525, 1, 0
      %v542 = vsel %vm526, 1, 0
      %v543 = vsel %vm527, 1, 0
      %v544 = vsel %vm528, 1, 0
      %v545 = vsel %vm529, 1, 0
      %v546 = vsel %vm530, 1, 0
      %v547 = vsel %vm531, 1, 0
      %v548 = vsel %vm532, 1, 0
      %v549 = vsel %vm533, 1, 0
      %v550 = vsel %vm534, 1, 0
      %v551 = vsel %vm535, 1, 0
      %vm552 = vcmp.eq.s32.totalorder %v536, 1
      %vm553 = vcmp.eq.s32.totalorder %v537, 1
      %vm554 = vcmp.eq.s32.totalorder %v538, 1
      %vm555 = vcmp.eq.s32.totalorder %v539, 1
      %vm556 = vcmp.eq.s32.totalorder %v540, 1
      %vm557 = vcmp.eq.s32.totalorder %v541, 1
      %vm558 = vcmp.eq.s32.totalorder %v542, 1
      %vm559 = vcmp.eq.s32.totalorder %v543, 1
      %vm560 = vcmp.eq.s32.totalorder %v544, 1
      %vm561 = vcmp.eq.s32.totalorder %v545, 1
      %vm562 = vcmp.eq.s32.totalorder %v546, 1
      %vm563 = vcmp.eq.s32.totalorder %v547, 1
      %vm564 = vcmp.eq.s32.totalorder %v548, 1
      %vm565 = vcmp.eq.s32.totalorder %v549, 1
      %vm566 = vcmp.eq.s32.totalorder %v550, 1
      %vm567 = vcmp.eq.s32.totalorder %v551, 1
      %v568 = vsel %vm552, %v469, 0.0
      %v569 = vsel %vm553, %v470, 0.0
      %v570 = vsel %vm554, %v471, 0.0
      %v571 = vsel %vm555, %v472, 0.0
      %v572 = vsel %vm556, %v473, 0.0
      %v573 = vsel %vm557, %v474, 0.0
      %v574 = vsel %vm558, %v475, 0.0
      %v575 = vsel %vm559, %v476, 0.0
      %v576 = vsel %vm560, %v477, 0.0
      %v577 = vsel %vm561, %v478, 0.0
      %v578 = vsel %vm562, %v479, 0.0
      %v579 = vsel %vm563, %v480, 0.0
      %v580 = vsel %vm564, %v481, 0.0
      %v581 = vsel %vm565, %v482, 0.0
      %v582 = vsel %vm566, %v483, 0.0
      %v583 = vsel %vm567, %v484, 0.0
      %p584 = scmp.eq.s32.totalorder %s19, 0
      %p585 = scmp.eq.s32.totalorder %s20, 0
      %p586 = pnand %p584, %p585
      %p587 = pneg %p586
      %p588 = scmp.eq.s32.totalorder %s21, 0
      %p589 = pnand %p587, %p588
      %p590 = pneg %p589
      // Predicated region
      $region33: #{vae_forward.18} parent=31 // pred_check
        _
      $region34: #{vae_forward.18} parent=31 // pred_check_branch
        %592 = sbr.rel (%p589) target = $region36
      $region35: #{vae_forward.18} parent=31 // pred_region
        %vm593 = vcmask 90112
        %594 = vst.msk [vmem:[#allocation2] sm:$0x1] %vm593, 0.0
        %595 = vst.msk [vmem:[#allocation3] sm:$0x1] %vm593, 0.0
      $region36: #{vae_forward.18} parent=31 // pred_fallthru
        _
      // Predicated region
      $region37: #{vae_forward.18} parent=31 // pred_check
        %p596 = pneg %p584
      $region38: #{vae_forward.18} parent=31 // pred_check_branch
        %598 = sbr.rel (%p596) target = $region40
      $region39: #{vae_forward.18} parent=31 // pred_region
        %v599 = vld [vmem:[#allocation2] sm:$0x1]
        %vm600 = vcmask 97280
        %v601 = vsel %vm600, %v568, 0.0
        %v602 = vsel %vm600, %v569, 0.0
        %v603 = vadd.f32 %v601, %v602
        %v604 = vsel %vm600, %v570, 0.0
        %v605 = vadd.f32 %v603, %v604
        %v606 = vsel %vm600, %v571, 0.0
        %v607 = vadd.f32 %v605, %v606
        %v608 = vsel %vm600, %v572, 0.0
        %v609 = vadd.f32 %v607, %v608
        %v610 = vsel %vm600, %v573, 0.0
        %v611 = vadd.f32 %v609, %v610
        %v612 = vsel %vm600, %v574, 0.0
        %v613 = vadd.f32 %v611, %v612
        %v614 = vsel %vm600, %v575, 0.0
        %v615 = vadd.f32 %v613, %v614
        %v616 = vsel %vm600, %v576, 0.0
        %v617 = vadd.f32 %v615, %v616
        %v618 = vsel %vm600, %v577, 0.0
        %v619 = vadd.f32 %v617, %v618
        %v620 = vsel %vm600, %v578, 0.0
        %v621 = vadd.f32 %v619, %v620
        %v622 = vsel %vm600, %v579, 0.0
        %v623 = vadd.f32 %v621, %v622
        %v624 = vsel %vm600, %v580, 0.0
        %v625 = vadd.f32 %v623, %v624
        %v626 = vsel %vm600, %v581, 0.0
        %v627 = vadd.f32 %v625, %v626
        %v628 = vsel %vm600, %v582, 0.0
        %v629 = vadd.f32 %v627, %v628
        %v630 = vsel %vm600, %v583, 0.0
        %v631 = vadd.f32 %v629, %v630
        %v632 = vrot.slane %v631, 4
        %v633 = vadd.f32 %v631, %v632
        %v634 = vrot.slane %v633, 2
        %v635 = vadd.f32 %v633, %v634
        %v636 = vrot.slane %v635, 1
        %v637 = vadd.f32 %v635, %v636
        %v638 = vadd.f32 %v599, %v637
        %vm639 = vcmask 90112
        %640 = vst.msk [vmem:[#allocation2] sm:$0x1] %vm639, %v638
        %v641 = vld [vmem:[#allocation3] sm:$0x1]
        %v642 = vmul.f32 %v568, %v568
        %v643 = vmul.f32 %v569, %v569
        %v644 = vmul.f32 %v570, %v570
        %v645 = vmul.f32 %v571, %v571
        %v646 = vmul.f32 %v572, %v572
        %v647 = vmul.f32 %v573, %v573
        %v648 = vmul.f32 %v574, %v574
        %v649 = vmul.f32 %v575, %v575
        %v650 = vmul.f32 %v576, %v576
        %v651 = vmul.f32 %v577, %v577
        %v652 = vmul.f32 %v578, %v578
        %v653 = vmul.f32 %v579, %v579
        %v654 = vmul.f32 %v580, %v580
        %v655 = vmul.f32 %v581, %v581
        %v656 = vmul.f32 %v582, %v582
        %v657 = vmul.f32 %v583, %v583
        %v658 = vsel %vm600, %v642, 0.0
        %v659 = vsel %vm600, %v643, 0.0
        %v660 = vadd.f32 %v658, %v659
        %v661 = vsel %vm600, %v644, 0.0
        %v662 = vadd.f32 %v660, %v661
        %v663 = vsel %vm600, %v645, 0.0
        %v664 = vadd.f32 %v662, %v663
        %v665 = vsel %vm600, %v646, 0.0
        %v666 = vadd.f32 %v664, %v665
        %v667 = vsel %vm600, %v647, 0.0
        %v668 = vadd.f32 %v666, %v667
        %v669 = vsel %vm600, %v648, 0.0
        %v670 = vadd.f32 %v668, %v669
        %v671 = vsel %vm600, %v649, 0.0
        %v672 = vadd.f32 %v670, %v671
        %v673 = vsel %vm600, %v650, 0.0
        %v674 = vadd.f32 %v672, %v673
        %v675 = vsel %vm600, %v651, 0.0
        %v676 = vadd.f32 %v674, %v675
        %v677 = vsel %vm600, %v652, 0.0
        %v678 = vadd.f32 %v676, %v677
        %v679 = vsel %vm600, %v653, 0.0
        %v680 = vadd.f32 %v678, %v679
        %v681 = vsel %vm600, %v654, 0.0
        %v682 = vadd.f32 %v680, %v681
        %v683 = vsel %vm600, %v655, 0.0
        %v684 = vadd.f32 %v682, %v683
        %v685 = vsel %vm600, %v656, 0.0
        %v686 = vadd.f32 %v684, %v685
        %v687 = vsel %vm600, %v657, 0.0
        %v688 = vadd.f32 %v686, %v687
        %v689 = vrot.slane %v688, 4
        %v690 = vadd.f32 %v688, %v689
        %v691 = vrot.slane %v690, 2
        %v692 = vadd.f32 %v690, %v691
        %v693 = vrot.slane %v692, 1
        %v694 = vadd.f32 %v692, %v693
        %v695 = vadd.f32 %v641, %v694
        %696 = vst.msk [vmem:[#allocation3] sm:$0x1] %vm639, %v695
      $region40: #{vae_forward.18} parent=31 // pred_fallthru
        _
      %p697 = scmp.eq.s32.totalorder %s19, 1
      // Predicated region
      $region41: #{vae_forward.18} parent=31 // pred_check
        %p698 = pneg %p697
      $region42: #{vae_forward.18} parent=31 // pred_check_branch
        %700 = sbr.rel (%p698) target = $region44
      $region43: #{vae_forward.18} parent=31 // pred_region
        %v701 = vld [vmem:[#allocation2] sm:$0x1]
        %v702 = vmul.f32 %v701, 0.001953125
        %v703 = vld [vmem:[#allocation3] sm:$0x1]
        %v704 = vmul.f32 %v703, 0.001953125
        %v705 = vmul.f32 %v702, %v702
        %v706 = vsub.f32 %v704, %v705
        %v708 = vlaneseq
        %v709 = vshrl.u32 %v708, 7
        %v710 = vsub.s32 0, %v709
        %v711 = vrot.slane %v702, %v710
        %v713 = vsub.f32 %v469, %v711
        %v714 = vsub.f32 %v470, %v711
        %v715 = vsub.f32 %v471, %v711
        %v716 = vsub.f32 %v472, %v711
        %v717 = vsub.f32 %v473, %v711
        %v718 = vsub.f32 %v474, %v711
        %v719 = vsub.f32 %v475, %v711
        %v720 = vsub.f32 %v476, %v711
        %v721 = vsub.f32 %v477, %v711
        %v722 = vsub.f32 %v478, %v711
        %v723 = vsub.f32 %v479, %v711
        %v724 = vsub.f32 %v480, %v711
        %v725 = vsub.f32 %v481, %v711
        %v726 = vsub.f32 %v482, %v711
        %v727 = vsub.f32 %v483, %v711
        %v728 = vsub.f32 %v484, %v711
        %v729 = vadd.f32 %v706, 1e-05
        %v730 = vrsqrt.pop %v729
        %v732 = vlaneseq
        %v733 = vshrl.u32 %v732, 7
        %v734 = vsub.s32 0, %v733
        %v735 = vrot.slane %v730, %v734
        %v737 = vmul.f32 %v713, %v735
        %v738 = vmul.f32 %v714, %v735
        %v739 = vmul.f32 %v715, %v735
        %v740 = vmul.f32 %v716, %v735
        %v741 = vmul.f32 %v717, %v735
        %v742 = vmul.f32 %v718, %v735
        %v743 = vmul.f32 %v719, %v735
        %v744 = vmul.f32 %v720, %v735
        %v745 = vmul.f32 %v721, %v735
        %v746 = vmul.f32 %v722, %v735
        %v747 = vmul.f32 %v723, %v735
        %v748 = vmul.f32 %v724, %v735
        %v749 = vmul.f32 %v725, %v735
        %v750 = vmul.f32 %v726, %v735
        %v751 = vmul.f32 %v727, %v735
        %v752 = vmul.f32 %v728, %v735
        %v753 = vld [vmem:[%s2 + $0x1] sm:$0x1]
        %v754 = vlaneseq
        %v755 = vshrl.u32 %v754, 7
        %v756 = vsub.s32 0, %v755
        %v757 = vrot.slane %v753, %v756
        %v758 = vmul.f32 %v737, %v757
        %v759 = vmul.f32 %v738, %v757
        %v760 = vmul.f32 %v739, %v757
        %v761 = vmul.f32 %v740, %v757
        %v762 = vmul.f32 %v741, %v757
        %v763 = vmul.f32 %v742, %v757
        %v764 = vmul.f32 %v743, %v757
        %v765 = vmul.f32 %v744, %v757
        %v766 = vmul.f32 %v745, %v757
        %v767 = vmul.f32 %v746, %v757
        %v768 = vmul.f32 %v747, %v757
        %v769 = vmul.f32 %v748, %v757
        %v770 = vmul.f32 %v749, %v757
        %v771 = vmul.f32 %v750, %v757
        %v772 = vmul.f32 %v751, %v757
        %v773 = vmul.f32 %v752, %v757
        %v774 = vld [vmem:[%s2 + $0x2] sm:$0x1]
        %v775 = vlaneseq
        %v776 = vshrl.u32 %v775, 7
        %v777 = vsub.s32 0, %v776
        %v778 = vrot.slane %v774, %v777
        %v779 = vadd.f32 %v758, %v778
        %v780 = vadd.f32 %v759, %v778
        %v781 = vadd.f32 %v760, %v778
        %v782 = vadd.f32 %v761, %v778
        %v783 = vadd.f32 %v762, %v778
        %v784 = vadd.f32 %v763, %v778
        %v785 = vadd.f32 %v764, %v778
        %v786 = vadd.f32 %v765, %v778
        %v787 = vadd.f32 %v766, %v778
        %v788 = vadd.f32 %v767, %v778
        %v789 = vadd.f32 %v768, %v778
        %v790 = vadd.f32 %v769, %v778
        %v791 = vadd.f32 %v770, %v778
        %v792 = vadd.f32 %v771, %v778
        %v793 = vadd.f32 %v772, %v778
        %v794 = vadd.f32 %v773, %v778
        %vm795 = vcmask 97280
        %796 = vst.msk [vmem:[%s235] sm:$0xff] %vm795, %v779
        %797 = vst.msk [vmem:[%s235 + $0x8] sm:$0xff] %vm795, %v780
        %798 = vst.msk [vmem:[%s235 + $0x10] sm:$0xff] %vm795, %v781
        %799 = vst.msk [vmem:[%s235 + $0x18] sm:$0xff] %vm795, %v782
        %800 = vst.msk [vmem:[%s235 + $0x20] sm:$0xff] %vm795, %v783
        %801 = vst.msk [vmem:[%s235 + $0x28] sm:$0xff] %vm795, %v784
        %802 = vst.msk [vmem:[%s235 + $0x30] sm:$0xff] %vm795, %v785
        %803 = vst.msk [vmem:[%s235 + $0x38] sm:$0xff] %vm795, %v786
        %804 = vst.msk [vmem:[%s235 + $0x40] sm:$0xff] %vm795, %v787
        %805 = vst.msk [vmem:[%s235 + $0x48] sm:$0xff] %vm795, %v788
        %806 = vst.msk [vmem:[%s235 + $0x50] sm:$0xff] %vm795, %v789
        %807 = vst.msk [vmem:[%s235 + $0x58] sm:$0xff] %vm795, %v790
        %808 = vst.msk [vmem:[%s235 + $0x60] sm:$0xff] %vm795, %v791
        %809 = vst.msk [vmem:[%s235 + $0x68] sm:$0xff] %vm795, %v792
        %810 = vst.msk [vmem:[%s235 + $0x70] sm:$0xff] %vm795, %v793
        %811 = vst.msk [vmem:[%s235 + $0x78] sm:$0xff] %vm795, %v794
      $region44: #{vae_forward.18} parent=31 // pred_fallthru
        _
      %s812 = smul.u32 16, %s21
      %p813 = scmp.lt.s32.totalorder %s20, 3
      %s814 = scalar_select %p813, %s20, 3
      %p815 = scmp.lt.s32.totalorder %s812, 15
      %s816 = scalar_select %p815, %s812, 15
      %s817 = smul.addr %s814, 16
      %s818 = sadd.s32 %s816, %s817
      %s819 = smul.addr %s818, 8
      %s820 = scalar_lea.vmem %s3, %s819
      // Predicated region
      $region45: #{vae_forward.18} parent=31 // pred_check
        %p821 = pneg %p128
      $region46: #{vae_forward.18} parent=31 // pred_check_branch
        %823 = sbr.rel (%p821) target = $region48
      $region47: #{vae_forward.18} parent=31 // pred_region
        %s824 = smul.u32 16, %s21
      $region48: #{vae_forward.18} parent=31 // pred_fallthru
        _
    $region32: #{vae_forward.18} parent=5 // pred_fallthru
      _
    %p825 = scmp.le.s32.totalorder 2, %s9
    // Predicated region
    $region49: #{vae_forward.18} parent=5 // pred_check
      %p826 = pneg %p825
    $region50: #{vae_forward.18} parent=5 // pred_check_branch
      %828 = sbr.rel (%p826) target = $region52
    $region51: #{vae_forward.18} parent=5 // pred_region
      %s829 = ssub.s32 %s9, 2
      // Predicated region
      $region53: #{vae_forward.18} parent=51 // pred_check
        %p830 = pneg %p134
      $region54: #{vae_forward.18} parent=51 // pred_check_branch
        %832 = sbr.rel (%p830) target = $region56
      $region55: #{vae_forward.18} parent=51 // pred_region
        %s833 = smul.u32 16, %s24
        %p834 = scmp.lt.s32.totalorder %s23, 3
        %s835 = scalar_select %p834, %s23, 3
        %p836 = scmp.lt.s32.totalorder %s833, 15
        %s837 = scalar_select %p836, %s833, 15
        %s838 = smul.addr %s835, 16
        %s839 = sadd.s32 %s837, %s838
        %s840 = smul.addr %s839, 8
        %s841 = scalar_lea.vmem %s3, %s840
      $region56: #{vae_forward.18} parent=51 // pred_fallthru
        _
    $region52: #{vae_forward.18} parent=5 // pred_fallthru
      _
  $region6: #{vae_forward.18} parent=0 // loop_footer
    %s13 = sadd.s32 1, %s9
  $region7: #{vae_forward.18} parent=0 // loop_footer_branch
    %8 = sbr.rel target = $region3
  $region8: #{vae_forward.18} parent=0 // loop_exit
    _

// kernel: vae_forward.19
$region0: #{vae_forward.19}
  #allocation0 [shape = 'u32[]', space=smem, size = 0x4, offset = 0x4, fixed_abs, tag = 'smem constant byte address 0x4 - core index']
  #allocation1 [shape = 'u32[144,128]{1,0:T(1,128)}', space=vmem, size = 0x12000, scoped, tag = 'internal scratch']
  %s0 = inlined_call_operand.vmem [shape: bf16[4,512,48], index: 0, kind: input, shape index: {}]
  %s1 = inlined_call_operand.vmem [shape: bf16[4,48,3], index: 1, kind: input, shape index: {}]
  %s2 = inlined_call_operand.vmem [shape: f32[1,3], index: 2, kind: input, shape index: {}]
  %s3 = inlined_call_operand.vmem [shape: f32[4,512,3], index: 3, kind: output, shape index: {}]
  %s4 = sld [smem:[#allocation0]]
  $region45: #{vae_forward.19} parent=0
    _
  %s6 = ssub.s32 1, %s4
  %s7 = scalar_select 0, %s6, %s4
  loop: start=0, step=1, limit=6
  $region2: #{vae_forward.19} parent=0 // loop_pre_header
    _
  $region3: #{vae_forward.19} parent=0 // loop_header
    %s9 = sphi 0, %s13
    %p10 = scmp.ge.s32.totalorder %s9, 6
    %s16 = sphi 0, %s35
    %s17 = sphi 0, %s31
    %s18 = sphi 0, %s27
    %s19 = sphi 0, %s16
    %s20 = sphi 0, %s17
    %s21 = sphi 0, %s18
    %s22 = sphi 0, %s19
    %s23 = sphi 0, %s20
    %s24 = sphi 0, %s21
    %s40 = sphi 0, %s42
    %s43 = sphi 0, %s40
    %s44 = sphi 0, %s43
    %s60 = sphi 0, %s44
    %s66 = sphi 0, %s68
    %s69 = sphi 0, %s66
    %s70 = sphi 0, %s69
    %s86 = sphi 0, %s70
    %s90 = sphi 0, %s90
    %s92 = sphi 0, %s90
    %s93 = sphi 0, %s92
    %s107 = sphi 0, %s93
    %s115 = sphi 0, %s117
    %s118 = sphi 0, %s115
    %s119 = sphi 0, %s118
    %s135 = sphi 0, %s119
  $region4: #{vae_forward.19} parent=0 // loop_header_branch
    %12 = sbr.rel (%p10) target = $region8
  $region5: #{vae_forward.19} parent=0 // loop_body
    %s14 = ssub.s32 %s9, 1
    %s15 = ssub.s32 %s9, 2
    %s25 = sadd.s32 1, %s18
    %p26 = scmp.ge.s32.totalorder %s25, 1
    %s27 = scalar_select %p26, 0, %s25
    %s28 = sadd.s32 1, %s17
    %s29 = scalar_select %p26, %s28, %s17
    %p30 = scmp.ge.s32.totalorder %s29, 4
    %s31 = scalar_select %p30, 0, %s29
    %s32 = sadd.s32 1, %s16
    %s33 = scalar_select %p30, %s32, %s16
    %p34 = scmp.ge.s32.totalorder %s33, 1
    %s35 = scalar_select %p34, 0, %s33
    %s36 = ssub.s32 %s17, %s31
    %s37 = ssub.s32 %s18, %s27
    %s38 = sor.u32 %s36, %s37
    %p39 = scmp.eq.s32.totalorder %s38, 0
    %s41 = sadd.s32 %s40, 1
    %s42 = scalar_select %p39, %s40, %s41
    %p45 = pneg %p39
    %p46 = scmp.eq.s32.totalorder %s9, 3
    %p47 = por %p45, %p46
    %p48 = scmp.ne.s32.totalorder %s40, %s43
    %p49 = scmp.eq.s32.totalorder %s9, 0
    %p50 = por %p48, %p49
    %p51 = scmp.ne.s32.totalorder %s40, %s43
    %p52 = scmp.eq.s32.totalorder %s14, 3
    %p53 = por %p51, %p52
    %p54 = scmp.ne.s32.totalorder %s43, %s44
    %p55 = scmp.eq.s32.totalorder %s14, 0
    %p56 = por %p54, %p55
    %p57 = scmp.ne.s32.totalorder %s43, %s44
    %p58 = scmp.eq.s32.totalorder %s15, 3
    %p59 = por %p57, %p58
    %p61 = scmp.ne.s32.totalorder %s44, %s60
    %p62 = scmp.eq.s32.totalorder %s15, 0
    %p63 = por %p61, %p62
    %s64 = ssub.s32 %s17, %s31
    %p65 = scmp.eq.s32.totalorder %s64, 0
    %s67 = sadd.s32 %s66, 1
    %s68 = scalar_select %p65, %s66, %s67
    %p71 = pneg %p65
    %p72 = scmp.eq.s32.totalorder %s9, 3
    %p73 = por %p71, %p72
    %p74 = scmp.ne.s32.totalorder %s66, %s69
    %p75 = scmp.eq.s32.totalorder %s9, 0
    %p76 = por %p74, %p75
    %p77 = scmp.ne.s32.totalorder %s66, %s69
    %p78 = scmp.eq.s32.totalorder %s14, 3
    %p79 = por %p77, %p78
    %p80 = scmp.ne.s32.totalorder %s69, %s70
    %p81 = scmp.eq.s32.totalorder %s14, 0
    %p82 = por %p80, %p81
    %p83 = scmp.ne.s32.totalorder %s69, %s70
    %p84 = scmp.eq.s32.totalorder %s15, 3
    %p85 = por %p83, %p84
    %p87 = scmp.ne.s32.totalorder %s70, %s86
    %p88 = scmp.eq.s32.totalorder %s15, 0
    %p89 = por %p87, %p88
    %s91 = sadd.s32 %s90, 1
    %p94 = scmp.eq.s32.totalorder %s9, 3
    %p95 = scmp.ne.s32.totalorder %s90, %s92
    %p96 = scmp.eq.s32.totalorder %s9, 0
    %p97 = por %p95, %p96
    %p98 = scmp.ne.s32.totalorder %s90, %s92
    %p99 = scmp.eq.s32.totalorder %s14, 3
    %p100 = por %p98, %p99
    %p101 = scmp.ne.s32.totalorder %s92, %s93
    %p102 = scmp.eq.s32.totalorder %s14, 0
    %p103 = por %p101, %p102
    %p104 = scmp.ne.s32.totalorder %s92, %s93
    %p105 = scmp.eq.s32.totalorder %s15, 3
    %p106 = por %p104, %p105
    %p108 = scmp.ne.s32.totalorder %s93, %s107
    %p109 = scmp.eq.s32.totalorder %s15, 0
    %p110 = por %p108, %p109
    %s111 = ssub.s32 %s17, %s31
    %s112 = ssub.s32 %s18, %s27
    %s113 = sor.u32 %s111, %s112
    %p114 = scmp.eq.s32.totalorder %s113, 0
    %s116 = sadd.s32 %s115, 1
    %s117 = scalar_select %p114, %s115, %s116
    %p120 = pneg %p114
    %p121 = scmp.eq.s32.totalorder %s9, 3
    %p122 = por %p120, %p121
    %p123 = scmp.ne.s32.totalorder %s115, %s118
    %p124 = scmp.eq.s32.totalorder %s9, 0
    %p125 = por %p123, %p124
    %p126 = scmp.ne.s32.totalorder %s115, %s118
    %p127 = scmp.eq.s32.totalorder %s14, 3
    %p128 = por %p126, %p127
    %p129 = scmp.ne.s32.totalorder %s118, %s119
    %p130 = scmp.eq.s32.totalorder %s14, 0
    %p131 = por %p129, %p130
    %p132 = scmp.ne.s32.totalorder %s118, %s119
    %p133 = scmp.eq.s32.totalorder %s15, 3
    %p134 = por %p132, %p133
    %p136 = scmp.ne.s32.totalorder %s119, %s135
    %p137 = scmp.eq.s32.totalorder %s15, 0
    %p138 = por %p136, %p137
    %p139 = scmp.le.s32.totalorder 1, %s9
    %p140 = scmp.lt.s32.totalorder %s9, 5
    %p141 = pnand %p139, %p140
    %p142 = pneg %p141
    // Predicated region
    $region9: #{vae_forward.19} parent=5 // pred_check
      _
    $region10: #{vae_forward.19} parent=5 // pred_check_branch
      %144 = sbr.rel (%p141) target = $region12
    $region11: #{vae_forward.19} parent=5 // pred_region
      %s145 = ssub.s32 %s9, 1
      // Predicated region
      $region13: #{vae_forward.19} parent=11 // pred_check
        %p146 = pneg %p103
      $region14: #{vae_forward.19} parent=11 // pred_check_branch
        %148 = sbr.rel (%p146) target = $region16
      $region15: #{vae_forward.19} parent=11 // pred_region
        _
      $region16: #{vae_forward.19} parent=11 // pred_fallthru
        _
    $region12: #{vae_forward.19} parent=5 // pred_fallthru
      _
    %p149 = scmp.lt.s32.totalorder %s9, 4
    // Predicated region
    $region17: #{vae_forward.19} parent=5 // pred_check
      %p150 = pneg %p149
    $region18: #{vae_forward.19} parent=5 // pred_check_branch
      %152 = sbr.rel (%p150) target = $region20
    $region19: #{vae_forward.19} parent=5 // pred_region
      // Predicated region
      $region21: #{vae_forward.19} parent=19 // pred_check
        %p153 = pneg %p50
      $region22: #{vae_forward.19} parent=19 // pred_check_branch
        %155 = sbr.rel (%p153) target = $region24
      $region23: #{vae_forward.19} parent=19 // pred_region
        %s156 = smul.u32 64, %s18
        %p157 = scmp.lt.s32.totalorder %s17, 3
        %s158 = scalar_select %p157, %s17, 3
        %p159 = scmp.lt.s32.totalorder %s156, 63
        %s160 = scalar_select %p159, %s156, 63
        %s161 = smul.addr %s158, 64
        %s162 = sadd.s32 %s160, %s161
        %s163 = smul.addr %s162, 4
        %s164 = scalar_lea.vmem %s0, %s163
        %s165 = smul.u32 64, %s18
      $region24: #{vae_forward.19} parent=19 // pred_fallthru
        _
      // Predicated region
      $region25: #{vae_forward.19} parent=19 // pred_check
        %p166 = pneg %p76
      $region26: #{vae_forward.19} parent=19 // pred_check_branch
        %168 = sbr.rel (%p166) target = $region28
      $region27: #{vae_forward.19} parent=19 // pred_region
        %p169 = scmp.lt.s32.totalorder %s17, 3
        %s170 = scalar_select %p169, %s17, 3
        %s171 = smul.addr %s170, 6
        %s172 = smul.addr %s171, 4
        %s173 = scalar_lea.vmem %s1, %s172
      $region28: #{vae_forward.19} parent=19 // pred_fallthru
        _
    $region20: #{vae_forward.19} parent=5 // pred_fallthru
      _
    %p174 = scmp.le.s32.totalorder 1, %s9
    %p175 = scmp.lt.s32.totalorder %s9, 5
    %p176 = pnand %p174, %p175
    %p177 = pneg %p176
    // Predicated region
    $region29: #{vae_forward.19} parent=5 // pred_check
      _
    $region30: #{vae_forward.19} parent=5 // pred_check_branch
      %179 = sbr.rel (%p176) target = $region32
    $region31: #{vae_forward.19} parent=5 // pred_region
      %s180 = ssub.s32 %s9, 1
      %s181 = smul.u32 64, %s21
      %p182 = scmp.lt.s32.totalorder %s20, 3
      %s183 = scalar_select %p182, %s20, 3
      %p184 = scmp.lt.s32.totalorder %s181, 63
      %s185 = scalar_select %p184, %s181, 63
      %s186 = smul.addr %s183, 64
      %s187 = sadd.s32 %s185, %s186
      %s188 = smul.addr %s187, 4
      %s189 = scalar_lea.vmem %s0, %s188
      %p190 = pneg %p56
      %p191 = pneg %p53
      %p192 = scmp.lt.s32.totalorder %s20, 3
      %s193 = scalar_select %p192, %s20, 3
      %s194 = smul.addr %s193, 6
      %s195 = smul.addr %s194, 4
      %s196 = scalar_lea.vmem %s1, %s195
      %p197 = pneg %p82
      %p198 = pneg %p79
      %p199 = pneg %p103
      %p200 = pneg %p100
      %p201 = pneg %p131
      %p202 = pneg %p128
      %s203 = smul.u32 64, %s21
      %p204 = scmp.lt.s32.totalorder %s20, 3
      %s205 = scalar_select %p204, %s20, 3
      %p206 = scmp.lt.s32.totalorder %s203, 63
      %s207 = scalar_select %p206, %s203, 63
      %s208 = smul.addr %s205, 64
      %s209 = sadd.s32 %s207, %s208
      %s210 = smul.addr %s209, 8
      %s211 = scalar_lea.vmem %s3, %s210
      %s212 = smul.u32 64, %s21
      %p213 = scmp.lt.s32.totalorder %s20, 3
      %s214 = scalar_select %p213, %s20, 3
      %p215 = scmp.lt.s32.totalorder %s212, 63
      %s216 = scalar_select %p215, %s212, 63
      %s217 = smul.addr %s214, 64
      %s218 = sadd.s32 %s216, %s217
      %s219 = smul.addr %s218, 4
      %s220 = scalar_lea.vmem %s0, %s219
      %s221 = smul.u32 64, %s21
      %p222 = scmp.lt.s32.totalorder %s20, 3
      %s223 = scalar_select %p222, %s20, 3
      %s224 = smul.addr %s223, 6
      %s225 = smul.addr %s224, 4
      %s226 = scalar_lea.vmem %s1, %s225
      %s227 = smul.u32 64, %s21
      %p228 = scmp.lt.s32.totalorder %s20, 3
      %s229 = scalar_select %p228, %s20, 3
      %p230 = scmp.lt.s32.totalorder %s227, 63
      %s231 = scalar_select %p230, %s227, 63
      %s232 = smul.addr %s229, 64
      %s233 = sadd.s32 %s231, %s232
      %s234 = smul.addr %s233, 8
      %s235 = scalar_lea.vmem %s3, %s234
      %s236 = smul.u32 64, %s21
      %v238 = vld [vmem:[%s220] sm:$0xf]
      %v239 = vld [vmem:[%s220 + $0x4] sm:$0xf]
      %v240 = vld [vmem:[%s220 + $0x8] sm:$0xf]
      %v241 = vld [vmem:[%s220 + $0xc] sm:$0xf]
      %v242 = vld [vmem:[%s220 + $0x10] sm:$0xf]
      %v243 = vld [vmem:[%s220 + $0x14] sm:$0xf]
      %v244 = vld [vmem:[%s220 + $0x18] sm:$0xf]
      %v245 = vld [vmem:[%s220 + $0x1c] sm:$0xf]
      %v246 = vld [vmem:[%s220 + $0x20] sm:$0xf]
      %v247 = vld [vmem:[%s220 + $0x24] sm:$0xf]
      %v248 = vld [vmem:[%s220 + $0x28] sm:$0xf]
      %v249 = vld [vmem:[%s220 + $0x2c] sm:$0xf]
      %v250 = vld [vmem:[%s220 + $0x30] sm:$0xf]
      %v251 = vld [vmem:[%s220 + $0x34] sm:$0xf]
      %v252 = vld [vmem:[%s220 + $0x38] sm:$0xf]
      %v253 = vld [vmem:[%s220 + $0x3c] sm:$0xf]
      %v254 = vld [vmem:[%s220 + $0x40] sm:$0xf]
      %v255 = vld [vmem:[%s220 + $0x44] sm:$0xf]
      %v256 = vld [vmem:[%s220 + $0x48] sm:$0xf]
      %v257 = vld [vmem:[%s220 + $0x4c] sm:$0xf]
      %v258 = vld [vmem:[%s220 + $0x50] sm:$0xf]
      %v259 = vld [vmem:[%s220 + $0x54] sm:$0xf]
      %v260 = vld [vmem:[%s220 + $0x58] sm:$0xf]
      %v261 = vld [vmem:[%s220 + $0x5c] sm:$0xf]
      %v262 = vld [vmem:[%s220 + $0x60] sm:$0xf]
      %v263 = vld [vmem:[%s220 + $0x64] sm:$0xf]
      %v264 = vld [vmem:[%s220 + $0x68] sm:$0xf]
      %v265 = vld [vmem:[%s220 + $0x6c] sm:$0xf]
      %v266 = vld [vmem:[%s220 + $0x70] sm:$0xf]
      %v267 = vld [vmem:[%s220 + $0x74] sm:$0xf]
      %v268 = vld [vmem:[%s220 + $0x78] sm:$0xf]
      %v269 = vld [vmem:[%s220 + $0x7c] sm:$0xf]
      %v270 = vld [vmem:[%s220 + $0x80] sm:$0xf]
      %v271 = vld [vmem:[%s220 + $0x84] sm:$0xf]
      %v272 = vld [vmem:[%s220 + $0x88] sm:$0xf]
      %v273 = vld [vmem:[%s220 + $0x8c] sm:$0xf]
      %v274 = vld [vmem:[%s220 + $0x90] sm:$0xf]
      %v275 = vld [vmem:[%s220 + $0x94] sm:$0xf]
      %v276 = vld [vmem:[%s220 + $0x98] sm:$0xf]
      %v277 = vld [vmem:[%s220 + $0x9c] sm:$0xf]
      %v278 = vld [vmem:[%s220 + $0xa0] sm:$0xf]
      %v279 = vld [vmem:[%s220 + $0xa4] sm:$0xf]
      %v280 = vld [vmem:[%s220 + $0xa8] sm:$0xf]
      %v281 = vld [vmem:[%s220 + $0xac] sm:$0xf]
      %v282 = vld [vmem:[%s220 + $0xb0] sm:$0xf]
      %v283 = vld [vmem:[%s220 + $0xb4] sm:$0xf]
      %v284 = vld [vmem:[%s220 + $0xb8] sm:$0xf]
      %v285 = vld [vmem:[%s220 + $0xbc] sm:$0xf]
      %v286 = vld [vmem:[%s220 + $0xc0] sm:$0xf]
      %v287 = vld [vmem:[%s220 + $0xc4] sm:$0xf]
      %v288 = vld [vmem:[%s220 + $0xc8] sm:$0xf]
      %v289 = vld [vmem:[%s220 + $0xcc] sm:$0xf]
      %v290 = vld [vmem:[%s220 + $0xd0] sm:$0xf]
      %v291 = vld [vmem:[%s220 + $0xd4] sm:$0xf]
      %v292 = vld [vmem:[%s220 + $0xd8] sm:$0xf]
      %v293 = vld [vmem:[%s220 + $0xdc] sm:$0xf]
      %v294 = vld [vmem:[%s220 + $0xe0] sm:$0xf]
      %v295 = vld [vmem:[%s220 + $0xe4] sm:$0xf]
      %v296 = vld [vmem:[%s220 + $0xe8] sm:$0xf]
      %v297 = vld [vmem:[%s220 + $0xec] sm:$0xf]
      %v298 = vld [vmem:[%s220 + $0xf0] sm:$0xf]
      %v299 = vld [vmem:[%s220 + $0xf4] sm:$0xf]
      %v300 = vld [vmem:[%s220 + $0xf8] sm:$0xf]
      %v301 = vld [vmem:[%s220 + $0xfc] sm:$0xf]
      %v302 = vld [vmem:[%s226] sm:$0xf]
      %v303 = vld [vmem:[%s226 + $0x4] sm:$0xf]
      %v304 = vld [vmem:[%s226 + $0x8] sm:$0xf]
      %v305 = vld [vmem:[%s226 + $0xc] sm:$0xf]
      %v306 = vld [vmem:[%s226 + $0x10] sm:$0xf]
      %v307 = vld [vmem:[%s226 + $0x14] sm:$0xf]
      %v308 = vld [vmem:[%s2] sm:$0x1]
      %v310 = vlaneseq
      %v311 = vshrl.u32 %v310, 7
      %v312 = vsub.s32 0, %v311
      %v313 = vrot.slane %v308, %v312
      %v379 = vunpack.c.l.b16 %v238
      %v380 = vunpack.c.l.b16 %v239
      %v381 = vunpack.c.l.b16 %v240
      %v382 = vunpack.c.l.b16 %v241
      %v383 = vunpack.c.l.b16 %v242
      %v384 = vunpack.c.l.b16 %v243
      %v385 = vunpack.c.l.b16 %v244
      %v386 = vunpack.c.l.b16 %v245
      %v387 = vunpack.c.l.b16 %v246
      %v388 = vunpack.c.l.b16 %v247
      %v389 = vunpack.c.l.b16 %v248
      %v390 = vunpack.c.l.b16 %v249
      %v391 = vunpack.c.l.b16 %v250
      %v392 = vunpack.c.l.b16 %v251
      %v393 = vunpack.c.l.b16 %v252
      %v394 = vunpack.c.l.b16 %v253
      %v395 = vunpack.c.l.b16 %v254
      %v396 = vunpack.c.l.b16 %v255
      %v397 = vunpack.c.l.b16 %v256
      %v398 = vunpack.c.l.b16 %v257
      %v399 = vunpack.c.l.b16 %v258
      %v400 = vunpack.c.l.b16 %v259
      %v401 = vunpack.c.l.b16 %v260
      %v402 = vunpack.c.l.b16 %v261
      %v403 = vunpack.c.l.b16 %v262
      %v404 = vunpack.c.l.b16 %v263
      %v405 = vunpack.c.l.b16 %v264
      %v406 = vunpack.c.l.b16 %v265
      %v407 = vunpack.c.l.b16 %v266
      %v408 = vunpack.c.l.b16 %v267
      %v409 = vunpack.c.l.b16 %v268
      %v410 = vunpack.c.l.b16 %v269
      %v411 = vunpack.c.l.b16 %v270
      %v412 = vunpack.c.l.b16 %v271
      %v413 = vunpack.c.l.b16 %v272
      %v414 = vunpack.c.l.b16 %v273
      %v415 = vunpack.c.l.b16 %v274
      %v416 = vunpack.c.l.b16 %v275
      %v417 = vunpack.c.l.b16 %v276
      %v418 = vunpack.c.l.b16 %v277
      %v419 = vunpack.c.l.b16 %v278
      %v420 = vunpack.c.l.b16 %v279
      %v421 = vunpack.c.l.b16 %v280
      %v422 = vunpack.c.l.b16 %v281
      %v423 = vunpack.c.l.b16 %v282
      %v424 = vunpack.c.l.b16 %v283
      %v425 = vunpack.c.l.b16 %v284
      %v426 = vunpack.c.l.b16 %v285
      %v427 = vunpack.c.l.b16 %v286
      %v428 = vunpack.c.l.b16 %v287
      %v429 = vunpack.c.l.b16 %v288
      %v430 = vunpack.c.l.b16 %v289
      %v431 = vunpack.c.l.b16 %v290
      %v432 = vunpack.c.l.b16 %v291
      %v433 = vunpack.c.l.b16 %v292
      %v434 = vunpack.c.l.b16 %v293
      %v435 = vunpack.c.l.b16 %v294
      %v436 = vunpack.c.l.b16 %v295
      %v437 = vunpack.c.l.b16 %v296
      %v438 = vunpack.c.l.b16 %v297
      %v439 = vunpack.c.l.b16 %v298
      %v440 = vunpack.c.l.b16 %v299
      %v441 = vunpack.c.l.b16 %v300
      %v442 = vunpack.c.l.b16 %v301
      %v443 = vpack.c.b16 %v380, %v379
      %v444 = vpack.c.b16 %v382, %v381
      %v445 = vpack.c.b16 %v384, %v383
      %v446 = vpack.c.b16 %v386, %v385
      %v447 = vpack.c.b16 %v388, %v387
      %v448 = vpack.c.b16 %v390, %v389
      %v449 = vpack.c.b16 %v392, %v391
      %v450 = vpack.c.b16 %v394, %v393
      %v451 = vpack.c.b16 %v396, %v395
      %v452 = vpack.c.b16 %v398, %v397
      %v453 = vpack.c.b16 %v400, %v399
      %v454 = vpack.c.b16 %v402, %v401
      %v455 = vpack.c.b16 %v404, %v403
      %v456 = vpack.c.b16 %v406, %v405
      %v457 = vpack.c.b16 %v408, %v407
      %v458 = vpack.c.b16 %v410, %v409
      %v459 = vpack.c.b16 %v412, %v411
      %v460 = vpack.c.b16 %v414, %v413
      %v461 = vpack.c.b16 %v416, %v415
      %v462 = vpack.c.b16 %v418, %v417
      %v463 = vpack.c.b16 %v420, %v419
      %v464 = vpack.c.b16 %v422, %v421
      %v465 = vpack.c.b16 %v424, %v423
      %v466 = vpack.c.b16 %v426, %v425
      %v467 = vpack.c.b16 %v428, %v427
      %v468 = vpack.c.b16 %v430, %v429
      %v469 = vpack.c.b16 %v432, %v431
      %v470 = vpack.c.b16 %v434, %v433
      %v471 = vpack.c.b16 %v436, %v435
      %v472 = vpack.c.b16 %v438, %v437
      %v473 = vpack.c.b16 %v440, %v439
      %v474 = vpack.c.b16 %v442, %v441
      %v481 = vunpack.c.l.b16 %v302
      %v482 = vunpack.c.l.b16 %v303
      %v483 = vunpack.c.l.b16 %v304
      %v484 = vunpack.c.l.b16 %v305
      %v485 = vunpack.c.l.b16 %v306
      %v486 = vunpack.c.l.b16 %v307
      %v487 = vpack.c.b16 %v482, %v481
      %v488 = vpack.c.b16 %v484, %v483
      %v489 = vpack.c.b16 %v486, %v485
      %vm493 = vcmask 392192
      %v495 = vsel %vm493, %v443, 0
      %v498 = vsel %vm493, %v444, 0
      %v501 = vsel %vm493, %v445, 0
      %v504 = vsel %vm493, %v446, 0
      %v507 = vsel %vm493, %v447, 0
      %v510 = vsel %vm493, %v448, 0
      %v513 = vsel %vm493, %v449, 0
      %v516 = vsel %vm493, %v450, 0
      %v519 = vsel %vm493, %v451, 0
      %v522 = vsel %vm493, %v452, 0
      %v525 = vsel %vm493, %v453, 0
      %v528 = vsel %vm493, %v454, 0
      %v531 = vsel %vm493, %v455, 0
      %v534 = vsel %vm493, %v456, 0
      %v537 = vsel %vm493, %v457, 0
      %v540 = vsel %vm493, %v458, 0
      %v543 = vsel %vm493, %v459, 0
      %v546 = vsel %vm493, %v460, 0
      %v549 = vsel %vm493, %v461, 0
      %v552 = vsel %vm493, %v462, 0
      %v555 = vsel %vm493, %v463, 0
      %v558 = vsel %vm493, %v464, 0
      %v561 = vsel %vm493, %v465, 0
      %v564 = vsel %vm493, %v466, 0
      %v567 = vsel %vm493, %v467, 0
      %v570 = vsel %vm493, %v468, 0
      %v573 = vsel %vm493, %v469, 0
      %v576 = vsel %vm493, %v470, 0
      %v579 = vsel %vm493, %v471, 0
      %v582 = vsel %vm493, %v472, 0
      %v585 = vsel %vm493, %v473, 0
      %v588 = vsel %vm493, %v474, 0
      %590 = vmatprep.subr.bf16.mxu0 0
      %591 = vmatpush1.bf16.msra.mxu0 %v487
      %592 = vmatprep.subr.bf16.mxu0 0
      %593 = vmatpush1.bf16.msra.mxu0 %v488
      %594 = vmatprep.subr.bf16.mxu0 0
      %595 = vmatpush1.bf16.msra.mxu0 %v489
      %596 = vmatprep.subr.bf16.mxu0 0
      %597 = vmatpush1.bf16.msra.mxu0 0
      %598 = vmatprep.subr.bf16.mxu0 0
      %599 = vmatpush1.bf16.msra.mxu0 0
      %600 = vmatprep.subr.bf16.mxu0 0
      %601 = vmatpush1.bf16.msra.mxu0 0
      %602 = vmatprep.subr.bf16.mxu0 0
      %603 = vmatpush1.bf16.msra.mxu0 0
      %604 = vmatprep.subr.bf16.mxu0 0
      %605 = vmatpush1.bf16.msra.mxu0 0
      %606 = vmatprep.subr.bf16.mxu0 0
      %607 = vmatpush1.bf16.msra.mxu0 0
      %608 = vmatprep.subr.bf16.mxu0 0
      %609 = vmatpush1.bf16.msra.mxu0 0
      %610 = vmatprep.subr.bf16.mxu0 0
      %611 = vmatpush1.bf16.msra.mxu0 0
      %612 = vmatprep.subr.bf16.mxu0 0
      %613 = vmatpush1.bf16.msra.mxu0 0
      %614 = vmatprep.subr.bf16.mxu0 0
      %615 = vmatpush1.bf16.msra.mxu0 0
      %616 = vmatprep.subr.bf16.mxu0 0
      %617 = vmatpush1.bf16.msra.mxu0 0
      %618 = vmatprep.subr.bf16.mxu0 0
      %619 = vmatpush1.bf16.msra.mxu0 0
      %620 = vmatprep.subr.bf16.mxu0 0
      %621 = vmatpush1.bf16.msra.mxu0 0
      %622 = vmatprep.mubr.bf16.mxu0 0
      %623 = vmatmul.mubr.bf16.gmra.mrb[0].mxu0 %v495
      %v624 = vpop.f32.mrb[0].mxu0
      %v625 = vadd.f32 %v313, %v624
      %v626 = vpop.f32.mrb[0].mxu0
      %v627 = vpop.f32.mrb[0].mxu0
      %v628 = vadd.f32 %v313, %v627
      %v629 = vpop.f32.mrb[0].mxu0
      %630 = vmatprep.mubr.bf16.mxu0 0
      %631 = vmatmul.mubr.bf16.gmra.mrb[0].mxu0 %v498
      %v632 = vpop.f32.mrb[0].mxu0
      %v633 = vadd.f32 %v313, %v632
      %v634 = vpop.f32.mrb[0].mxu0
      %v635 = vpop.f32.mrb[0].mxu0
      %v636 = vadd.f32 %v313, %v635
      %v637 = vpop.f32.mrb[0].mxu0
      %638 = vmatprep.mubr.bf16.mxu0 0
      %639 = vmatmul.mubr.bf16.gmra.mrb[0].mxu0 %v501
      %v640 = vpop.f32.mrb[0].mxu0
      %v641 = vadd.f32 %v313, %v640
      %v642 = vpop.f32.mrb[0].mxu0
      %v643 = vpop.f32.mrb[0].mxu0
      %v644 = vadd.f32 %v313, %v643
      %v645 = vpop.f32.mrb[0].mxu0
      %646 = vmatprep.mubr.bf16.mxu0 0
      %647 = vmatmul.mubr.bf16.gmra.mrb[0].mxu0 %v504
      %v648 = vpop.f32.mrb[0].mxu0
      %v649 = vadd.f32 %v313, %v648
      %v650 = vpop.f32.mrb[0].mxu0
      %v651 = vpop.f32.mrb[0].mxu0
      %v652 = vadd.f32 %v313, %v651
      %v653 = vpop.f32.mrb[0].mxu0
      %654 = vmatprep.mubr.bf16.mxu0 0
      %655 = vmatmul.mubr.bf16.gmra.mrb[0].mxu0 %v507
      %v656 = vpop.f32.mrb[0].mxu0
      %v657 = vadd.f32 %v313, %v656
      %v658 = vpop.f32.mrb[0].mxu0
      %v659 = vpop.f32.mrb[0].mxu0
      %v660 = vadd.f32 %v313, %v659
      %v661 = vpop.f32.mrb[0].mxu0
      %662 = vmatprep.mubr.bf16.mxu0 0
      %663 = vmatmul.mubr.bf16.gmra.mrb[0].mxu0 %v510
      %v664 = vpop.f32.mrb[0].mxu0
      %v665 = vadd.f32 %v313, %v664
      %v666 = vpop.f32.mrb[0].mxu0
      %v667 = vpop.f32.mrb[0].mxu0
      %v668 = vadd.f32 %v313, %v667
      %v669 = vpop.f32.mrb[0].mxu0
      %670 = vmatprep.mubr.bf16.mxu0 0
      %671 = vmatmul.mubr.bf16.gmra.mrb[0].mxu0 %v513
      %v672 = vpop.f32.mrb[0].mxu0
      %v673 = vadd.f32 %v313, %v672
      %v674 = vpop.f32.mrb[0].mxu0
      %v675 = vpop.f32.mrb[0].mxu0
      %v676 = vadd.f32 %v313, %v675
      %v677 = vpop.f32.mrb[0].mxu0
      %678 = vmatprep.mubr.bf16.mxu0 0
      %679 = vmatmul.mubr.bf16.gmra.mrb[0].mxu0 %v516
      %v680 = vpop.f32.mrb[0].mxu0
      %v681 = vadd.f32 %v313, %v680
      %v682 = vpop.f32.mrb[0].mxu0
      %v683 = vpop.f32.mrb[0].mxu0
      %v684 = vadd.f32 %v313, %v683
      %v685 = vpop.f32.mrb[0].mxu0
      %686 = vmatprep.mubr.bf16.mxu0 0
      %687 = vmatmul.mubr.bf16.gmra.mrb[0].mxu0 %v519
      %v688 = vpop.f32.mrb[0].mxu0
      %v689 = vadd.f32 %v313, %v688
      %v690 = vpop.f32.mrb[0].mxu0
      %v691 = vpop.f32.mrb[0].mxu0
      %v692 = vadd.f32 %v313, %v691
      %v693 = vpop.f32.mrb[0].mxu0
      %694 = vmatprep.mubr.bf16.mxu0 0
      %695 = vmatmul.mubr.bf16.gmra.mrb[0].mxu0 %v522
      %v696 = vpop.f32.mrb[0].mxu0
      %v697 = vadd.f32 %v313, %v696
      %v698 = vpop.f32.mrb[0].mxu0
      %v699 = vpop.f32.mrb[0].mxu0
      %v700 = vadd.f32 %v313, %v699
      %v701 = vpop.f32.mrb[0].mxu0
      %702 = vmatprep.mubr.bf16.mxu0 0
      %703 = vmatmul.mubr.bf16.gmra.mrb[0].mxu0 %v525
      %v704 = vpop.f32.mrb[0].mxu0
      %v705 = vadd.f32 %v313, %v704
      %v706 = vpop.f32.mrb[0].mxu0
      %v707 = vpop.f32.mrb[0].mxu0
      %v708 = vadd.f32 %v313, %v707
      %v709 = vpop.f32.mrb[0].mxu0
      %710 = vmatprep.mubr.bf16.mxu0 0
      %711 = vmatmul.mubr.bf16.gmra.mrb[0].mxu0 %v528
      %v712 = vpop.f32.mrb[0].mxu0
      %v713 = vadd.f32 %v313, %v712
      %v714 = vpop.f32.mrb[0].mxu0
      %v715 = vpop.f32.mrb[0].mxu0
      %v716 = vadd.f32 %v313, %v715
      %v717 = vpop.f32.mrb[0].mxu0
      %718 = vmatprep.mubr.bf16.mxu0 0
      %719 = vmatmul.mubr.bf16.gmra.mrb[0].mxu0 %v531
      %v720 = vpop.f32.mrb[0].mxu0
      %v721 = vadd.f32 %v313, %v720
      %v722 = vpop.f32.mrb[0].mxu0
      %v723 = vpop.f32.mrb[0].mxu0
      %v724 = vadd.f32 %v313, %v723
      %v725 = vpop.f32.mrb[0].mxu0
      %726 = vmatprep.mubr.bf16.mxu0 0
      %727 = vmatmul.mubr.bf16.gmra.mrb[0].mxu0 %v534
      %v728 = vpop.f32.mrb[0].mxu0
      %v729 = vadd.f32 %v313, %v728
      %v730 = vpop.f32.mrb[0].mxu0
      %v731 = vpop.f32.mrb[0].mxu0
      %v732 = vadd.f32 %v313, %v731
      %v733 = vpop.f32.mrb[0].mxu0
      %734 = vmatprep.mubr.bf16.mxu0 0
      %735 = vmatmul.mubr.bf16.gmra.mrb[0].mxu0 %v537
      %v736 = vpop.f32.mrb[0].mxu0
      %v737 = vadd.f32 %v313, %v736
      %v738 = vpop.f32.mrb[0].mxu0
      %v739 = vpop.f32.mrb[0].mxu0
      %v740 = vadd.f32 %v313, %v739
      %v741 = vpop.f32.mrb[0].mxu0
      %742 = vmatprep.mubr.bf16.mxu0 0
      %743 = vmatmul.mubr.bf16.gmra.mrb[0].mxu0 %v540
      %v744 = vpop.f32.mrb[0].mxu0
      %v745 = vadd.f32 %v313, %v744
      %v746 = vpop.f32.mrb[0].mxu0
      %v747 = vpop.f32.mrb[0].mxu0
      %v748 = vadd.f32 %v313, %v747
      %v749 = vpop.f32.mrb[0].mxu0
      %750 = vmatprep.mubr.bf16.mxu0 0
      %751 = vmatmul.mubr.bf16.gmra.mrb[0].mxu0 %v543
      %v752 = vpop.f32.mrb[0].mxu0
      %v753 = vadd.f32 %v313, %v752
      %v754 = vpop.f32.mrb[0].mxu0
      %v755 = vpop.f32.mrb[0].mxu0
      %v756 = vadd.f32 %v313, %v755
      %v757 = vpop.f32.mrb[0].mxu0
      %758 = vmatprep.mubr.bf16.mxu0 0
      %759 = vmatmul.mubr.bf16.gmra.mrb[0].mxu0 %v546
      %v760 = vpop.f32.mrb[0].mxu0
      %v761 = vadd.f32 %v313, %v760
      %v762 = vpop.f32.mrb[0].mxu0
      %v763 = vpop.f32.mrb[0].mxu0
      %v764 = vadd.f32 %v313, %v763
      %v765 = vpop.f32.mrb[0].mxu0
      %766 = vmatprep.mubr.bf16.mxu0 0
      %767 = vmatmul.mubr.bf16.gmra.mrb[0].mxu0 %v549
      %v768 = vpop.f32.mrb[0].mxu0
      %v769 = vadd.f32 %v313, %v768
      %v770 = vpop.f32.mrb[0].mxu0
      %v771 = vpop.f32.mrb[0].mxu0
      %v772 = vadd.f32 %v313, %v771
      %v773 = vpop.f32.mrb[0].mxu0
      %774 = vmatprep.mubr.bf16.mxu0 0
      %775 = vmatmul.mubr.bf16.gmra.mrb[0].mxu0 %v552
      %v776 = vpop.f32.mrb[0].mxu0
      %v777 = vadd.f32 %v313, %v776
      %v778 = vpop.f32.mrb[0].mxu0
      %v779 = vpop.f32.mrb[0].mxu0
      %v780 = vadd.f32 %v313, %v779
      %v781 = vpop.f32.mrb[0].mxu0
      %782 = vmatprep.mubr.bf16.mxu0 0
      %783 = vmatmul.mubr.bf16.gmra.mrb[0].mxu0 %v555
      %v784 = vpop.f32.mrb[0].mxu0
      %v785 = vadd.f32 %v313, %v784
      %v786 = vpop.f32.mrb[0].mxu0
      %v787 = vpop.f32.mrb[0].mxu0
      %v788 = vadd.f32 %v313, %v787
      %v789 = vpop.f32.mrb[0].mxu0
      %790 = vmatprep.mubr.bf16.mxu0 0
      %791 = vmatmul.mubr.bf16.gmra.mrb[0].mxu0 %v558
      %v792 = vpop.f32.mrb[0].mxu0
      %v793 = vadd.f32 %v313, %v792
      %v794 = vpop.f32.mrb[0].mxu0
      %v795 = vpop.f32.mrb[0].mxu0
      %v796 = vadd.f32 %v313, %v795
      %v797 = vpop.f32.mrb[0].mxu0
      %798 = vmatprep.mubr.bf16.mxu0 0
      %799 = vmatmul.mubr.bf16.gmra.mrb[0].mxu0 %v561
      %v800 = vpop.f32.mrb[0].mxu0
      %v801 = vadd.f32 %v313, %v800
      %v802 = vpop.f32.mrb[0].mxu0
      %v803 = vpop.f32.mrb[0].mxu0
      %v804 = vadd.f32 %v313, %v803
      %v805 = vpop.f32.mrb[0].mxu0
      %806 = vmatprep.mubr.bf16.mxu0 0
      %807 = vmatmul.mubr.bf16.gmra.mrb[0].mxu0 %v564
      %v808 = vpop.f32.mrb[0].mxu0
      %v809 = vadd.f32 %v313, %v808
      %v810 = vpop.f32.mrb[0].mxu0
      %v811 = vpop.f32.mrb[0].mxu0
      %v812 = vadd.f32 %v313, %v811
      %v813 = vpop.f32.mrb[0].mxu0
      %814 = vmatprep.mubr.bf16.mxu0 0
      %815 = vmatmul.mubr.bf16.gmra.mrb[0].mxu0 %v567
      %v816 = vpop.f32.mrb[0].mxu0
      %v817 = vadd.f32 %v313, %v816
      %v818 = vpop.f32.mrb[0].mxu0
      %v819 = vpop.f32.mrb[0].mxu0
      %v820 = vadd.f32 %v313, %v819
      %v821 = vpop.f32.mrb[0].mxu0
      %822 = vmatprep.mubr.bf16.mxu0 0
      %823 = vmatmul.mubr.bf16.gmra.mrb[0].mxu0 %v570
      %v824 = vpop.f32.mrb[0].mxu0
      %v825 = vadd.f32 %v313, %v824
      %v826 = vpop.f32.mrb[0].mxu0
      %v827 = vpop.f32.mrb[0].mxu0
      %v828 = vadd.f32 %v313, %v827
      %v829 = vpop.f32.mrb[0].mxu0
      %830 = vmatprep.mubr.bf16.mxu0 0
      %831 = vmatmul.mubr.bf16.gmra.mrb[0].mxu0 %v573
      %v832 = vpop.f32.mrb[0].mxu0
      %v833 = vadd.f32 %v313, %v832
      %v834 = vpop.f32.mrb[0].mxu0
      %v835 = vpop.f32.mrb[0].mxu0
      %v836 = vadd.f32 %v313, %v835
      %v837 = vpop.f32.mrb[0].mxu0
      %838 = vmatprep.mubr.bf16.mxu0 0
      %839 = vmatmul.mubr.bf16.gmra.mrb[0].mxu0 %v576
      %v840 = vpop.f32.mrb[0].mxu0
      %v841 = vadd.f32 %v313, %v840
      %v842 = vpop.f32.mrb[0].mxu0
      %v843 = vpop.f32.mrb[0].mxu0
      %v844 = vadd.f32 %v313, %v843
      %v845 = vpop.f32.mrb[0].mxu0
      %846 = vmatprep.mubr.bf16.mxu0 0
      %847 = vmatmul.mubr.bf16.gmra.mrb[0].mxu0 %v579
      %v848 = vpop.f32.mrb[0].mxu0
      %v849 = vadd.f32 %v313, %v848
      %v850 = vpop.f32.mrb[0].mxu0
      %v851 = vpop.f32.mrb[0].mxu0
      %v852 = vadd.f32 %v313, %v851
      %v853 = vpop.f32.mrb[0].mxu0
      %854 = vmatprep.mubr.bf16.mxu0 0
      %855 = vmatmul.mubr.bf16.gmra.mrb[0].mxu0 %v582
      %v856 = vpop.f32.mrb[0].mxu0
      %v857 = vadd.f32 %v313, %v856
      %v858 = vpop.f32.mrb[0].mxu0
      %v859 = vpop.f32.mrb[0].mxu0
      %v860 = vadd.f32 %v313, %v859
      %v861 = vpop.f32.mrb[0].mxu0
      %862 = vmatprep.mubr.bf16.mxu0 0
      %863 = vmatmul.mubr.bf16.gmra.mrb[0].mxu0 %v585
      %v864 = vpop.f32.mrb[0].mxu0
      %v865 = vadd.f32 %v313, %v864
      %v866 = vpop.f32.mrb[0].mxu0
      %v867 = vpop.f32.mrb[0].mxu0
      %v868 = vadd.f32 %v313, %v867
      %v869 = vpop.f32.mrb[0].mxu0
      %870 = vmatprep.mubr.bf16.mxu0 0
      %871 = vmatmul.mubr.bf16.gmra.mrb[0].mxu0 %v588
      %v872 = vpop.f32.mrb[0].mxu0
      %v873 = vadd.f32 %v313, %v872
      %v874 = vpop.f32.mrb[0].mxu0
      %v875 = vpop.f32.mrb[0].mxu0
      %v876 = vadd.f32 %v313, %v875
      %v877 = vpop.f32.mrb[0].mxu0
      %878 = vdwg.mxu0
      %v879 = vtanh.pop %v625
      %v880 = vtanh.pop %v628
      %v881 = vtanh.pop %v633
      %v882 = vtanh.pop %v636
      %v883 = vtanh.pop %v641
      %v884 = vtanh.pop %v644
      %v885 = vtanh.pop %v649
      %v886 = vtanh.pop %v652
      %v887 = vtanh.pop %v657
      %v888 = vtanh.pop %v660
      %v889 = vtanh.pop %v665
      %v890 = vtanh.pop %v668
      %v891 = vtanh.pop %v673
      %v892 = vtanh.pop %v676
      %v893 = vtanh.pop %v681
      %v894 = vtanh.pop %v684
      %v895 = vtanh.pop %v689
      %v896 = vtanh.pop %v692
      %v897 = vtanh.pop %v697
      %v898 = vtanh.pop %v700
      %v899 = vtanh.pop %v705
      %v900 = vtanh.pop %v708
      %v901 = vtanh.pop %v713
      %v902 = vtanh.pop %v716
      %v903 = vtanh.pop %v721
      %v904 = vtanh.pop %v724
      %v905 = vtanh.pop %v729
      %v906 = vtanh.pop %v732
      %v907 = vtanh.pop %v737
      %v908 = vtanh.pop %v740
      %v909 = vtanh.pop %v745
      %v910 = vtanh.pop %v748
      %v911 = vtanh.pop %v753
      %v912 = vtanh.pop %v756
      %v913 = vtanh.pop %v761
      %v914 = vtanh.pop %v764
      %v915 = vtanh.pop %v769
      %v916 = vtanh.pop %v772
      %v917 = vtanh.pop %v777
      %v918 = vtanh.pop %v780
      %v919 = vtanh.pop %v785
      %v920 = vtanh.pop %v788
      %v921 = vtanh.pop %v793
      %v922 = vtanh.pop %v796
      %v923 = vtanh.pop %v801
      %v924 = vtanh.pop %v804
      %v925 = vtanh.pop %v809
      %v926 = vtanh.pop %v812
      %v927 = vtanh.pop %v817
      %v928 = vtanh.pop %v820
      %v929 = vtanh.pop %v825
      %v930 = vtanh.pop %v828
      %v931 = vtanh.pop %v833
      %v932 = vtanh.pop %v836
      %v933 = vtanh.pop %v841
      %v934 = vtanh.pop %v844
      %v935 = vtanh.pop %v849
      %v936 = vtanh.pop %v852
      %v937 = vtanh.pop %v857
      %v938 = vtanh.pop %v860
      %v939 = vtanh.pop %v865
      %v940 = vtanh.pop %v868
      %v941 = vtanh.pop %v873
      %v942 = vtanh.pop %v876
      %vm943 = vcmask 23552
      %944 = vst.msk [vmem:[%s235] sm:$0xff] %vm943, %v879
      %945 = vst.msk [vmem:[%s235 + $0x8] sm:$0xff] %vm943, %v880
      %946 = vst.msk [vmem:[%s235 + $0x10] sm:$0xff] %vm943, %v881
      %947 = vst.msk [vmem:[%s235 + $0x18] sm:$0xff] %vm943, %v882
      %948 = vst.msk [vmem:[%s235 + $0x20] sm:$0xff] %vm943, %v883
      %949 = vst.msk [vmem:[%s235 + $0x28] sm:$0xff] %vm943, %v884
      %950 = vst.msk [vmem:[%s235 + $0x30] sm:$0xff] %vm943, %v885
      %951 = vst.msk [vmem:[%s235 + $0x38] sm:$0xff] %vm943, %v886
      %952 = vst.msk [vmem:[%s235 + $0x40] sm:$0xff] %vm943, %v887
      %953 = vst.msk [vmem:[%s235 + $0x48] sm:$0xff] %vm943, %v888
      %954 = vst.msk [vmem:[%s235 + $0x50] sm:$0xff] %vm943, %v889
      %955 = vst.msk [vmem:[%s235 + $0x58] sm:$0xff] %vm943, %v890
      %956 = vst.msk [vmem:[%s235 + $0x60] sm:$0xff] %vm943, %v891
      %957 = vst.msk [vmem:[%s235 + $0x68] sm:$0xff] %vm943, %v892
      %958 = vst.msk [vmem:[%s235 + $0x70] sm:$0xff] %vm943, %v893
      %959 = vst.msk [vmem:[%s235 + $0x78] sm:$0xff] %vm943, %v894
      %960 = vst.msk [vmem:[%s235 + $0x80] sm:$0xff] %vm943, %v895
      %961 = vst.msk [vmem:[%s235 + $0x88] sm:$0xff] %vm943, %v896
      %962 = vst.msk [vmem:[%s235 + $0x90] sm:$0xff] %vm943, %v897
      %963 = vst.msk [vmem:[%s235 + $0x98] sm:$0xff] %vm943, %v898
      %964 = vst.msk [vmem:[%s235 + $0xa0] sm:$0xff] %vm943, %v899
      %965 = vst.msk [vmem:[%s235 + $0xa8] sm:$0xff] %vm943, %v900
      %966 = vst.msk [vmem:[%s235 + $0xb0] sm:$0xff] %vm943, %v901
      %967 = vst.msk [vmem:[%s235 + $0xb8] sm:$0xff] %vm943, %v902
      %968 = vst.msk [vmem:[%s235 + $0xc0] sm:$0xff] %vm943, %v903
      %969 = vst.msk [vmem:[%s235 + $0xc8] sm:$0xff] %vm943, %v904
      %970 = vst.msk [vmem:[%s235 + $0xd0] sm:$0xff] %vm943, %v905
      %971 = vst.msk [vmem:[%s235 + $0xd8] sm:$0xff] %vm943, %v906
      %972 = vst.msk [vmem:[%s235 + $0xe0] sm:$0xff] %vm943, %v907
      %973 = vst.msk [vmem:[%s235 + $0xe8] sm:$0xff] %vm943, %v908
      %974 = vst.msk [vmem:[%s235 + $0xf0] sm:$0xff] %vm943, %v909
      %975 = vst.msk [vmem:[%s235 + $0xf8] sm:$0xff] %vm943, %v910
      %976 = vst.msk [vmem:[%s235 + $0x100] sm:$0xff] %vm943, %v911
      %977 = vst.msk [vmem:[%s235 + $0x108] sm:$0xff] %vm943, %v912
      %978 = vst.msk [vmem:[%s235 + $0x110] sm:$0xff] %vm943, %v913
      %979 = vst.msk [vmem:[%s235 + $0x118] sm:$0xff] %vm943, %v914
      %980 = vst.msk [vmem:[%s235 + $0x120] sm:$0xff] %vm943, %v915
      %981 = vst.msk [vmem:[%s235 + $0x128] sm:$0xff] %vm943, %v916
      %982 = vst.msk [vmem:[%s235 + $0x130] sm:$0xff] %vm943, %v917
      %983 = vst.msk [vmem:[%s235 + $0x138] sm:$0xff] %vm943, %v918
      %984 = vst.msk [vmem:[%s235 + $0x140] sm:$0xff] %vm943, %v919
      %985 = vst.msk [vmem:[%s235 + $0x148] sm:$0xff] %vm943, %v920
      %986 = vst.msk [vmem:[%s235 + $0x150] sm:$0xff] %vm943, %v921
      %987 = vst.msk [vmem:[%s235 + $0x158] sm:$0xff] %vm943, %v922
      %988 = vst.msk [vmem:[%s235 + $0x160] sm:$0xff] %vm943, %v923
      %989 = vst.msk [vmem:[%s235 + $0x168] sm:$0xff] %vm943, %v924
      %990 = vst.msk [vmem:[%s235 + $0x170] sm:$0xff] %vm943, %v925
      %991 = vst.msk [vmem:[%s235 + $0x178] sm:$0xff] %vm943, %v926
      %992 = vst.msk [vmem:[%s235 + $0x180] sm:$0xff] %vm943, %v927
      %993 = vst.msk [vmem:[%s235 + $0x188] sm:$0xff] %vm943, %v928
      %994 = vst.msk [vmem:[%s235 + $0x190] sm:$0xff] %vm943, %v929
      %995 = vst.msk [vmem:[%s235 + $0x198] sm:$0xff] %vm943, %v930
      %996 = vst.msk [vmem:[%s235 + $0x1a0] sm:$0xff] %vm943, %v931
      %997 = vst.msk [vmem:[%s235 + $0x1a8] sm:$0xff] %vm943, %v932
      %998 = vst.msk [vmem:[%s235 + $0x1b0] sm:$0xff] %vm943, %v933
      %999 = vst.msk [vmem:[%s235 + $0x1b8] sm:$0xff] %vm943, %v934
      %1000 = vst.msk [vmem:[%s235 + $0x1c0] sm:$0xff] %vm943, %v935
      %1001 = vst.msk [vmem:[%s235 + $0x1c8] sm:$0xff] %vm943, %v936
      %1002 = vst.msk [vmem:[%s235 + $0x1d0] sm:$0xff] %vm943, %v937
      %1003 = vst.msk [vmem:[%s235 + $0x1d8] sm:$0xff] %vm943, %v938
      %1004 = vst.msk [vmem:[%s235 + $0x1e0] sm:$0xff] %vm943, %v939
      %1005 = vst.msk [vmem:[%s235 + $0x1e8] sm:$0xff] %vm943, %v940
      %1006 = vst.msk [vmem:[%s235 + $0x1f0] sm:$0xff] %vm943, %v941
      %1007 = vst.msk [vmem:[%s235 + $0x1f8] sm:$0xff] %vm943, %v942
      %s1008 = smul.u32 64, %s21
      %p1009 = scmp.lt.s32.totalorder %s20, 3
      %s1010 = scalar_select %p1009, %s20, 3
      %p1011 = scmp.lt.s32.totalorder %s1008, 63
      %s1012 = scalar_select %p1011, %s1008, 63
      %s1013 = smul.addr %s1010, 64
      %s1014 = sadd.s32 %s1012, %s1013
      %s1015 = smul.addr %s1014, 8
      %s1016 = scalar_lea.vmem %s3, %s1015
      // Predicated region
      $region33: #{vae_forward.19} parent=31 // pred_check
        %p1017 = pneg %p128
      $region34: #{vae_forward.19} parent=31 // pred_check_branch
        %1019 = sbr.rel (%p1017) target = $region36
      $region35: #{vae_forward.19} parent=31 // pred_region
        %s1020 = smul.u32 64, %s21
      $region36: #{vae_forward.19} parent=31 // pred_fallthru
        _
    $region32: #{vae_forward.19} parent=5 // pred_fallthru
      _
    %p1021 = scmp.le.s32.totalorder 2, %s9
    // Predicated region
    $region37: #{vae_forward.19} parent=5 // pred_check
      %p1022 = pneg %p1021
    $region38: #{vae_forward.19} parent=5 // pred_check_branch
      %1024 = sbr.rel (%p1022) target = $region40
    $region39: #{vae_forward.19} parent=5 // pred_region
      %s1025 = ssub.s32 %s9, 2
      // Predicated region
      $region41: #{vae_forward.19} parent=39 // pred_check
        %p1026 = pneg %p134
      $region42: #{vae_forward.19} parent=39 // pred_check_branch
        %1028 = sbr.rel (%p1026) target = $region44
      $region43: #{vae_forward.19} parent=39 // pred_region
        %s1029 = smul.u32 64, %s24
        %p1030 = scmp.lt.s32.totalorder %s23, 3
        %s1031 = scalar_select %p1030, %s23, 3
        %p1032 = scmp.lt.s32.totalorder %s1029, 63
        %s1033 = scalar_select %p1032, %s1029, 63
        %s1034 = smul.addr %s1031, 64
        %s1035 = sadd.s32 %s1033, %s1034
        %s1036 = smul.addr %s1035, 8
        %s1037 = scalar_lea.vmem %s3, %s1036
      $region44: #{vae_forward.19} parent=39 // pred_fallthru
        _
    $region40: #{vae_forward.19} parent=5 // pred_fallthru
      _
  $region6: #{vae_forward.19} parent=0 // loop_footer
    %s13 = sadd.s32 1, %s9
  $region7: #{vae_forward.19} parent=0 // loop_footer_branch
    %8 = sbr.rel target = $region3
  $region8: #{vae_forward.19} parent=0 // loop_exit
    _

</llo_original>
